<compile_context>
chip_gen: v7x
topology: tpu7x:2x2x1
jax: 0.10.0
libtpu: 0.0.40
codegen_flags: <defaults>
</compile_context>

<pallas_src>
import jax
import jax.numpy as jnp
import numpy as np
from jax.experimental import pallas as pl
from jax.experimental.pallas import tpu as pltpu


# ----------------------------------------------------------------------------
# Glue: im2col for the 1-D convolution (padding = kernel_size // 2, stride 1)
# ----------------------------------------------------------------------------
def _im2col_1d(x, K):
    """x: (B, C_in, L) -> patches (B, L, C_in*K), zero padded by K//2."""
    B, C, L = x.shape
    pad = K // 2
    xp = jnp.pad(x, ((0, 0), (0, 0), (pad, pad)))
    cols = jnp.stack([xp[:, :, k:k + L] for k in range(K)], axis=-1)  # (B, C, L, K)
    return cols.transpose(0, 2, 1, 3).reshape(B, L, C * K)


# ----------------------------------------------------------------------------
# Pallas kernel: `block_b` sequences per grid step, everything fused in VMEM.
# ----------------------------------------------------------------------------
def _make_kernel(block_b, L, D, H, FF, LATp, eps=1e-5):
    dh = D // H
    M = block_b * L
    f32 = jnp.float32
    bf16 = jnp.bfloat16

    def kernel(patches_ref, wc_ref, bc_ref,
               wq_ref, wk_ref, wv_ref, bq_ref, bk_ref, bv_ref,
               wo_ref, bo_ref,
               ln1g_ref, ln1b_ref,
               w1_ref, b1_ref, w2_ref, b2_ref,
               ln2g_ref, ln2b_ref,
               wl_ref, bl_ref, out_ref):
        # ---- Conv1d (im2col matmul) + ReLU: per-token, all M rows at once ----
        feat = jnp.dot(patches_ref[...], wc_ref[...],
                       preferred_element_type=f32) + bc_ref[...]          # (M, D)
        feat = jnp.maximum(feat, 0.0)
        feat_bf = feat.astype(bf16)

        # ---- Multi-head self-attention, batched over block_b sequences ------
        # Head split lives in the pre-split weights; 1/sqrt(dh) folded into wq/bq.
        attn = jnp.zeros((M, D), f32)
        for h in range(H):
            qh = (jnp.dot(feat_bf, wq_ref[h], preferred_element_type=f32)
                  + bq_ref[h]).reshape(block_b, L, dh)
            kh = (jnp.dot(feat_bf, wk_ref[h], preferred_element_type=f32)
                  + bk_ref[h]).reshape(block_b, L, dh)
            vh = (jnp.dot(feat_bf, wv_ref[h], preferred_element_type=f32)
                  + bv_ref[h]).reshape(block_b, L, dh)
            s = jnp.einsum("bqd,bkd->bqk", qh.astype(bf16), kh.astype(bf16),
                           preferred_element_type=f32)                    # (Bblk, L, L)
            s = s - jnp.max(s, axis=-1, keepdims=True)
            p = jnp.exp(s)
            p = p * pl.reciprocal(jnp.sum(p, axis=-1, keepdims=True), approx=True)
            oh = jnp.einsum("bqk,bkd->bqd", p.astype(bf16), vh.astype(bf16),
                            preferred_element_type=f32)                   # (Bblk, L, dh)
            attn = attn + jnp.dot(oh.reshape(M, dh).astype(bf16), wo_ref[h],
                                  preferred_element_type=f32)
        attn = attn + bo_ref[...]
        # dropout is identity at inference

        # ---- Residual + LayerNorm 1 (f32) ------------------------------------
        x1 = feat + attn
        mu = jnp.mean(x1, axis=-1, keepdims=True)
        var = jnp.mean((x1 - mu) ** 2, axis=-1, keepdims=True)
        x1 = (x1 - mu) * jax.lax.rsqrt(var + eps) * ln1g_ref[...] + ln1b_ref[...]

        # ---- Feed-forward (bf16 matmuls, f32 accumulate) ----------------------
        h1 = jnp.dot(x1.astype(bf16), w1_ref[...],
                     preferred_element_type=f32) + b1_ref[...]            # (M, FF)
        h1 = jnp.maximum(h1, 0.0)
        ff = jnp.dot(h1.astype(bf16), w2_ref[...],
                     preferred_element_type=f32) + b2_ref[...]            # (M, D)

        # ---- Residual + LayerNorm 2 -------------------------------------------
        x2 = x1 + ff
        mu2 = jnp.mean(x2, axis=-1, keepdims=True)
        var2 = jnp.mean((x2 - mu2) ** 2, axis=-1, keepdims=True)
        x2 = (x2 - mu2) * jax.lax.rsqrt(var2 + eps) * ln2g_ref[...] + ln2b_ref[...]

        # ---- AdaptiveAvgPool1d(1) over time per sequence + final Linear -------
        pooled = jnp.mean(x2.reshape(block_b, L, D), axis=1)              # (Bblk, D)
        out_ref[...] = jnp.dot(pooled, wl_ref[...],
                               preferred_element_type=f32) + bl_ref[...]  # (Bblk, LATp)

    return kernel


def _rep_spec(w):
    """Full-array, grid-invariant BlockSpec for a (constant) weight."""
    if w.ndim == 2:
        return pl.BlockSpec(w.shape, lambda b: (0, 0))
    return pl.BlockSpec(w.shape, lambda b: (0, 0, 0))


# ----------------------------------------------------------------------------
# Wrapper
# ----------------------------------------------------------------------------
def temporal_feature_module(x, params, *, H, K, block_b=None):
    """x: (B, C_in, L) float32 -> (B, latent_dim) float32."""
    B, C_in, L = x.shape
    D = params["wc"].shape[1]
    FF = params["w1"].shape[1]
    LATENT = params["wl"].shape[1]
    assert D % H == 0
    dh = D // H

    # Block the batch so M = block_b*L >= 128 (pass block_b=16 on v6e/v7x for M>=256
    # when B is large enough to avoid excessive padding).
    if block_b is None:
        block_b = max(1, -(-128 // L))
    n_blocks = -(-B // block_b)
    B_pad = n_blocks * block_b

    CK = C_in * K
    CKp = max(8, -(-CK // 8) * 8)               # pad contraction to a sublane multiple
    LATp = max(128, -(-LATENT // 128) * 128)    # lane-dense output last dim

    # im2col in the wrapper (cheap at small L).
    # TODO(synk): for large L, fuse im2col into the kernel (K shifted adds / pltpu.roll)
    # to avoid K-times-duplicated activation HBM traffic.
    patches = _im2col_1d(x, K).astype(jnp.float32)                        # (B, L, CK)
    patches = jnp.pad(patches, ((0, B_pad - B), (0, 0), (0, CKp - CK)))
    patches2d = patches.reshape(B_pad * L, CKp)                           # (B_pad*L, CKp)

    # ---- weight preparation: pad / split heads / fold scale / cast to bf16 ----
    scale = 1.0 / float(np.sqrt(dh))
    wqkv, bqkv = params["wqkv"], params["bqkv"]                           # (D,3D), (1,3D)

    def split_w(w):                                                       # (D,D)->(H,D,dh)
        return w.reshape(D, H, dh).transpose(1, 0, 2)

    def split_b(b):                                                       # (D,)->(H,1,dh)
        return b.reshape(H, 1, dh)

    wc = jnp.pad(params["wc"], ((0, CKp - CK), (0, 0)))                   # f32
    wq = (split_w(wqkv[:, 0:D]) * scale).astype(jnp.bfloat16)
    wk = split_w(wqkv[:, D:2 * D]).astype(jnp.bfloat16)
    wv = split_w(wqkv[:, 2 * D:3 * D]).astype(jnp.bfloat16)
    bq = (split_b(bqkv[0, 0:D]) * scale).astype(jnp.float32)
    bk = split_b(bqkv[0, D:2 * D]).astype(jnp.float32)
    bv = split_b(bqkv[0, 2 * D:3 * D]).astype(jnp.float32)
    wo = params["wo"].reshape(H, dh, D).astype(jnp.bfloat16)              # concat-major rows
    w1 = params["w1"].astype(jnp.bfloat16)
    w2 = params["w2"].astype(jnp.bfloat16)
    wl = jnp.pad(params["wl"], ((0, 0), (0, LATp - LATENT)))
    bl = jnp.pad(params["bl"], ((0, 0), (0, LATp - LATENT)))

    weight_args = [wc, params["bc"], wq, wk, wv, bq, bk, bv, wo, params["bo"],
                   params["ln1g"], params["ln1b"],
                   w1, params["b1"], w2, params["b2"],
                   params["ln2g"], params["ln2b"], wl, bl]
    weight_specs = [_rep_spec(w) for w in weight_args]

    # Advisory cost estimate for the XLA scheduler.
    flops = (2 * B_pad * L * (CKp * D + 3 * D * D + 2 * L * D + D * D + 2 * D * FF)
             + 2 * B_pad * D * LATp)
    transcendentals = B_pad * H * L * L
    bytes_accessed = (patches2d.size * 4
                      + sum(int(w.size) * int(w.dtype.itemsize) for w in weight_args)
                      + B_pad * LATp * 4)

    kernel = _make_kernel(block_b, L, D, H, FF, LATp)
    out = pl.pallas_call(
        kernel,
        out_shape=jax.ShapeDtypeStruct((B_pad, LATp), jnp.float32),
        grid_spec=pltpu.PrefetchScalarGridSpec(
            num_scalar_prefetch=0,
            grid=(n_blocks,),
            in_specs=[pl.BlockSpec((block_b * L, CKp), lambda b: (b, 0))] + weight_specs,
            out_specs=pl.BlockSpec((block_b, LATp), lambda b: (b, 0)),
        ),
        compiler_params=pltpu.CompilerParams(dimension_semantics=("parallel",)),
        cost_estimate=pl.CostEstimate(flops=flops, transcendentals=transcendentals,
                                      bytes_accessed=bytes_accessed),
    )(patches2d, *weight_args)
    return out[:B, :LATENT]


# ----------------------------------------------------------------------------
# Deterministic synthetic parameters (shapes follow the nn.Module __init__).
# Weights are stored pre-transposed so math is plain `x @ W` matmuls.
# ----------------------------------------------------------------------------
def init_params(key, C_in, D, K, FF, LATENT):
    ks = jax.random.split(key, 12)

    def rnd(k, shape, s):
        return jax.random.normal(k, shape, jnp.float32) * s

    return dict(
        wc=rnd(ks[0], (C_in * K, D), 0.05),      # Conv1d weight (D, C_in, K) -> (C_in*K, D)
        bc=rnd(ks[1], (1, D), 0.01),
        wqkv=rnd(ks[2], (D, 3 * D), 0.05),       # MHA in_proj_weight (3D, D) -> (D, 3D)
        bqkv=rnd(ks[3], (1, 3 * D), 0.01),
        wo=rnd(ks[4], (D, D), 0.05),             # MHA out_proj
        bo=rnd(ks[5], (1, D), 0.01),
        ln1g=jnp.ones((1, D), jnp.float32),
        ln1b=jnp.zeros((1, D), jnp.float32),
        w1=rnd(ks[6], (D, FF), 0.05),            # FFN linear1
        b1=rnd(ks[7], (1, FF), 0.01),
        w2=rnd(ks[8], (FF, D), 0.02),            # FFN linear2
        b2=rnd(ks[9], (1, D), 0.01),
        ln2g=jnp.ones((1, D), jnp.float32),
        ln2b=jnp.zeros((1, D), jnp.float32),
        wl=rnd(ks[10], (D, LATENT), 0.05),       # final Linear(D, latent_dim)
        bl=rnd(ks[11], (1, LATENT), 0.01),
    )


# ----------------------------------------------------------------------------
# Pure-JAX f32 reference (same math, no Pallas) for a correctness check.
# ----------------------------------------------------------------------------
def reference_forward(x, p, *, H, K, eps=1e-5):
    B, C_in, L = x.shape
    D = p["wc"].shape[1]
    dh = D // H
    patches = _im2col_1d(x, K)
    feat = jnp.maximum(jnp.einsum("blc,cd->bld", patches, p["wc"]) + p["bc"], 0.0)
    qkv = jnp.einsum("bld,de->ble", feat, p["wqkv"]) + p["bqkv"]
    q, k, v = qkv[..., :D], qkv[..., D:2 * D], qkv[..., 2 * D:]
    qh = q.reshape(B, L, H, dh).transpose(0, 2, 1, 3)
    kh = k.reshape(B, L, H, dh).transpose(0, 2, 1, 3)
    vh = v.reshape(B, L, H, dh).transpose(0, 2, 1, 3)
    s = jnp.einsum("bhqd,bhkd->bhqk", qh, kh) / np.sqrt(dh)
    a = jax.nn.softmax(s, axis=-1)
    ao = jnp.einsum("bhqk,bhkd->bhqd", a, vh).transpose(0, 2, 1, 3).reshape(B, L, D)
    attn = jnp.einsum("bld,de->ble", ao, p["wo"]) + p["bo"]

    def ln(y, g, b):
        mu = jnp.mean(y, -1, keepdims=True)
        var = jnp.mean((y - mu) ** 2, -1, keepdims=True)
        return (y - mu) / jnp.sqrt(var + eps) * g + b

    x1 = ln(feat + attn, p["ln1g"], p["ln1b"])
    h1 = jnp.maximum(jnp.einsum("bld,df->blf", x1, p["w1"]) + p["b1"], 0.0)
    ff = jnp.einsum("blf,fd->bld", h1, p["w2"]) + p["b2"]
    x2 = ln(x1 + ff, p["ln2g"], p["ln2b"])
    pooled = jnp.mean(x2, axis=1)
    return pooled @ p["wl"] + p["bl"]


if __name__ == "__main__":
    # Small shapes consistent with the module defaults:
    # in_channels=1, cnn_out_channels=64, kernel_size=5, attn_heads=4,
    # dim_feedforward=2048 (PyTorch default), latent_dim=100, seq_len=16, batch=2.
    B, C_in, L = 2, 1, 16
    D, K, H, FF, LATENT = 64, 5, 4, 2048, 100

    key = jax.random.PRNGKey(0)
    kx, kp = jax.random.split(key)
    x = jax.random.normal(kx, (B, C_in, L), jnp.float32)
    params = init_params(kp, C_in, D, K, FF, LATENT)

    out = temporal_feature_module(x, params, H=H, K=K)
    out = jax.block_until_ready(out)

    ref = reference_forward(x, params, H=H, K=K)
    np.testing.assert_allclose(np.asarray(out), np.asarray(ref), atol=2e-2, rtol=2e-2)
    assert out.shape == (B, LATENT)
    print("KERNEL_OK")
</pallas_src>

<mosaic_0001>
module attributes {stable_mosaic.version = 11 : i64} {
  func.func @kernel(%arg0: i32, %arg1: memref<128x8xf32, #tpu.memory_space<vmem>>, %arg2: memref<8x64xf32, #tpu.memory_space<vmem>>, %arg3: memref<1x64xf32, #tpu.memory_space<vmem>>, %arg4: memref<4x64x16xbf16, #tpu.memory_space<vmem>>, %arg5: memref<4x64x16xbf16, #tpu.memory_space<vmem>>, %arg6: memref<4x64x16xbf16, #tpu.memory_space<vmem>>, %arg7: memref<4x1x16xf32, #tpu.memory_space<vmem>>, %arg8: memref<4x1x16xf32, #tpu.memory_space<vmem>>, %arg9: memref<4x1x16xf32, #tpu.memory_space<vmem>>, %arg10: memref<4x16x64xbf16, #tpu.memory_space<vmem>>, %arg11: memref<1x64xf32, #tpu.memory_space<vmem>>, %arg12: memref<1x64xf32, #tpu.memory_space<vmem>>, %arg13: memref<1x64xf32, #tpu.memory_space<vmem>>, %arg14: memref<64x2048xbf16, #tpu.memory_space<vmem>>, %arg15: memref<1x2048xf32, #tpu.memory_space<vmem>>, %arg16: memref<2048x64xbf16, #tpu.memory_space<vmem>>, %arg17: memref<1x64xf32, #tpu.memory_space<vmem>>, %arg18: memref<1x64xf32, #tpu.memory_space<vmem>>, %arg19: memref<1x64xf32, #tpu.memory_space<vmem>>, %arg20: memref<64x128xf32, #tpu.memory_space<vmem>>, %arg21: memref<1x128xf32, #tpu.memory_space<vmem>>, %arg22: memref<8x128xf32, #tpu.memory_space<vmem>>) attributes {dimension_semantics = [#tpu.dimension_semantics<parallel>], iteration_bounds = array<i64: 1>, scalar_prefetch = 0 : i64, scratch_operands = 0 : i64, tpu.core_type = #tpu.core_type<tc>, window_params = [{transform_indices = @transform_0, window_bounds = array<i64: 128, 8>}, {pipeline_mode = #tpu.pipeline_mode<synchronous>, transform_indices = @transform_1, window_bounds = array<i64: 8, 64>}, {pipeline_mode = #tpu.pipeline_mode<synchronous>, transform_indices = @transform_2, window_bounds = array<i64: 1, 64>}, {pipeline_mode = #tpu.pipeline_mode<synchronous>, transform_indices = @transform_3, window_bounds = array<i64: 4, 64, 16>}, {pipeline_mode = #tpu.pipeline_mode<synchronous>, transform_indices = @transform_4, window_bounds = array<i64: 4, 64, 16>}, {pipeline_mode = #tpu.pipeline_mode<synchronous>, transform_indices = @transform_5, window_bounds = array<i64: 4, 64, 16>}, {pipeline_mode = #tpu.pipeline_mode<synchronous>, transform_indices = @transform_6, window_bounds = array<i64: 4, 1, 16>}, {pipeline_mode = #tpu.pipeline_mode<synchronous>, transform_indices = @transform_7, window_bounds = array<i64: 4, 1, 16>}, {pipeline_mode = #tpu.pipeline_mode<synchronous>, transform_indices = @transform_8, window_bounds = array<i64: 4, 1, 16>}, {pipeline_mode = #tpu.pipeline_mode<synchronous>, transform_indices = @transform_9, window_bounds = array<i64: 4, 16, 64>}, {pipeline_mode = #tpu.pipeline_mode<synchronous>, transform_indices = @transform_10, window_bounds = array<i64: 1, 64>}, {pipeline_mode = #tpu.pipeline_mode<synchronous>, transform_indices = @transform_11, window_bounds = array<i64: 1, 64>}, {pipeline_mode = #tpu.pipeline_mode<synchronous>, transform_indices = @transform_12, window_bounds = array<i64: 1, 64>}, {pipeline_mode = #tpu.pipeline_mode<synchronous>, transform_indices = @transform_13, window_bounds = array<i64: 64, 2048>}, {pipeline_mode = #tpu.pipeline_mode<synchronous>, transform_indices = @transform_14, window_bounds = array<i64: 1, 2048>}, {pipeline_mode = #tpu.pipeline_mode<synchronous>, transform_indices = @transform_15, window_bounds = array<i64: 2048, 64>}, {pipeline_mode = #tpu.pipeline_mode<synchronous>, transform_indices = @transform_16, window_bounds = array<i64: 1, 64>}, {pipeline_mode = #tpu.pipeline_mode<synchronous>, transform_indices = @transform_17, window_bounds = array<i64: 1, 64>}, {pipeline_mode = #tpu.pipeline_mode<synchronous>, transform_indices = @transform_18, window_bounds = array<i64: 1, 64>}, {pipeline_mode = #tpu.pipeline_mode<synchronous>, transform_indices = @transform_19, window_bounds = array<i64: 64, 128>}, {pipeline_mode = #tpu.pipeline_mode<synchronous>, transform_indices = @transform_20, window_bounds = array<i64: 1, 128>}, {transform_indices = @transform_21, window_bounds = array<i64: 8, 128>}]} {
    %c0 = arith.constant 0 : index
    %c0_0 = arith.constant 0 : index
    %0 = vector.load %arg1[%c0, %c0_0] : memref<128x8xf32, #tpu.memory_space<vmem>>, vector<128x8xf32>
    %c0_1 = arith.constant 0 : index
    %c0_2 = arith.constant 0 : index
    %1 = vector.load %arg2[%c0_1, %c0_2] : memref<8x64xf32, #tpu.memory_space<vmem>>, vector<8x64xf32>
    %cst = arith.constant dense<0.000000e+00> : vector<128x64xf32>
    %2 = tpu.matmul %0, %1, %cst {dimension_numbers = #tpu.dot_dimension_numbers<[1], [0], [0], [1], [0, 0, 1, 1], [], []>} : vector<128x8xf32>, vector<8x64xf32>, vector<128x64xf32> -> vector<128x64xf32>
    %c0_3 = arith.constant 0 : index
    %c0_4 = arith.constant 0 : index
    %3 = vector.load %arg3[%c0_3, %c0_4] : memref<1x64xf32, #tpu.memory_space<vmem>>, vector<1x64xf32>
    %4 = vector.broadcast %3 : vector<1x64xf32> to vector<128x64xf32>
    %5 = arith.addf %2, %4 : vector<128x64xf32>
    %cst_5 = arith.constant 0.000000e+00 : f32
    %6 = vector.broadcast %cst_5 : f32 to vector<128x64xf32>
    %7 = arith.maximumf %5, %6 : vector<128x64xf32>
    %8 = arith.truncf %7 : vector<128x64xf32> to vector<128x64xbf16>
    %cst_6 = arith.constant 0.000000e+00 : f32
    %9 = vector.broadcast %cst_6 : f32 to vector<128x64xf32>
    %c0_7 = arith.constant 0 : index
    %c0_8 = arith.constant 0 : index
    %c0_9 = arith.constant 0 : index
    %10 = vector.load %arg4[%c0_7, %c0_8, %c0_9] : memref<4x64x16xbf16, #tpu.memory_space<vmem>>, vector<1x64x16xbf16>
    %11 = vector.shape_cast %10 : vector<1x64x16xbf16> to vector<64x16xbf16>
    %cst_10 = arith.constant dense<0.000000e+00> : vector<128x16xf32>
    %12 = tpu.matmul %8, %11, %cst_10 {dimension_numbers = #tpu.dot_dimension_numbers<[1], [0], [0], [1], [0, 0, 1, 1], [], []>} : vector<128x64xbf16>, vector<64x16xbf16>, vector<128x16xf32> -> vector<128x16xf32>
    %c0_11 = arith.constant 0 : index
    %c0_12 = arith.constant 0 : index
    %c0_13 = arith.constant 0 : index
    %13 = vector.load %arg7[%c0_11, %c0_12, %c0_13] : memref<4x1x16xf32, #tpu.memory_space<vmem>>, vector<1x1x16xf32>
    %14 = vector.shape_cast %13 : vector<1x1x16xf32> to vector<1x16xf32>
    %15 = vector.broadcast %14 : vector<1x16xf32> to vector<128x16xf32>
    %16 = arith.addf %12, %15 : vector<128x16xf32>
    %17 = vector.shape_cast %16 : vector<128x16xf32> to vector<8x16x16xf32>
    %c0_14 = arith.constant 0 : index
    %c0_15 = arith.constant 0 : index
    %c0_16 = arith.constant 0 : index
    %18 = vector.load %arg5[%c0_14, %c0_15, %c0_16] : memref<4x64x16xbf16, #tpu.memory_space<vmem>>, vector<1x64x16xbf16>
    %19 = vector.shape_cast %18 : vector<1x64x16xbf16> to vector<64x16xbf16>
    %cst_17 = arith.constant dense<0.000000e+00> : vector<128x16xf32>
    %20 = tpu.matmul %8, %19, %cst_17 {dimension_numbers = #tpu.dot_dimension_numbers<[1], [0], [0], [1], [0, 0, 1, 1], [], []>} : vector<128x64xbf16>, vector<64x16xbf16>, vector<128x16xf32> -> vector<128x16xf32>
    %c0_18 = arith.constant 0 : index
    %c0_19 = arith.constant 0 : index
    %c0_20 = arith.constant 0 : index
    %21 = vector.load %arg8[%c0_18, %c0_19, %c0_20] : memref<4x1x16xf32, #tpu.memory_space<vmem>>, vector<1x1x16xf32>
    %22 = vector.shape_cast %21 : vector<1x1x16xf32> to vector<1x16xf32>
    %23 = vector.broadcast %22 : vector<1x16xf32> to vector<128x16xf32>
    %24 = arith.addf %20, %23 : vector<128x16xf32>
    %25 = vector.shape_cast %24 : vector<128x16xf32> to vector<8x16x16xf32>
    %c0_21 = arith.constant 0 : index
    %c0_22 = arith.constant 0 : index
    %c0_23 = arith.constant 0 : index
    %26 = vector.load %arg6[%c0_21, %c0_22, %c0_23] : memref<4x64x16xbf16, #tpu.memory_space<vmem>>, vector<1x64x16xbf16>
    %27 = vector.shape_cast %26 : vector<1x64x16xbf16> to vector<64x16xbf16>
    %cst_24 = arith.constant dense<0.000000e+00> : vector<128x16xf32>
    %28 = tpu.matmul %8, %27, %cst_24 {dimension_numbers = #tpu.dot_dimension_numbers<[1], [0], [0], [1], [0, 0, 1, 1], [], []>} : vector<128x64xbf16>, vector<64x16xbf16>, vector<128x16xf32> -> vector<128x16xf32>
    %c0_25 = arith.constant 0 : index
    %c0_26 = arith.constant 0 : index
    %c0_27 = arith.constant 0 : index
    %29 = vector.load %arg9[%c0_25, %c0_26, %c0_27] : memref<4x1x16xf32, #tpu.memory_space<vmem>>, vector<1x1x16xf32>
    %30 = vector.shape_cast %29 : vector<1x1x16xf32> to vector<1x16xf32>
    %31 = vector.broadcast %30 : vector<1x16xf32> to vector<128x16xf32>
    %32 = arith.addf %28, %31 : vector<128x16xf32>
    %33 = vector.shape_cast %32 : vector<128x16xf32> to vector<8x16x16xf32>
    %34 = arith.truncf %17 : vector<8x16x16xf32> to vector<8x16x16xbf16>
    %35 = arith.truncf %25 : vector<8x16x16xf32> to vector<8x16x16xbf16>
    "tpu.trace_start"() <{level = 10 : i32, message = "bqd,bkd->bqk"}> : () -> ()
    %cst_28 = arith.constant dense<0.000000e+00> : vector<8x16x16xf32>
    %36 = tpu.matmul %34, %35, %cst_28 {dimension_numbers = #tpu.dot_dimension_numbers<[2], [2], [1], [1], [0, 0, 0, 1, 1, 1], [0], [0]>} : vector<8x16x16xbf16>, vector<8x16x16xbf16>, vector<8x16x16xf32> -> vector<8x16x16xf32>
    "tpu.trace_stop"() : () -> ()
    %cst_29 = arith.constant dense<0xFF800000> : vector<8x16xf32>
    %37 = vector.multi_reduction <maximumf>, %36, %cst_29 [2] : vector<8x16x16xf32> to vector<8x16xf32>
    %38 = vector.shape_cast %37 : vector<8x16xf32> to vector<8x16x1xf32>
    %39 = vector.broadcast %38 : vector<8x16x1xf32> to vector<8x16x16xf32>
    %40 = arith.subf %36, %39 : vector<8x16x16xf32>
    %41 = math.exp %40 : vector<8x16x16xf32>
    %cst_30 = arith.constant dense<0.000000e+00> : vector<8x16xf32>
    %42 = vector.multi_reduction <add>, %41, %cst_30 [2] : vector<8x16x16xf32> to vector<8x16xf32>
    %43 = vector.shape_cast %42 : vector<8x16xf32> to vector<8x16x1xf32>
    %44 = tpu.reciprocal %43 {approx = true} : vector<8x16x1xf32> -> vector<8x16x1xf32>
    %45 = vector.broadcast %44 : vector<8x16x1xf32> to vector<8x16x16xf32>
    %46 = arith.mulf %41, %45 : vector<8x16x16xf32>
    %47 = arith.truncf %46 : vector<8x16x16xf32> to vector<8x16x16xbf16>
    %48 = arith.truncf %33 : vector<8x16x16xf32> to vector<8x16x16xbf16>
    "tpu.trace_start"() <{level = 10 : i32, message = "bqk,bkd->bqd"}> : () -> ()
    %cst_31 = arith.constant dense<0.000000e+00> : vector<8x16x16xf32>
    %49 = tpu.matmul %47, %48, %cst_31 {dimension_numbers = #tpu.dot_dimension_numbers<[2], [1], [1], [2], [0, 0, 0, 1, 1, 2], [0], [0]>} : vector<8x16x16xbf16>, vector<8x16x16xbf16>, vector<8x16x16xf32> -> vector<8x16x16xf32>
    "tpu.trace_stop"() : () -> ()
    %50 = vector.shape_cast %49 : vector<8x16x16xf32> to vector<128x16xf32>
    %51 = arith.truncf %50 : vector<128x16xf32> to vector<128x16xbf16>
    %c0_32 = arith.constant 0 : index
    %c0_33 = arith.constant 0 : index
    %c0_34 = arith.constant 0 : index
    %52 = vector.load %arg10[%c0_32, %c0_33, %c0_34] : memref<4x16x64xbf16, #tpu.memory_space<vmem>>, vector<1x16x64xbf16>
    %53 = vector.shape_cast %52 : vector<1x16x64xbf16> to vector<16x64xbf16>
    %cst_35 = arith.constant dense<0.000000e+00> : vector<128x64xf32>
    %54 = tpu.matmul %51, %53, %cst_35 {dimension_numbers = #tpu.dot_dimension_numbers<[1], [0], [0], [1], [0, 0, 1, 1], [], []>} : vector<128x16xbf16>, vector<16x64xbf16>, vector<128x64xf32> -> vector<128x64xf32>
    %55 = arith.addf %9, %54 : vector<128x64xf32>
    %c1 = arith.constant 1 : index
    %c0_36 = arith.constant 0 : index
    %c0_37 = arith.constant 0 : index
    %56 = vector.load %arg4[%c1, %c0_36, %c0_37] : memref<4x64x16xbf16, #tpu.memory_space<vmem>>, vector<1x64x16xbf16>
    %57 = vector.shape_cast %56 : vector<1x64x16xbf16> to vector<64x16xbf16>
    %cst_38 = arith.constant dense<0.000000e+00> : vector<128x16xf32>
    %58 = tpu.matmul %8, %57, %cst_38 {dimension_numbers = #tpu.dot_dimension_numbers<[1], [0], [0], [1], [0, 0, 1, 1], [], []>} : vector<128x64xbf16>, vector<64x16xbf16>, vector<128x16xf32> -> vector<128x16xf32>
    %c1_39 = arith.constant 1 : index
    %c0_40 = arith.constant 0 : index
    %c0_41 = arith.constant 0 : index
    %59 = vector.load %arg7[%c1_39, %c0_40, %c0_41] : memref<4x1x16xf32, #tpu.memory_space<vmem>>, vector<1x1x16xf32>
    %60 = vector.shape_cast %59 : vector<1x1x16xf32> to vector<1x16xf32>
    %61 = vector.broadcast %60 : vector<1x16xf32> to vector<128x16xf32>
    %62 = arith.addf %58, %61 : vector<128x16xf32>
    %63 = vector.shape_cast %62 : vector<128x16xf32> to vector<8x16x16xf32>
    %c1_42 = arith.constant 1 : index
    %c0_43 = arith.constant 0 : index
    %c0_44 = arith.constant 0 : index
    %64 = vector.load %arg5[%c1_42, %c0_43, %c0_44] : memref<4x64x16xbf16, #tpu.memory_space<vmem>>, vector<1x64x16xbf16>
    %65 = vector.shape_cast %64 : vector<1x64x16xbf16> to vector<64x16xbf16>
    %cst_45 = arith.constant dense<0.000000e+00> : vector<128x16xf32>
    %66 = tpu.matmul %8, %65, %cst_45 {dimension_numbers = #tpu.dot_dimension_numbers<[1], [0], [0], [1], [0, 0, 1, 1], [], []>} : vector<128x64xbf16>, vector<64x16xbf16>, vector<128x16xf32> -> vector<128x16xf32>
    %c1_46 = arith.constant 1 : index
    %c0_47 = arith.constant 0 : index
    %c0_48 = arith.constant 0 : index
    %67 = vector.load %arg8[%c1_46, %c0_47, %c0_48] : memref<4x1x16xf32, #tpu.memory_space<vmem>>, vector<1x1x16xf32>
    %68 = vector.shape_cast %67 : vector<1x1x16xf32> to vector<1x16xf32>
    %69 = vector.broadcast %68 : vector<1x16xf32> to vector<128x16xf32>
    %70 = arith.addf %66, %69 : vector<128x16xf32>
    %71 = vector.shape_cast %70 : vector<128x16xf32> to vector<8x16x16xf32>
    %c1_49 = arith.constant 1 : index
    %c0_50 = arith.constant 0 : index
    %c0_51 = arith.constant 0 : index
    %72 = vector.load %arg6[%c1_49, %c0_50, %c0_51] : memref<4x64x16xbf16, #tpu.memory_space<vmem>>, vector<1x64x16xbf16>
    %73 = vector.shape_cast %72 : vector<1x64x16xbf16> to vector<64x16xbf16>
    %cst_52 = arith.constant dense<0.000000e+00> : vector<128x16xf32>
    %74 = tpu.matmul %8, %73, %cst_52 {dimension_numbers = #tpu.dot_dimension_numbers<[1], [0], [0], [1], [0, 0, 1, 1], [], []>} : vector<128x64xbf16>, vector<64x16xbf16>, vector<128x16xf32> -> vector<128x16xf32>
    %c1_53 = arith.constant 1 : index
    %c0_54 = arith.constant 0 : index
    %c0_55 = arith.constant 0 : index
    %75 = vector.load %arg9[%c1_53, %c0_54, %c0_55] : memref<4x1x16xf32, #tpu.memory_space<vmem>>, vector<1x1x16xf32>
    %76 = vector.shape_cast %75 : vector<1x1x16xf32> to vector<1x16xf32>
    %77 = vector.broadcast %76 : vector<1x16xf32> to vector<128x16xf32>
    %78 = arith.addf %74, %77 : vector<128x16xf32>
    %79 = vector.shape_cast %78 : vector<128x16xf32> to vector<8x16x16xf32>
    %80 = arith.truncf %63 : vector<8x16x16xf32> to vector<8x16x16xbf16>
    %81 = arith.truncf %71 : vector<8x16x16xf32> to vector<8x16x16xbf16>
    "tpu.trace_start"() <{level = 10 : i32, message = "bqd,bkd->bqk"}> : () -> ()
    %cst_56 = arith.constant dense<0.000000e+00> : vector<8x16x16xf32>
    %82 = tpu.matmul %80, %81, %cst_56 {dimension_numbers = #tpu.dot_dimension_numbers<[2], [2], [1], [1], [0, 0, 0, 1, 1, 1], [0], [0]>} : vector<8x16x16xbf16>, vector<8x16x16xbf16>, vector<8x16x16xf32> -> vector<8x16x16xf32>
    "tpu.trace_stop"() : () -> ()
    %cst_57 = arith.constant dense<0xFF800000> : vector<8x16xf32>
    %83 = vector.multi_reduction <maximumf>, %82, %cst_57 [2] : vector<8x16x16xf32> to vector<8x16xf32>
    %84 = vector.shape_cast %83 : vector<8x16xf32> to vector<8x16x1xf32>
    %85 = vector.broadcast %84 : vector<8x16x1xf32> to vector<8x16x16xf32>
    %86 = arith.subf %82, %85 : vector<8x16x16xf32>
    %87 = math.exp %86 : vector<8x16x16xf32>
    %cst_58 = arith.constant dense<0.000000e+00> : vector<8x16xf32>
    %88 = vector.multi_reduction <add>, %87, %cst_58 [2] : vector<8x16x16xf32> to vector<8x16xf32>
    %89 = vector.shape_cast %88 : vector<8x16xf32> to vector<8x16x1xf32>
    %90 = tpu.reciprocal %89 {approx = true} : vector<8x16x1xf32> -> vector<8x16x1xf32>
    %91 = vector.broadcast %90 : vector<8x16x1xf32> to vector<8x16x16xf32>
    %92 = arith.mulf %87, %91 : vector<8x16x16xf32>
    %93 = arith.truncf %92 : vector<8x16x16xf32> to vector<8x16x16xbf16>
    %94 = arith.truncf %79 : vector<8x16x16xf32> to vector<8x16x16xbf16>
    "tpu.trace_start"() <{level = 10 : i32, message = "bqk,bkd->bqd"}> : () -> ()
    %cst_59 = arith.constant dense<0.000000e+00> : vector<8x16x16xf32>
    %95 = tpu.matmul %93, %94, %cst_59 {dimension_numbers = #tpu.dot_dimension_numbers<[2], [1], [1], [2], [0, 0, 0, 1, 1, 2], [0], [0]>} : vector<8x16x16xbf16>, vector<8x16x16xbf16>, vector<8x16x16xf32> -> vector<8x16x16xf32>
    "tpu.trace_stop"() : () -> ()
    %96 = vector.shape_cast %95 : vector<8x16x16xf32> to vector<128x16xf32>
    %97 = arith.truncf %96 : vector<128x16xf32> to vector<128x16xbf16>
    %c1_60 = arith.constant 1 : index
    %c0_61 = arith.constant 0 : index
    %c0_62 = arith.constant 0 : index
    %98 = vector.load %arg10[%c1_60, %c0_61, %c0_62] : memref<4x16x64xbf16, #tpu.memory_space<vmem>>, vector<1x16x64xbf16>
    %99 = vector.shape_cast %98 : vector<1x16x64xbf16> to vector<16x64xbf16>
    %cst_63 = arith.constant dense<0.000000e+00> : vector<128x64xf32>
    %100 = tpu.matmul %97, %99, %cst_63 {dimension_numbers = #tpu.dot_dimension_numbers<[1], [0], [0], [1], [0, 0, 1, 1], [], []>} : vector<128x16xbf16>, vector<16x64xbf16>, vector<128x64xf32> -> vector<128x64xf32>
    %101 = arith.addf %55, %100 : vector<128x64xf32>
    %c2 = arith.constant 2 : index
    %c0_64 = arith.constant 0 : index
    %c0_65 = arith.constant 0 : index
    %102 = vector.load %arg4[%c2, %c0_64, %c0_65] : memref<4x64x16xbf16, #tpu.memory_space<vmem>>, vector<1x64x16xbf16>
    %103 = vector.shape_cast %102 : vector<1x64x16xbf16> to vector<64x16xbf16>
    %cst_66 = arith.constant dense<0.000000e+00> : vector<128x16xf32>
    %104 = tpu.matmul %8, %103, %cst_66 {dimension_numbers = #tpu.dot_dimension_numbers<[1], [0], [0], [1], [0, 0, 1, 1], [], []>} : vector<128x64xbf16>, vector<64x16xbf16>, vector<128x16xf32> -> vector<128x16xf32>
    %c2_67 = arith.constant 2 : index
    %c0_68 = arith.constant 0 : index
    %c0_69 = arith.constant 0 : index
    %105 = vector.load %arg7[%c2_67, %c0_68, %c0_69] : memref<4x1x16xf32, #tpu.memory_space<vmem>>, vector<1x1x16xf32>
    %106 = vector.shape_cast %105 : vector<1x1x16xf32> to vector<1x16xf32>
    %107 = vector.broadcast %106 : vector<1x16xf32> to vector<128x16xf32>
    %108 = arith.addf %104, %107 : vector<128x16xf32>
    %109 = vector.shape_cast %108 : vector<128x16xf32> to vector<8x16x16xf32>
    %c2_70 = arith.constant 2 : index
    %c0_71 = arith.constant 0 : index
    %c0_72 = arith.constant 0 : index
    %110 = vector.load %arg5[%c2_70, %c0_71, %c0_72] : memref<4x64x16xbf16, #tpu.memory_space<vmem>>, vector<1x64x16xbf16>
    %111 = vector.shape_cast %110 : vector<1x64x16xbf16> to vector<64x16xbf16>
    %cst_73 = arith.constant dense<0.000000e+00> : vector<128x16xf32>
    %112 = tpu.matmul %8, %111, %cst_73 {dimension_numbers = #tpu.dot_dimension_numbers<[1], [0], [0], [1], [0, 0, 1, 1], [], []>} : vector<128x64xbf16>, vector<64x16xbf16>, vector<128x16xf32> -> vector<128x16xf32>
    %c2_74 = arith.constant 2 : index
    %c0_75 = arith.constant 0 : index
    %c0_76 = arith.constant 0 : index
    %113 = vector.load %arg8[%c2_74, %c0_75, %c0_76] : memref<4x1x16xf32, #tpu.memory_space<vmem>>, vector<1x1x16xf32>
    %114 = vector.shape_cast %113 : vector<1x1x16xf32> to vector<1x16xf32>
    %115 = vector.broadcast %114 : vector<1x16xf32> to vector<128x16xf32>
    %116 = arith.addf %112, %115 : vector<128x16xf32>
    %117 = vector.shape_cast %116 : vector<128x16xf32> to vector<8x16x16xf32>
    %c2_77 = arith.constant 2 : index
    %c0_78 = arith.constant 0 : index
    %c0_79 = arith.constant 0 : index
    %118 = vector.load %arg6[%c2_77, %c0_78, %c0_79] : memref<4x64x16xbf16, #tpu.memory_space<vmem>>, vector<1x64x16xbf16>
    %119 = vector.shape_cast %118 : vector<1x64x16xbf16> to vector<64x16xbf16>
    %cst_80 = arith.constant dense<0.000000e+00> : vector<128x16xf32>
    %120 = tpu.matmul %8, %119, %cst_80 {dimension_numbers = #tpu.dot_dimension_numbers<[1], [0], [0], [1], [0, 0, 1, 1], [], []>} : vector<128x64xbf16>, vector<64x16xbf16>, vector<128x16xf32> -> vector<128x16xf32>
    %c2_81 = arith.constant 2 : index
    %c0_82 = arith.constant 0 : index
    %c0_83 = arith.constant 0 : index
    %121 = vector.load %arg9[%c2_81, %c0_82, %c0_83] : memref<4x1x16xf32, #tpu.memory_space<vmem>>, vector<1x1x16xf32>
    %122 = vector.shape_cast %121 : vector<1x1x16xf32> to vector<1x16xf32>
    %123 = vector.broadcast %122 : vector<1x16xf32> to vector<128x16xf32>
    %124 = arith.addf %120, %123 : vector<128x16xf32>
    %125 = vector.shape_cast %124 : vector<128x16xf32> to vector<8x16x16xf32>
    %126 = arith.truncf %109 : vector<8x16x16xf32> to vector<8x16x16xbf16>
    %127 = arith.truncf %117 : vector<8x16x16xf32> to vector<8x16x16xbf16>
    "tpu.trace_start"() <{level = 10 : i32, message = "bqd,bkd->bqk"}> : () -> ()
    %cst_84 = arith.constant dense<0.000000e+00> : vector<8x16x16xf32>
    %128 = tpu.matmul %126, %127, %cst_84 {dimension_numbers = #tpu.dot_dimension_numbers<[2], [2], [1], [1], [0, 0, 0, 1, 1, 1], [0], [0]>} : vector<8x16x16xbf16>, vector<8x16x16xbf16>, vector<8x16x16xf32> -> vector<8x16x16xf32>
    "tpu.trace_stop"() : () -> ()
    %cst_85 = arith.constant dense<0xFF800000> : vector<8x16xf32>
    %129 = vector.multi_reduction <maximumf>, %128, %cst_85 [2] : vector<8x16x16xf32> to vector<8x16xf32>
    %130 = vector.shape_cast %129 : vector<8x16xf32> to vector<8x16x1xf32>
    %131 = vector.broadcast %130 : vector<8x16x1xf32> to vector<8x16x16xf32>
    %132 = arith.subf %128, %131 : vector<8x16x16xf32>
    %133 = math.exp %132 : vector<8x16x16xf32>
    %cst_86 = arith.constant dense<0.000000e+00> : vector<8x16xf32>
    %134 = vector.multi_reduction <add>, %133, %cst_86 [2] : vector<8x16x16xf32> to vector<8x16xf32>
    %135 = vector.shape_cast %134 : vector<8x16xf32> to vector<8x16x1xf32>
    %136 = tpu.reciprocal %135 {approx = true} : vector<8x16x1xf32> -> vector<8x16x1xf32>
    %137 = vector.broadcast %136 : vector<8x16x1xf32> to vector<8x16x16xf32>
    %138 = arith.mulf %133, %137 : vector<8x16x16xf32>
    %139 = arith.truncf %138 : vector<8x16x16xf32> to vector<8x16x16xbf16>
    %140 = arith.truncf %125 : vector<8x16x16xf32> to vector<8x16x16xbf16>
    "tpu.trace_start"() <{level = 10 : i32, message = "bqk,bkd->bqd"}> : () -> ()
    %cst_87 = arith.constant dense<0.000000e+00> : vector<8x16x16xf32>
    %141 = tpu.matmul %139, %140, %cst_87 {dimension_numbers = #tpu.dot_dimension_numbers<[2], [1], [1], [2], [0, 0, 0, 1, 1, 2], [0], [0]>} : vector<8x16x16xbf16>, vector<8x16x16xbf16>, vector<8x16x16xf32> -> vector<8x16x16xf32>
    "tpu.trace_stop"() : () -> ()
    %142 = vector.shape_cast %141 : vector<8x16x16xf32> to vector<128x16xf32>
    %143 = arith.truncf %142 : vector<128x16xf32> to vector<128x16xbf16>
    %c2_88 = arith.constant 2 : index
    %c0_89 = arith.constant 0 : index
    %c0_90 = arith.constant 0 : index
    %144 = vector.load %arg10[%c2_88, %c0_89, %c0_90] : memref<4x16x64xbf16, #tpu.memory_space<vmem>>, vector<1x16x64xbf16>
    %145 = vector.shape_cast %144 : vector<1x16x64xbf16> to vector<16x64xbf16>
    %cst_91 = arith.constant dense<0.000000e+00> : vector<128x64xf32>
    %146 = tpu.matmul %143, %145, %cst_91 {dimension_numbers = #tpu.dot_dimension_numbers<[1], [0], [0], [1], [0, 0, 1, 1], [], []>} : vector<128x16xbf16>, vector<16x64xbf16>, vector<128x64xf32> -> vector<128x64xf32>
    %147 = arith.addf %101, %146 : vector<128x64xf32>
    %c3 = arith.constant 3 : index
    %c0_92 = arith.constant 0 : index
    %c0_93 = arith.constant 0 : index
    %148 = vector.load %arg4[%c3, %c0_92, %c0_93] : memref<4x64x16xbf16, #tpu.memory_space<vmem>>, vector<1x64x16xbf16>
    %149 = vector.shape_cast %148 : vector<1x64x16xbf16> to vector<64x16xbf16>
    %cst_94 = arith.constant dense<0.000000e+00> : vector<128x16xf32>
    %150 = tpu.matmul %8, %149, %cst_94 {dimension_numbers = #tpu.dot_dimension_numbers<[1], [0], [0], [1], [0, 0, 1, 1], [], []>} : vector<128x64xbf16>, vector<64x16xbf16>, vector<128x16xf32> -> vector<128x16xf32>
    %c3_95 = arith.constant 3 : index
    %c0_96 = arith.constant 0 : index
    %c0_97 = arith.constant 0 : index
    %151 = vector.load %arg7[%c3_95, %c0_96, %c0_97] : memref<4x1x16xf32, #tpu.memory_space<vmem>>, vector<1x1x16xf32>
    %152 = vector.shape_cast %151 : vector<1x1x16xf32> to vector<1x16xf32>
    %153 = vector.broadcast %152 : vector<1x16xf32> to vector<128x16xf32>
    %154 = arith.addf %150, %153 : vector<128x16xf32>
    %155 = vector.shape_cast %154 : vector<128x16xf32> to vector<8x16x16xf32>
    %c3_98 = arith.constant 3 : index
    %c0_99 = arith.constant 0 : index
    %c0_100 = arith.constant 0 : index
    %156 = vector.load %arg5[%c3_98, %c0_99, %c0_100] : memref<4x64x16xbf16, #tpu.memory_space<vmem>>, vector<1x64x16xbf16>
    %157 = vector.shape_cast %156 : vector<1x64x16xbf16> to vector<64x16xbf16>
    %cst_101 = arith.constant dense<0.000000e+00> : vector<128x16xf32>
    %158 = tpu.matmul %8, %157, %cst_101 {dimension_numbers = #tpu.dot_dimension_numbers<[1], [0], [0], [1], [0, 0, 1, 1], [], []>} : vector<128x64xbf16>, vector<64x16xbf16>, vector<128x16xf32> -> vector<128x16xf32>
    %c3_102 = arith.constant 3 : index
    %c0_103 = arith.constant 0 : index
    %c0_104 = arith.constant 0 : index
    %159 = vector.load %arg8[%c3_102, %c0_103, %c0_104] : memref<4x1x16xf32, #tpu.memory_space<vmem>>, vector<1x1x16xf32>
    %160 = vector.shape_cast %159 : vector<1x1x16xf32> to vector<1x16xf32>
    %161 = vector.broadcast %160 : vector<1x16xf32> to vector<128x16xf32>
    %162 = arith.addf %158, %161 : vector<128x16xf32>
    %163 = vector.shape_cast %162 : vector<128x16xf32> to vector<8x16x16xf32>
    %c3_105 = arith.constant 3 : index
    %c0_106 = arith.constant 0 : index
    %c0_107 = arith.constant 0 : index
    %164 = vector.load %arg6[%c3_105, %c0_106, %c0_107] : memref<4x64x16xbf16, #tpu.memory_space<vmem>>, vector<1x64x16xbf16>
    %165 = vector.shape_cast %164 : vector<1x64x16xbf16> to vector<64x16xbf16>
    %cst_108 = arith.constant dense<0.000000e+00> : vector<128x16xf32>
    %166 = tpu.matmul %8, %165, %cst_108 {dimension_numbers = #tpu.dot_dimension_numbers<[1], [0], [0], [1], [0, 0, 1, 1], [], []>} : vector<128x64xbf16>, vector<64x16xbf16>, vector<128x16xf32> -> vector<128x16xf32>
    %c3_109 = arith.constant 3 : index
    %c0_110 = arith.constant 0 : index
    %c0_111 = arith.constant 0 : index
    %167 = vector.load %arg9[%c3_109, %c0_110, %c0_111] : memref<4x1x16xf32, #tpu.memory_space<vmem>>, vector<1x1x16xf32>
    %168 = vector.shape_cast %167 : vector<1x1x16xf32> to vector<1x16xf32>
    %169 = vector.broadcast %168 : vector<1x16xf32> to vector<128x16xf32>
    %170 = arith.addf %166, %169 : vector<128x16xf32>
    %171 = vector.shape_cast %170 : vector<128x16xf32> to vector<8x16x16xf32>
    %172 = arith.truncf %155 : vector<8x16x16xf32> to vector<8x16x16xbf16>
    %173 = arith.truncf %163 : vector<8x16x16xf32> to vector<8x16x16xbf16>
    "tpu.trace_start"() <{level = 10 : i32, message = "bqd,bkd->bqk"}> : () -> ()
    %cst_112 = arith.constant dense<0.000000e+00> : vector<8x16x16xf32>
    %174 = tpu.matmul %172, %173, %cst_112 {dimension_numbers = #tpu.dot_dimension_numbers<[2], [2], [1], [1], [0, 0, 0, 1, 1, 1], [0], [0]>} : vector<8x16x16xbf16>, vector<8x16x16xbf16>, vector<8x16x16xf32> -> vector<8x16x16xf32>
    "tpu.trace_stop"() : () -> ()
    %cst_113 = arith.constant dense<0xFF800000> : vector<8x16xf32>
    %175 = vector.multi_reduction <maximumf>, %174, %cst_113 [2] : vector<8x16x16xf32> to vector<8x16xf32>
    %176 = vector.shape_cast %175 : vector<8x16xf32> to vector<8x16x1xf32>
    %177 = vector.broadcast %176 : vector<8x16x1xf32> to vector<8x16x16xf32>
    %178 = arith.subf %174, %177 : vector<8x16x16xf32>
    %179 = math.exp %178 : vector<8x16x16xf32>
    %cst_114 = arith.constant dense<0.000000e+00> : vector<8x16xf32>
    %180 = vector.multi_reduction <add>, %179, %cst_114 [2] : vector<8x16x16xf32> to vector<8x16xf32>
    %181 = vector.shape_cast %180 : vector<8x16xf32> to vector<8x16x1xf32>
    %182 = tpu.reciprocal %181 {approx = true} : vector<8x16x1xf32> -> vector<8x16x1xf32>
    %183 = vector.broadcast %182 : vector<8x16x1xf32> to vector<8x16x16xf32>
    %184 = arith.mulf %179, %183 : vector<8x16x16xf32>
    %185 = arith.truncf %184 : vector<8x16x16xf32> to vector<8x16x16xbf16>
    %186 = arith.truncf %171 : vector<8x16x16xf32> to vector<8x16x16xbf16>
    "tpu.trace_start"() <{level = 10 : i32, message = "bqk,bkd->bqd"}> : () -> ()
    %cst_115 = arith.constant dense<0.000000e+00> : vector<8x16x16xf32>
    %187 = tpu.matmul %185, %186, %cst_115 {dimension_numbers = #tpu.dot_dimension_numbers<[2], [1], [1], [2], [0, 0, 0, 1, 1, 2], [0], [0]>} : vector<8x16x16xbf16>, vector<8x16x16xbf16>, vector<8x16x16xf32> -> vector<8x16x16xf32>
    "tpu.trace_stop"() : () -> ()
    %188 = vector.shape_cast %187 : vector<8x16x16xf32> to vector<128x16xf32>
    %189 = arith.truncf %188 : vector<128x16xf32> to vector<128x16xbf16>
    %c3_116 = arith.constant 3 : index
    %c0_117 = arith.constant 0 : index
    %c0_118 = arith.constant 0 : index
    %190 = vector.load %arg10[%c3_116, %c0_117, %c0_118] : memref<4x16x64xbf16, #tpu.memory_space<vmem>>, vector<1x16x64xbf16>
    %191 = vector.shape_cast %190 : vector<1x16x64xbf16> to vector<16x64xbf16>
    %cst_119 = arith.constant dense<0.000000e+00> : vector<128x64xf32>
    %192 = tpu.matmul %189, %191, %cst_119 {dimension_numbers = #tpu.dot_dimension_numbers<[1], [0], [0], [1], [0, 0, 1, 1], [], []>} : vector<128x16xbf16>, vector<16x64xbf16>, vector<128x64xf32> -> vector<128x64xf32>
    %193 = arith.addf %147, %192 : vector<128x64xf32>
    %c0_120 = arith.constant 0 : index
    %c0_121 = arith.constant 0 : index
    %194 = vector.load %arg11[%c0_120, %c0_121] : memref<1x64xf32, #tpu.memory_space<vmem>>, vector<1x64xf32>
    %195 = vector.broadcast %194 : vector<1x64xf32> to vector<128x64xf32>
    %196 = arith.addf %193, %195 : vector<128x64xf32>
    %197 = arith.addf %7, %196 : vector<128x64xf32>
    %cst_122 = arith.constant dense<0.000000e+00> : vector<128xf32>
    %198 = vector.multi_reduction <add>, %197, %cst_122 [1] : vector<128x64xf32> to vector<128xf32>
    %199 = vector.shape_cast %198 : vector<128xf32> to vector<128x1xf32>
    %cst_123 = arith.constant 6.400000e+01 : f32
    %200 = vector.broadcast %cst_123 : f32 to vector<128x1xf32>
    %201 = arith.divf %199, %200 : vector<128x1xf32>
    %202 = vector.broadcast %201 : vector<128x1xf32> to vector<128x64xf32>
    %203 = arith.subf %197, %202 : vector<128x64xf32>
    %204 = arith.mulf %203, %203 : vector<128x64xf32>
    %cst_124 = arith.constant dense<0.000000e+00> : vector<128xf32>
    %205 = vector.multi_reduction <add>, %204, %cst_124 [1] : vector<128x64xf32> to vector<128xf32>
    %206 = vector.shape_cast %205 : vector<128xf32> to vector<128x1xf32>
    %cst_125 = arith.constant 6.400000e+01 : f32
    %207 = vector.broadcast %cst_125 : f32 to vector<128x1xf32>
    %208 = arith.divf %206, %207 : vector<128x1xf32>
    %209 = vector.broadcast %201 : vector<128x1xf32> to vector<128x64xf32>
    %210 = arith.subf %197, %209 : vector<128x64xf32>
    %cst_126 = arith.constant 9.99999974E-6 : f32
    %211 = vector.broadcast %cst_126 : f32 to vector<128x1xf32>
    %212 = arith.addf %208, %211 : vector<128x1xf32>
    %213 = math.rsqrt %212 : vector<128x1xf32>
    %214 = vector.broadcast %213 : vector<128x1xf32> to vector<128x64xf32>
    %215 = arith.mulf %210, %214 : vector<128x64xf32>
    %c0_127 = arith.constant 0 : index
    %c0_128 = arith.constant 0 : index
    %216 = vector.load %arg12[%c0_127, %c0_128] : memref<1x64xf32, #tpu.memory_space<vmem>>, vector<1x64xf32>
    %217 = vector.broadcast %216 : vector<1x64xf32> to vector<128x64xf32>
    %218 = arith.mulf %215, %217 : vector<128x64xf32>
    %c0_129 = arith.constant 0 : index
    %c0_130 = arith.constant 0 : index
    %219 = vector.load %arg13[%c0_129, %c0_130] : memref<1x64xf32, #tpu.memory_space<vmem>>, vector<1x64xf32>
    %220 = vector.broadcast %219 : vector<1x64xf32> to vector<128x64xf32>
    %221 = arith.addf %218, %220 : vector<128x64xf32>
    %222 = arith.truncf %221 : vector<128x64xf32> to vector<128x64xbf16>
    %c0_131 = arith.constant 0 : index
    %c0_132 = arith.constant 0 : index
    %223 = vector.load %arg14[%c0_131, %c0_132] : memref<64x2048xbf16, #tpu.memory_space<vmem>>, vector<64x2048xbf16>
    %cst_133 = arith.constant dense<0.000000e+00> : vector<128x2048xf32>
    %224 = tpu.matmul %222, %223, %cst_133 {dimension_numbers = #tpu.dot_dimension_numbers<[1], [0], [0], [1], [0, 0, 1, 1], [], []>} : vector<128x64xbf16>, vector<64x2048xbf16>, vector<128x2048xf32> -> vector<128x2048xf32>
    %c0_134 = arith.constant 0 : index
    %c0_135 = arith.constant 0 : index
    %225 = vector.load %arg15[%c0_134, %c0_135] : memref<1x2048xf32, #tpu.memory_space<vmem>>, vector<1x2048xf32>
    %226 = vector.broadcast %225 : vector<1x2048xf32> to vector<128x2048xf32>
    %227 = arith.addf %224, %226 : vector<128x2048xf32>
    %cst_136 = arith.constant 0.000000e+00 : f32
    %228 = vector.broadcast %cst_136 : f32 to vector<128x2048xf32>
    %229 = arith.maximumf %227, %228 : vector<128x2048xf32>
    %230 = arith.truncf %229 : vector<128x2048xf32> to vector<128x2048xbf16>
    %c0_137 = arith.constant 0 : index
    %c0_138 = arith.constant 0 : index
    %231 = vector.load %arg16[%c0_137, %c0_138] : memref<2048x64xbf16, #tpu.memory_space<vmem>>, vector<2048x64xbf16>
    %cst_139 = arith.constant dense<0.000000e+00> : vector<128x64xf32>
    %232 = tpu.matmul %230, %231, %cst_139 {dimension_numbers = #tpu.dot_dimension_numbers<[1], [0], [0], [1], [0, 0, 1, 1], [], []>} : vector<128x2048xbf16>, vector<2048x64xbf16>, vector<128x64xf32> -> vector<128x64xf32>
    %c0_140 = arith.constant 0 : index
    %c0_141 = arith.constant 0 : index
    %233 = vector.load %arg17[%c0_140, %c0_141] : memref<1x64xf32, #tpu.memory_space<vmem>>, vector<1x64xf32>
    %234 = vector.broadcast %233 : vector<1x64xf32> to vector<128x64xf32>
    %235 = arith.addf %232, %234 : vector<128x64xf32>
    %236 = arith.addf %221, %235 : vector<128x64xf32>
    %cst_142 = arith.constant dense<0.000000e+00> : vector<128xf32>
    %237 = vector.multi_reduction <add>, %236, %cst_142 [1] : vector<128x64xf32> to vector<128xf32>
    %238 = vector.shape_cast %237 : vector<128xf32> to vector<128x1xf32>
    %cst_143 = arith.constant 6.400000e+01 : f32
    %239 = vector.broadcast %cst_143 : f32 to vector<128x1xf32>
    %240 = arith.divf %238, %239 : vector<128x1xf32>
    %241 = vector.broadcast %240 : vector<128x1xf32> to vector<128x64xf32>
    %242 = arith.subf %236, %241 : vector<128x64xf32>
    %243 = arith.mulf %242, %242 : vector<128x64xf32>
    %cst_144 = arith.constant dense<0.000000e+00> : vector<128xf32>
    %244 = vector.multi_reduction <add>, %243, %cst_144 [1] : vector<128x64xf32> to vector<128xf32>
    %245 = vector.shape_cast %244 : vector<128xf32> to vector<128x1xf32>
    %cst_145 = arith.constant 6.400000e+01 : f32
    %246 = vector.broadcast %cst_145 : f32 to vector<128x1xf32>
    %247 = arith.divf %245, %246 : vector<128x1xf32>
    %248 = vector.broadcast %240 : vector<128x1xf32> to vector<128x64xf32>
    %249 = arith.subf %236, %248 : vector<128x64xf32>
    %cst_146 = arith.constant 9.99999974E-6 : f32
    %250 = vector.broadcast %cst_146 : f32 to vector<128x1xf32>
    %251 = arith.addf %247, %250 : vector<128x1xf32>
    %252 = math.rsqrt %251 : vector<128x1xf32>
    %253 = vector.broadcast %252 : vector<128x1xf32> to vector<128x64xf32>
    %254 = arith.mulf %249, %253 : vector<128x64xf32>
    %c0_147 = arith.constant 0 : index
    %c0_148 = arith.constant 0 : index
    %255 = vector.load %arg18[%c0_147, %c0_148] : memref<1x64xf32, #tpu.memory_space<vmem>>, vector<1x64xf32>
    %256 = vector.broadcast %255 : vector<1x64xf32> to vector<128x64xf32>
    %257 = arith.mulf %254, %256 : vector<128x64xf32>
    %c0_149 = arith.constant 0 : index
    %c0_150 = arith.constant 0 : index
    %258 = vector.load %arg19[%c0_149, %c0_150] : memref<1x64xf32, #tpu.memory_space<vmem>>, vector<1x64xf32>
    %259 = vector.broadcast %258 : vector<1x64xf32> to vector<128x64xf32>
    %260 = arith.addf %257, %259 : vector<128x64xf32>
    %261 = vector.shape_cast %260 : vector<128x64xf32> to vector<8x16x64xf32>
    %cst_151 = arith.constant dense<0.000000e+00> : vector<8x64xf32>
    %262 = vector.multi_reduction <add>, %261, %cst_151 [1] : vector<8x16x64xf32> to vector<8x64xf32>
    %cst_152 = arith.constant 1.600000e+01 : f32
    %263 = vector.broadcast %cst_152 : f32 to vector<8x64xf32>
    %264 = arith.divf %262, %263 : vector<8x64xf32>
    %c0_153 = arith.constant 0 : index
    %c0_154 = arith.constant 0 : index
    %265 = vector.load %arg20[%c0_153, %c0_154] : memref<64x128xf32, #tpu.memory_space<vmem>>, vector<64x128xf32>
    %cst_155 = arith.constant dense<0.000000e+00> : vector<8x128xf32>
    %266 = tpu.matmul %264, %265, %cst_155 {dimension_numbers = #tpu.dot_dimension_numbers<[1], [0], [0], [1], [0, 0, 1, 1], [], []>} : vector<8x64xf32>, vector<64x128xf32>, vector<8x128xf32> -> vector<8x128xf32>
    %c0_156 = arith.constant 0 : index
    %c0_157 = arith.constant 0 : index
    %267 = vector.load %arg21[%c0_156, %c0_157] : memref<1x128xf32, #tpu.memory_space<vmem>>, vector<1x128xf32>
    %268 = vector.broadcast %267 : vector<1x128xf32> to vector<8x128xf32>
    %269 = arith.addf %266, %268 : vector<8x128xf32>
    %c0_158 = arith.constant 0 : index
    %c0_159 = arith.constant 0 : index
    %270 = vector.load %arg22[%c0_158, %c0_159] : memref<8x128xf32, #tpu.memory_space<vmem>>, vector<8x128xf32>
    tpu.vector_store %arg22[%c0_158, %c0_159], %269 {strides = array<i32>} : memref<8x128xf32, #tpu.memory_space<vmem>>, vector<8x128xf32>,
    return
  }
  func.func @transform_0(%arg0: i32) -> (i32, i32) {
    %c0_i32 = arith.constant 0 : i32
    %c0_i32_0 = arith.constant 0 : i32
    return %arg0, %c0_i32 : i32, i32
  }
  func.func @transform_1(%arg0: i32) -> (i32, i32) {
    %c0_i32 = arith.constant 0 : i32
    %c0_i32_0 = arith.constant 0 : i32
    %c0_i32_1 = arith.constant 0 : i32
    return %c0_i32, %c0_i32_0 : i32, i32
  }
  func.func @transform_2(%arg0: i32) -> (i32, i32) {
    %c0_i32 = arith.constant 0 : i32
    %c0_i32_0 = arith.constant 0 : i32
    %c0_i32_1 = arith.constant 0 : i32
    return %c0_i32, %c0_i32_0 : i32, i32
  }
  func.func @transform_3(%arg0: i32) -> (i32, i32, i32) {
    %c0_i32 = arith.constant 0 : i32
    %c0_i32_0 = arith.constant 0 : i32
    %c0_i32_1 = arith.constant 0 : i32
    %c0_i32_2 = arith.constant 0 : i32
    return %c0_i32, %c0_i32_0, %c0_i32_1 : i32, i32, i32
  }
  func.func @transform_4(%arg0: i32) -> (i32, i32, i32) {
    %c0_i32 = arith.constant 0 : i32
    %c0_i32_0 = arith.constant 0 : i32
    %c0_i32_1 = arith.constant 0 : i32
    %c0_i32_2 = arith.constant 0 : i32
    return %c0_i32, %c0_i32_0, %c0_i32_1 : i32, i32, i32
  }
  func.func @transform_5(%arg0: i32) -> (i32, i32, i32) {
    %c0_i32 = arith.constant 0 : i32
    %c0_i32_0 = arith.constant 0 : i32
    %c0_i32_1 = arith.constant 0 : i32
    %c0_i32_2 = arith.constant 0 : i32
    return %c0_i32, %c0_i32_0, %c0_i32_1 : i32, i32, i32
  }
  func.func @transform_6(%arg0: i32) -> (i32, i32, i32) {
    %c0_i32 = arith.constant 0 : i32
    %c0_i32_0 = arith.constant 0 : i32
    %c0_i32_1 = arith.constant 0 : i32
    %c0_i32_2 = arith.constant 0 : i32
    return %c0_i32, %c0_i32_0, %c0_i32_1 : i32, i32, i32
  }
  func.func @transform_7(%arg0: i32) -> (i32, i32, i32) {
    %c0_i32 = arith.constant 0 : i32
    %c0_i32_0 = arith.constant 0 : i32
    %c0_i32_1 = arith.constant 0 : i32
    %c0_i32_2 = arith.constant 0 : i32
    return %c0_i32, %c0_i32_0, %c0_i32_1 : i32, i32, i32
  }
  func.func @transform_8(%arg0: i32) -> (i32, i32, i32) {
    %c0_i32 = arith.constant 0 : i32
    %c0_i32_0 = arith.constant 0 : i32
    %c0_i32_1 = arith.constant 0 : i32
    %c0_i32_2 = arith.constant 0 : i32
    return %c0_i32, %c0_i32_0, %c0_i32_1 : i32, i32, i32
  }
  func.func @transform_9(%arg0: i32) -> (i32, i32, i32) {
    %c0_i32 = arith.constant 0 : i32
    %c0_i32_0 = arith.constant 0 : i32
    %c0_i32_1 = arith.constant 0 : i32
    %c0_i32_2 = arith.constant 0 : i32
    return %c0_i32, %c0_i32_0, %c0_i32_1 : i32, i32, i32
  }
  func.func @transform_10(%arg0: i32) -> (i32, i32) {
    %c0_i32 = arith.constant 0 : i32
    %c0_i32_0 = arith.constant 0 : i32
    %c0_i32_1 = arith.constant 0 : i32
    return %c0_i32, %c0_i32_0 : i32, i32
  }
  func.func @transform_11(%arg0: i32) -> (i32, i32) {
    %c0_i32 = arith.constant 0 : i32
    %c0_i32_0 = arith.constant 0 : i32
    %c0_i32_1 = arith.constant 0 : i32
    return %c0_i32, %c0_i32_0 : i32, i32
  }
  func.func @transform_12(%arg0: i32) -> (i32, i32) {
    %c0_i32 = arith.constant 0 : i32
    %c0_i32_0 = arith.constant 0 : i32
    %c0_i32_1 = arith.constant 0 : i32
    return %c0_i32, %c0_i32_0 : i32, i32
  }
  func.func @transform_13(%arg0: i32) -> (i32, i32) {
    %c0_i32 = arith.constant 0 : i32
    %c0_i32_0 = arith.constant 0 : i32
    %c0_i32_1 = arith.constant 0 : i32
    return %c0_i32, %c0_i32_0 : i32, i32
  }
  func.func @transform_14(%arg0: i32) -> (i32, i32) {
    %c0_i32 = arith.constant 0 : i32
    %c0_i32_0 = arith.constant 0 : i32
    %c0_i32_1 = arith.constant 0 : i32
    return %c0_i32, %c0_i32_0 : i32, i32
  }
  func.func @transform_15(%arg0: i32) -> (i32, i32) {
    %c0_i32 = arith.constant 0 : i32
    %c0_i32_0 = arith.constant 0 : i32
    %c0_i32_1 = arith.constant 0 : i32
    return %c0_i32, %c0_i32_0 : i32, i32
  }
  func.func @transform_16(%arg0: i32) -> (i32, i32) {
    %c0_i32 = arith.constant 0 : i32
    %c0_i32_0 = arith.constant 0 : i32
    %c0_i32_1 = arith.constant 0 : i32
    return %c0_i32, %c0_i32_0 : i32, i32
  }
  func.func @transform_17(%arg0: i32) -> (i32, i32) {
    %c0_i32 = arith.constant 0 : i32
    %c0_i32_0 = arith.constant 0 : i32
    %c0_i32_1 = arith.constant 0 : i32
    return %c0_i32, %c0_i32_0 : i32, i32
  }
  func.func @transform_18(%arg0: i32) -> (i32, i32) {
    %c0_i32 = arith.constant 0 : i32
    %c0_i32_0 = arith.constant 0 : i32
    %c0_i32_1 = arith.constant 0 : i32
    return %c0_i32, %c0_i32_0 : i32, i32
  }
  func.func @transform_19(%arg0: i32) -> (i32, i32) {
    %c0_i32 = arith.constant 0 : i32
    %c0_i32_0 = arith.constant 0 : i32
    %c0_i32_1 = arith.constant 0 : i32
    return %c0_i32, %c0_i32_0 : i32, i32
  }
  func.func @transform_20(%arg0: i32) -> (i32, i32) {
    %c0_i32 = arith.constant 0 : i32
    %c0_i32_0 = arith.constant 0 : i32
    %c0_i32_1 = arith.constant 0 : i32
    return %c0_i32, %c0_i32_0 : i32, i32
  }
  func.func @transform_21(%arg0: i32) -> (i32, i32) {
    %c0_i32 = arith.constant 0 : i32
    %c0_i32_0 = arith.constant 0 : i32
    return %arg0, %c0_i32 : i32, i32
  }
}

</mosaic_0001>

<llo_original>
// kernel: tpu_custom_call.1
$region0: #{tpu_custom_call.1}
  #allocation0 [shape = 'u32[]', space=smem, size = 0x4, offset = 0x4, fixed_abs, tag = 'smem constant byte address 0x4 - core index']
  #allocation1 [shape = 'u32[144,128]{1,0:T(1,128)}', space=vmem, size = 0x12000, scoped, tag = 'internal scratch']
  %s0 = inlined_call_operand.vmem [shape: f32[128,8], index: 0, kind: input, shape index: {}]
  %s1 = inlined_call_operand.vmem [shape: f32[8,64], index: 1, kind: input, shape index: {}]
  %s2 = inlined_call_operand.vmem [shape: f32[1,64], index: 2, kind: input, shape index: {}]
  %s3 = inlined_call_operand.vmem [shape: bf16[4,64,16], index: 3, kind: input, shape index: {}]
  %s4 = inlined_call_operand.vmem [shape: bf16[4,64,16], index: 4, kind: input, shape index: {}]
  %s5 = inlined_call_operand.vmem [shape: bf16[4,64,16], index: 5, kind: input, shape index: {}]
  %s6 = inlined_call_operand.vmem [shape: f32[4,1,16], index: 6, kind: input, shape index: {}]
  %s7 = inlined_call_operand.vmem [shape: f32[4,1,16], index: 7, kind: input, shape index: {}]
  %s8 = inlined_call_operand.vmem [shape: f32[4,1,16], index: 8, kind: input, shape index: {}]
  %s9 = inlined_call_operand.vmem [shape: bf16[4,16,64], index: 9, kind: input, shape index: {}]
  %s10 = inlined_call_operand.vmem [shape: f32[1,64], index: 10, kind: input, shape index: {}]
  %s11 = inlined_call_operand.vmem [shape: f32[1,64], index: 11, kind: input, shape index: {}]
  %s12 = inlined_call_operand.vmem [shape: f32[1,64], index: 12, kind: input, shape index: {}]
  %s13 = inlined_call_operand.vmem [shape: bf16[64,2048], index: 13, kind: input, shape index: {}]
  %s14 = inlined_call_operand.vmem [shape: f32[1,2048], index: 14, kind: input, shape index: {}]
  %s15 = inlined_call_operand.vmem [shape: bf16[2048,64], index: 15, kind: input, shape index: {}]
  %s16 = inlined_call_operand.vmem [shape: f32[1,64], index: 16, kind: input, shape index: {}]
  %s17 = inlined_call_operand.vmem [shape: f32[1,64], index: 17, kind: input, shape index: {}]
  %s18 = inlined_call_operand.vmem [shape: f32[1,64], index: 18, kind: input, shape index: {}]
  %s19 = inlined_call_operand.vmem [shape: f32[64,128], index: 19, kind: input, shape index: {}]
  %s20 = inlined_call_operand.vmem [shape: f32[1,128], index: 20, kind: input, shape index: {}]
  %s21 = inlined_call_operand.hbm [shape: f32[8,128], index: 21, kind: output, shape index: {}]
  %s22 = sld [smem:[#allocation0]]
  $region94: #{tpu_custom_call.1} parent=0
    _
  %s24 = ssub.s32 1, %s22
  %s25 = scalar_select 0, %s24, %s22
  $region1: #{tpu_custom_call.1} parent=0
    #allocation2 [shape = 'u8[4096]{0}', space=vmem, size = 0x1000, scoped, tag = 'output window, operand 0, single buffered']
    #allocation3 [shape = 's32[1]{0}', space=sflag, size = 0x4, scoped, tag = 'scoped memory for tpu_custom_call.1']
    %26 = vsyncpa [#allocation3], 0
    // Predicated region
    $region2: #{tpu_custom_call.1} parent=1 // pred_check
      _
    $region3: #{tpu_custom_call.1} parent=1 // pred_check_branch
      %28 = sbr.rel (0) target = $region5
    $region4: #{tpu_custom_call.1} parent=1 // pred_region
      _
    $region5: #{tpu_custom_call.1} parent=1 // pred_fallthru
      _
    // Predicated region
    $region6: #{tpu_custom_call.1} parent=1 // pred_check
      _
    $region7: #{tpu_custom_call.1} parent=1 // pred_check_branch
      %30 = sbr.rel (0) target = $region9
    $region8: #{tpu_custom_call.1} parent=1 // pred_region
      _
    $region9: #{tpu_custom_call.1} parent=1 // pred_fallthru
      _
    // Predicated region
    $region10: #{tpu_custom_call.1} parent=1 // pred_check
      _
    $region11: #{tpu_custom_call.1} parent=1 // pred_check_branch
      %32 = sbr.rel (0) target = $region13
    $region12: #{tpu_custom_call.1} parent=1 // pred_region
      _
    $region13: #{tpu_custom_call.1} parent=1 // pred_fallthru
      _
    // Predicated region
    $region14: #{tpu_custom_call.1} parent=1 // pred_check
      _
    $region15: #{tpu_custom_call.1} parent=1 // pred_check_branch
      %34 = sbr.rel (0) target = $region17
    $region16: #{tpu_custom_call.1} parent=1 // pred_region
      _
    $region17: #{tpu_custom_call.1} parent=1 // pred_fallthru
      _
    // Predicated region
    $region18: #{tpu_custom_call.1} parent=1 // pred_check
      _
    $region19: #{tpu_custom_call.1} parent=1 // pred_check_branch
      %36 = sbr.rel (0) target = $region21
    $region20: #{tpu_custom_call.1} parent=1 // pred_region
      _
    $region21: #{tpu_custom_call.1} parent=1 // pred_fallthru
      _
    // Predicated region
    $region22: #{tpu_custom_call.1} parent=1 // pred_check
      _
    $region23: #{tpu_custom_call.1} parent=1 // pred_check_branch
      %38 = sbr.rel (0) target = $region25
    $region24: #{tpu_custom_call.1} parent=1 // pred_region
      _
    $region25: #{tpu_custom_call.1} parent=1 // pred_fallthru
      _
    // Predicated region
    $region26: #{tpu_custom_call.1} parent=1 // pred_check
      _
    $region27: #{tpu_custom_call.1} parent=1 // pred_check_branch
      %40 = sbr.rel (0) target = $region29
    $region28: #{tpu_custom_call.1} parent=1 // pred_region
      _
    $region29: #{tpu_custom_call.1} parent=1 // pred_fallthru
      _
    // Predicated region
    $region30: #{tpu_custom_call.1} parent=1 // pred_check
      _
    $region31: #{tpu_custom_call.1} parent=1 // pred_check_branch
      %42 = sbr.rel (0) target = $region33
    $region32: #{tpu_custom_call.1} parent=1 // pred_region
      _
    $region33: #{tpu_custom_call.1} parent=1 // pred_fallthru
      _
    // Predicated region
    $region34: #{tpu_custom_call.1} parent=1 // pred_check
      _
    $region35: #{tpu_custom_call.1} parent=1 // pred_check_branch
      %44 = sbr.rel (0) target = $region37
    $region36: #{tpu_custom_call.1} parent=1 // pred_region
      _
    $region37: #{tpu_custom_call.1} parent=1 // pred_fallthru
      _
    // Predicated region
    $region38: #{tpu_custom_call.1} parent=1 // pred_check
      _
    $region39: #{tpu_custom_call.1} parent=1 // pred_check_branch
      %46 = sbr.rel (0) target = $region41
    $region40: #{tpu_custom_call.1} parent=1 // pred_region
      _
    $region41: #{tpu_custom_call.1} parent=1 // pred_fallthru
      _
    // Predicated region
    $region42: #{tpu_custom_call.1} parent=1 // pred_check
      _
    $region43: #{tpu_custom_call.1} parent=1 // pred_check_branch
      %48 = sbr.rel (0) target = $region45
    $region44: #{tpu_custom_call.1} parent=1 // pred_region
      _
    $region45: #{tpu_custom_call.1} parent=1 // pred_fallthru
      _
    // Predicated region
    $region46: #{tpu_custom_call.1} parent=1 // pred_check
      _
    $region47: #{tpu_custom_call.1} parent=1 // pred_check_branch
      %50 = sbr.rel (0) target = $region49
    $region48: #{tpu_custom_call.1} parent=1 // pred_region
      _
    $region49: #{tpu_custom_call.1} parent=1 // pred_fallthru
      _
    // Predicated region
    $region50: #{tpu_custom_call.1} parent=1 // pred_check
      _
    $region51: #{tpu_custom_call.1} parent=1 // pred_check_branch
      %52 = sbr.rel (0) target = $region53
    $region52: #{tpu_custom_call.1} parent=1 // pred_region
      _
    $region53: #{tpu_custom_call.1} parent=1 // pred_fallthru
      _
    // Predicated region
    $region54: #{tpu_custom_call.1} parent=1 // pred_check
      _
    $region55: #{tpu_custom_call.1} parent=1 // pred_check_branch
      %54 = sbr.rel (0) target = $region57
    $region56: #{tpu_custom_call.1} parent=1 // pred_region
      _
    $region57: #{tpu_custom_call.1} parent=1 // pred_fallthru
      _
    // Predicated region
    $region58: #{tpu_custom_call.1} parent=1 // pred_check
      _
    $region59: #{tpu_custom_call.1} parent=1 // pred_check_branch
      %56 = sbr.rel (0) target = $region61
    $region60: #{tpu_custom_call.1} parent=1 // pred_region
      _
    $region61: #{tpu_custom_call.1} parent=1 // pred_fallthru
      _
    // Predicated region
    $region62: #{tpu_custom_call.1} parent=1 // pred_check
      _
    $region63: #{tpu_custom_call.1} parent=1 // pred_check_branch
      %58 = sbr.rel (0) target = $region65
    $region64: #{tpu_custom_call.1} parent=1 // pred_region
      _
    $region65: #{tpu_custom_call.1} parent=1 // pred_fallthru
      _
    // Predicated region
    $region66: #{tpu_custom_call.1} parent=1 // pred_check
      _
    $region67: #{tpu_custom_call.1} parent=1 // pred_check_branch
      %60 = sbr.rel (0) target = $region69
    $region68: #{tpu_custom_call.1} parent=1 // pred_region
      _
    $region69: #{tpu_custom_call.1} parent=1 // pred_fallthru
      _
    // Predicated region
    $region70: #{tpu_custom_call.1} parent=1 // pred_check
      _
    $region71: #{tpu_custom_call.1} parent=1 // pred_check_branch
      %62 = sbr.rel (0) target = $region73
    $region72: #{tpu_custom_call.1} parent=1 // pred_region
      _
    $region73: #{tpu_custom_call.1} parent=1 // pred_fallthru
      _
    // Predicated region
    $region74: #{tpu_custom_call.1} parent=1 // pred_check
      _
    $region75: #{tpu_custom_call.1} parent=1 // pred_check_branch
      %64 = sbr.rel (0) target = $region77
    $region76: #{tpu_custom_call.1} parent=1 // pred_region
      _
    $region77: #{tpu_custom_call.1} parent=1 // pred_fallthru
      _
    // Predicated region
    $region78: #{tpu_custom_call.1} parent=1 // pred_check
      _
    $region79: #{tpu_custom_call.1} parent=1 // pred_check_branch
      %66 = sbr.rel (0) target = $region81
    $region80: #{tpu_custom_call.1} parent=1 // pred_region
      _
    $region81: #{tpu_custom_call.1} parent=1 // pred_fallthru
      _
    // Predicated region
    $region82: #{tpu_custom_call.1} parent=1 // pred_check
      _
    $region83: #{tpu_custom_call.1} parent=1 // pred_check_branch
      %68 = sbr.rel (0) target = $region85
    $region84: #{tpu_custom_call.1} parent=1 // pred_region
      _
    $region85: #{tpu_custom_call.1} parent=1 // pred_fallthru
      _
    %v70 = vld [vmem:[%s0] sm:$0xff]
    %v71 = vld [vmem:[%s0 + $0x8] sm:$0xff]
    %v72 = vld [vmem:[%s0 + $0x10] sm:$0xff]
    %v73 = vld [vmem:[%s0 + $0x18] sm:$0xff]
    %v74 = vld [vmem:[%s0 + $0x20] sm:$0xff]
    %v75 = vld [vmem:[%s0 + $0x28] sm:$0xff]
    %v76 = vld [vmem:[%s0 + $0x30] sm:$0xff]
    %v77 = vld [vmem:[%s0 + $0x38] sm:$0xff]
    %v78 = vld [vmem:[%s0 + $0x40] sm:$0xff]
    %v79 = vld [vmem:[%s0 + $0x48] sm:$0xff]
    %v80 = vld [vmem:[%s0 + $0x50] sm:$0xff]
    %v81 = vld [vmem:[%s0 + $0x58] sm:$0xff]
    %v82 = vld [vmem:[%s0 + $0x60] sm:$0xff]
    %v83 = vld [vmem:[%s0 + $0x68] sm:$0xff]
    %v84 = vld [vmem:[%s0 + $0x70] sm:$0xff]
    %v85 = vld [vmem:[%s0 + $0x78] sm:$0xff]
    %v86 = vld [vmem:[%s1] sm:$0xff]
    %v87 = vld [vmem:[%s2] sm:$0x1]
    %v89 = vlaneseq
    %v90 = vshrl.u32 %v89, 7
    %v91 = vsub.s32 0, %v90
    %v92 = vrot.slane %v87, %v91
    %vm94 = vcmask 64512
    %v96 = vsel %vm94, %v70, 0
    %v99 = vsel %vm94, %v71, 0
    %v102 = vsel %vm94, %v72, 0
    %v105 = vsel %vm94, %v73, 0
    %v108 = vsel %vm94, %v74, 0
    %v111 = vsel %vm94, %v75, 0
    %v114 = vsel %vm94, %v76, 0
    %v117 = vsel %vm94, %v77, 0
    %v120 = vsel %vm94, %v78, 0
    %v123 = vsel %vm94, %v79, 0
    %v126 = vsel %vm94, %v80, 0
    %v129 = vsel %vm94, %v81, 0
    %v132 = vsel %vm94, %v82, 0
    %v135 = vsel %vm94, %v83, 0
    %v138 = vsel %vm94, %v84, 0
    %v141 = vsel %vm94, %v85, 0
    %143 = vmatprep.subr.mxu0 0.0
    %144 = vmatpush1.msra.mxu0 %v86
    %145 = vmatprep.subr.mxu0 0.0
    %146 = vmatpush1.msra.mxu0 0.0
    %147 = vmatprep.subr.mxu0 0.0
    %148 = vmatpush1.msra.mxu0 0.0
    %149 = vmatprep.subr.mxu0 0.0
    %150 = vmatpush1.msra.mxu0 0.0
    %151 = vmatprep.subr.mxu0 0.0
    %152 = vmatpush1.msra.mxu0 0.0
    %153 = vmatprep.subr.mxu0 0.0
    %154 = vmatpush1.msra.mxu0 0.0
    %155 = vmatprep.subr.mxu0 0.0
    %156 = vmatpush1.msra.mxu0 0.0
    %157 = vmatprep.subr.mxu0 0.0
    %158 = vmatpush1.msra.mxu0 0.0
    %159 = vmatprep.subr.mxu0 0.0
    %160 = vmatpush1.msra.mxu0 0.0
    %161 = vmatprep.subr.mxu0 0.0
    %162 = vmatpush1.msra.mxu0 0.0
    %163 = vmatprep.subr.mxu0 0.0
    %164 = vmatpush1.msra.mxu0 0.0
    %165 = vmatprep.subr.mxu0 0.0
    %166 = vmatpush1.msra.mxu0 0.0
    %167 = vmatprep.subr.mxu0 0.0
    %168 = vmatpush1.msra.mxu0 0.0
    %169 = vmatprep.subr.mxu0 0.0
    %170 = vmatpush1.msra.mxu0 0.0
    %171 = vmatprep.subr.mxu0 0.0
    %172 = vmatpush1.msra.mxu0 0.0
    %173 = vmatprep.subr.mxu0 0.0
    %174 = vmatpush1.msra.mxu0 0.0
    %175 = vmatprep.subr.mxu0 0.0
    %176 = vmatpush1.msra.mxu0 0.0
    %177 = vmatprep.subr.mxu0 0.0
    %178 = vmatpush1.msra.mxu0 0.0
    %179 = vmatprep.subr.mxu0 0.0
    %180 = vmatpush1.msra.mxu0 0.0
    %181 = vmatprep.subr.mxu0 0.0
    %182 = vmatpush1.msra.mxu0 0.0
    %183 = vmatprep.subr.mxu0 0.0
    %184 = vmatpush1.msra.mxu0 0.0
    %185 = vmatprep.subr.mxu0 0.0
    %186 = vmatpush1.msra.mxu0 0.0
    %187 = vmatprep.subr.mxu0 0.0
    %188 = vmatpush1.msra.mxu0 0.0
    %189 = vmatprep.subr.mxu0 0.0
    %190 = vmatpush1.msra.mxu0 0.0
    %191 = vmatprep.subr.mxu0 0.0
    %192 = vmatpush1.msra.mxu0 0.0
    %193 = vmatprep.subr.mxu0 0.0
    %194 = vmatpush1.msra.mxu0 0.0
    %195 = vmatprep.subr.mxu0 0.0
    %196 = vmatpush1.msra.mxu0 0.0
    %197 = vmatprep.subr.mxu0 0.0
    %198 = vmatpush1.msra.mxu0 0.0
    %199 = vmatprep.subr.mxu0 0.0
    %200 = vmatpush1.msra.mxu0 0.0
    %201 = vmatprep.subr.mxu0 0.0
    %202 = vmatpush1.msra.mxu0 0.0
    %203 = vmatprep.subr.mxu0 0.0
    %204 = vmatpush1.msra.mxu0 0.0
    %205 = vmatprep.subr.mxu0 0.0
    %206 = vmatpush1.msra.mxu0 0.0
    %207 = vmatprep.mubr.f32.mxu0 0.0
    %208 = vmatmul.mubr.f32.gmra.mrb[0].mxu0 %v96
    %v209 = vpop.f32.mrb[0].mxu0
    %v210 = vadd.f32 %v92, %v209
    %v211 = vpop.f32.mrb[0].mxu0
    %212 = vmatprep.mubr.f32.mxu0 0.0
    %213 = vmatmul.mubr.f32.gmra.mrb[0].mxu0 %v99
    %v214 = vpop.f32.mrb[0].mxu0
    %v215 = vadd.f32 %v92, %v214
    %v216 = vpop.f32.mrb[0].mxu0
    %217 = vmatprep.mubr.f32.mxu0 0.0
    %218 = vmatmul.mubr.f32.gmra.mrb[0].mxu0 %v102
    %v219 = vpop.f32.mrb[0].mxu0
    %v220 = vadd.f32 %v92, %v219
    %v221 = vpop.f32.mrb[0].mxu0
    %222 = vmatprep.mubr.f32.mxu0 0.0
    %223 = vmatmul.mubr.f32.gmra.mrb[0].mxu0 %v105
    %v224 = vpop.f32.mrb[0].mxu0
    %v225 = vadd.f32 %v92, %v224
    %v226 = vpop.f32.mrb[0].mxu0
    %227 = vmatprep.mubr.f32.mxu0 0.0
    %228 = vmatmul.mubr.f32.gmra.mrb[0].mxu0 %v108
    %v229 = vpop.f32.mrb[0].mxu0
    %v230 = vadd.f32 %v92, %v229
    %v231 = vpop.f32.mrb[0].mxu0
    %232 = vmatprep.mubr.f32.mxu0 0.0
    %233 = vmatmul.mubr.f32.gmra.mrb[0].mxu0 %v111
    %v234 = vpop.f32.mrb[0].mxu0
    %v235 = vadd.f32 %v92, %v234
    %v236 = vpop.f32.mrb[0].mxu0
    %237 = vmatprep.mubr.f32.mxu0 0.0
    %238 = vmatmul.mubr.f32.gmra.mrb[0].mxu0 %v114
    %v239 = vpop.f32.mrb[0].mxu0
    %v240 = vadd.f32 %v92, %v239
    %v241 = vpop.f32.mrb[0].mxu0
    %242 = vmatprep.mubr.f32.mxu0 0.0
    %243 = vmatmul.mubr.f32.gmra.mrb[0].mxu0 %v117
    %v244 = vpop.f32.mrb[0].mxu0
    %v245 = vadd.f32 %v92, %v244
    %v246 = vpop.f32.mrb[0].mxu0
    %247 = vmatprep.mubr.f32.mxu0 0.0
    %248 = vmatmul.mubr.f32.gmra.mrb[0].mxu0 %v120
    %v249 = vpop.f32.mrb[0].mxu0
    %v250 = vadd.f32 %v92, %v249
    %v251 = vpop.f32.mrb[0].mxu0
    %252 = vmatprep.mubr.f32.mxu0 0.0
    %253 = vmatmul.mubr.f32.gmra.mrb[0].mxu0 %v123
    %v254 = vpop.f32.mrb[0].mxu0
    %v255 = vadd.f32 %v92, %v254
    %v256 = vpop.f32.mrb[0].mxu0
    %257 = vmatprep.mubr.f32.mxu0 0.0
    %258 = vmatmul.mubr.f32.gmra.mrb[0].mxu0 %v126
    %v259 = vpop.f32.mrb[0].mxu0
    %v260 = vadd.f32 %v92, %v259
    %v261 = vpop.f32.mrb[0].mxu0
    %262 = vmatprep.mubr.f32.mxu0 0.0
    %263 = vmatmul.mubr.f32.gmra.mrb[0].mxu0 %v129
    %v264 = vpop.f32.mrb[0].mxu0
    %v265 = vadd.f32 %v92, %v264
    %v266 = vpop.f32.mrb[0].mxu0
    %267 = vmatprep.mubr.f32.mxu0 0.0
    %268 = vmatmul.mubr.f32.gmra.mrb[0].mxu0 %v132
    %v269 = vpop.f32.mrb[0].mxu0
    %v270 = vadd.f32 %v92, %v269
    %v271 = vpop.f32.mrb[0].mxu0
    %272 = vmatprep.mubr.f32.mxu0 0.0
    %273 = vmatmul.mubr.f32.gmra.mrb[0].mxu0 %v135
    %v274 = vpop.f32.mrb[0].mxu0
    %v275 = vadd.f32 %v92, %v274
    %v276 = vpop.f32.mrb[0].mxu0
    %277 = vmatprep.mubr.f32.mxu0 0.0
    %278 = vmatmul.mubr.f32.gmra.mrb[0].mxu0 %v138
    %v279 = vpop.f32.mrb[0].mxu0
    %v280 = vadd.f32 %v92, %v279
    %v281 = vpop.f32.mrb[0].mxu0
    %282 = vmatprep.mubr.f32.mxu0 0.0
    %283 = vmatmul.mubr.f32.gmra.mrb[0].mxu0 %v141
    %v284 = vpop.f32.mrb[0].mxu0
    %v285 = vadd.f32 %v92, %v284
    %v286 = vpop.f32.mrb[0].mxu0
    %287 = vdwg.mxu0
    %v288 = vmax.f32 %v210, 0.0
    %v289 = vmax.f32 %v215, 0.0
    %v290 = vmax.f32 %v220, 0.0
    %v291 = vmax.f32 %v225, 0.0
    %v292 = vmax.f32 %v230, 0.0
    %v293 = vmax.f32 %v235, 0.0
    %v294 = vmax.f32 %v240, 0.0
    %v295 = vmax.f32 %v245, 0.0
    %v296 = vmax.f32 %v250, 0.0
    %v297 = vmax.f32 %v255, 0.0
    %v298 = vmax.f32 %v260, 0.0
    %v299 = vmax.f32 %v265, 0.0
    %v300 = vmax.f32 %v270, 0.0
    %v301 = vmax.f32 %v275, 0.0
    %v302 = vmax.f32 %v280, 0.0
    %v303 = vmax.f32 %v285, 0.0
    %v304 = vpack.c.bf16 %v289, %v288
    %v305 = vpack.c.bf16 %v291, %v290
    %v306 = vpack.c.bf16 %v293, %v292
    %v307 = vpack.c.bf16 %v295, %v294
    %v308 = vpack.c.bf16 %v297, %v296
    %v309 = vpack.c.bf16 %v299, %v298
    %v310 = vpack.c.bf16 %v301, %v300
    %v311 = vpack.c.bf16 %v303, %v302
    %v312 = vld [vmem:[%s3] sm:$0xf]
    %v313 = vld [vmem:[%s3 + $0x4] sm:$0xf]
    %v314 = vld [vmem:[%s3 + $0x8] sm:$0xf]
    %v315 = vld [vmem:[%s3 + $0xc] sm:$0xf]
    %v316 = vld [vmem:[%s3 + $0x10] sm:$0xf]
    %v317 = vld [vmem:[%s3 + $0x14] sm:$0xf]
    %v318 = vld [vmem:[%s3 + $0x18] sm:$0xf]
    %v319 = vld [vmem:[%s3 + $0x1c] sm:$0xf]
    %v320 = vld [vmem:[%s6] sm:$0x1]
    %v322 = vlaneseq
    %v323 = vshrl.u32 %v322, 7
    %v324 = vsub.s32 0, %v323
    %v325 = vrot.slane %v320, %v324
    %v335 = vunpack.c.l.b16 %v312
    %v336 = vunpack.c.l.b16 %v313
    %v337 = vunpack.c.l.b16 %v314
    %v338 = vunpack.c.l.b16 %v315
    %v339 = vunpack.c.l.b16 %v316
    %v340 = vunpack.c.l.b16 %v317
    %v341 = vunpack.c.l.b16 %v318
    %v342 = vunpack.c.l.b16 %v319
    %v343 = vpack.c.b16 %v336, %v335
    %v344 = vpack.c.b16 %v338, %v337
    %v345 = vpack.c.b16 %v340, %v339
    %v346 = vpack.c.b16 %v342, %v341
    %vm351 = vcmask 523264
    %v353 = vsel %vm351, %v304, 0
    %v356 = vsel %vm351, %v305, 0
    %v359 = vsel %vm351, %v306, 0
    %v362 = vsel %vm351, %v307, 0
    %v365 = vsel %vm351, %v308, 0
    %v368 = vsel %vm351, %v309, 0
    %v371 = vsel %vm351, %v310, 0
    %v374 = vsel %vm351, %v311, 0
    %376 = vmatprep.subr.bf16.mxu0 0
    %377 = vmatpush1.bf16.msra.mxu0 %v343
    %378 = vmatprep.subr.bf16.mxu0 0
    %379 = vmatpush1.bf16.msra.mxu0 %v344
    %380 = vmatprep.subr.bf16.mxu0 0
    %381 = vmatpush1.bf16.msra.mxu0 %v345
    %382 = vmatprep.subr.bf16.mxu0 0
    %383 = vmatpush1.bf16.msra.mxu0 %v346
    %384 = vmatprep.subr.bf16.mxu0 0
    %385 = vmatpush1.bf16.msra.mxu0 0
    %386 = vmatprep.subr.bf16.mxu0 0
    %387 = vmatpush1.bf16.msra.mxu0 0
    %388 = vmatprep.subr.bf16.mxu0 0
    %389 = vmatpush1.bf16.msra.mxu0 0
    %390 = vmatprep.subr.bf16.mxu0 0
    %391 = vmatpush1.bf16.msra.mxu0 0
    %392 = vmatprep.subr.bf16.mxu0 0
    %393 = vmatpush1.bf16.msra.mxu0 0
    %394 = vmatprep.subr.bf16.mxu0 0
    %395 = vmatpush1.bf16.msra.mxu0 0
    %396 = vmatprep.subr.bf16.mxu0 0
    %397 = vmatpush1.bf16.msra.mxu0 0
    %398 = vmatprep.subr.bf16.mxu0 0
    %399 = vmatpush1.bf16.msra.mxu0 0
    %400 = vmatprep.subr.bf16.mxu0 0
    %401 = vmatpush1.bf16.msra.mxu0 0
    %402 = vmatprep.subr.bf16.mxu0 0
    %403 = vmatpush1.bf16.msra.mxu0 0
    %404 = vmatprep.subr.bf16.mxu0 0
    %405 = vmatpush1.bf16.msra.mxu0 0
    %406 = vmatprep.subr.bf16.mxu0 0
    %407 = vmatpush1.bf16.msra.mxu0 0
    %408 = vmatprep.mubr.bf16.mxu0 0
    %409 = vmatmul.mubr.bf16.gmra.mrb[0].mxu0 %v353
    %v410 = vpop.f32.mrb[0].mxu0
    %v411 = vadd.f32 %v325, %v410
    %v412 = vpop.f32.mrb[0].mxu0
    %v413 = vpop.f32.mrb[0].mxu0
    %v414 = vadd.f32 %v325, %v413
    %v415 = vpop.f32.mrb[0].mxu0
    %416 = vmatprep.mubr.bf16.mxu0 0
    %417 = vmatmul.mubr.bf16.gmra.mrb[0].mxu0 %v356
    %v418 = vpop.f32.mrb[0].mxu0
    %v419 = vadd.f32 %v325, %v418
    %v420 = vpop.f32.mrb[0].mxu0
    %v421 = vpop.f32.mrb[0].mxu0
    %v422 = vadd.f32 %v325, %v421
    %v423 = vpop.f32.mrb[0].mxu0
    %424 = vmatprep.mubr.bf16.mxu0 0
    %425 = vmatmul.mubr.bf16.gmra.mrb[0].mxu0 %v359
    %v426 = vpop.f32.mrb[0].mxu0
    %v427 = vadd.f32 %v325, %v426
    %v428 = vpop.f32.mrb[0].mxu0
    %v429 = vpop.f32.mrb[0].mxu0
    %v430 = vadd.f32 %v325, %v429
    %v431 = vpop.f32.mrb[0].mxu0
    %432 = vmatprep.mubr.bf16.mxu0 0
    %433 = vmatmul.mubr.bf16.gmra.mrb[0].mxu0 %v362
    %v434 = vpop.f32.mrb[0].mxu0
    %v435 = vadd.f32 %v325, %v434
    %v436 = vpop.f32.mrb[0].mxu0
    %v437 = vpop.f32.mrb[0].mxu0
    %v438 = vadd.f32 %v325, %v437
    %v439 = vpop.f32.mrb[0].mxu0
    %440 = vmatprep.mubr.bf16.mxu0 0
    %441 = vmatmul.mubr.bf16.gmra.mrb[0].mxu0 %v365
    %v442 = vpop.f32.mrb[0].mxu0
    %v443 = vadd.f32 %v325, %v442
    %v444 = vpop.f32.mrb[0].mxu0
    %v445 = vpop.f32.mrb[0].mxu0
    %v446 = vadd.f32 %v325, %v445
    %v447 = vpop.f32.mrb[0].mxu0
    %448 = vmatprep.mubr.bf16.mxu0 0
    %449 = vmatmul.mubr.bf16.gmra.mrb[0].mxu0 %v368
    %v450 = vpop.f32.mrb[0].mxu0
    %v451 = vadd.f32 %v325, %v450
    %v452 = vpop.f32.mrb[0].mxu0
    %v453 = vpop.f32.mrb[0].mxu0
    %v454 = vadd.f32 %v325, %v453
    %v455 = vpop.f32.mrb[0].mxu0
    %456 = vmatprep.mubr.bf16.mxu0 0
    %457 = vmatmul.mubr.bf16.gmra.mrb[0].mxu0 %v371
    %v458 = vpop.f32.mrb[0].mxu0
    %v459 = vadd.f32 %v325, %v458
    %v460 = vpop.f32.mrb[0].mxu0
    %v461 = vpop.f32.mrb[0].mxu0
    %v462 = vadd.f32 %v325, %v461
    %v463 = vpop.f32.mrb[0].mxu0
    %464 = vmatprep.mubr.bf16.mxu0 0
    %465 = vmatmul.mubr.bf16.gmra.mrb[0].mxu0 %v374
    %v466 = vpop.f32.mrb[0].mxu0
    %v467 = vadd.f32 %v325, %v466
    %v468 = vpop.f32.mrb[0].mxu0
    %v469 = vpop.f32.mrb[0].mxu0
    %v470 = vadd.f32 %v325, %v469
    %v471 = vpop.f32.mrb[0].mxu0
    %472 = vdwg.mxu0
    %v473 = vld [vmem:[%s4] sm:$0xf]
    %v474 = vld [vmem:[%s4 + $0x4] sm:$0xf]
    %v475 = vld [vmem:[%s4 + $0x8] sm:$0xf]
    %v476 = vld [vmem:[%s4 + $0xc] sm:$0xf]
    %v477 = vld [vmem:[%s4 + $0x10] sm:$0xf]
    %v478 = vld [vmem:[%s4 + $0x14] sm:$0xf]
    %v479 = vld [vmem:[%s4 + $0x18] sm:$0xf]
    %v480 = vld [vmem:[%s4 + $0x1c] sm:$0xf]
    %v481 = vld [vmem:[%s7] sm:$0x1]
    %v483 = vlaneseq
    %v484 = vshrl.u32 %v483, 7
    %v485 = vsub.s32 0, %v484
    %v486 = vrot.slane %v481, %v485
    %v496 = vunpack.c.l.b16 %v473
    %v497 = vunpack.c.l.b16 %v474
    %v498 = vunpack.c.l.b16 %v475
    %v499 = vunpack.c.l.b16 %v476
    %v500 = vunpack.c.l.b16 %v477
    %v501 = vunpack.c.l.b16 %v478
    %v502 = vunpack.c.l.b16 %v479
    %v503 = vunpack.c.l.b16 %v480
    %v504 = vpack.c.b16 %v497, %v496
    %v505 = vpack.c.b16 %v499, %v498
    %v506 = vpack.c.b16 %v501, %v500
    %v507 = vpack.c.b16 %v503, %v502
    %512 = vmatprep.subr.bf16.mxu0 0
    %513 = vmatpush1.bf16.msra.mxu0 %v504
    %514 = vmatprep.subr.bf16.mxu0 0
    %515 = vmatpush1.bf16.msra.mxu0 %v505
    %516 = vmatprep.subr.bf16.mxu0 0
    %517 = vmatpush1.bf16.msra.mxu0 %v506
    %518 = vmatprep.subr.bf16.mxu0 0
    %519 = vmatpush1.bf16.msra.mxu0 %v507
    %520 = vmatprep.subr.bf16.mxu0 0
    %521 = vmatpush1.bf16.msra.mxu0 0
    %522 = vmatprep.subr.bf16.mxu0 0
    %523 = vmatpush1.bf16.msra.mxu0 0
    %524 = vmatprep.subr.bf16.mxu0 0
    %525 = vmatpush1.bf16.msra.mxu0 0
    %526 = vmatprep.subr.bf16.mxu0 0
    %527 = vmatpush1.bf16.msra.mxu0 0
    %528 = vmatprep.subr.bf16.mxu0 0
    %529 = vmatpush1.bf16.msra.mxu0 0
    %530 = vmatprep.subr.bf16.mxu0 0
    %531 = vmatpush1.bf16.msra.mxu0 0
    %532 = vmatprep.subr.bf16.mxu0 0
    %533 = vmatpush1.bf16.msra.mxu0 0
    %534 = vmatprep.subr.bf16.mxu0 0
    %535 = vmatpush1.bf16.msra.mxu0 0
    %536 = vmatprep.subr.bf16.mxu0 0
    %537 = vmatpush1.bf16.msra.mxu0 0
    %538 = vmatprep.subr.bf16.mxu0 0
    %539 = vmatpush1.bf16.msra.mxu0 0
    %540 = vmatprep.subr.bf16.mxu0 0
    %541 = vmatpush1.bf16.msra.mxu0 0
    %542 = vmatprep.subr.bf16.mxu0 0
    %543 = vmatpush1.bf16.msra.mxu0 0
    %544 = vmatprep.mubr.bf16.mxu0 0
    %545 = vmatmul.mubr.bf16.gmra.mrb[0].mxu0 %v353
    %v546 = vpop.f32.mrb[0].mxu0
    %v547 = vadd.f32 %v486, %v546
    %v548 = vpop.f32.mrb[0].mxu0
    %v549 = vpop.f32.mrb[0].mxu0
    %v550 = vadd.f32 %v486, %v549
    %v551 = vpop.f32.mrb[0].mxu0
    %552 = vmatprep.mubr.bf16.mxu0 0
    %553 = vmatmul.mubr.bf16.gmra.mrb[0].mxu0 %v356
    %v554 = vpop.f32.mrb[0].mxu0
    %v555 = vadd.f32 %v486, %v554
    %v556 = vpop.f32.mrb[0].mxu0
    %v557 = vpop.f32.mrb[0].mxu0
    %v558 = vadd.f32 %v486, %v557
    %v559 = vpop.f32.mrb[0].mxu0
    %560 = vmatprep.mubr.bf16.mxu0 0
    %561 = vmatmul.mubr.bf16.gmra.mrb[0].mxu0 %v359
    %v562 = vpop.f32.mrb[0].mxu0
    %v563 = vadd.f32 %v486, %v562
    %v564 = vpop.f32.mrb[0].mxu0
    %v565 = vpop.f32.mrb[0].mxu0
    %v566 = vadd.f32 %v486, %v565
    %v567 = vpop.f32.mrb[0].mxu0
    %568 = vmatprep.mubr.bf16.mxu0 0
    %569 = vmatmul.mubr.bf16.gmra.mrb[0].mxu0 %v362
    %v570 = vpop.f32.mrb[0].mxu0
    %v571 = vadd.f32 %v486, %v570
    %v572 = vpop.f32.mrb[0].mxu0
    %v573 = vpop.f32.mrb[0].mxu0
    %v574 = vadd.f32 %v486, %v573
    %v575 = vpop.f32.mrb[0].mxu0
    %576 = vmatprep.mubr.bf16.mxu0 0
    %577 = vmatmul.mubr.bf16.gmra.mrb[0].mxu0 %v365
    %v578 = vpop.f32.mrb[0].mxu0
    %v579 = vadd.f32 %v486, %v578
    %v580 = vpop.f32.mrb[0].mxu0
    %v581 = vpop.f32.mrb[0].mxu0
    %v582 = vadd.f32 %v486, %v581
    %v583 = vpop.f32.mrb[0].mxu0
    %584 = vmatprep.mubr.bf16.mxu0 0
    %585 = vmatmul.mubr.bf16.gmra.mrb[0].mxu0 %v368
    %v586 = vpop.f32.mrb[0].mxu0
    %v587 = vadd.f32 %v486, %v586
    %v588 = vpop.f32.mrb[0].mxu0
    %v589 = vpop.f32.mrb[0].mxu0
    %v590 = vadd.f32 %v486, %v589
    %v591 = vpop.f32.mrb[0].mxu0
    %592 = vmatprep.mubr.bf16.mxu0 0
    %593 = vmatmul.mubr.bf16.gmra.mrb[0].mxu0 %v371
    %v594 = vpop.f32.mrb[0].mxu0
    %v595 = vadd.f32 %v486, %v594
    %v596 = vpop.f32.mrb[0].mxu0
    %v597 = vpop.f32.mrb[0].mxu0
    %v598 = vadd.f32 %v486, %v597
    %v599 = vpop.f32.mrb[0].mxu0
    %600 = vmatprep.mubr.bf16.mxu0 0
    %601 = vmatmul.mubr.bf16.gmra.mrb[0].mxu0 %v374
    %v602 = vpop.f32.mrb[0].mxu0
    %v603 = vadd.f32 %v486, %v602
    %v604 = vpop.f32.mrb[0].mxu0
    %v605 = vpop.f32.mrb[0].mxu0
    %v606 = vadd.f32 %v486, %v605
    %v607 = vpop.f32.mrb[0].mxu0
    %608 = vdwg.mxu0
    %v609 = vld [vmem:[%s5] sm:$0xf]
    %v610 = vld [vmem:[%s5 + $0x4] sm:$0xf]
    %v611 = vld [vmem:[%s5 + $0x8] sm:$0xf]
    %v612 = vld [vmem:[%s5 + $0xc] sm:$0xf]
    %v613 = vld [vmem:[%s5 + $0x10] sm:$0xf]
    %v614 = vld [vmem:[%s5 + $0x14] sm:$0xf]
    %v615 = vld [vmem:[%s5 + $0x18] sm:$0xf]
    %v616 = vld [vmem:[%s5 + $0x1c] sm:$0xf]
    %v617 = vld [vmem:[%s8] sm:$0x1]
    %v619 = vlaneseq
    %v620 = vshrl.u32 %v619, 7
    %v621 = vsub.s32 0, %v620
    %v622 = vrot.slane %v617, %v621
    %v632 = vunpack.c.l.b16 %v609
    %v633 = vunpack.c.l.b16 %v610
    %v634 = vunpack.c.l.b16 %v611
    %v635 = vunpack.c.l.b16 %v612
    %v636 = vunpack.c.l.b16 %v613
    %v637 = vunpack.c.l.b16 %v614
    %v638 = vunpack.c.l.b16 %v615
    %v639 = vunpack.c.l.b16 %v616
    %v640 = vpack.c.b16 %v633, %v632
    %v641 = vpack.c.b16 %v635, %v634
    %v642 = vpack.c.b16 %v637, %v636
    %v643 = vpack.c.b16 %v639, %v638
    %648 = vmatprep.subr.bf16.mxu0 0
    %649 = vmatpush1.bf16.msra.mxu0 %v640
    %650 = vmatprep.subr.bf16.mxu0 0
    %651 = vmatpush1.bf16.msra.mxu0 %v641
    %652 = vmatprep.subr.bf16.mxu0 0
    %653 = vmatpush1.bf16.msra.mxu0 %v642
    %654 = vmatprep.subr.bf16.mxu0 0
    %655 = vmatpush1.bf16.msra.mxu0 %v643
    %656 = vmatprep.subr.bf16.mxu0 0
    %657 = vmatpush1.bf16.msra.mxu0 0
    %658 = vmatprep.subr.bf16.mxu0 0
    %659 = vmatpush1.bf16.msra.mxu0 0
    %660 = vmatprep.subr.bf16.mxu0 0
    %661 = vmatpush1.bf16.msra.mxu0 0
    %662 = vmatprep.subr.bf16.mxu0 0
    %663 = vmatpush1.bf16.msra.mxu0 0
    %664 = vmatprep.subr.bf16.mxu0 0
    %665 = vmatpush1.bf16.msra.mxu0 0
    %666 = vmatprep.subr.bf16.mxu0 0
    %667 = vmatpush1.bf16.msra.mxu0 0
    %668 = vmatprep.subr.bf16.mxu0 0
    %669 = vmatpush1.bf16.msra.mxu0 0
    %670 = vmatprep.subr.bf16.mxu0 0
    %671 = vmatpush1.bf16.msra.mxu0 0
    %672 = vmatprep.subr.bf16.mxu0 0
    %673 = vmatpush1.bf16.msra.mxu0 0
    %674 = vmatprep.subr.bf16.mxu0 0
    %675 = vmatpush1.bf16.msra.mxu0 0
    %676 = vmatprep.subr.bf16.mxu0 0
    %677 = vmatpush1.bf16.msra.mxu0 0
    %678 = vmatprep.subr.bf16.mxu0 0
    %679 = vmatpush1.bf16.msra.mxu0 0
    %680 = vmatprep.mubr.bf16.mxu0 0
    %681 = vmatmul.mubr.bf16.gmra.mrb[0].mxu0 %v353
    %v682 = vpop.f32.mrb[0].mxu0
    %v683 = vadd.f32 %v622, %v682
    %v684 = vpop.f32.mrb[0].mxu0
    %v685 = vpop.f32.mrb[0].mxu0
    %v686 = vadd.f32 %v622, %v685
    %v687 = vpop.f32.mrb[0].mxu0
    %688 = vmatprep.mubr.bf16.mxu0 0
    %689 = vmatmul.mubr.bf16.gmra.mrb[0].mxu0 %v356
    %v690 = vpop.f32.mrb[0].mxu0
    %v691 = vadd.f32 %v622, %v690
    %v692 = vpop.f32.mrb[0].mxu0
    %v693 = vpop.f32.mrb[0].mxu0
    %v694 = vadd.f32 %v622, %v693
    %v695 = vpop.f32.mrb[0].mxu0
    %696 = vmatprep.mubr.bf16.mxu0 0
    %697 = vmatmul.mubr.bf16.gmra.mrb[0].mxu0 %v359
    %v698 = vpop.f32.mrb[0].mxu0
    %v699 = vadd.f32 %v622, %v698
    %v700 = vpop.f32.mrb[0].mxu0
    %v701 = vpop.f32.mrb[0].mxu0
    %v702 = vadd.f32 %v622, %v701
    %v703 = vpop.f32.mrb[0].mxu0
    %704 = vmatprep.mubr.bf16.mxu0 0
    %705 = vmatmul.mubr.bf16.gmra.mrb[0].mxu0 %v362
    %v706 = vpop.f32.mrb[0].mxu0
    %v707 = vadd.f32 %v622, %v706
    %v708 = vpop.f32.mrb[0].mxu0
    %v709 = vpop.f32.mrb[0].mxu0
    %v710 = vadd.f32 %v622, %v709
    %v711 = vpop.f32.mrb[0].mxu0
    %712 = vmatprep.mubr.bf16.mxu0 0
    %713 = vmatmul.mubr.bf16.gmra.mrb[0].mxu0 %v365
    %v714 = vpop.f32.mrb[0].mxu0
    %v715 = vadd.f32 %v622, %v714
    %v716 = vpop.f32.mrb[0].mxu0
    %v717 = vpop.f32.mrb[0].mxu0
    %v718 = vadd.f32 %v622, %v717
    %v719 = vpop.f32.mrb[0].mxu0
    %720 = vmatprep.mubr.bf16.mxu0 0
    %721 = vmatmul.mubr.bf16.gmra.mrb[0].mxu0 %v368
    %v722 = vpop.f32.mrb[0].mxu0
    %v723 = vadd.f32 %v622, %v722
    %v724 = vpop.f32.mrb[0].mxu0
    %v725 = vpop.f32.mrb[0].mxu0
    %v726 = vadd.f32 %v622, %v725
    %v727 = vpop.f32.mrb[0].mxu0
    %728 = vmatprep.mubr.bf16.mxu0 0
    %729 = vmatmul.mubr.bf16.gmra.mrb[0].mxu0 %v371
    %v730 = vpop.f32.mrb[0].mxu0
    %v731 = vadd.f32 %v622, %v730
    %v732 = vpop.f32.mrb[0].mxu0
    %v733 = vpop.f32.mrb[0].mxu0
    %v734 = vadd.f32 %v622, %v733
    %v735 = vpop.f32.mrb[0].mxu0
    %736 = vmatprep.mubr.bf16.mxu0 0
    %737 = vmatmul.mubr.bf16.gmra.mrb[0].mxu0 %v374
    %v738 = vpop.f32.mrb[0].mxu0
    %v739 = vadd.f32 %v622, %v738
    %v740 = vpop.f32.mrb[0].mxu0
    %v741 = vpop.f32.mrb[0].mxu0
    %v742 = vadd.f32 %v622, %v741
    %v743 = vpop.f32.mrb[0].mxu0
    %744 = vdwg.mxu0
    %v745 = vpack.c.bf16 %v414, %v411
    %v746 = vpack.c.bf16 %v422, %v419
    %v747 = vpack.c.bf16 %v430, %v427
    %v748 = vpack.c.bf16 %v438, %v435
    %v749 = vpack.c.bf16 %v446, %v443
    %v750 = vpack.c.bf16 %v454, %v451
    %v751 = vpack.c.bf16 %v462, %v459
    %v752 = vpack.c.bf16 %v470, %v467
    %v753 = vpack.c.bf16 %v550, %v547
    %v754 = vpack.c.bf16 %v558, %v555
    %v755 = vpack.c.bf16 %v566, %v563
    %v756 = vpack.c.bf16 %v574, %v571
    %v757 = vpack.c.bf16 %v582, %v579
    %v758 = vpack.c.bf16 %v590, %v587
    %v759 = vpack.c.bf16 %v598, %v595
    %v760 = vpack.c.bf16 %v606, %v603
    %vm761 = vcmask 130048
    %v763 = vsel %vm761, %v745, 0
    %v766 = vsel %vm761, %v753, 0
    %768 = vmatprep.subr.bf16.mxu0 0
    %769 = vmatpush1.bf16.xpose.msra.mxu0 %v766
    %770 = vmatprep.subr.bf16.mxu0 0
    %771 = vmatpush1.bf16.xpose.msra.mxu0 0
    %772 = vmatprep.subr.bf16.mxu0 0
    %773 = vmatpush1.bf16.xpose.msra.mxu0 0
    %774 = vmatprep.subr.bf16.mxu0 0
    %775 = vmatpush1.bf16.xpose.msra.mxu0 0
    %776 = vmatprep.subr.bf16.mxu0 0
    %777 = vmatpush1.bf16.xpose.msra.mxu0 0
    %778 = vmatprep.subr.bf16.mxu0 0
    %779 = vmatpush1.bf16.xpose.msra.mxu0 0
    %780 = vmatprep.subr.bf16.mxu0 0
    %781 = vmatpush1.bf16.xpose.msra.mxu0 0
    %782 = vmatprep.subr.bf16.mxu0 0
    %783 = vmatpush1.bf16.xpose.msra.mxu0 0
    %784 = vmatprep.subr.bf16.mxu0 0
    %785 = vmatpush1.bf16.xpose.msra.mxu0 0
    %786 = vmatprep.subr.bf16.mxu0 0
    %787 = vmatpush1.bf16.xpose.msra.mxu0 0
    %788 = vmatprep.subr.bf16.mxu0 0
    %789 = vmatpush1.bf16.xpose.msra.mxu0 0
    %790 = vmatprep.subr.bf16.mxu0 0
    %791 = vmatpush1.bf16.xpose.msra.mxu0 0
    %792 = vmatprep.subr.bf16.mxu0 0
    %793 = vmatpush1.bf16.xpose.msra.mxu0 0
    %794 = vmatprep.subr.bf16.mxu0 0
    %795 = vmatpush1.bf16.xpose.msra.mxu0 0
    %796 = vmatprep.subr.bf16.mxu0 0
    %797 = vmatpush1.bf16.xpose.msra.mxu0 0
    %798 = vmatprep.subr.bf16.mxu0 0
    %799 = vmatpush1.bf16.xpose.msra.mxu0 0
    %800 = vmatprep.mubr.bf16.mxu0 0
    %801 = vmatmul.mubr.bf16.gmra.mrb[0].mxu0 %v763
    %v802 = vpop.f32.mrb[0].mxu0
    %v803 = vadd.f32 0.0, %v802
    %v804 = vpop.f32.mrb[0].mxu0
    %v805 = vpop.f32.mrb[0].mxu0
    %v806 = vadd.f32 0.0, %v805
    %v807 = vpop.f32.mrb[0].mxu0
    %808 = vdwg.mxu0
    %v810 = vsel %vm761, %v746, 0
    %v813 = vsel %vm761, %v754, 0
    %815 = vmatprep.subr.bf16.mxu0 0
    %816 = vmatpush1.bf16.xpose.msra.mxu0 %v813
    %817 = vmatprep.subr.bf16.mxu0 0
    %818 = vmatpush1.bf16.xpose.msra.mxu0 0
    %819 = vmatprep.subr.bf16.mxu0 0
    %820 = vmatpush1.bf16.xpose.msra.mxu0 0
    %821 = vmatprep.subr.bf16.mxu0 0
    %822 = vmatpush1.bf16.xpose.msra.mxu0 0
    %823 = vmatprep.subr.bf16.mxu0 0
    %824 = vmatpush1.bf16.xpose.msra.mxu0 0
    %825 = vmatprep.subr.bf16.mxu0 0
    %826 = vmatpush1.bf16.xpose.msra.mxu0 0
    %827 = vmatprep.subr.bf16.mxu0 0
    %828 = vmatpush1.bf16.xpose.msra.mxu0 0
    %829 = vmatprep.subr.bf16.mxu0 0
    %830 = vmatpush1.bf16.xpose.msra.mxu0 0
    %831 = vmatprep.subr.bf16.mxu0 0
    %832 = vmatpush1.bf16.xpose.msra.mxu0 0
    %833 = vmatprep.subr.bf16.mxu0 0
    %834 = vmatpush1.bf16.xpose.msra.mxu0 0
    %835 = vmatprep.subr.bf16.mxu0 0
    %836 = vmatpush1.bf16.xpose.msra.mxu0 0
    %837 = vmatprep.subr.bf16.mxu0 0
    %838 = vmatpush1.bf16.xpose.msra.mxu0 0
    %839 = vmatprep.subr.bf16.mxu0 0
    %840 = vmatpush1.bf16.xpose.msra.mxu0 0
    %841 = vmatprep.subr.bf16.mxu0 0
    %842 = vmatpush1.bf16.xpose.msra.mxu0 0
    %843 = vmatprep.subr.bf16.mxu0 0
    %844 = vmatpush1.bf16.xpose.msra.mxu0 0
    %845 = vmatprep.subr.bf16.mxu0 0
    %846 = vmatpush1.bf16.xpose.msra.mxu0 0
    %847 = vmatprep.mubr.bf16.mxu0 0
    %848 = vmatmul.mubr.bf16.gmra.mrb[0].mxu0 %v810
    %v849 = vpop.f32.mrb[0].mxu0
    %v850 = vadd.f32 0.0, %v849
    %v851 = vpop.f32.mrb[0].mxu0
    %v852 = vpop.f32.mrb[0].mxu0
    %v853 = vadd.f32 0.0, %v852
    %v854 = vpop.f32.mrb[0].mxu0
    %855 = vdwg.mxu0
    %v857 = vsel %vm761, %v747, 0
    %v860 = vsel %vm761, %v755, 0
    %862 = vmatprep.subr.bf16.mxu0 0
    %863 = vmatpush1.bf16.xpose.msra.mxu0 %v860
    %864 = vmatprep.subr.bf16.mxu0 0
    %865 = vmatpush1.bf16.xpose.msra.mxu0 0
    %866 = vmatprep.subr.bf16.mxu0 0
    %867 = vmatpush1.bf16.xpose.msra.mxu0 0
    %868 = vmatprep.subr.bf16.mxu0 0
    %869 = vmatpush1.bf16.xpose.msra.mxu0 0
    %870 = vmatprep.subr.bf16.mxu0 0
    %871 = vmatpush1.bf16.xpose.msra.mxu0 0
    %872 = vmatprep.subr.bf16.mxu0 0
    %873 = vmatpush1.bf16.xpose.msra.mxu0 0
    %874 = vmatprep.subr.bf16.mxu0 0
    %875 = vmatpush1.bf16.xpose.msra.mxu0 0
    %876 = vmatprep.subr.bf16.mxu0 0
    %877 = vmatpush1.bf16.xpose.msra.mxu0 0
    %878 = vmatprep.subr.bf16.mxu0 0
    %879 = vmatpush1.bf16.xpose.msra.mxu0 0
    %880 = vmatprep.subr.bf16.mxu0 0
    %881 = vmatpush1.bf16.xpose.msra.mxu0 0
    %882 = vmatprep.subr.bf16.mxu0 0
    %883 = vmatpush1.bf16.xpose.msra.mxu0 0
    %884 = vmatprep.subr.bf16.mxu0 0
    %885 = vmatpush1.bf16.xpose.msra.mxu0 0
    %886 = vmatprep.subr.bf16.mxu0 0
    %887 = vmatpush1.bf16.xpose.msra.mxu0 0
    %888 = vmatprep.subr.bf16.mxu0 0
    %889 = vmatpush1.bf16.xpose.msra.mxu0 0
    %890 = vmatprep.subr.bf16.mxu0 0
    %891 = vmatpush1.bf16.xpose.msra.mxu0 0
    %892 = vmatprep.subr.bf16.mxu0 0
    %893 = vmatpush1.bf16.xpose.msra.mxu0 0
    %894 = vmatprep.mubr.bf16.mxu0 0
    %895 = vmatmul.mubr.bf16.gmra.mrb[0].mxu0 %v857
    %v896 = vpop.f32.mrb[0].mxu0
    %v897 = vadd.f32 0.0, %v896
    %v898 = vpop.f32.mrb[0].mxu0
    %v899 = vpop.f32.mrb[0].mxu0
    %v900 = vadd.f32 0.0, %v899
    %v901 = vpop.f32.mrb[0].mxu0
    %902 = vdwg.mxu0
    %v904 = vsel %vm761, %v748, 0
    %v907 = vsel %vm761, %v756, 0
    %909 = vmatprep.subr.bf16.mxu0 0
    %910 = vmatpush1.bf16.xpose.msra.mxu0 %v907
    %911 = vmatprep.subr.bf16.mxu0 0
    %912 = vmatpush1.bf16.xpose.msra.mxu0 0
    %913 = vmatprep.subr.bf16.mxu0 0
    %914 = vmatpush1.bf16.xpose.msra.mxu0 0
    %915 = vmatprep.subr.bf16.mxu0 0
    %916 = vmatpush1.bf16.xpose.msra.mxu0 0
    %917 = vmatprep.subr.bf16.mxu0 0
    %918 = vmatpush1.bf16.xpose.msra.mxu0 0
    %919 = vmatprep.subr.bf16.mxu0 0
    %920 = vmatpush1.bf16.xpose.msra.mxu0 0
    %921 = vmatprep.subr.bf16.mxu0 0
    %922 = vmatpush1.bf16.xpose.msra.mxu0 0
    %923 = vmatprep.subr.bf16.mxu0 0
    %924 = vmatpush1.bf16.xpose.msra.mxu0 0
    %925 = vmatprep.subr.bf16.mxu0 0
    %926 = vmatpush1.bf16.xpose.msra.mxu0 0
    %927 = vmatprep.subr.bf16.mxu0 0
    %928 = vmatpush1.bf16.xpose.msra.mxu0 0
    %929 = vmatprep.subr.bf16.mxu0 0
    %930 = vmatpush1.bf16.xpose.msra.mxu0 0
    %931 = vmatprep.subr.bf16.mxu0 0
    %932 = vmatpush1.bf16.xpose.msra.mxu0 0
    %933 = vmatprep.subr.bf16.mxu0 0
    %934 = vmatpush1.bf16.xpose.msra.mxu0 0
    %935 = vmatprep.subr.bf16.mxu0 0
    %936 = vmatpush1.bf16.xpose.msra.mxu0 0
    %937 = vmatprep.subr.bf16.mxu0 0
    %938 = vmatpush1.bf16.xpose.msra.mxu0 0
    %939 = vmatprep.subr.bf16.mxu0 0
    %940 = vmatpush1.bf16.xpose.msra.mxu0 0
    %941 = vmatprep.mubr.bf16.mxu0 0
    %942 = vmatmul.mubr.bf16.gmra.mrb[0].mxu0 %v904
    %v943 = vpop.f32.mrb[0].mxu0
    %v944 = vadd.f32 0.0, %v943
    %v945 = vpop.f32.mrb[0].mxu0
    %v946 = vpop.f32.mrb[0].mxu0
    %v947 = vadd.f32 0.0, %v946
    %v948 = vpop.f32.mrb[0].mxu0
    %949 = vdwg.mxu0
    %v951 = vsel %vm761, %v749, 0
    %v954 = vsel %vm761, %v757, 0
    %956 = vmatprep.subr.bf16.mxu0 0
    %957 = vmatpush1.bf16.xpose.msra.mxu0 %v954
    %958 = vmatprep.subr.bf16.mxu0 0
    %959 = vmatpush1.bf16.xpose.msra.mxu0 0
    %960 = vmatprep.subr.bf16.mxu0 0
    %961 = vmatpush1.bf16.xpose.msra.mxu0 0
    %962 = vmatprep.subr.bf16.mxu0 0
    %963 = vmatpush1.bf16.xpose.msra.mxu0 0
    %964 = vmatprep.subr.bf16.mxu0 0
    %965 = vmatpush1.bf16.xpose.msra.mxu0 0
    %966 = vmatprep.subr.bf16.mxu0 0
    %967 = vmatpush1.bf16.xpose.msra.mxu0 0
    %968 = vmatprep.subr.bf16.mxu0 0
    %969 = vmatpush1.bf16.xpose.msra.mxu0 0
    %970 = vmatprep.subr.bf16.mxu0 0
    %971 = vmatpush1.bf16.xpose.msra.mxu0 0
    %972 = vmatprep.subr.bf16.mxu0 0
    %973 = vmatpush1.bf16.xpose.msra.mxu0 0
    %974 = vmatprep.subr.bf16.mxu0 0
    %975 = vmatpush1.bf16.xpose.msra.mxu0 0
    %976 = vmatprep.subr.bf16.mxu0 0
    %977 = vmatpush1.bf16.xpose.msra.mxu0 0
    %978 = vmatprep.subr.bf16.mxu0 0
    %979 = vmatpush1.bf16.xpose.msra.mxu0 0
    %980 = vmatprep.subr.bf16.mxu0 0
    %981 = vmatpush1.bf16.xpose.msra.mxu0 0
    %982 = vmatprep.subr.bf16.mxu0 0
    %983 = vmatpush1.bf16.xpose.msra.mxu0 0
    %984 = vmatprep.subr.bf16.mxu0 0
    %985 = vmatpush1.bf16.xpose.msra.mxu0 0
    %986 = vmatprep.subr.bf16.mxu0 0
    %987 = vmatpush1.bf16.xpose.msra.mxu0 0
    %988 = vmatprep.mubr.bf16.mxu0 0
    %989 = vmatmul.mubr.bf16.gmra.mrb[0].mxu0 %v951
    %v990 = vpop.f32.mrb[0].mxu0
    %v991 = vadd.f32 0.0, %v990
    %v992 = vpop.f32.mrb[0].mxu0
    %v993 = vpop.f32.mrb[0].mxu0
    %v994 = vadd.f32 0.0, %v993
    %v995 = vpop.f32.mrb[0].mxu0
    %996 = vdwg.mxu0
    %v998 = vsel %vm761, %v750, 0
    %v1001 = vsel %vm761, %v758, 0
    %1003 = vmatprep.subr.bf16.mxu0 0
    %1004 = vmatpush1.bf16.xpose.msra.mxu0 %v1001
    %1005 = vmatprep.subr.bf16.mxu0 0
    %1006 = vmatpush1.bf16.xpose.msra.mxu0 0
    %1007 = vmatprep.subr.bf16.mxu0 0
    %1008 = vmatpush1.bf16.xpose.msra.mxu0 0
    %1009 = vmatprep.subr.bf16.mxu0 0
    %1010 = vmatpush1.bf16.xpose.msra.mxu0 0
    %1011 = vmatprep.subr.bf16.mxu0 0
    %1012 = vmatpush1.bf16.xpose.msra.mxu0 0
    %1013 = vmatprep.subr.bf16.mxu0 0
    %1014 = vmatpush1.bf16.xpose.msra.mxu0 0
    %1015 = vmatprep.subr.bf16.mxu0 0
    %1016 = vmatpush1.bf16.xpose.msra.mxu0 0
    %1017 = vmatprep.subr.bf16.mxu0 0
    %1018 = vmatpush1.bf16.xpose.msra.mxu0 0
    %1019 = vmatprep.subr.bf16.mxu0 0
    %1020 = vmatpush1.bf16.xpose.msra.mxu0 0
    %1021 = vmatprep.subr.bf16.mxu0 0
    %1022 = vmatpush1.bf16.xpose.msra.mxu0 0
    %1023 = vmatprep.subr.bf16.mxu0 0
    %1024 = vmatpush1.bf16.xpose.msra.mxu0 0
    %1025 = vmatprep.subr.bf16.mxu0 0
    %1026 = vmatpush1.bf16.xpose.msra.mxu0 0
    %1027 = vmatprep.subr.bf16.mxu0 0
    %1028 = vmatpush1.bf16.xpose.msra.mxu0 0
    %1029 = vmatprep.subr.bf16.mxu0 0
    %1030 = vmatpush1.bf16.xpose.msra.mxu0 0
    %1031 = vmatprep.subr.bf16.mxu0 0
    %1032 = vmatpush1.bf16.xpose.msra.mxu0 0
    %1033 = vmatprep.subr.bf16.mxu0 0
    %1034 = vmatpush1.bf16.xpose.msra.mxu0 0
    %1035 = vmatprep.mubr.bf16.mxu0 0
    %1036 = vmatmul.mubr.bf16.gmra.mrb[0].mxu0 %v998
    %v1037 = vpop.f32.mrb[0].mxu0
    %v1038 = vadd.f32 0.0, %v1037
    %v1039 = vpop.f32.mrb[0].mxu0
    %v1040 = vpop.f32.mrb[0].mxu0
    %v1041 = vadd.f32 0.0, %v1040
    %v1042 = vpop.f32.mrb[0].mxu0
    %1043 = vdwg.mxu0
    %v1045 = vsel %vm761, %v751, 0
    %v1048 = vsel %vm761, %v759, 0
    %1050 = vmatprep.subr.bf16.mxu0 0
    %1051 = vmatpush1.bf16.xpose.msra.mxu0 %v1048
    %1052 = vmatprep.subr.bf16.mxu0 0
    %1053 = vmatpush1.bf16.xpose.msra.mxu0 0
    %1054 = vmatprep.subr.bf16.mxu0 0
    %1055 = vmatpush1.bf16.xpose.msra.mxu0 0
    %1056 = vmatprep.subr.bf16.mxu0 0
    %1057 = vmatpush1.bf16.xpose.msra.mxu0 0
    %1058 = vmatprep.subr.bf16.mxu0 0
    %1059 = vmatpush1.bf16.xpose.msra.mxu0 0
    %1060 = vmatprep.subr.bf16.mxu0 0
    %1061 = vmatpush1.bf16.xpose.msra.mxu0 0
    %1062 = vmatprep.subr.bf16.mxu0 0
    %1063 = vmatpush1.bf16.xpose.msra.mxu0 0
    %1064 = vmatprep.subr.bf16.mxu0 0
    %1065 = vmatpush1.bf16.xpose.msra.mxu0 0
    %1066 = vmatprep.subr.bf16.mxu0 0
    %1067 = vmatpush1.bf16.xpose.msra.mxu0 0
    %1068 = vmatprep.subr.bf16.mxu0 0
    %1069 = vmatpush1.bf16.xpose.msra.mxu0 0
    %1070 = vmatprep.subr.bf16.mxu0 0
    %1071 = vmatpush1.bf16.xpose.msra.mxu0 0
    %1072 = vmatprep.subr.bf16.mxu0 0
    %1073 = vmatpush1.bf16.xpose.msra.mxu0 0
    %1074 = vmatprep.subr.bf16.mxu0 0
    %1075 = vmatpush1.bf16.xpose.msra.mxu0 0
    %1076 = vmatprep.subr.bf16.mxu0 0
    %1077 = vmatpush1.bf16.xpose.msra.mxu0 0
    %1078 = vmatprep.subr.bf16.mxu0 0
    %1079 = vmatpush1.bf16.xpose.msra.mxu0 0
    %1080 = vmatprep.subr.bf16.mxu0 0
    %1081 = vmatpush1.bf16.xpose.msra.mxu0 0
    %1082 = vmatprep.mubr.bf16.mxu0 0
    %1083 = vmatmul.mubr.bf16.gmra.mrb[0].mxu0 %v1045
    %v1084 = vpop.f32.mrb[0].mxu0
    %v1085 = vadd.f32 0.0, %v1084
    %v1086 = vpop.f32.mrb[0].mxu0
    %v1087 = vpop.f32.mrb[0].mxu0
    %v1088 = vadd.f32 0.0, %v1087
    %v1089 = vpop.f32.mrb[0].mxu0
    %1090 = vdwg.mxu0
    %v1092 = vsel %vm761, %v752, 0
    %v1095 = vsel %vm761, %v760, 0
    %1097 = vmatprep.subr.bf16.mxu0 0
    %1098 = vmatpush1.bf16.xpose.msra.mxu0 %v1095
    %1099 = vmatprep.subr.bf16.mxu0 0
    %1100 = vmatpush1.bf16.xpose.msra.mxu0 0
    %1101 = vmatprep.subr.bf16.mxu0 0
    %1102 = vmatpush1.bf16.xpose.msra.mxu0 0
    %1103 = vmatprep.subr.bf16.mxu0 0
    %1104 = vmatpush1.bf16.xpose.msra.mxu0 0
    %1105 = vmatprep.subr.bf16.mxu0 0
    %1106 = vmatpush1.bf16.xpose.msra.mxu0 0
    %1107 = vmatprep.subr.bf16.mxu0 0
    %1108 = vmatpush1.bf16.xpose.msra.mxu0 0
    %1109 = vmatprep.subr.bf16.mxu0 0
    %1110 = vmatpush1.bf16.xpose.msra.mxu0 0
    %1111 = vmatprep.subr.bf16.mxu0 0
    %1112 = vmatpush1.bf16.xpose.msra.mxu0 0
    %1113 = vmatprep.subr.bf16.mxu0 0
    %1114 = vmatpush1.bf16.xpose.msra.mxu0 0
    %1115 = vmatprep.subr.bf16.mxu0 0
    %1116 = vmatpush1.bf16.xpose.msra.mxu0 0
    %1117 = vmatprep.subr.bf16.mxu0 0
    %1118 = vmatpush1.bf16.xpose.msra.mxu0 0
    %1119 = vmatprep.subr.bf16.mxu0 0
    %1120 = vmatpush1.bf16.xpose.msra.mxu0 0
    %1121 = vmatprep.subr.bf16.mxu0 0
    %1122 = vmatpush1.bf16.xpose.msra.mxu0 0
    %1123 = vmatprep.subr.bf16.mxu0 0
    %1124 = vmatpush1.bf16.xpose.msra.mxu0 0
    %1125 = vmatprep.subr.bf16.mxu0 0
    %1126 = vmatpush1.bf16.xpose.msra.mxu0 0
    %1127 = vmatprep.subr.bf16.mxu0 0
    %1128 = vmatpush1.bf16.xpose.msra.mxu0 0
    %1129 = vmatprep.mubr.bf16.mxu0 0
    %1130 = vmatmul.mubr.bf16.gmra.mrb[0].mxu0 %v1092
    %v1131 = vpop.f32.mrb[0].mxu0
    %v1132 = vadd.f32 0.0, %v1131
    %v1133 = vpop.f32.mrb[0].mxu0
    %v1134 = vpop.f32.mrb[0].mxu0
    %v1135 = vadd.f32 0.0, %v1134
    %v1136 = vpop.f32.mrb[0].mxu0
    %1137 = vdwg.mxu0
    %v1138 = vsel %vm761, %v803, -inf
    %1139 = vmax.xlane.f32.xlu0 %v1138
    %v1140 = vpop.xlane.xlu0 %1139
    %v1141 = vsel %vm761, %v806, -inf
    %1142 = vmax.xlane.f32.xlu0 %v1141
    %v1143 = vpop.xlane.xlu0 %1142
    %v1144 = vsel %vm761, %v850, -inf
    %1145 = vmax.xlane.f32.xlu0 %v1144
    %v1146 = vpop.xlane.xlu0 %1145
    %v1147 = vsel %vm761, %v853, -inf
    %1148 = vmax.xlane.f32.xlu0 %v1147
    %v1149 = vpop.xlane.xlu0 %1148
    %v1150 = vsel %vm761, %v897, -inf
    %1151 = vmax.xlane.f32.xlu0 %v1150
    %v1152 = vpop.xlane.xlu0 %1151
    %v1153 = vsel %vm761, %v900, -inf
    %1154 = vmax.xlane.f32.xlu0 %v1153
    %v1155 = vpop.xlane.xlu0 %1154
    %v1156 = vsel %vm761, %v944, -inf
    %1157 = vmax.xlane.f32.xlu0 %v1156
    %v1158 = vpop.xlane.xlu0 %1157
    %v1159 = vsel %vm761, %v947, -inf
    %1160 = vmax.xlane.f32.xlu0 %v1159
    %v1161 = vpop.xlane.xlu0 %1160
    %v1162 = vsel %vm761, %v991, -inf
    %1163 = vmax.xlane.f32.xlu0 %v1162
    %v1164 = vpop.xlane.xlu0 %1163
    %v1165 = vsel %vm761, %v994, -inf
    %1166 = vmax.xlane.f32.xlu0 %v1165
    %v1167 = vpop.xlane.xlu0 %1166
    %v1168 = vsel %vm761, %v1038, -inf
    %1169 = vmax.xlane.f32.xlu0 %v1168
    %v1170 = vpop.xlane.xlu0 %1169
    %v1171 = vsel %vm761, %v1041, -inf
    %1172 = vmax.xlane.f32.xlu0 %v1171
    %v1173 = vpop.xlane.xlu0 %1172
    %v1174 = vsel %vm761, %v1085, -inf
    %1175 = vmax.xlane.f32.xlu0 %v1174
    %v1176 = vpop.xlane.xlu0 %1175
    %v1177 = vsel %vm761, %v1088, -inf
    %1178 = vmax.xlane.f32.xlu0 %v1177
    %v1179 = vpop.xlane.xlu0 %1178
    %v1180 = vsel %vm761, %v1132, -inf
    %1181 = vmax.xlane.f32.xlu0 %v1180
    %v1182 = vpop.xlane.xlu0 %1181
    %v1183 = vsel %vm761, %v1135, -inf
    %1184 = vmax.xlane.f32.xlu0 %v1183
    %v1185 = vpop.xlane.xlu0 %1184
    %v1186 = vsub.f32 %v803, %v1140
    %v1187 = vsub.f32 %v806, %v1143
    %v1188 = vsub.f32 %v850, %v1146
    %v1189 = vsub.f32 %v853, %v1149
    %v1190 = vsub.f32 %v897, %v1152
    %v1191 = vsub.f32 %v900, %v1155
    %v1192 = vsub.f32 %v944, %v1158
    %v1193 = vsub.f32 %v947, %v1161
    %v1194 = vsub.f32 %v991, %v1164
    %v1195 = vsub.f32 %v994, %v1167
    %v1196 = vsub.f32 %v1038, %v1170
    %v1197 = vsub.f32 %v1041, %v1173
    %v1198 = vsub.f32 %v1085, %v1176
    %v1199 = vsub.f32 %v1088, %v1179
    %v1200 = vsub.f32 %v1132, %v1182
    %v1201 = vsub.f32 %v1135, %v1185
    %v1202 = vmul.f32 %v1186, 1.442695
    %v1203 = vpow.pop %v1202
    %v1204 = vmul.f32 %v1187, 1.442695
    %v1205 = vpow.pop %v1204
    %v1206 = vmul.f32 %v1188, 1.442695
    %v1207 = vpow.pop %v1206
    %v1208 = vmul.f32 %v1189, 1.442695
    %v1209 = vpow.pop %v1208
    %v1210 = vmul.f32 %v1190, 1.442695
    %v1211 = vpow.pop %v1210
    %v1212 = vmul.f32 %v1191, 1.442695
    %v1213 = vpow.pop %v1212
    %v1214 = vmul.f32 %v1192, 1.442695
    %v1215 = vpow.pop %v1214
    %v1216 = vmul.f32 %v1193, 1.442695
    %v1217 = vpow.pop %v1216
    %v1218 = vmul.f32 %v1194, 1.442695
    %v1219 = vpow.pop %v1218
    %v1220 = vmul.f32 %v1195, 1.442695
    %v1221 = vpow.pop %v1220
    %v1222 = vmul.f32 %v1196, 1.442695
    %v1223 = vpow.pop %v1222
    %v1224 = vmul.f32 %v1197, 1.442695
    %v1225 = vpow.pop %v1224
    %v1226 = vmul.f32 %v1198, 1.442695
    %v1227 = vpow.pop %v1226
    %v1228 = vmul.f32 %v1199, 1.442695
    %v1229 = vpow.pop %v1228
    %v1230 = vmul.f32 %v1200, 1.442695
    %v1231 = vpow.pop %v1230
    %v1232 = vmul.f32 %v1201, 1.442695
    %v1233 = vpow.pop %v1232
    %v1234 = vsel %vm761, %v1203, 0.0
    %1235 = vadd.xlane.f32.xlu0 %v1234
    %v1236 = vpop.xlane.xlu0 %1235
    %v1237 = vsel %vm761, %v1205, 0.0
    %1238 = vadd.xlane.f32.xlu0 %v1237
    %v1239 = vpop.xlane.xlu0 %1238
    %v1240 = vsel %vm761, %v1207, 0.0
    %1241 = vadd.xlane.f32.xlu0 %v1240
    %v1242 = vpop.xlane.xlu0 %1241
    %v1243 = vsel %vm761, %v1209, 0.0
    %1244 = vadd.xlane.f32.xlu0 %v1243
    %v1245 = vpop.xlane.xlu0 %1244
    %v1246 = vsel %vm761, %v1211, 0.0
    %1247 = vadd.xlane.f32.xlu0 %v1246
    %v1248 = vpop.xlane.xlu0 %1247
    %v1249 = vsel %vm761, %v1213, 0.0
    %1250 = vadd.xlane.f32.xlu0 %v1249
    %v1251 = vpop.xlane.xlu0 %1250
    %v1252 = vsel %vm761, %v1215, 0.0
    %1253 = vadd.xlane.f32.xlu0 %v1252
    %v1254 = vpop.xlane.xlu0 %1253
    %v1255 = vsel %vm761, %v1217, 0.0
    %1256 = vadd.xlane.f32.xlu0 %v1255
    %v1257 = vpop.xlane.xlu0 %1256
    %v1258 = vsel %vm761, %v1219, 0.0
    %1259 = vadd.xlane.f32.xlu0 %v1258
    %v1260 = vpop.xlane.xlu0 %1259
    %v1261 = vsel %vm761, %v1221, 0.0
    %1262 = vadd.xlane.f32.xlu0 %v1261
    %v1263 = vpop.xlane.xlu0 %1262
    %v1264 = vsel %vm761, %v1223, 0.0
    %1265 = vadd.xlane.f32.xlu0 %v1264
    %v1266 = vpop.xlane.xlu0 %1265
    %v1267 = vsel %vm761, %v1225, 0.0
    %1268 = vadd.xlane.f32.xlu0 %v1267
    %v1269 = vpop.xlane.xlu0 %1268
    %v1270 = vsel %vm761, %v1227, 0.0
    %1271 = vadd.xlane.f32.xlu0 %v1270
    %v1272 = vpop.xlane.xlu0 %1271
    %v1273 = vsel %vm761, %v1229, 0.0
    %1274 = vadd.xlane.f32.xlu0 %v1273
    %v1275 = vpop.xlane.xlu0 %1274
    %v1276 = vsel %vm761, %v1231, 0.0
    %1277 = vadd.xlane.f32.xlu0 %v1276
    %v1278 = vpop.xlane.xlu0 %1277
    %v1279 = vsel %vm761, %v1233, 0.0
    %1280 = vadd.xlane.f32.xlu0 %v1279
    %v1281 = vpop.xlane.xlu0 %1280
    %v1282 = vrcp.pop %v1236
    %v1283 = vrcp.pop %v1239
    %v1284 = vrcp.pop %v1242
    %v1285 = vrcp.pop %v1245
    %v1286 = vrcp.pop %v1248
    %v1287 = vrcp.pop %v1251
    %v1288 = vrcp.pop %v1254
    %v1289 = vrcp.pop %v1257
    %v1290 = vrcp.pop %v1260
    %v1291 = vrcp.pop %v1263
    %v1292 = vrcp.pop %v1266
    %v1293 = vrcp.pop %v1269
    %v1294 = vrcp.pop %v1272
    %v1295 = vrcp.pop %v1275
    %v1296 = vrcp.pop %v1278
    %v1297 = vrcp.pop %v1281
    %v1298 = vmul.f32 %v1203, %v1282
    %v1299 = vmul.f32 %v1205, %v1283
    %v1300 = vmul.f32 %v1207, %v1284
    %v1301 = vmul.f32 %v1209, %v1285
    %v1302 = vmul.f32 %v1211, %v1286
    %v1303 = vmul.f32 %v1213, %v1287
    %v1304 = vmul.f32 %v1215, %v1288
    %v1305 = vmul.f32 %v1217, %v1289
    %v1306 = vmul.f32 %v1219, %v1290
    %v1307 = vmul.f32 %v1221, %v1291
    %v1308 = vmul.f32 %v1223, %v1292
    %v1309 = vmul.f32 %v1225, %v1293
    %v1310 = vmul.f32 %v1227, %v1294
    %v1311 = vmul.f32 %v1229, %v1295
    %v1312 = vmul.f32 %v1231, %v1296
    %v1313 = vmul.f32 %v1233, %v1297
    %v1314 = vpack.c.bf16 %v1299, %v1298
    %v1315 = vpack.c.bf16 %v1301, %v1300
    %v1316 = vpack.c.bf16 %v1303, %v1302
    %v1317 = vpack.c.bf16 %v1305, %v1304
    %v1318 = vpack.c.bf16 %v1307, %v1306
    %v1319 = vpack.c.bf16 %v1309, %v1308
    %v1320 = vpack.c.bf16 %v1311, %v1310
    %v1321 = vpack.c.bf16 %v1313, %v1312
    %v1322 = vpack.c.bf16 %v686, %v683
    %v1323 = vpack.c.bf16 %v694, %v691
    %v1324 = vpack.c.bf16 %v702, %v699
    %v1325 = vpack.c.bf16 %v710, %v707
    %v1326 = vpack.c.bf16 %v718, %v715
    %v1327 = vpack.c.bf16 %v726, %v723
    %v1328 = vpack.c.bf16 %v734, %v731
    %v1329 = vpack.c.bf16 %v742, %v739
    %v1331 = vsel %vm761, %v1314, 0
    %1333 = vmatprep.subr.bf16.mxu0 0
    %1334 = vmatpush1.bf16.msra.mxu0 %v1322
    %1335 = vmatprep.subr.bf16.mxu0 0
    %1336 = vmatpush1.bf16.msra.mxu0 0
    %1337 = vmatprep.subr.bf16.mxu0 0
    %1338 = vmatpush1.bf16.msra.mxu0 0
    %1339 = vmatprep.subr.bf16.mxu0 0
    %1340 = vmatpush1.bf16.msra.mxu0 0
    %1341 = vmatprep.subr.bf16.mxu0 0
    %1342 = vmatpush1.bf16.msra.mxu0 0
    %1343 = vmatprep.subr.bf16.mxu0 0
    %1344 = vmatpush1.bf16.msra.mxu0 0
    %1345 = vmatprep.subr.bf16.mxu0 0
    %1346 = vmatpush1.bf16.msra.mxu0 0
    %1347 = vmatprep.subr.bf16.mxu0 0
    %1348 = vmatpush1.bf16.msra.mxu0 0
    %1349 = vmatprep.subr.bf16.mxu0 0
    %1350 = vmatpush1.bf16.msra.mxu0 0
    %1351 = vmatprep.subr.bf16.mxu0 0
    %1352 = vmatpush1.bf16.msra.mxu0 0
    %1353 = vmatprep.subr.bf16.mxu0 0
    %1354 = vmatpush1.bf16.msra.mxu0 0
    %1355 = vmatprep.subr.bf16.mxu0 0
    %1356 = vmatpush1.bf16.msra.mxu0 0
    %1357 = vmatprep.subr.bf16.mxu0 0
    %1358 = vmatpush1.bf16.msra.mxu0 0
    %1359 = vmatprep.subr.bf16.mxu0 0
    %1360 = vmatpush1.bf16.msra.mxu0 0
    %1361 = vmatprep.subr.bf16.mxu0 0
    %1362 = vmatpush1.bf16.msra.mxu0 0
    %1363 = vmatprep.subr.bf16.mxu0 0
    %1364 = vmatpush1.bf16.msra.mxu0 0
    %1365 = vmatprep.mubr.bf16.mxu0 0
    %1366 = vmatmul.mubr.bf16.gmra.mrb[0].mxu0 %v1331
    %v1367 = vpop.f32.mrb[0].mxu0
    %v1368 = vadd.f32 0.0, %v1367
    %v1369 = vpop.f32.mrb[0].mxu0
    %v1370 = vpop.f32.mrb[0].mxu0
    %v1371 = vadd.f32 0.0, %v1370
    %v1372 = vpop.f32.mrb[0].mxu0
    %1373 = vdwg.mxu0
    %v1375 = vsel %vm761, %v1315, 0
    %1377 = vmatprep.subr.bf16.mxu0 0
    %1378 = vmatpush1.bf16.msra.mxu0 %v1323
    %1379 = vmatprep.subr.bf16.mxu0 0
    %1380 = vmatpush1.bf16.msra.mxu0 0
    %1381 = vmatprep.subr.bf16.mxu0 0
    %1382 = vmatpush1.bf16.msra.mxu0 0
    %1383 = vmatprep.subr.bf16.mxu0 0
    %1384 = vmatpush1.bf16.msra.mxu0 0
    %1385 = vmatprep.subr.bf16.mxu0 0
    %1386 = vmatpush1.bf16.msra.mxu0 0
    %1387 = vmatprep.subr.bf16.mxu0 0
    %1388 = vmatpush1.bf16.msra.mxu0 0
    %1389 = vmatprep.subr.bf16.mxu0 0
    %1390 = vmatpush1.bf16.msra.mxu0 0
    %1391 = vmatprep.subr.bf16.mxu0 0
    %1392 = vmatpush1.bf16.msra.mxu0 0
    %1393 = vmatprep.subr.bf16.mxu0 0
    %1394 = vmatpush1.bf16.msra.mxu0 0
    %1395 = vmatprep.subr.bf16.mxu0 0
    %1396 = vmatpush1.bf16.msra.mxu0 0
    %1397 = vmatprep.subr.bf16.mxu0 0
    %1398 = vmatpush1.bf16.msra.mxu0 0
    %1399 = vmatprep.subr.bf16.mxu0 0
    %1400 = vmatpush1.bf16.msra.mxu0 0
    %1401 = vmatprep.subr.bf16.mxu0 0
    %1402 = vmatpush1.bf16.msra.mxu0 0
    %1403 = vmatprep.subr.bf16.mxu0 0
    %1404 = vmatpush1.bf16.msra.mxu0 0
    %1405 = vmatprep.subr.bf16.mxu0 0
    %1406 = vmatpush1.bf16.msra.mxu0 0
    %1407 = vmatprep.subr.bf16.mxu0 0
    %1408 = vmatpush1.bf16.msra.mxu0 0
    %1409 = vmatprep.mubr.bf16.mxu0 0
    %1410 = vmatmul.mubr.bf16.gmra.mrb[0].mxu0 %v1375
    %v1411 = vpop.f32.mrb[0].mxu0
    %v1412 = vadd.f32 0.0, %v1411
    %v1413 = vpop.f32.mrb[0].mxu0
    %v1414 = vpop.f32.mrb[0].mxu0
    %v1415 = vadd.f32 0.0, %v1414
    %v1416 = vpop.f32.mrb[0].mxu0
    %1417 = vdwg.mxu0
    %v1419 = vsel %vm761, %v1316, 0
    %1421 = vmatprep.subr.bf16.mxu0 0
    %1422 = vmatpush1.bf16.msra.mxu0 %v1324
    %1423 = vmatprep.subr.bf16.mxu0 0
    %1424 = vmatpush1.bf16.msra.mxu0 0
    %1425 = vmatprep.subr.bf16.mxu0 0
    %1426 = vmatpush1.bf16.msra.mxu0 0
    %1427 = vmatprep.subr.bf16.mxu0 0
    %1428 = vmatpush1.bf16.msra.mxu0 0
    %1429 = vmatprep.subr.bf16.mxu0 0
    %1430 = vmatpush1.bf16.msra.mxu0 0
    %1431 = vmatprep.subr.bf16.mxu0 0
    %1432 = vmatpush1.bf16.msra.mxu0 0
    %1433 = vmatprep.subr.bf16.mxu0 0
    %1434 = vmatpush1.bf16.msra.mxu0 0
    %1435 = vmatprep.subr.bf16.mxu0 0
    %1436 = vmatpush1.bf16.msra.mxu0 0
    %1437 = vmatprep.subr.bf16.mxu0 0
    %1438 = vmatpush1.bf16.msra.mxu0 0
    %1439 = vmatprep.subr.bf16.mxu0 0
    %1440 = vmatpush1.bf16.msra.mxu0 0
    %1441 = vmatprep.subr.bf16.mxu0 0
    %1442 = vmatpush1.bf16.msra.mxu0 0
    %1443 = vmatprep.subr.bf16.mxu0 0
    %1444 = vmatpush1.bf16.msra.mxu0 0
    %1445 = vmatprep.subr.bf16.mxu0 0
    %1446 = vmatpush1.bf16.msra.mxu0 0
    %1447 = vmatprep.subr.bf16.mxu0 0
    %1448 = vmatpush1.bf16.msra.mxu0 0
    %1449 = vmatprep.subr.bf16.mxu0 0
    %1450 = vmatpush1.bf16.msra.mxu0 0
    %1451 = vmatprep.subr.bf16.mxu0 0
    %1452 = vmatpush1.bf16.msra.mxu0 0
    %1453 = vmatprep.mubr.bf16.mxu0 0
    %1454 = vmatmul.mubr.bf16.gmra.mrb[0].mxu0 %v1419
    %v1455 = vpop.f32.mrb[0].mxu0
    %v1456 = vadd.f32 0.0, %v1455
    %v1457 = vpop.f32.mrb[0].mxu0
    %v1458 = vpop.f32.mrb[0].mxu0
    %v1459 = vadd.f32 0.0, %v1458
    %v1460 = vpop.f32.mrb[0].mxu0
    %1461 = vdwg.mxu0
    %v1463 = vsel %vm761, %v1317, 0
    %1465 = vmatprep.subr.bf16.mxu0 0
    %1466 = vmatpush1.bf16.msra.mxu0 %v1325
    %1467 = vmatprep.subr.bf16.mxu0 0
    %1468 = vmatpush1.bf16.msra.mxu0 0
    %1469 = vmatprep.subr.bf16.mxu0 0
    %1470 = vmatpush1.bf16.msra.mxu0 0
    %1471 = vmatprep.subr.bf16.mxu0 0
    %1472 = vmatpush1.bf16.msra.mxu0 0
    %1473 = vmatprep.subr.bf16.mxu0 0
    %1474 = vmatpush1.bf16.msra.mxu0 0
    %1475 = vmatprep.subr.bf16.mxu0 0
    %1476 = vmatpush1.bf16.msra.mxu0 0
    %1477 = vmatprep.subr.bf16.mxu0 0
    %1478 = vmatpush1.bf16.msra.mxu0 0
    %1479 = vmatprep.subr.bf16.mxu0 0
    %1480 = vmatpush1.bf16.msra.mxu0 0
    %1481 = vmatprep.subr.bf16.mxu0 0
    %1482 = vmatpush1.bf16.msra.mxu0 0
    %1483 = vmatprep.subr.bf16.mxu0 0
    %1484 = vmatpush1.bf16.msra.mxu0 0
    %1485 = vmatprep.subr.bf16.mxu0 0
    %1486 = vmatpush1.bf16.msra.mxu0 0
    %1487 = vmatprep.subr.bf16.mxu0 0
    %1488 = vmatpush1.bf16.msra.mxu0 0
    %1489 = vmatprep.subr.bf16.mxu0 0
    %1490 = vmatpush1.bf16.msra.mxu0 0
    %1491 = vmatprep.subr.bf16.mxu0 0
    %1492 = vmatpush1.bf16.msra.mxu0 0
    %1493 = vmatprep.subr.bf16.mxu0 0
    %1494 = vmatpush1.bf16.msra.mxu0 0
    %1495 = vmatprep.subr.bf16.mxu0 0
    %1496 = vmatpush1.bf16.msra.mxu0 0
    %1497 = vmatprep.mubr.bf16.mxu0 0
    %1498 = vmatmul.mubr.bf16.gmra.mrb[0].mxu0 %v1463
    %v1499 = vpop.f32.mrb[0].mxu0
    %v1500 = vadd.f32 0.0, %v1499
    %v1501 = vpop.f32.mrb[0].mxu0
    %v1502 = vpop.f32.mrb[0].mxu0
    %v1503 = vadd.f32 0.0, %v1502
    %v1504 = vpop.f32.mrb[0].mxu0
    %1505 = vdwg.mxu0
    %v1507 = vsel %vm761, %v1318, 0
    %1509 = vmatprep.subr.bf16.mxu0 0
    %1510 = vmatpush1.bf16.msra.mxu0 %v1326
    %1511 = vmatprep.subr.bf16.mxu0 0
    %1512 = vmatpush1.bf16.msra.mxu0 0
    %1513 = vmatprep.subr.bf16.mxu0 0
    %1514 = vmatpush1.bf16.msra.mxu0 0
    %1515 = vmatprep.subr.bf16.mxu0 0
    %1516 = vmatpush1.bf16.msra.mxu0 0
    %1517 = vmatprep.subr.bf16.mxu0 0
    %1518 = vmatpush1.bf16.msra.mxu0 0
    %1519 = vmatprep.subr.bf16.mxu0 0
    %1520 = vmatpush1.bf16.msra.mxu0 0
    %1521 = vmatprep.subr.bf16.mxu0 0
    %1522 = vmatpush1.bf16.msra.mxu0 0
    %1523 = vmatprep.subr.bf16.mxu0 0
    %1524 = vmatpush1.bf16.msra.mxu0 0
    %1525 = vmatprep.subr.bf16.mxu0 0
    %1526 = vmatpush1.bf16.msra.mxu0 0
    %1527 = vmatprep.subr.bf16.mxu0 0
    %1528 = vmatpush1.bf16.msra.mxu0 0
    %1529 = vmatprep.subr.bf16.mxu0 0
    %1530 = vmatpush1.bf16.msra.mxu0 0
    %1531 = vmatprep.subr.bf16.mxu0 0
    %1532 = vmatpush1.bf16.msra.mxu0 0
    %1533 = vmatprep.subr.bf16.mxu0 0
    %1534 = vmatpush1.bf16.msra.mxu0 0
    %1535 = vmatprep.subr.bf16.mxu0 0
    %1536 = vmatpush1.bf16.msra.mxu0 0
    %1537 = vmatprep.subr.bf16.mxu0 0
    %1538 = vmatpush1.bf16.msra.mxu0 0
    %1539 = vmatprep.subr.bf16.mxu0 0
    %1540 = vmatpush1.bf16.msra.mxu0 0
    %1541 = vmatprep.mubr.bf16.mxu0 0
    %1542 = vmatmul.mubr.bf16.gmra.mrb[0].mxu0 %v1507
    %v1543 = vpop.f32.mrb[0].mxu0
    %v1544 = vadd.f32 0.0, %v1543
    %v1545 = vpop.f32.mrb[0].mxu0
    %v1546 = vpop.f32.mrb[0].mxu0
    %v1547 = vadd.f32 0.0, %v1546
    %v1548 = vpop.f32.mrb[0].mxu0
    %1549 = vdwg.mxu0
    %v1551 = vsel %vm761, %v1319, 0
    %1553 = vmatprep.subr.bf16.mxu0 0
    %1554 = vmatpush1.bf16.msra.mxu0 %v1327
    %1555 = vmatprep.subr.bf16.mxu0 0
    %1556 = vmatpush1.bf16.msra.mxu0 0
    %1557 = vmatprep.subr.bf16.mxu0 0
    %1558 = vmatpush1.bf16.msra.mxu0 0
    %1559 = vmatprep.subr.bf16.mxu0 0
    %1560 = vmatpush1.bf16.msra.mxu0 0
    %1561 = vmatprep.subr.bf16.mxu0 0
    %1562 = vmatpush1.bf16.msra.mxu0 0
    %1563 = vmatprep.subr.bf16.mxu0 0
    %1564 = vmatpush1.bf16.msra.mxu0 0
    %1565 = vmatprep.subr.bf16.mxu0 0
    %1566 = vmatpush1.bf16.msra.mxu0 0
    %1567 = vmatprep.subr.bf16.mxu0 0
    %1568 = vmatpush1.bf16.msra.mxu0 0
    %1569 = vmatprep.subr.bf16.mxu0 0
    %1570 = vmatpush1.bf16.msra.mxu0 0
    %1571 = vmatprep.subr.bf16.mxu0 0
    %1572 = vmatpush1.bf16.msra.mxu0 0
    %1573 = vmatprep.subr.bf16.mxu0 0
    %1574 = vmatpush1.bf16.msra.mxu0 0
    %1575 = vmatprep.subr.bf16.mxu0 0
    %1576 = vmatpush1.bf16.msra.mxu0 0
    %1577 = vmatprep.subr.bf16.mxu0 0
    %1578 = vmatpush1.bf16.msra.mxu0 0
    %1579 = vmatprep.subr.bf16.mxu0 0
    %1580 = vmatpush1.bf16.msra.mxu0 0
    %1581 = vmatprep.subr.bf16.mxu0 0
    %1582 = vmatpush1.bf16.msra.mxu0 0
    %1583 = vmatprep.subr.bf16.mxu0 0
    %1584 = vmatpush1.bf16.msra.mxu0 0
    %1585 = vmatprep.mubr.bf16.mxu0 0
    %1586 = vmatmul.mubr.bf16.gmra.mrb[0].mxu0 %v1551
    %v1587 = vpop.f32.mrb[0].mxu0
    %v1588 = vadd.f32 0.0, %v1587
    %v1589 = vpop.f32.mrb[0].mxu0
    %v1590 = vpop.f32.mrb[0].mxu0
    %v1591 = vadd.f32 0.0, %v1590
    %v1592 = vpop.f32.mrb[0].mxu0
    %1593 = vdwg.mxu0
    %v1595 = vsel %vm761, %v1320, 0
    %1597 = vmatprep.subr.bf16.mxu0 0
    %1598 = vmatpush1.bf16.msra.mxu0 %v1328
    %1599 = vmatprep.subr.bf16.mxu0 0
    %1600 = vmatpush1.bf16.msra.mxu0 0
    %1601 = vmatprep.subr.bf16.mxu0 0
    %1602 = vmatpush1.bf16.msra.mxu0 0
    %1603 = vmatprep.subr.bf16.mxu0 0
    %1604 = vmatpush1.bf16.msra.mxu0 0
    %1605 = vmatprep.subr.bf16.mxu0 0
    %1606 = vmatpush1.bf16.msra.mxu0 0
    %1607 = vmatprep.subr.bf16.mxu0 0
    %1608 = vmatpush1.bf16.msra.mxu0 0
    %1609 = vmatprep.subr.bf16.mxu0 0
    %1610 = vmatpush1.bf16.msra.mxu0 0
    %1611 = vmatprep.subr.bf16.mxu0 0
    %1612 = vmatpush1.bf16.msra.mxu0 0
    %1613 = vmatprep.subr.bf16.mxu0 0
    %1614 = vmatpush1.bf16.msra.mxu0 0
    %1615 = vmatprep.subr.bf16.mxu0 0
    %1616 = vmatpush1.bf16.msra.mxu0 0
    %1617 = vmatprep.subr.bf16.mxu0 0
    %1618 = vmatpush1.bf16.msra.mxu0 0
    %1619 = vmatprep.subr.bf16.mxu0 0
    %1620 = vmatpush1.bf16.msra.mxu0 0
    %1621 = vmatprep.subr.bf16.mxu0 0
    %1622 = vmatpush1.bf16.msra.mxu0 0
    %1623 = vmatprep.subr.bf16.mxu0 0
    %1624 = vmatpush1.bf16.msra.mxu0 0
    %1625 = vmatprep.subr.bf16.mxu0 0
    %1626 = vmatpush1.bf16.msra.mxu0 0
    %1627 = vmatprep.subr.bf16.mxu0 0
    %1628 = vmatpush1.bf16.msra.mxu0 0
    %1629 = vmatprep.mubr.bf16.mxu0 0
    %1630 = vmatmul.mubr.bf16.gmra.mrb[0].mxu0 %v1595
    %v1631 = vpop.f32.mrb[0].mxu0
    %v1632 = vadd.f32 0.0, %v1631
    %v1633 = vpop.f32.mrb[0].mxu0
    %v1634 = vpop.f32.mrb[0].mxu0
    %v1635 = vadd.f32 0.0, %v1634
    %v1636 = vpop.f32.mrb[0].mxu0
    %1637 = vdwg.mxu0
    %v1639 = vsel %vm761, %v1321, 0
    %1641 = vmatprep.subr.bf16.mxu0 0
    %1642 = vmatpush1.bf16.msra.mxu0 %v1329
    %1643 = vmatprep.subr.bf16.mxu0 0
    %1644 = vmatpush1.bf16.msra.mxu0 0
    %1645 = vmatprep.subr.bf16.mxu0 0
    %1646 = vmatpush1.bf16.msra.mxu0 0
    %1647 = vmatprep.subr.bf16.mxu0 0
    %1648 = vmatpush1.bf16.msra.mxu0 0
    %1649 = vmatprep.subr.bf16.mxu0 0
    %1650 = vmatpush1.bf16.msra.mxu0 0
    %1651 = vmatprep.subr.bf16.mxu0 0
    %1652 = vmatpush1.bf16.msra.mxu0 0
    %1653 = vmatprep.subr.bf16.mxu0 0
    %1654 = vmatpush1.bf16.msra.mxu0 0
    %1655 = vmatprep.subr.bf16.mxu0 0
    %1656 = vmatpush1.bf16.msra.mxu0 0
    %1657 = vmatprep.subr.bf16.mxu0 0
    %1658 = vmatpush1.bf16.msra.mxu0 0
    %1659 = vmatprep.subr.bf16.mxu0 0
    %1660 = vmatpush1.bf16.msra.mxu0 0
    %1661 = vmatprep.subr.bf16.mxu0 0
    %1662 = vmatpush1.bf16.msra.mxu0 0
    %1663 = vmatprep.subr.bf16.mxu0 0
    %1664 = vmatpush1.bf16.msra.mxu0 0
    %1665 = vmatprep.subr.bf16.mxu0 0
    %1666 = vmatpush1.bf16.msra.mxu0 0
    %1667 = vmatprep.subr.bf16.mxu0 0
    %1668 = vmatpush1.bf16.msra.mxu0 0
    %1669 = vmatprep.subr.bf16.mxu0 0
    %1670 = vmatpush1.bf16.msra.mxu0 0
    %1671 = vmatprep.subr.bf16.mxu0 0
    %1672 = vmatpush1.bf16.msra.mxu0 0
    %1673 = vmatprep.mubr.bf16.mxu0 0
    %1674 = vmatmul.mubr.bf16.gmra.mrb[0].mxu0 %v1639
    %v1675 = vpop.f32.mrb[0].mxu0
    %v1676 = vadd.f32 0.0, %v1675
    %v1677 = vpop.f32.mrb[0].mxu0
    %v1678 = vpop.f32.mrb[0].mxu0
    %v1679 = vadd.f32 0.0, %v1678
    %v1680 = vpop.f32.mrb[0].mxu0
    %1681 = vdwg.mxu0
    %v1682 = vpack.c.bf16 %v1371, %v1368
    %v1683 = vpack.c.bf16 %v1415, %v1412
    %v1684 = vpack.c.bf16 %v1459, %v1456
    %v1685 = vpack.c.bf16 %v1503, %v1500
    %v1686 = vpack.c.bf16 %v1547, %v1544
    %v1687 = vpack.c.bf16 %v1591, %v1588
    %v1688 = vpack.c.bf16 %v1635, %v1632
    %v1689 = vpack.c.bf16 %v1679, %v1676
    %v1690 = vld [vmem:[%s9] sm:$0xf]
    %v1691 = vld [vmem:[%s9 + $0x4] sm:$0xf]
    %s1692 = scalar_lea.vmem %s3, 32
    %v1693 = vld [vmem:[%s1692] sm:$0xf]
    %v1694 = vld [vmem:[%s1692 + $0x4] sm:$0xf]
    %v1695 = vld [vmem:[%s1692 + $0x8] sm:$0xf]
    %v1696 = vld [vmem:[%s1692 + $0xc] sm:$0xf]
    %v1697 = vld [vmem:[%s1692 + $0x10] sm:$0xf]
    %v1698 = vld [vmem:[%s1692 + $0x14] sm:$0xf]
    %v1699 = vld [vmem:[%s1692 + $0x18] sm:$0xf]
    %v1700 = vld [vmem:[%s1692 + $0x1c] sm:$0xf]
    %s1701 = scalar_lea.vmem %s6, 1
    %v1702 = vld [vmem:[%s1701] sm:$0x1]
    %v1704 = vlaneseq
    %v1705 = vshrl.u32 %v1704, 7
    %v1706 = vsub.s32 0, %v1705
    %v1707 = vrot.slane %v1702, %v1706
    %v1717 = vunpack.c.l.b16 %v1693
    %v1718 = vunpack.c.l.b16 %v1694
    %v1719 = vunpack.c.l.b16 %v1695
    %v1720 = vunpack.c.l.b16 %v1696
    %v1721 = vunpack.c.l.b16 %v1697
    %v1722 = vunpack.c.l.b16 %v1698
    %v1723 = vunpack.c.l.b16 %v1699
    %v1724 = vunpack.c.l.b16 %v1700
    %v1725 = vpack.c.b16 %v1718, %v1717
    %v1726 = vpack.c.b16 %v1720, %v1719
    %v1727 = vpack.c.b16 %v1722, %v1721
    %v1728 = vpack.c.b16 %v1724, %v1723
    %1733 = vmatprep.subr.bf16.mxu0 0
    %1734 = vmatpush1.bf16.msra.mxu0 %v1725
    %1735 = vmatprep.subr.bf16.mxu0 0
    %1736 = vmatpush1.bf16.msra.mxu0 %v1726
    %1737 = vmatprep.subr.bf16.mxu0 0
    %1738 = vmatpush1.bf16.msra.mxu0 %v1727
    %1739 = vmatprep.subr.bf16.mxu0 0
    %1740 = vmatpush1.bf16.msra.mxu0 %v1728
    %1741 = vmatprep.subr.bf16.mxu0 0
    %1742 = vmatpush1.bf16.msra.mxu0 0
    %1743 = vmatprep.subr.bf16.mxu0 0
    %1744 = vmatpush1.bf16.msra.mxu0 0
    %1745 = vmatprep.subr.bf16.mxu0 0
    %1746 = vmatpush1.bf16.msra.mxu0 0
    %1747 = vmatprep.subr.bf16.mxu0 0
    %1748 = vmatpush1.bf16.msra.mxu0 0
    %1749 = vmatprep.subr.bf16.mxu0 0
    %1750 = vmatpush1.bf16.msra.mxu0 0
    %1751 = vmatprep.subr.bf16.mxu0 0
    %1752 = vmatpush1.bf16.msra.mxu0 0
    %1753 = vmatprep.subr.bf16.mxu0 0
    %1754 = vmatpush1.bf16.msra.mxu0 0
    %1755 = vmatprep.subr.bf16.mxu0 0
    %1756 = vmatpush1.bf16.msra.mxu0 0
    %1757 = vmatprep.subr.bf16.mxu0 0
    %1758 = vmatpush1.bf16.msra.mxu0 0
    %1759 = vmatprep.subr.bf16.mxu0 0
    %1760 = vmatpush1.bf16.msra.mxu0 0
    %1761 = vmatprep.subr.bf16.mxu0 0
    %1762 = vmatpush1.bf16.msra.mxu0 0
    %1763 = vmatprep.subr.bf16.mxu0 0
    %1764 = vmatpush1.bf16.msra.mxu0 0
    %1765 = vmatprep.mubr.bf16.mxu0 0
    %1766 = vmatmul.mubr.bf16.gmra.mrb[0].mxu0 %v353
    %v1767 = vpop.f32.mrb[0].mxu0
    %v1768 = vadd.f32 %v1707, %v1767
    %v1769 = vpop.f32.mrb[0].mxu0
    %v1770 = vpop.f32.mrb[0].mxu0
    %v1771 = vadd.f32 %v1707, %v1770
    %v1772 = vpop.f32.mrb[0].mxu0
    %1773 = vmatprep.mubr.bf16.mxu0 0
    %1774 = vmatmul.mubr.bf16.gmra.mrb[0].mxu0 %v356
    %v1775 = vpop.f32.mrb[0].mxu0
    %v1776 = vadd.f32 %v1707, %v1775
    %v1777 = vpop.f32.mrb[0].mxu0
    %v1778 = vpop.f32.mrb[0].mxu0
    %v1779 = vadd.f32 %v1707, %v1778
    %v1780 = vpop.f32.mrb[0].mxu0
    %1781 = vmatprep.mubr.bf16.mxu0 0
    %1782 = vmatmul.mubr.bf16.gmra.mrb[0].mxu0 %v359
    %v1783 = vpop.f32.mrb[0].mxu0
    %v1784 = vadd.f32 %v1707, %v1783
    %v1785 = vpop.f32.mrb[0].mxu0
    %v1786 = vpop.f32.mrb[0].mxu0
    %v1787 = vadd.f32 %v1707, %v1786
    %v1788 = vpop.f32.mrb[0].mxu0
    %1789 = vmatprep.mubr.bf16.mxu0 0
    %1790 = vmatmul.mubr.bf16.gmra.mrb[0].mxu0 %v362
    %v1791 = vpop.f32.mrb[0].mxu0
    %v1792 = vadd.f32 %v1707, %v1791
    %v1793 = vpop.f32.mrb[0].mxu0
    %v1794 = vpop.f32.mrb[0].mxu0
    %v1795 = vadd.f32 %v1707, %v1794
    %v1796 = vpop.f32.mrb[0].mxu0
    %1797 = vmatprep.mubr.bf16.mxu0 0
    %1798 = vmatmul.mubr.bf16.gmra.mrb[0].mxu0 %v365
    %v1799 = vpop.f32.mrb[0].mxu0
    %v1800 = vadd.f32 %v1707, %v1799
    %v1801 = vpop.f32.mrb[0].mxu0
    %v1802 = vpop.f32.mrb[0].mxu0
    %v1803 = vadd.f32 %v1707, %v1802
    %v1804 = vpop.f32.mrb[0].mxu0
    %1805 = vmatprep.mubr.bf16.mxu0 0
    %1806 = vmatmul.mubr.bf16.gmra.mrb[0].mxu0 %v368
    %v1807 = vpop.f32.mrb[0].mxu0
    %v1808 = vadd.f32 %v1707, %v1807
    %v1809 = vpop.f32.mrb[0].mxu0
    %v1810 = vpop.f32.mrb[0].mxu0
    %v1811 = vadd.f32 %v1707, %v1810
    %v1812 = vpop.f32.mrb[0].mxu0
    %1813 = vmatprep.mubr.bf16.mxu0 0
    %1814 = vmatmul.mubr.bf16.gmra.mrb[0].mxu0 %v371
    %v1815 = vpop.f32.mrb[0].mxu0
    %v1816 = vadd.f32 %v1707, %v1815
    %v1817 = vpop.f32.mrb[0].mxu0
    %v1818 = vpop.f32.mrb[0].mxu0
    %v1819 = vadd.f32 %v1707, %v1818
    %v1820 = vpop.f32.mrb[0].mxu0
    %1821 = vmatprep.mubr.bf16.mxu0 0
    %1822 = vmatmul.mubr.bf16.gmra.mrb[0].mxu0 %v374
    %v1823 = vpop.f32.mrb[0].mxu0
    %v1824 = vadd.f32 %v1707, %v1823
    %v1825 = vpop.f32.mrb[0].mxu0
    %v1826 = vpop.f32.mrb[0].mxu0
    %v1827 = vadd.f32 %v1707, %v1826
    %v1828 = vpop.f32.mrb[0].mxu0
    %1829 = vdwg.mxu0
    %s1830 = scalar_lea.vmem %s4, 32
    %v1831 = vld [vmem:[%s1830] sm:$0xf]
    %v1832 = vld [vmem:[%s1830 + $0x4] sm:$0xf]
    %v1833 = vld [vmem:[%s1830 + $0x8] sm:$0xf]
    %v1834 = vld [vmem:[%s1830 + $0xc] sm:$0xf]
    %v1835 = vld [vmem:[%s1830 + $0x10] sm:$0xf]
    %v1836 = vld [vmem:[%s1830 + $0x14] sm:$0xf]
    %v1837 = vld [vmem:[%s1830 + $0x18] sm:$0xf]
    %v1838 = vld [vmem:[%s1830 + $0x1c] sm:$0xf]
    %s1839 = scalar_lea.vmem %s7, 1
    %v1840 = vld [vmem:[%s1839] sm:$0x1]
    %v1842 = vlaneseq
    %v1843 = vshrl.u32 %v1842, 7
    %v1844 = vsub.s32 0, %v1843
    %v1845 = vrot.slane %v1840, %v1844
    %v1855 = vunpack.c.l.b16 %v1831
    %v1856 = vunpack.c.l.b16 %v1832
    %v1857 = vunpack.c.l.b16 %v1833
    %v1858 = vunpack.c.l.b16 %v1834
    %v1859 = vunpack.c.l.b16 %v1835
    %v1860 = vunpack.c.l.b16 %v1836
    %v1861 = vunpack.c.l.b16 %v1837
    %v1862 = vunpack.c.l.b16 %v1838
    %v1863 = vpack.c.b16 %v1856, %v1855
    %v1864 = vpack.c.b16 %v1858, %v1857
    %v1865 = vpack.c.b16 %v1860, %v1859
    %v1866 = vpack.c.b16 %v1862, %v1861
    %1871 = vmatprep.subr.bf16.mxu0 0
    %1872 = vmatpush1.bf16.msra.mxu0 %v1863
    %1873 = vmatprep.subr.bf16.mxu0 0
    %1874 = vmatpush1.bf16.msra.mxu0 %v1864
    %1875 = vmatprep.subr.bf16.mxu0 0
    %1876 = vmatpush1.bf16.msra.mxu0 %v1865
    %1877 = vmatprep.subr.bf16.mxu0 0
    %1878 = vmatpush1.bf16.msra.mxu0 %v1866
    %1879 = vmatprep.subr.bf16.mxu0 0
    %1880 = vmatpush1.bf16.msra.mxu0 0
    %1881 = vmatprep.subr.bf16.mxu0 0
    %1882 = vmatpush1.bf16.msra.mxu0 0
    %1883 = vmatprep.subr.bf16.mxu0 0
    %1884 = vmatpush1.bf16.msra.mxu0 0
    %1885 = vmatprep.subr.bf16.mxu0 0
    %1886 = vmatpush1.bf16.msra.mxu0 0
    %1887 = vmatprep.subr.bf16.mxu0 0
    %1888 = vmatpush1.bf16.msra.mxu0 0
    %1889 = vmatprep.subr.bf16.mxu0 0
    %1890 = vmatpush1.bf16.msra.mxu0 0
    %1891 = vmatprep.subr.bf16.mxu0 0
    %1892 = vmatpush1.bf16.msra.mxu0 0
    %1893 = vmatprep.subr.bf16.mxu0 0
    %1894 = vmatpush1.bf16.msra.mxu0 0
    %1895 = vmatprep.subr.bf16.mxu0 0
    %1896 = vmatpush1.bf16.msra.mxu0 0
    %1897 = vmatprep.subr.bf16.mxu0 0
    %1898 = vmatpush1.bf16.msra.mxu0 0
    %1899 = vmatprep.subr.bf16.mxu0 0
    %1900 = vmatpush1.bf16.msra.mxu0 0
    %1901 = vmatprep.subr.bf16.mxu0 0
    %1902 = vmatpush1.bf16.msra.mxu0 0
    %1903 = vmatprep.mubr.bf16.mxu0 0
    %1904 = vmatmul.mubr.bf16.gmra.mrb[0].mxu0 %v353
    %v1905 = vpop.f32.mrb[0].mxu0
    %v1906 = vadd.f32 %v1845, %v1905
    %v1907 = vpop.f32.mrb[0].mxu0
    %v1908 = vpop.f32.mrb[0].mxu0
    %v1909 = vadd.f32 %v1845, %v1908
    %v1910 = vpop.f32.mrb[0].mxu0
    %1911 = vmatprep.mubr.bf16.mxu0 0
    %1912 = vmatmul.mubr.bf16.gmra.mrb[0].mxu0 %v356
    %v1913 = vpop.f32.mrb[0].mxu0
    %v1914 = vadd.f32 %v1845, %v1913
    %v1915 = vpop.f32.mrb[0].mxu0
    %v1916 = vpop.f32.mrb[0].mxu0
    %v1917 = vadd.f32 %v1845, %v1916
    %v1918 = vpop.f32.mrb[0].mxu0
    %1919 = vmatprep.mubr.bf16.mxu0 0
    %1920 = vmatmul.mubr.bf16.gmra.mrb[0].mxu0 %v359
    %v1921 = vpop.f32.mrb[0].mxu0
    %v1922 = vadd.f32 %v1845, %v1921
    %v1923 = vpop.f32.mrb[0].mxu0
    %v1924 = vpop.f32.mrb[0].mxu0
    %v1925 = vadd.f32 %v1845, %v1924
    %v1926 = vpop.f32.mrb[0].mxu0
    %1927 = vmatprep.mubr.bf16.mxu0 0
    %1928 = vmatmul.mubr.bf16.gmra.mrb[0].mxu0 %v362
    %v1929 = vpop.f32.mrb[0].mxu0
    %v1930 = vadd.f32 %v1845, %v1929
    %v1931 = vpop.f32.mrb[0].mxu0
    %v1932 = vpop.f32.mrb[0].mxu0
    %v1933 = vadd.f32 %v1845, %v1932
    %v1934 = vpop.f32.mrb[0].mxu0
    %1935 = vmatprep.mubr.bf16.mxu0 0
    %1936 = vmatmul.mubr.bf16.gmra.mrb[0].mxu0 %v365
    %v1937 = vpop.f32.mrb[0].mxu0
    %v1938 = vadd.f32 %v1845, %v1937
    %v1939 = vpop.f32.mrb[0].mxu0
    %v1940 = vpop.f32.mrb[0].mxu0
    %v1941 = vadd.f32 %v1845, %v1940
    %v1942 = vpop.f32.mrb[0].mxu0
    %1943 = vmatprep.mubr.bf16.mxu0 0
    %1944 = vmatmul.mubr.bf16.gmra.mrb[0].mxu0 %v368
    %v1945 = vpop.f32.mrb[0].mxu0
    %v1946 = vadd.f32 %v1845, %v1945
    %v1947 = vpop.f32.mrb[0].mxu0
    %v1948 = vpop.f32.mrb[0].mxu0
    %v1949 = vadd.f32 %v1845, %v1948
    %v1950 = vpop.f32.mrb[0].mxu0
    %1951 = vmatprep.mubr.bf16.mxu0 0
    %1952 = vmatmul.mubr.bf16.gmra.mrb[0].mxu0 %v371
    %v1953 = vpop.f32.mrb[0].mxu0
    %v1954 = vadd.f32 %v1845, %v1953
    %v1955 = vpop.f32.mrb[0].mxu0
    %v1956 = vpop.f32.mrb[0].mxu0
    %v1957 = vadd.f32 %v1845, %v1956
    %v1958 = vpop.f32.mrb[0].mxu0
    %1959 = vmatprep.mubr.bf16.mxu0 0
    %1960 = vmatmul.mubr.bf16.gmra.mrb[0].mxu0 %v374
    %v1961 = vpop.f32.mrb[0].mxu0
    %v1962 = vadd.f32 %v1845, %v1961
    %v1963 = vpop.f32.mrb[0].mxu0
    %v1964 = vpop.f32.mrb[0].mxu0
    %v1965 = vadd.f32 %v1845, %v1964
    %v1966 = vpop.f32.mrb[0].mxu0
    %1967 = vdwg.mxu0
    %s1968 = scalar_lea.vmem %s5, 32
    %v1969 = vld [vmem:[%s1968] sm:$0xf]
    %v1970 = vld [vmem:[%s1968 + $0x4] sm:$0xf]
    %v1971 = vld [vmem:[%s1968 + $0x8] sm:$0xf]
    %v1972 = vld [vmem:[%s1968 + $0xc] sm:$0xf]
    %v1973 = vld [vmem:[%s1968 + $0x10] sm:$0xf]
    %v1974 = vld [vmem:[%s1968 + $0x14] sm:$0xf]
    %v1975 = vld [vmem:[%s1968 + $0x18] sm:$0xf]
    %v1976 = vld [vmem:[%s1968 + $0x1c] sm:$0xf]
    %s1977 = scalar_lea.vmem %s8, 1
    %v1978 = vld [vmem:[%s1977] sm:$0x1]
    %v1980 = vlaneseq
    %v1981 = vshrl.u32 %v1980, 7
    %v1982 = vsub.s32 0, %v1981
    %v1983 = vrot.slane %v1978, %v1982
    %v1993 = vunpack.c.l.b16 %v1969
    %v1994 = vunpack.c.l.b16 %v1970
    %v1995 = vunpack.c.l.b16 %v1971
    %v1996 = vunpack.c.l.b16 %v1972
    %v1997 = vunpack.c.l.b16 %v1973
    %v1998 = vunpack.c.l.b16 %v1974
    %v1999 = vunpack.c.l.b16 %v1975
    %v2000 = vunpack.c.l.b16 %v1976
    %v2001 = vpack.c.b16 %v1994, %v1993
    %v2002 = vpack.c.b16 %v1996, %v1995
    %v2003 = vpack.c.b16 %v1998, %v1997
    %v2004 = vpack.c.b16 %v2000, %v1999
    %2009 = vmatprep.subr.bf16.mxu0 0
    %2010 = vmatpush1.bf16.msra.mxu0 %v2001
    %2011 = vmatprep.subr.bf16.mxu0 0
    %2012 = vmatpush1.bf16.msra.mxu0 %v2002
    %2013 = vmatprep.subr.bf16.mxu0 0
    %2014 = vmatpush1.bf16.msra.mxu0 %v2003
    %2015 = vmatprep.subr.bf16.mxu0 0
    %2016 = vmatpush1.bf16.msra.mxu0 %v2004
    %2017 = vmatprep.subr.bf16.mxu0 0
    %2018 = vmatpush1.bf16.msra.mxu0 0
    %2019 = vmatprep.subr.bf16.mxu0 0
    %2020 = vmatpush1.bf16.msra.mxu0 0
    %2021 = vmatprep.subr.bf16.mxu0 0
    %2022 = vmatpush1.bf16.msra.mxu0 0
    %2023 = vmatprep.subr.bf16.mxu0 0
    %2024 = vmatpush1.bf16.msra.mxu0 0
    %2025 = vmatprep.subr.bf16.mxu0 0
    %2026 = vmatpush1.bf16.msra.mxu0 0
    %2027 = vmatprep.subr.bf16.mxu0 0
    %2028 = vmatpush1.bf16.msra.mxu0 0
    %2029 = vmatprep.subr.bf16.mxu0 0
    %2030 = vmatpush1.bf16.msra.mxu0 0
    %2031 = vmatprep.subr.bf16.mxu0 0
    %2032 = vmatpush1.bf16.msra.mxu0 0
    %2033 = vmatprep.subr.bf16.mxu0 0
    %2034 = vmatpush1.bf16.msra.mxu0 0
    %2035 = vmatprep.subr.bf16.mxu0 0
    %2036 = vmatpush1.bf16.msra.mxu0 0
    %2037 = vmatprep.subr.bf16.mxu0 0
    %2038 = vmatpush1.bf16.msra.mxu0 0
    %2039 = vmatprep.subr.bf16.mxu0 0
    %2040 = vmatpush1.bf16.msra.mxu0 0
    %2041 = vmatprep.mubr.bf16.mxu0 0
    %2042 = vmatmul.mubr.bf16.gmra.mrb[0].mxu0 %v353
    %v2043 = vpop.f32.mrb[0].mxu0
    %v2044 = vadd.f32 %v1983, %v2043
    %v2045 = vpop.f32.mrb[0].mxu0
    %v2046 = vpop.f32.mrb[0].mxu0
    %v2047 = vadd.f32 %v1983, %v2046
    %v2048 = vpop.f32.mrb[0].mxu0
    %2049 = vmatprep.mubr.bf16.mxu0 0
    %2050 = vmatmul.mubr.bf16.gmra.mrb[0].mxu0 %v356
    %v2051 = vpop.f32.mrb[0].mxu0
    %v2052 = vadd.f32 %v1983, %v2051
    %v2053 = vpop.f32.mrb[0].mxu0
    %v2054 = vpop.f32.mrb[0].mxu0
    %v2055 = vadd.f32 %v1983, %v2054
    %v2056 = vpop.f32.mrb[0].mxu0
    %2057 = vmatprep.mubr.bf16.mxu0 0
    %2058 = vmatmul.mubr.bf16.gmra.mrb[0].mxu0 %v359
    %v2059 = vpop.f32.mrb[0].mxu0
    %v2060 = vadd.f32 %v1983, %v2059
    %v2061 = vpop.f32.mrb[0].mxu0
    %v2062 = vpop.f32.mrb[0].mxu0
    %v2063 = vadd.f32 %v1983, %v2062
    %v2064 = vpop.f32.mrb[0].mxu0
    %2065 = vmatprep.mubr.bf16.mxu0 0
    %2066 = vmatmul.mubr.bf16.gmra.mrb[0].mxu0 %v362
    %v2067 = vpop.f32.mrb[0].mxu0
    %v2068 = vadd.f32 %v1983, %v2067
    %v2069 = vpop.f32.mrb[0].mxu0
    %v2070 = vpop.f32.mrb[0].mxu0
    %v2071 = vadd.f32 %v1983, %v2070
    %v2072 = vpop.f32.mrb[0].mxu0
    %2073 = vmatprep.mubr.bf16.mxu0 0
    %2074 = vmatmul.mubr.bf16.gmra.mrb[0].mxu0 %v365
    %v2075 = vpop.f32.mrb[0].mxu0
    %v2076 = vadd.f32 %v1983, %v2075
    %v2077 = vpop.f32.mrb[0].mxu0
    %v2078 = vpop.f32.mrb[0].mxu0
    %v2079 = vadd.f32 %v1983, %v2078
    %v2080 = vpop.f32.mrb[0].mxu0
    %2081 = vmatprep.mubr.bf16.mxu0 0
    %2082 = vmatmul.mubr.bf16.gmra.mrb[0].mxu0 %v368
    %v2083 = vpop.f32.mrb[0].mxu0
    %v2084 = vadd.f32 %v1983, %v2083
    %v2085 = vpop.f32.mrb[0].mxu0
    %v2086 = vpop.f32.mrb[0].mxu0
    %v2087 = vadd.f32 %v1983, %v2086
    %v2088 = vpop.f32.mrb[0].mxu0
    %2089 = vmatprep.mubr.bf16.mxu0 0
    %2090 = vmatmul.mubr.bf16.gmra.mrb[0].mxu0 %v371
    %v2091 = vpop.f32.mrb[0].mxu0
    %v2092 = vadd.f32 %v1983, %v2091
    %v2093 = vpop.f32.mrb[0].mxu0
    %v2094 = vpop.f32.mrb[0].mxu0
    %v2095 = vadd.f32 %v1983, %v2094
    %v2096 = vpop.f32.mrb[0].mxu0
    %2097 = vmatprep.mubr.bf16.mxu0 0
    %2098 = vmatmul.mubr.bf16.gmra.mrb[0].mxu0 %v374
    %v2099 = vpop.f32.mrb[0].mxu0
    %v2100 = vadd.f32 %v1983, %v2099
    %v2101 = vpop.f32.mrb[0].mxu0
    %v2102 = vpop.f32.mrb[0].mxu0
    %v2103 = vadd.f32 %v1983, %v2102
    %v2104 = vpop.f32.mrb[0].mxu0
    %2105 = vdwg.mxu0
    %v2106 = vpack.c.bf16 %v1771, %v1768
    %v2107 = vpack.c.bf16 %v1779, %v1776
    %v2108 = vpack.c.bf16 %v1787, %v1784
    %v2109 = vpack.c.bf16 %v1795, %v1792
    %v2110 = vpack.c.bf16 %v1803, %v1800
    %v2111 = vpack.c.bf16 %v1811, %v1808
    %v2112 = vpack.c.bf16 %v1819, %v1816
    %v2113 = vpack.c.bf16 %v1827, %v1824
    %v2114 = vpack.c.bf16 %v1909, %v1906
    %v2115 = vpack.c.bf16 %v1917, %v1914
    %v2116 = vpack.c.bf16 %v1925, %v1922
    %v2117 = vpack.c.bf16 %v1933, %v1930
    %v2118 = vpack.c.bf16 %v1941, %v1938
    %v2119 = vpack.c.bf16 %v1949, %v1946
    %v2120 = vpack.c.bf16 %v1957, %v1954
    %v2121 = vpack.c.bf16 %v1965, %v1962
    %v2123 = vsel %vm761, %v2106, 0
    %v2126 = vsel %vm761, %v2114, 0
    %2128 = vmatprep.subr.bf16.mxu0 0
    %2129 = vmatpush1.bf16.xpose.msra.mxu0 %v2126
    %2130 = vmatprep.subr.bf16.mxu0 0
    %2131 = vmatpush1.bf16.xpose.msra.mxu0 0
    %2132 = vmatprep.subr.bf16.mxu0 0
    %2133 = vmatpush1.bf16.xpose.msra.mxu0 0
    %2134 = vmatprep.subr.bf16.mxu0 0
    %2135 = vmatpush1.bf16.xpose.msra.mxu0 0
    %2136 = vmatprep.subr.bf16.mxu0 0
    %2137 = vmatpush1.bf16.xpose.msra.mxu0 0
    %2138 = vmatprep.subr.bf16.mxu0 0
    %2139 = vmatpush1.bf16.xpose.msra.mxu0 0
    %2140 = vmatprep.subr.bf16.mxu0 0
    %2141 = vmatpush1.bf16.xpose.msra.mxu0 0
    %2142 = vmatprep.subr.bf16.mxu0 0
    %2143 = vmatpush1.bf16.xpose.msra.mxu0 0
    %2144 = vmatprep.subr.bf16.mxu0 0
    %2145 = vmatpush1.bf16.xpose.msra.mxu0 0
    %2146 = vmatprep.subr.bf16.mxu0 0
    %2147 = vmatpush1.bf16.xpose.msra.mxu0 0
    %2148 = vmatprep.subr.bf16.mxu0 0
    %2149 = vmatpush1.bf16.xpose.msra.mxu0 0
    %2150 = vmatprep.subr.bf16.mxu0 0
    %2151 = vmatpush1.bf16.xpose.msra.mxu0 0
    %2152 = vmatprep.subr.bf16.mxu0 0
    %2153 = vmatpush1.bf16.xpose.msra.mxu0 0
    %2154 = vmatprep.subr.bf16.mxu0 0
    %2155 = vmatpush1.bf16.xpose.msra.mxu0 0
    %2156 = vmatprep.subr.bf16.mxu0 0
    %2157 = vmatpush1.bf16.xpose.msra.mxu0 0
    %2158 = vmatprep.subr.bf16.mxu0 0
    %2159 = vmatpush1.bf16.xpose.msra.mxu0 0
    %2160 = vmatprep.mubr.bf16.mxu0 0
    %2161 = vmatmul.mubr.bf16.gmra.mrb[0].mxu0 %v2123
    %v2162 = vpop.f32.mrb[0].mxu0
    %v2163 = vadd.f32 0.0, %v2162
    %v2164 = vpop.f32.mrb[0].mxu0
    %v2165 = vpop.f32.mrb[0].mxu0
    %v2166 = vadd.f32 0.0, %v2165
    %v2167 = vpop.f32.mrb[0].mxu0
    %2168 = vdwg.mxu0
    %v2170 = vsel %vm761, %v2107, 0
    %v2173 = vsel %vm761, %v2115, 0
    %2175 = vmatprep.subr.bf16.mxu0 0
    %2176 = vmatpush1.bf16.xpose.msra.mxu0 %v2173
    %2177 = vmatprep.subr.bf16.mxu0 0
    %2178 = vmatpush1.bf16.xpose.msra.mxu0 0
    %2179 = vmatprep.subr.bf16.mxu0 0
    %2180 = vmatpush1.bf16.xpose.msra.mxu0 0
    %2181 = vmatprep.subr.bf16.mxu0 0
    %2182 = vmatpush1.bf16.xpose.msra.mxu0 0
    %2183 = vmatprep.subr.bf16.mxu0 0
    %2184 = vmatpush1.bf16.xpose.msra.mxu0 0
    %2185 = vmatprep.subr.bf16.mxu0 0
    %2186 = vmatpush1.bf16.xpose.msra.mxu0 0
    %2187 = vmatprep.subr.bf16.mxu0 0
    %2188 = vmatpush1.bf16.xpose.msra.mxu0 0
    %2189 = vmatprep.subr.bf16.mxu0 0
    %2190 = vmatpush1.bf16.xpose.msra.mxu0 0
    %2191 = vmatprep.subr.bf16.mxu0 0
    %2192 = vmatpush1.bf16.xpose.msra.mxu0 0
    %2193 = vmatprep.subr.bf16.mxu0 0
    %2194 = vmatpush1.bf16.xpose.msra.mxu0 0
    %2195 = vmatprep.subr.bf16.mxu0 0
    %2196 = vmatpush1.bf16.xpose.msra.mxu0 0
    %2197 = vmatprep.subr.bf16.mxu0 0
    %2198 = vmatpush1.bf16.xpose.msra.mxu0 0
    %2199 = vmatprep.subr.bf16.mxu0 0
    %2200 = vmatpush1.bf16.xpose.msra.mxu0 0
    %2201 = vmatprep.subr.bf16.mxu0 0
    %2202 = vmatpush1.bf16.xpose.msra.mxu0 0
    %2203 = vmatprep.subr.bf16.mxu0 0
    %2204 = vmatpush1.bf16.xpose.msra.mxu0 0
    %2205 = vmatprep.subr.bf16.mxu0 0
    %2206 = vmatpush1.bf16.xpose.msra.mxu0 0
    %2207 = vmatprep.mubr.bf16.mxu0 0
    %2208 = vmatmul.mubr.bf16.gmra.mrb[0].mxu0 %v2170
    %v2209 = vpop.f32.mrb[0].mxu0
    %v2210 = vadd.f32 0.0, %v2209
    %v2211 = vpop.f32.mrb[0].mxu0
    %v2212 = vpop.f32.mrb[0].mxu0
    %v2213 = vadd.f32 0.0, %v2212
    %v2214 = vpop.f32.mrb[0].mxu0
    %2215 = vdwg.mxu0
    %v2217 = vsel %vm761, %v2108, 0
    %v2220 = vsel %vm761, %v2116, 0
    %2222 = vmatprep.subr.bf16.mxu0 0
    %2223 = vmatpush1.bf16.xpose.msra.mxu0 %v2220
    %2224 = vmatprep.subr.bf16.mxu0 0
    %2225 = vmatpush1.bf16.xpose.msra.mxu0 0
    %2226 = vmatprep.subr.bf16.mxu0 0
    %2227 = vmatpush1.bf16.xpose.msra.mxu0 0
    %2228 = vmatprep.subr.bf16.mxu0 0
    %2229 = vmatpush1.bf16.xpose.msra.mxu0 0
    %2230 = vmatprep.subr.bf16.mxu0 0
    %2231 = vmatpush1.bf16.xpose.msra.mxu0 0
    %2232 = vmatprep.subr.bf16.mxu0 0
    %2233 = vmatpush1.bf16.xpose.msra.mxu0 0
    %2234 = vmatprep.subr.bf16.mxu0 0
    %2235 = vmatpush1.bf16.xpose.msra.mxu0 0
    %2236 = vmatprep.subr.bf16.mxu0 0
    %2237 = vmatpush1.bf16.xpose.msra.mxu0 0
    %2238 = vmatprep.subr.bf16.mxu0 0
    %2239 = vmatpush1.bf16.xpose.msra.mxu0 0
    %2240 = vmatprep.subr.bf16.mxu0 0
    %2241 = vmatpush1.bf16.xpose.msra.mxu0 0
    %2242 = vmatprep.subr.bf16.mxu0 0
    %2243 = vmatpush1.bf16.xpose.msra.mxu0 0
    %2244 = vmatprep.subr.bf16.mxu0 0
    %2245 = vmatpush1.bf16.xpose.msra.mxu0 0
    %2246 = vmatprep.subr.bf16.mxu0 0
    %2247 = vmatpush1.bf16.xpose.msra.mxu0 0
    %2248 = vmatprep.subr.bf16.mxu0 0
    %2249 = vmatpush1.bf16.xpose.msra.mxu0 0
    %2250 = vmatprep.subr.bf16.mxu0 0
    %2251 = vmatpush1.bf16.xpose.msra.mxu0 0
    %2252 = vmatprep.subr.bf16.mxu0 0
    %2253 = vmatpush1.bf16.xpose.msra.mxu0 0
    %2254 = vmatprep.mubr.bf16.mxu0 0
    %2255 = vmatmul.mubr.bf16.gmra.mrb[0].mxu0 %v2217
    %v2256 = vpop.f32.mrb[0].mxu0
    %v2257 = vadd.f32 0.0, %v2256
    %v2258 = vpop.f32.mrb[0].mxu0
    %v2259 = vpop.f32.mrb[0].mxu0
    %v2260 = vadd.f32 0.0, %v2259
    %v2261 = vpop.f32.mrb[0].mxu0
    %2262 = vdwg.mxu0
    %v2264 = vsel %vm761, %v2109, 0
    %v2267 = vsel %vm761, %v2117, 0
    %2269 = vmatprep.subr.bf16.mxu0 0
    %2270 = vmatpush1.bf16.xpose.msra.mxu0 %v2267
    %2271 = vmatprep.subr.bf16.mxu0 0
    %2272 = vmatpush1.bf16.xpose.msra.mxu0 0
    %2273 = vmatprep.subr.bf16.mxu0 0
    %2274 = vmatpush1.bf16.xpose.msra.mxu0 0
    %2275 = vmatprep.subr.bf16.mxu0 0
    %2276 = vmatpush1.bf16.xpose.msra.mxu0 0
    %2277 = vmatprep.subr.bf16.mxu0 0
    %2278 = vmatpush1.bf16.xpose.msra.mxu0 0
    %2279 = vmatprep.subr.bf16.mxu0 0
    %2280 = vmatpush1.bf16.xpose.msra.mxu0 0
    %2281 = vmatprep.subr.bf16.mxu0 0
    %2282 = vmatpush1.bf16.xpose.msra.mxu0 0
    %2283 = vmatprep.subr.bf16.mxu0 0
    %2284 = vmatpush1.bf16.xpose.msra.mxu0 0
    %2285 = vmatprep.subr.bf16.mxu0 0
    %2286 = vmatpush1.bf16.xpose.msra.mxu0 0
    %2287 = vmatprep.subr.bf16.mxu0 0
    %2288 = vmatpush1.bf16.xpose.msra.mxu0 0
    %2289 = vmatprep.subr.bf16.mxu0 0
    %2290 = vmatpush1.bf16.xpose.msra.mxu0 0
    %2291 = vmatprep.subr.bf16.mxu0 0
    %2292 = vmatpush1.bf16.xpose.msra.mxu0 0
    %2293 = vmatprep.subr.bf16.mxu0 0
    %2294 = vmatpush1.bf16.xpose.msra.mxu0 0
    %2295 = vmatprep.subr.bf16.mxu0 0
    %2296 = vmatpush1.bf16.xpose.msra.mxu0 0
    %2297 = vmatprep.subr.bf16.mxu0 0
    %2298 = vmatpush1.bf16.xpose.msra.mxu0 0
    %2299 = vmatprep.subr.bf16.mxu0 0
    %2300 = vmatpush1.bf16.xpose.msra.mxu0 0
    %2301 = vmatprep.mubr.bf16.mxu0 0
    %2302 = vmatmul.mubr.bf16.gmra.mrb[0].mxu0 %v2264
    %v2303 = vpop.f32.mrb[0].mxu0
    %v2304 = vadd.f32 0.0, %v2303
    %v2305 = vpop.f32.mrb[0].mxu0
    %v2306 = vpop.f32.mrb[0].mxu0
    %v2307 = vadd.f32 0.0, %v2306
    %v2308 = vpop.f32.mrb[0].mxu0
    %2309 = vdwg.mxu0
    %v2311 = vsel %vm761, %v2110, 0
    %v2314 = vsel %vm761, %v2118, 0
    %2316 = vmatprep.subr.bf16.mxu0 0
    %2317 = vmatpush1.bf16.xpose.msra.mxu0 %v2314
    %2318 = vmatprep.subr.bf16.mxu0 0
    %2319 = vmatpush1.bf16.xpose.msra.mxu0 0
    %2320 = vmatprep.subr.bf16.mxu0 0
    %2321 = vmatpush1.bf16.xpose.msra.mxu0 0
    %2322 = vmatprep.subr.bf16.mxu0 0
    %2323 = vmatpush1.bf16.xpose.msra.mxu0 0
    %2324 = vmatprep.subr.bf16.mxu0 0
    %2325 = vmatpush1.bf16.xpose.msra.mxu0 0
    %2326 = vmatprep.subr.bf16.mxu0 0
    %2327 = vmatpush1.bf16.xpose.msra.mxu0 0
    %2328 = vmatprep.subr.bf16.mxu0 0
    %2329 = vmatpush1.bf16.xpose.msra.mxu0 0
    %2330 = vmatprep.subr.bf16.mxu0 0
    %2331 = vmatpush1.bf16.xpose.msra.mxu0 0
    %2332 = vmatprep.subr.bf16.mxu0 0
    %2333 = vmatpush1.bf16.xpose.msra.mxu0 0
    %2334 = vmatprep.subr.bf16.mxu0 0
    %2335 = vmatpush1.bf16.xpose.msra.mxu0 0
    %2336 = vmatprep.subr.bf16.mxu0 0
    %2337 = vmatpush1.bf16.xpose.msra.mxu0 0
    %2338 = vmatprep.subr.bf16.mxu0 0
    %2339 = vmatpush1.bf16.xpose.msra.mxu0 0
    %2340 = vmatprep.subr.bf16.mxu0 0
    %2341 = vmatpush1.bf16.xpose.msra.mxu0 0
    %2342 = vmatprep.subr.bf16.mxu0 0
    %2343 = vmatpush1.bf16.xpose.msra.mxu0 0
    %2344 = vmatprep.subr.bf16.mxu0 0
    %2345 = vmatpush1.bf16.xpose.msra.mxu0 0
    %2346 = vmatprep.subr.bf16.mxu0 0
    %2347 = vmatpush1.bf16.xpose.msra.mxu0 0
    %2348 = vmatprep.mubr.bf16.mxu0 0
    %2349 = vmatmul.mubr.bf16.gmra.mrb[0].mxu0 %v2311
    %v2350 = vpop.f32.mrb[0].mxu0
    %v2351 = vadd.f32 0.0, %v2350
    %v2352 = vpop.f32.mrb[0].mxu0
    %v2353 = vpop.f32.mrb[0].mxu0
    %v2354 = vadd.f32 0.0, %v2353
    %v2355 = vpop.f32.mrb[0].mxu0
    %2356 = vdwg.mxu0
    %v2358 = vsel %vm761, %v2111, 0
    %v2361 = vsel %vm761, %v2119, 0
    %2363 = vmatprep.subr.bf16.mxu0 0
    %2364 = vmatpush1.bf16.xpose.msra.mxu0 %v2361
    %2365 = vmatprep.subr.bf16.mxu0 0
    %2366 = vmatpush1.bf16.xpose.msra.mxu0 0
    %2367 = vmatprep.subr.bf16.mxu0 0
    %2368 = vmatpush1.bf16.xpose.msra.mxu0 0
    %2369 = vmatprep.subr.bf16.mxu0 0
    %2370 = vmatpush1.bf16.xpose.msra.mxu0 0
    %2371 = vmatprep.subr.bf16.mxu0 0
    %2372 = vmatpush1.bf16.xpose.msra.mxu0 0
    %2373 = vmatprep.subr.bf16.mxu0 0
    %2374 = vmatpush1.bf16.xpose.msra.mxu0 0
    %2375 = vmatprep.subr.bf16.mxu0 0
    %2376 = vmatpush1.bf16.xpose.msra.mxu0 0
    %2377 = vmatprep.subr.bf16.mxu0 0
    %2378 = vmatpush1.bf16.xpose.msra.mxu0 0
    %2379 = vmatprep.subr.bf16.mxu0 0
    %2380 = vmatpush1.bf16.xpose.msra.mxu0 0
    %2381 = vmatprep.subr.bf16.mxu0 0
    %2382 = vmatpush1.bf16.xpose.msra.mxu0 0
    %2383 = vmatprep.subr.bf16.mxu0 0
    %2384 = vmatpush1.bf16.xpose.msra.mxu0 0
    %2385 = vmatprep.subr.bf16.mxu0 0
    %2386 = vmatpush1.bf16.xpose.msra.mxu0 0
    %2387 = vmatprep.subr.bf16.mxu0 0
    %2388 = vmatpush1.bf16.xpose.msra.mxu0 0
    %2389 = vmatprep.subr.bf16.mxu0 0
    %2390 = vmatpush1.bf16.xpose.msra.mxu0 0
    %2391 = vmatprep.subr.bf16.mxu0 0
    %2392 = vmatpush1.bf16.xpose.msra.mxu0 0
    %2393 = vmatprep.subr.bf16.mxu0 0
    %2394 = vmatpush1.bf16.xpose.msra.mxu0 0
    %2395 = vmatprep.mubr.bf16.mxu0 0
    %2396 = vmatmul.mubr.bf16.gmra.mrb[0].mxu0 %v2358
    %v2397 = vpop.f32.mrb[0].mxu0
    %v2398 = vadd.f32 0.0, %v2397
    %v2399 = vpop.f32.mrb[0].mxu0
    %v2400 = vpop.f32.mrb[0].mxu0
    %v2401 = vadd.f32 0.0, %v2400
    %v2402 = vpop.f32.mrb[0].mxu0
    %2403 = vdwg.mxu0
    %v2405 = vsel %vm761, %v2112, 0
    %v2408 = vsel %vm761, %v2120, 0
    %2410 = vmatprep.subr.bf16.mxu0 0
    %2411 = vmatpush1.bf16.xpose.msra.mxu0 %v2408
    %2412 = vmatprep.subr.bf16.mxu0 0
    %2413 = vmatpush1.bf16.xpose.msra.mxu0 0
    %2414 = vmatprep.subr.bf16.mxu0 0
    %2415 = vmatpush1.bf16.xpose.msra.mxu0 0
    %2416 = vmatprep.subr.bf16.mxu0 0
    %2417 = vmatpush1.bf16.xpose.msra.mxu0 0
    %2418 = vmatprep.subr.bf16.mxu0 0
    %2419 = vmatpush1.bf16.xpose.msra.mxu0 0
    %2420 = vmatprep.subr.bf16.mxu0 0
    %2421 = vmatpush1.bf16.xpose.msra.mxu0 0
    %2422 = vmatprep.subr.bf16.mxu0 0
    %2423 = vmatpush1.bf16.xpose.msra.mxu0 0
    %2424 = vmatprep.subr.bf16.mxu0 0
    %2425 = vmatpush1.bf16.xpose.msra.mxu0 0
    %2426 = vmatprep.subr.bf16.mxu0 0
    %2427 = vmatpush1.bf16.xpose.msra.mxu0 0
    %2428 = vmatprep.subr.bf16.mxu0 0
    %2429 = vmatpush1.bf16.xpose.msra.mxu0 0
    %2430 = vmatprep.subr.bf16.mxu0 0
    %2431 = vmatpush1.bf16.xpose.msra.mxu0 0
    %2432 = vmatprep.subr.bf16.mxu0 0
    %2433 = vmatpush1.bf16.xpose.msra.mxu0 0
    %2434 = vmatprep.subr.bf16.mxu0 0
    %2435 = vmatpush1.bf16.xpose.msra.mxu0 0
    %2436 = vmatprep.subr.bf16.mxu0 0
    %2437 = vmatpush1.bf16.xpose.msra.mxu0 0
    %2438 = vmatprep.subr.bf16.mxu0 0
    %2439 = vmatpush1.bf16.xpose.msra.mxu0 0
    %2440 = vmatprep.subr.bf16.mxu0 0
    %2441 = vmatpush1.bf16.xpose.msra.mxu0 0
    %2442 = vmatprep.mubr.bf16.mxu0 0
    %2443 = vmatmul.mubr.bf16.gmra.mrb[0].mxu0 %v2405
    %v2444 = vpop.f32.mrb[0].mxu0
    %v2445 = vadd.f32 0.0, %v2444
    %v2446 = vpop.f32.mrb[0].mxu0
    %v2447 = vpop.f32.mrb[0].mxu0
    %v2448 = vadd.f32 0.0, %v2447
    %v2449 = vpop.f32.mrb[0].mxu0
    %2450 = vdwg.mxu0
    %v2452 = vsel %vm761, %v2113, 0
    %v2455 = vsel %vm761, %v2121, 0
    %2457 = vmatprep.subr.bf16.mxu0 0
    %2458 = vmatpush1.bf16.xpose.msra.mxu0 %v2455
    %2459 = vmatprep.subr.bf16.mxu0 0
    %2460 = vmatpush1.bf16.xpose.msra.mxu0 0
    %2461 = vmatprep.subr.bf16.mxu0 0
    %2462 = vmatpush1.bf16.xpose.msra.mxu0 0
    %2463 = vmatprep.subr.bf16.mxu0 0
    %2464 = vmatpush1.bf16.xpose.msra.mxu0 0
    %2465 = vmatprep.subr.bf16.mxu0 0
    %2466 = vmatpush1.bf16.xpose.msra.mxu0 0
    %2467 = vmatprep.subr.bf16.mxu0 0
    %2468 = vmatpush1.bf16.xpose.msra.mxu0 0
    %2469 = vmatprep.subr.bf16.mxu0 0
    %2470 = vmatpush1.bf16.xpose.msra.mxu0 0
    %2471 = vmatprep.subr.bf16.mxu0 0
    %2472 = vmatpush1.bf16.xpose.msra.mxu0 0
    %2473 = vmatprep.subr.bf16.mxu0 0
    %2474 = vmatpush1.bf16.xpose.msra.mxu0 0
    %2475 = vmatprep.subr.bf16.mxu0 0
    %2476 = vmatpush1.bf16.xpose.msra.mxu0 0
    %2477 = vmatprep.subr.bf16.mxu0 0
    %2478 = vmatpush1.bf16.xpose.msra.mxu0 0
    %2479 = vmatprep.subr.bf16.mxu0 0
    %2480 = vmatpush1.bf16.xpose.msra.mxu0 0
    %2481 = vmatprep.subr.bf16.mxu0 0
    %2482 = vmatpush1.bf16.xpose.msra.mxu0 0
    %2483 = vmatprep.subr.bf16.mxu0 0
    %2484 = vmatpush1.bf16.xpose.msra.mxu0 0
    %2485 = vmatprep.subr.bf16.mxu0 0
    %2486 = vmatpush1.bf16.xpose.msra.mxu0 0
    %2487 = vmatprep.subr.bf16.mxu0 0
    %2488 = vmatpush1.bf16.xpose.msra.mxu0 0
    %2489 = vmatprep.mubr.bf16.mxu0 0
    %2490 = vmatmul.mubr.bf16.gmra.mrb[0].mxu0 %v2452
    %v2491 = vpop.f32.mrb[0].mxu0
    %v2492 = vadd.f32 0.0, %v2491
    %v2493 = vpop.f32.mrb[0].mxu0
    %v2494 = vpop.f32.mrb[0].mxu0
    %v2495 = vadd.f32 0.0, %v2494
    %v2496 = vpop.f32.mrb[0].mxu0
    %2497 = vdwg.mxu0
    %v2498 = vsel %vm761, %v2163, -inf
    %2499 = vmax.xlane.f32.xlu0 %v2498
    %v2500 = vpop.xlane.xlu0 %2499
    %v2501 = vsel %vm761, %v2166, -inf
    %2502 = vmax.xlane.f32.xlu0 %v2501
    %v2503 = vpop.xlane.xlu0 %2502
    %v2504 = vsel %vm761, %v2210, -inf
    %2505 = vmax.xlane.f32.xlu0 %v2504
    %v2506 = vpop.xlane.xlu0 %2505
    %v2507 = vsel %vm761, %v2213, -inf
    %2508 = vmax.xlane.f32.xlu0 %v2507
    %v2509 = vpop.xlane.xlu0 %2508
    %v2510 = vsel %vm761, %v2257, -inf
    %2511 = vmax.xlane.f32.xlu0 %v2510
    %v2512 = vpop.xlane.xlu0 %2511
    %v2513 = vsel %vm761, %v2260, -inf
    %2514 = vmax.xlane.f32.xlu0 %v2513
    %v2515 = vpop.xlane.xlu0 %2514
    %v2516 = vsel %vm761, %v2304, -inf
    %2517 = vmax.xlane.f32.xlu0 %v2516
    %v2518 = vpop.xlane.xlu0 %2517
    %v2519 = vsel %vm761, %v2307, -inf
    %2520 = vmax.xlane.f32.xlu0 %v2519
    %v2521 = vpop.xlane.xlu0 %2520
    %v2522 = vsel %vm761, %v2351, -inf
    %2523 = vmax.xlane.f32.xlu0 %v2522
    %v2524 = vpop.xlane.xlu0 %2523
    %v2525 = vsel %vm761, %v2354, -inf
    %2526 = vmax.xlane.f32.xlu0 %v2525
    %v2527 = vpop.xlane.xlu0 %2526
    %v2528 = vsel %vm761, %v2398, -inf
    %2529 = vmax.xlane.f32.xlu0 %v2528
    %v2530 = vpop.xlane.xlu0 %2529
    %v2531 = vsel %vm761, %v2401, -inf
    %2532 = vmax.xlane.f32.xlu0 %v2531
    %v2533 = vpop.xlane.xlu0 %2532
    %v2534 = vsel %vm761, %v2445, -inf
    %2535 = vmax.xlane.f32.xlu0 %v2534
    %v2536 = vpop.xlane.xlu0 %2535
    %v2537 = vsel %vm761, %v2448, -inf
    %2538 = vmax.xlane.f32.xlu0 %v2537
    %v2539 = vpop.xlane.xlu0 %2538
    %v2540 = vsel %vm761, %v2492, -inf
    %2541 = vmax.xlane.f32.xlu0 %v2540
    %v2542 = vpop.xlane.xlu0 %2541
    %v2543 = vsel %vm761, %v2495, -inf
    %2544 = vmax.xlane.f32.xlu0 %v2543
    %v2545 = vpop.xlane.xlu0 %2544
    %v2546 = vsub.f32 %v2163, %v2500
    %v2547 = vsub.f32 %v2166, %v2503
    %v2548 = vsub.f32 %v2210, %v2506
    %v2549 = vsub.f32 %v2213, %v2509
    %v2550 = vsub.f32 %v2257, %v2512
    %v2551 = vsub.f32 %v2260, %v2515
    %v2552 = vsub.f32 %v2304, %v2518
    %v2553 = vsub.f32 %v2307, %v2521
    %v2554 = vsub.f32 %v2351, %v2524
    %v2555 = vsub.f32 %v2354, %v2527
    %v2556 = vsub.f32 %v2398, %v2530
    %v2557 = vsub.f32 %v2401, %v2533
    %v2558 = vsub.f32 %v2445, %v2536
    %v2559 = vsub.f32 %v2448, %v2539
    %v2560 = vsub.f32 %v2492, %v2542
    %v2561 = vsub.f32 %v2495, %v2545
    %v2562 = vmul.f32 %v2546, 1.442695
    %v2563 = vpow.pop %v2562
    %v2564 = vmul.f32 %v2547, 1.442695
    %v2565 = vpow.pop %v2564
    %v2566 = vmul.f32 %v2548, 1.442695
    %v2567 = vpow.pop %v2566
    %v2568 = vmul.f32 %v2549, 1.442695
    %v2569 = vpow.pop %v2568
    %v2570 = vmul.f32 %v2550, 1.442695
    %v2571 = vpow.pop %v2570
    %v2572 = vmul.f32 %v2551, 1.442695
    %v2573 = vpow.pop %v2572
    %v2574 = vmul.f32 %v2552, 1.442695
    %v2575 = vpow.pop %v2574
    %v2576 = vmul.f32 %v2553, 1.442695
    %v2577 = vpow.pop %v2576
    %v2578 = vmul.f32 %v2554, 1.442695
    %v2579 = vpow.pop %v2578
    %v2580 = vmul.f32 %v2555, 1.442695
    %v2581 = vpow.pop %v2580
    %v2582 = vmul.f32 %v2556, 1.442695
    %v2583 = vpow.pop %v2582
    %v2584 = vmul.f32 %v2557, 1.442695
    %v2585 = vpow.pop %v2584
    %v2586 = vmul.f32 %v2558, 1.442695
    %v2587 = vpow.pop %v2586
    %v2588 = vmul.f32 %v2559, 1.442695
    %v2589 = vpow.pop %v2588
    %v2590 = vmul.f32 %v2560, 1.442695
    %v2591 = vpow.pop %v2590
    %v2592 = vmul.f32 %v2561, 1.442695
    %v2593 = vpow.pop %v2592
    %v2594 = vsel %vm761, %v2563, 0.0
    %2595 = vadd.xlane.f32.xlu0 %v2594
    %v2596 = vpop.xlane.xlu0 %2595
    %v2597 = vsel %vm761, %v2565, 0.0
    %2598 = vadd.xlane.f32.xlu0 %v2597
    %v2599 = vpop.xlane.xlu0 %2598
    %v2600 = vsel %vm761, %v2567, 0.0
    %2601 = vadd.xlane.f32.xlu0 %v2600
    %v2602 = vpop.xlane.xlu0 %2601
    %v2603 = vsel %vm761, %v2569, 0.0
    %2604 = vadd.xlane.f32.xlu0 %v2603
    %v2605 = vpop.xlane.xlu0 %2604
    %v2606 = vsel %vm761, %v2571, 0.0
    %2607 = vadd.xlane.f32.xlu0 %v2606
    %v2608 = vpop.xlane.xlu0 %2607
    %v2609 = vsel %vm761, %v2573, 0.0
    %2610 = vadd.xlane.f32.xlu0 %v2609
    %v2611 = vpop.xlane.xlu0 %2610
    %v2612 = vsel %vm761, %v2575, 0.0
    %2613 = vadd.xlane.f32.xlu0 %v2612
    %v2614 = vpop.xlane.xlu0 %2613
    %v2615 = vsel %vm761, %v2577, 0.0
    %2616 = vadd.xlane.f32.xlu0 %v2615
    %v2617 = vpop.xlane.xlu0 %2616
    %v2618 = vsel %vm761, %v2579, 0.0
    %2619 = vadd.xlane.f32.xlu0 %v2618
    %v2620 = vpop.xlane.xlu0 %2619
    %v2621 = vsel %vm761, %v2581, 0.0
    %2622 = vadd.xlane.f32.xlu0 %v2621
    %v2623 = vpop.xlane.xlu0 %2622
    %v2624 = vsel %vm761, %v2583, 0.0
    %2625 = vadd.xlane.f32.xlu0 %v2624
    %v2626 = vpop.xlane.xlu0 %2625
    %v2627 = vsel %vm761, %v2585, 0.0
    %2628 = vadd.xlane.f32.xlu0 %v2627
    %v2629 = vpop.xlane.xlu0 %2628
    %v2630 = vsel %vm761, %v2587, 0.0
    %2631 = vadd.xlane.f32.xlu0 %v2630
    %v2632 = vpop.xlane.xlu0 %2631
    %v2633 = vsel %vm761, %v2589, 0.0
    %2634 = vadd.xlane.f32.xlu0 %v2633
    %v2635 = vpop.xlane.xlu0 %2634
    %v2636 = vsel %vm761, %v2591, 0.0
    %2637 = vadd.xlane.f32.xlu0 %v2636
    %v2638 = vpop.xlane.xlu0 %2637
    %v2639 = vsel %vm761, %v2593, 0.0
    %2640 = vadd.xlane.f32.xlu0 %v2639
    %v2641 = vpop.xlane.xlu0 %2640
    %v2642 = vrcp.pop %v2596
    %v2643 = vrcp.pop %v2599
    %v2644 = vrcp.pop %v2602
    %v2645 = vrcp.pop %v2605
    %v2646 = vrcp.pop %v2608
    %v2647 = vrcp.pop %v2611
    %v2648 = vrcp.pop %v2614
    %v2649 = vrcp.pop %v2617
    %v2650 = vrcp.pop %v2620
    %v2651 = vrcp.pop %v2623
    %v2652 = vrcp.pop %v2626
    %v2653 = vrcp.pop %v2629
    %v2654 = vrcp.pop %v2632
    %v2655 = vrcp.pop %v2635
    %v2656 = vrcp.pop %v2638
    %v2657 = vrcp.pop %v2641
    %v2658 = vmul.f32 %v2563, %v2642
    %v2659 = vmul.f32 %v2565, %v2643
    %v2660 = vmul.f32 %v2567, %v2644
    %v2661 = vmul.f32 %v2569, %v2645
    %v2662 = vmul.f32 %v2571, %v2646
    %v2663 = vmul.f32 %v2573, %v2647
    %v2664 = vmul.f32 %v2575, %v2648
    %v2665 = vmul.f32 %v2577, %v2649
    %v2666 = vmul.f32 %v2579, %v2650
    %v2667 = vmul.f32 %v2581, %v2651
    %v2668 = vmul.f32 %v2583, %v2652
    %v2669 = vmul.f32 %v2585, %v2653
    %v2670 = vmul.f32 %v2587, %v2654
    %v2671 = vmul.f32 %v2589, %v2655
    %v2672 = vmul.f32 %v2591, %v2656
    %v2673 = vmul.f32 %v2593, %v2657
    %v2674 = vpack.c.bf16 %v2659, %v2658
    %v2675 = vpack.c.bf16 %v2661, %v2660
    %v2676 = vpack.c.bf16 %v2663, %v2662
    %v2677 = vpack.c.bf16 %v2665, %v2664
    %v2678 = vpack.c.bf16 %v2667, %v2666
    %v2679 = vpack.c.bf16 %v2669, %v2668
    %v2680 = vpack.c.bf16 %v2671, %v2670
    %v2681 = vpack.c.bf16 %v2673, %v2672
    %v2682 = vpack.c.bf16 %v2047, %v2044
    %v2683 = vpack.c.bf16 %v2055, %v2052
    %v2684 = vpack.c.bf16 %v2063, %v2060
    %v2685 = vpack.c.bf16 %v2071, %v2068
    %v2686 = vpack.c.bf16 %v2079, %v2076
    %v2687 = vpack.c.bf16 %v2087, %v2084
    %v2688 = vpack.c.bf16 %v2095, %v2092
    %v2689 = vpack.c.bf16 %v2103, %v2100
    %v2691 = vsel %vm761, %v2674, 0
    %2693 = vmatprep.subr.bf16.mxu0 0
    %2694 = vmatpush1.bf16.msra.mxu0 %v2682
    %2695 = vmatprep.subr.bf16.mxu0 0
    %2696 = vmatpush1.bf16.msra.mxu0 0
    %2697 = vmatprep.subr.bf16.mxu0 0
    %2698 = vmatpush1.bf16.msra.mxu0 0
    %2699 = vmatprep.subr.bf16.mxu0 0
    %2700 = vmatpush1.bf16.msra.mxu0 0
    %2701 = vmatprep.subr.bf16.mxu0 0
    %2702 = vmatpush1.bf16.msra.mxu0 0
    %2703 = vmatprep.subr.bf16.mxu0 0
    %2704 = vmatpush1.bf16.msra.mxu0 0
    %2705 = vmatprep.subr.bf16.mxu0 0
    %2706 = vmatpush1.bf16.msra.mxu0 0
    %2707 = vmatprep.subr.bf16.mxu0 0
    %2708 = vmatpush1.bf16.msra.mxu0 0
    %2709 = vmatprep.subr.bf16.mxu0 0
    %2710 = vmatpush1.bf16.msra.mxu0 0
    %2711 = vmatprep.subr.bf16.mxu0 0
    %2712 = vmatpush1.bf16.msra.mxu0 0
    %2713 = vmatprep.subr.bf16.mxu0 0
    %2714 = vmatpush1.bf16.msra.mxu0 0
    %2715 = vmatprep.subr.bf16.mxu0 0
    %2716 = vmatpush1.bf16.msra.mxu0 0
    %2717 = vmatprep.subr.bf16.mxu0 0
    %2718 = vmatpush1.bf16.msra.mxu0 0
    %2719 = vmatprep.subr.bf16.mxu0 0
    %2720 = vmatpush1.bf16.msra.mxu0 0
    %2721 = vmatprep.subr.bf16.mxu0 0
    %2722 = vmatpush1.bf16.msra.mxu0 0
    %2723 = vmatprep.subr.bf16.mxu0 0
    %2724 = vmatpush1.bf16.msra.mxu0 0
    %2725 = vmatprep.mubr.bf16.mxu0 0
    %2726 = vmatmul.mubr.bf16.gmra.mrb[0].mxu0 %v2691
    %v2727 = vpop.f32.mrb[0].mxu0
    %v2728 = vadd.f32 0.0, %v2727
    %v2729 = vpop.f32.mrb[0].mxu0
    %v2730 = vpop.f32.mrb[0].mxu0
    %v2731 = vadd.f32 0.0, %v2730
    %v2732 = vpop.f32.mrb[0].mxu0
    %2733 = vdwg.mxu0
    %v2735 = vsel %vm761, %v2675, 0
    %2737 = vmatprep.subr.bf16.mxu0 0
    %2738 = vmatpush1.bf16.msra.mxu0 %v2683
    %2739 = vmatprep.subr.bf16.mxu0 0
    %2740 = vmatpush1.bf16.msra.mxu0 0
    %2741 = vmatprep.subr.bf16.mxu0 0
    %2742 = vmatpush1.bf16.msra.mxu0 0
    %2743 = vmatprep.subr.bf16.mxu0 0
    %2744 = vmatpush1.bf16.msra.mxu0 0
    %2745 = vmatprep.subr.bf16.mxu0 0
    %2746 = vmatpush1.bf16.msra.mxu0 0
    %2747 = vmatprep.subr.bf16.mxu0 0
    %2748 = vmatpush1.bf16.msra.mxu0 0
    %2749 = vmatprep.subr.bf16.mxu0 0
    %2750 = vmatpush1.bf16.msra.mxu0 0
    %2751 = vmatprep.subr.bf16.mxu0 0
    %2752 = vmatpush1.bf16.msra.mxu0 0
    %2753 = vmatprep.subr.bf16.mxu0 0
    %2754 = vmatpush1.bf16.msra.mxu0 0
    %2755 = vmatprep.subr.bf16.mxu0 0
    %2756 = vmatpush1.bf16.msra.mxu0 0
    %2757 = vmatprep.subr.bf16.mxu0 0
    %2758 = vmatpush1.bf16.msra.mxu0 0
    %2759 = vmatprep.subr.bf16.mxu0 0
    %2760 = vmatpush1.bf16.msra.mxu0 0
    %2761 = vmatprep.subr.bf16.mxu0 0
    %2762 = vmatpush1.bf16.msra.mxu0 0
    %2763 = vmatprep.subr.bf16.mxu0 0
    %2764 = vmatpush1.bf16.msra.mxu0 0
    %2765 = vmatprep.subr.bf16.mxu0 0
    %2766 = vmatpush1.bf16.msra.mxu0 0
    %2767 = vmatprep.subr.bf16.mxu0 0
    %2768 = vmatpush1.bf16.msra.mxu0 0
    %2769 = vmatprep.mubr.bf16.mxu0 0
    %2770 = vmatmul.mubr.bf16.gmra.mrb[0].mxu0 %v2735
    %v2771 = vpop.f32.mrb[0].mxu0
    %v2772 = vadd.f32 0.0, %v2771
    %v2773 = vpop.f32.mrb[0].mxu0
    %v2774 = vpop.f32.mrb[0].mxu0
    %v2775 = vadd.f32 0.0, %v2774
    %v2776 = vpop.f32.mrb[0].mxu0
    %2777 = vdwg.mxu0
    %v2779 = vsel %vm761, %v2676, 0
    %2781 = vmatprep.subr.bf16.mxu0 0
    %2782 = vmatpush1.bf16.msra.mxu0 %v2684
    %2783 = vmatprep.subr.bf16.mxu0 0
    %2784 = vmatpush1.bf16.msra.mxu0 0
    %2785 = vmatprep.subr.bf16.mxu0 0
    %2786 = vmatpush1.bf16.msra.mxu0 0
    %2787 = vmatprep.subr.bf16.mxu0 0
    %2788 = vmatpush1.bf16.msra.mxu0 0
    %2789 = vmatprep.subr.bf16.mxu0 0
    %2790 = vmatpush1.bf16.msra.mxu0 0
    %2791 = vmatprep.subr.bf16.mxu0 0
    %2792 = vmatpush1.bf16.msra.mxu0 0
    %2793 = vmatprep.subr.bf16.mxu0 0
    %2794 = vmatpush1.bf16.msra.mxu0 0
    %2795 = vmatprep.subr.bf16.mxu0 0
    %2796 = vmatpush1.bf16.msra.mxu0 0
    %2797 = vmatprep.subr.bf16.mxu0 0
    %2798 = vmatpush1.bf16.msra.mxu0 0
    %2799 = vmatprep.subr.bf16.mxu0 0
    %2800 = vmatpush1.bf16.msra.mxu0 0
    %2801 = vmatprep.subr.bf16.mxu0 0
    %2802 = vmatpush1.bf16.msra.mxu0 0
    %2803 = vmatprep.subr.bf16.mxu0 0
    %2804 = vmatpush1.bf16.msra.mxu0 0
    %2805 = vmatprep.subr.bf16.mxu0 0
    %2806 = vmatpush1.bf16.msra.mxu0 0
    %2807 = vmatprep.subr.bf16.mxu0 0
    %2808 = vmatpush1.bf16.msra.mxu0 0
    %2809 = vmatprep.subr.bf16.mxu0 0
    %2810 = vmatpush1.bf16.msra.mxu0 0
    %2811 = vmatprep.subr.bf16.mxu0 0
    %2812 = vmatpush1.bf16.msra.mxu0 0
    %2813 = vmatprep.mubr.bf16.mxu0 0
    %2814 = vmatmul.mubr.bf16.gmra.mrb[0].mxu0 %v2779
    %v2815 = vpop.f32.mrb[0].mxu0
    %v2816 = vadd.f32 0.0, %v2815
    %v2817 = vpop.f32.mrb[0].mxu0
    %v2818 = vpop.f32.mrb[0].mxu0
    %v2819 = vadd.f32 0.0, %v2818
    %v2820 = vpop.f32.mrb[0].mxu0
    %2821 = vdwg.mxu0
    %v2823 = vsel %vm761, %v2677, 0
    %2825 = vmatprep.subr.bf16.mxu0 0
    %2826 = vmatpush1.bf16.msra.mxu0 %v2685
    %2827 = vmatprep.subr.bf16.mxu0 0
    %2828 = vmatpush1.bf16.msra.mxu0 0
    %2829 = vmatprep.subr.bf16.mxu0 0
    %2830 = vmatpush1.bf16.msra.mxu0 0
    %2831 = vmatprep.subr.bf16.mxu0 0
    %2832 = vmatpush1.bf16.msra.mxu0 0
    %2833 = vmatprep.subr.bf16.mxu0 0
    %2834 = vmatpush1.bf16.msra.mxu0 0
    %2835 = vmatprep.subr.bf16.mxu0 0
    %2836 = vmatpush1.bf16.msra.mxu0 0
    %2837 = vmatprep.subr.bf16.mxu0 0
    %2838 = vmatpush1.bf16.msra.mxu0 0
    %2839 = vmatprep.subr.bf16.mxu0 0
    %2840 = vmatpush1.bf16.msra.mxu0 0
    %2841 = vmatprep.subr.bf16.mxu0 0
    %2842 = vmatpush1.bf16.msra.mxu0 0
    %2843 = vmatprep.subr.bf16.mxu0 0
    %2844 = vmatpush1.bf16.msra.mxu0 0
    %2845 = vmatprep.subr.bf16.mxu0 0
    %2846 = vmatpush1.bf16.msra.mxu0 0
    %2847 = vmatprep.subr.bf16.mxu0 0
    %2848 = vmatpush1.bf16.msra.mxu0 0
    %2849 = vmatprep.subr.bf16.mxu0 0
    %2850 = vmatpush1.bf16.msra.mxu0 0
    %2851 = vmatprep.subr.bf16.mxu0 0
    %2852 = vmatpush1.bf16.msra.mxu0 0
    %2853 = vmatprep.subr.bf16.mxu0 0
    %2854 = vmatpush1.bf16.msra.mxu0 0
    %2855 = vmatprep.subr.bf16.mxu0 0
    %2856 = vmatpush1.bf16.msra.mxu0 0
    %2857 = vmatprep.mubr.bf16.mxu0 0
    %2858 = vmatmul.mubr.bf16.gmra.mrb[0].mxu0 %v2823
    %v2859 = vpop.f32.mrb[0].mxu0
    %v2860 = vadd.f32 0.0, %v2859
    %v2861 = vpop.f32.mrb[0].mxu0
    %v2862 = vpop.f32.mrb[0].mxu0
    %v2863 = vadd.f32 0.0, %v2862
    %v2864 = vpop.f32.mrb[0].mxu0
    %2865 = vdwg.mxu0
    %v2867 = vsel %vm761, %v2678, 0
    %2869 = vmatprep.subr.bf16.mxu0 0
    %2870 = vmatpush1.bf16.msra.mxu0 %v2686
    %2871 = vmatprep.subr.bf16.mxu0 0
    %2872 = vmatpush1.bf16.msra.mxu0 0
    %2873 = vmatprep.subr.bf16.mxu0 0
    %2874 = vmatpush1.bf16.msra.mxu0 0
    %2875 = vmatprep.subr.bf16.mxu0 0
    %2876 = vmatpush1.bf16.msra.mxu0 0
    %2877 = vmatprep.subr.bf16.mxu0 0
    %2878 = vmatpush1.bf16.msra.mxu0 0
    %2879 = vmatprep.subr.bf16.mxu0 0
    %2880 = vmatpush1.bf16.msra.mxu0 0
    %2881 = vmatprep.subr.bf16.mxu0 0
    %2882 = vmatpush1.bf16.msra.mxu0 0
    %2883 = vmatprep.subr.bf16.mxu0 0
    %2884 = vmatpush1.bf16.msra.mxu0 0
    %2885 = vmatprep.subr.bf16.mxu0 0
    %2886 = vmatpush1.bf16.msra.mxu0 0
    %2887 = vmatprep.subr.bf16.mxu0 0
    %2888 = vmatpush1.bf16.msra.mxu0 0
    %2889 = vmatprep.subr.bf16.mxu0 0
    %2890 = vmatpush1.bf16.msra.mxu0 0
    %2891 = vmatprep.subr.bf16.mxu0 0
    %2892 = vmatpush1.bf16.msra.mxu0 0
    %2893 = vmatprep.subr.bf16.mxu0 0
    %2894 = vmatpush1.bf16.msra.mxu0 0
    %2895 = vmatprep.subr.bf16.mxu0 0
    %2896 = vmatpush1.bf16.msra.mxu0 0
    %2897 = vmatprep.subr.bf16.mxu0 0
    %2898 = vmatpush1.bf16.msra.mxu0 0
    %2899 = vmatprep.subr.bf16.mxu0 0
    %2900 = vmatpush1.bf16.msra.mxu0 0
    %2901 = vmatprep.mubr.bf16.mxu0 0
    %2902 = vmatmul.mubr.bf16.gmra.mrb[0].mxu0 %v2867
    %v2903 = vpop.f32.mrb[0].mxu0
    %v2904 = vadd.f32 0.0, %v2903
    %v2905 = vpop.f32.mrb[0].mxu0
    %v2906 = vpop.f32.mrb[0].mxu0
    %v2907 = vadd.f32 0.0, %v2906
    %v2908 = vpop.f32.mrb[0].mxu0
    %2909 = vdwg.mxu0
    %v2911 = vsel %vm761, %v2679, 0
    %2913 = vmatprep.subr.bf16.mxu0 0
    %2914 = vmatpush1.bf16.msra.mxu0 %v2687
    %2915 = vmatprep.subr.bf16.mxu0 0
    %2916 = vmatpush1.bf16.msra.mxu0 0
    %2917 = vmatprep.subr.bf16.mxu0 0
    %2918 = vmatpush1.bf16.msra.mxu0 0
    %2919 = vmatprep.subr.bf16.mxu0 0
    %2920 = vmatpush1.bf16.msra.mxu0 0
    %2921 = vmatprep.subr.bf16.mxu0 0
    %2922 = vmatpush1.bf16.msra.mxu0 0
    %2923 = vmatprep.subr.bf16.mxu0 0
    %2924 = vmatpush1.bf16.msra.mxu0 0
    %2925 = vmatprep.subr.bf16.mxu0 0
    %2926 = vmatpush1.bf16.msra.mxu0 0
    %2927 = vmatprep.subr.bf16.mxu0 0
    %2928 = vmatpush1.bf16.msra.mxu0 0
    %2929 = vmatprep.subr.bf16.mxu0 0
    %2930 = vmatpush1.bf16.msra.mxu0 0
    %2931 = vmatprep.subr.bf16.mxu0 0
    %2932 = vmatpush1.bf16.msra.mxu0 0
    %2933 = vmatprep.subr.bf16.mxu0 0
    %2934 = vmatpush1.bf16.msra.mxu0 0
    %2935 = vmatprep.subr.bf16.mxu0 0
    %2936 = vmatpush1.bf16.msra.mxu0 0
    %2937 = vmatprep.subr.bf16.mxu0 0
    %2938 = vmatpush1.bf16.msra.mxu0 0
    %2939 = vmatprep.subr.bf16.mxu0 0
    %2940 = vmatpush1.bf16.msra.mxu0 0
    %2941 = vmatprep.subr.bf16.mxu0 0
    %2942 = vmatpush1.bf16.msra.mxu0 0
    %2943 = vmatprep.subr.bf16.mxu0 0
    %2944 = vmatpush1.bf16.msra.mxu0 0
    %2945 = vmatprep.mubr.bf16.mxu0 0
    %2946 = vmatmul.mubr.bf16.gmra.mrb[0].mxu0 %v2911
    %v2947 = vpop.f32.mrb[0].mxu0
    %v2948 = vadd.f32 0.0, %v2947
    %v2949 = vpop.f32.mrb[0].mxu0
    %v2950 = vpop.f32.mrb[0].mxu0
    %v2951 = vadd.f32 0.0, %v2950
    %v2952 = vpop.f32.mrb[0].mxu0
    %2953 = vdwg.mxu0
    %v2955 = vsel %vm761, %v2680, 0
    %2957 = vmatprep.subr.bf16.mxu0 0
    %2958 = vmatpush1.bf16.msra.mxu0 %v2688
    %2959 = vmatprep.subr.bf16.mxu0 0
    %2960 = vmatpush1.bf16.msra.mxu0 0
    %2961 = vmatprep.subr.bf16.mxu0 0
    %2962 = vmatpush1.bf16.msra.mxu0 0
    %2963 = vmatprep.subr.bf16.mxu0 0
    %2964 = vmatpush1.bf16.msra.mxu0 0
    %2965 = vmatprep.subr.bf16.mxu0 0
    %2966 = vmatpush1.bf16.msra.mxu0 0
    %2967 = vmatprep.subr.bf16.mxu0 0
    %2968 = vmatpush1.bf16.msra.mxu0 0
    %2969 = vmatprep.subr.bf16.mxu0 0
    %2970 = vmatpush1.bf16.msra.mxu0 0
    %2971 = vmatprep.subr.bf16.mxu0 0
    %2972 = vmatpush1.bf16.msra.mxu0 0
    %2973 = vmatprep.subr.bf16.mxu0 0
    %2974 = vmatpush1.bf16.msra.mxu0 0
    %2975 = vmatprep.subr.bf16.mxu0 0
    %2976 = vmatpush1.bf16.msra.mxu0 0
    %2977 = vmatprep.subr.bf16.mxu0 0
    %2978 = vmatpush1.bf16.msra.mxu0 0
    %2979 = vmatprep.subr.bf16.mxu0 0
    %2980 = vmatpush1.bf16.msra.mxu0 0
    %2981 = vmatprep.subr.bf16.mxu0 0
    %2982 = vmatpush1.bf16.msra.mxu0 0
    %2983 = vmatprep.subr.bf16.mxu0 0
    %2984 = vmatpush1.bf16.msra.mxu0 0
    %2985 = vmatprep.subr.bf16.mxu0 0
    %2986 = vmatpush1.bf16.msra.mxu0 0
    %2987 = vmatprep.subr.bf16.mxu0 0
    %2988 = vmatpush1.bf16.msra.mxu0 0
    %2989 = vmatprep.mubr.bf16.mxu0 0
    %2990 = vmatmul.mubr.bf16.gmra.mrb[0].mxu0 %v2955
    %v2991 = vpop.f32.mrb[0].mxu0
    %v2992 = vadd.f32 0.0, %v2991
    %v2993 = vpop.f32.mrb[0].mxu0
    %v2994 = vpop.f32.mrb[0].mxu0
    %v2995 = vadd.f32 0.0, %v2994
    %v2996 = vpop.f32.mrb[0].mxu0
    %2997 = vdwg.mxu0
    %v2999 = vsel %vm761, %v2681, 0
    %3001 = vmatprep.subr.bf16.mxu0 0
    %3002 = vmatpush1.bf16.msra.mxu0 %v2689
    %3003 = vmatprep.subr.bf16.mxu0 0
    %3004 = vmatpush1.bf16.msra.mxu0 0
    %3005 = vmatprep.subr.bf16.mxu0 0
    %3006 = vmatpush1.bf16.msra.mxu0 0
    %3007 = vmatprep.subr.bf16.mxu0 0
    %3008 = vmatpush1.bf16.msra.mxu0 0
    %3009 = vmatprep.subr.bf16.mxu0 0
    %3010 = vmatpush1.bf16.msra.mxu0 0
    %3011 = vmatprep.subr.bf16.mxu0 0
    %3012 = vmatpush1.bf16.msra.mxu0 0
    %3013 = vmatprep.subr.bf16.mxu0 0
    %3014 = vmatpush1.bf16.msra.mxu0 0
    %3015 = vmatprep.subr.bf16.mxu0 0
    %3016 = vmatpush1.bf16.msra.mxu0 0
    %3017 = vmatprep.subr.bf16.mxu0 0
    %3018 = vmatpush1.bf16.msra.mxu0 0
    %3019 = vmatprep.subr.bf16.mxu0 0
    %3020 = vmatpush1.bf16.msra.mxu0 0
    %3021 = vmatprep.subr.bf16.mxu0 0
    %3022 = vmatpush1.bf16.msra.mxu0 0
    %3023 = vmatprep.subr.bf16.mxu0 0
    %3024 = vmatpush1.bf16.msra.mxu0 0
    %3025 = vmatprep.subr.bf16.mxu0 0
    %3026 = vmatpush1.bf16.msra.mxu0 0
    %3027 = vmatprep.subr.bf16.mxu0 0
    %3028 = vmatpush1.bf16.msra.mxu0 0
    %3029 = vmatprep.subr.bf16.mxu0 0
    %3030 = vmatpush1.bf16.msra.mxu0 0
    %3031 = vmatprep.subr.bf16.mxu0 0
    %3032 = vmatpush1.bf16.msra.mxu0 0
    %3033 = vmatprep.mubr.bf16.mxu0 0
    %3034 = vmatmul.mubr.bf16.gmra.mrb[0].mxu0 %v2999
    %v3035 = vpop.f32.mrb[0].mxu0
    %v3036 = vadd.f32 0.0, %v3035
    %v3037 = vpop.f32.mrb[0].mxu0
    %v3038 = vpop.f32.mrb[0].mxu0
    %v3039 = vadd.f32 0.0, %v3038
    %v3040 = vpop.f32.mrb[0].mxu0
    %3041 = vdwg.mxu0
    %v3042 = vpack.c.bf16 %v2731, %v2728
    %v3043 = vpack.c.bf16 %v2775, %v2772
    %v3044 = vpack.c.bf16 %v2819, %v2816
    %v3045 = vpack.c.bf16 %v2863, %v2860
    %v3046 = vpack.c.bf16 %v2907, %v2904
    %v3047 = vpack.c.bf16 %v2951, %v2948
    %v3048 = vpack.c.bf16 %v2995, %v2992
    %v3049 = vpack.c.bf16 %v3039, %v3036
    %s3050 = scalar_lea.vmem %s9, 8
    %v3051 = vld [vmem:[%s3050] sm:$0xf]
    %v3052 = vld [vmem:[%s3050 + $0x4] sm:$0xf]
    %v3055 = vunpack.c.l.b16 %v3051
    %v3056 = vunpack.c.l.b16 %v3052
    %v3057 = vpack.c.b16 %v3056, %v3055
    %v3060 = vsel %vm761, %v3042, 0
    %v3063 = vsel %vm761, %v3043, 0
    %v3066 = vsel %vm761, %v3044, 0
    %v3069 = vsel %vm761, %v3045, 0
    %v3072 = vsel %vm761, %v3046, 0
    %v3075 = vsel %vm761, %v3047, 0
    %v3078 = vsel %vm761, %v3048, 0
    %v3081 = vsel %vm761, %v3049, 0
    %3083 = vmatprep.subr.bf16.mxu0 0
    %3084 = vmatpush1.bf16.msra.mxu0 %v3057
    %3085 = vmatprep.subr.bf16.mxu0 0
    %3086 = vmatpush1.bf16.msra.mxu0 0
    %3087 = vmatprep.subr.bf16.mxu0 0
    %3088 = vmatpush1.bf16.msra.mxu0 0
    %3089 = vmatprep.subr.bf16.mxu0 0
    %3090 = vmatpush1.bf16.msra.mxu0 0
    %3091 = vmatprep.subr.bf16.mxu0 0
    %3092 = vmatpush1.bf16.msra.mxu0 0
    %3093 = vmatprep.subr.bf16.mxu0 0
    %3094 = vmatpush1.bf16.msra.mxu0 0
    %3095 = vmatprep.subr.bf16.mxu0 0
    %3096 = vmatpush1.bf16.msra.mxu0 0
    %3097 = vmatprep.subr.bf16.mxu0 0
    %3098 = vmatpush1.bf16.msra.mxu0 0
    %3099 = vmatprep.subr.bf16.mxu0 0
    %3100 = vmatpush1.bf16.msra.mxu0 0
    %3101 = vmatprep.subr.bf16.mxu0 0
    %3102 = vmatpush1.bf16.msra.mxu0 0
    %3103 = vmatprep.subr.bf16.mxu0 0
    %3104 = vmatpush1.bf16.msra.mxu0 0
    %3105 = vmatprep.subr.bf16.mxu0 0
    %3106 = vmatpush1.bf16.msra.mxu0 0
    %3107 = vmatprep.subr.bf16.mxu0 0
    %3108 = vmatpush1.bf16.msra.mxu0 0
    %3109 = vmatprep.subr.bf16.mxu0 0
    %3110 = vmatpush1.bf16.msra.mxu0 0
    %3111 = vmatprep.subr.bf16.mxu0 0
    %3112 = vmatpush1.bf16.msra.mxu0 0
    %3113 = vmatprep.subr.bf16.mxu0 0
    %3114 = vmatpush1.bf16.msra.mxu0 0
    %3115 = vmatprep.mubr.bf16.mxu0 0
    %3116 = vmatmul.mubr.bf16.gmra.mrb[0].mxu0 %v3060
    %v3117 = vpop.f32.mrb[0].mxu0
    %v3118 = vadd.f32 0.0, %v3117
    %v3119 = vpop.f32.mrb[0].mxu0
    %v3120 = vpop.f32.mrb[0].mxu0
    %v3121 = vadd.f32 0.0, %v3120
    %v3122 = vpop.f32.mrb[0].mxu0
    %3123 = vmatprep.mubr.bf16.mxu0 0
    %3124 = vmatmul.mubr.bf16.gmra.mrb[0].mxu0 %v3063
    %v3125 = vpop.f32.mrb[0].mxu0
    %v3126 = vadd.f32 0.0, %v3125
    %v3127 = vpop.f32.mrb[0].mxu0
    %v3128 = vpop.f32.mrb[0].mxu0
    %v3129 = vadd.f32 0.0, %v3128
    %v3130 = vpop.f32.mrb[0].mxu0
    %3131 = vmatprep.mubr.bf16.mxu0 0
    %3132 = vmatmul.mubr.bf16.gmra.mrb[0].mxu0 %v3066
    %v3133 = vpop.f32.mrb[0].mxu0
    %v3134 = vadd.f32 0.0, %v3133
    %v3135 = vpop.f32.mrb[0].mxu0
    %v3136 = vpop.f32.mrb[0].mxu0
    %v3137 = vadd.f32 0.0, %v3136
    %v3138 = vpop.f32.mrb[0].mxu0
    %3139 = vmatprep.mubr.bf16.mxu0 0
    %3140 = vmatmul.mubr.bf16.gmra.mrb[0].mxu0 %v3069
    %v3141 = vpop.f32.mrb[0].mxu0
    %v3142 = vadd.f32 0.0, %v3141
    %v3143 = vpop.f32.mrb[0].mxu0
    %v3144 = vpop.f32.mrb[0].mxu0
    %v3145 = vadd.f32 0.0, %v3144
    %v3146 = vpop.f32.mrb[0].mxu0
    %3147 = vmatprep.mubr.bf16.mxu0 0
    %3148 = vmatmul.mubr.bf16.gmra.mrb[0].mxu0 %v3072
    %v3149 = vpop.f32.mrb[0].mxu0
    %v3150 = vadd.f32 0.0, %v3149
    %v3151 = vpop.f32.mrb[0].mxu0
    %v3152 = vpop.f32.mrb[0].mxu0
    %v3153 = vadd.f32 0.0, %v3152
    %v3154 = vpop.f32.mrb[0].mxu0
    %3155 = vmatprep.mubr.bf16.mxu0 0
    %3156 = vmatmul.mubr.bf16.gmra.mrb[0].mxu0 %v3075
    %v3157 = vpop.f32.mrb[0].mxu0
    %v3158 = vadd.f32 0.0, %v3157
    %v3159 = vpop.f32.mrb[0].mxu0
    %v3160 = vpop.f32.mrb[0].mxu0
    %v3161 = vadd.f32 0.0, %v3160
    %v3162 = vpop.f32.mrb[0].mxu0
    %3163 = vmatprep.mubr.bf16.mxu0 0
    %3164 = vmatmul.mubr.bf16.gmra.mrb[0].mxu0 %v3078
    %v3165 = vpop.f32.mrb[0].mxu0
    %v3166 = vadd.f32 0.0, %v3165
    %v3167 = vpop.f32.mrb[0].mxu0
    %v3168 = vpop.f32.mrb[0].mxu0
    %v3169 = vadd.f32 0.0, %v3168
    %v3170 = vpop.f32.mrb[0].mxu0
    %3171 = vmatprep.mubr.bf16.mxu0 0
    %3172 = vmatmul.mubr.bf16.gmra.mrb[0].mxu0 %v3081
    %v3173 = vpop.f32.mrb[0].mxu0
    %v3174 = vadd.f32 0.0, %v3173
    %v3175 = vpop.f32.mrb[0].mxu0
    %v3176 = vpop.f32.mrb[0].mxu0
    %v3177 = vadd.f32 0.0, %v3176
    %v3178 = vpop.f32.mrb[0].mxu0
    %3179 = vdwg.mxu0
    %v3182 = vunpack.c.l.b16 %v1690
    %v3183 = vunpack.c.l.b16 %v1691
    %v3184 = vpack.c.b16 %v3183, %v3182
    %v3187 = vsel %vm761, %v1682, 0
    %v3190 = vsel %vm761, %v1683, 0
    %v3193 = vsel %vm761, %v1684, 0
    %v3196 = vsel %vm761, %v1685, 0
    %v3199 = vsel %vm761, %v1686, 0
    %v3202 = vsel %vm761, %v1687, 0
    %v3205 = vsel %vm761, %v1688, 0
    %v3208 = vsel %vm761, %v1689, 0
    %3210 = vmatprep.subr.bf16.mxu0 0
    %3211 = vmatpush1.bf16.msra.mxu0 %v3184
    %3212 = vmatprep.subr.bf16.mxu0 0
    %3213 = vmatpush1.bf16.msra.mxu0 0
    %3214 = vmatprep.subr.bf16.mxu0 0
    %3215 = vmatpush1.bf16.msra.mxu0 0
    %3216 = vmatprep.subr.bf16.mxu0 0
    %3217 = vmatpush1.bf16.msra.mxu0 0
    %3218 = vmatprep.subr.bf16.mxu0 0
    %3219 = vmatpush1.bf16.msra.mxu0 0
    %3220 = vmatprep.subr.bf16.mxu0 0
    %3221 = vmatpush1.bf16.msra.mxu0 0
    %3222 = vmatprep.subr.bf16.mxu0 0
    %3223 = vmatpush1.bf16.msra.mxu0 0
    %3224 = vmatprep.subr.bf16.mxu0 0
    %3225 = vmatpush1.bf16.msra.mxu0 0
    %3226 = vmatprep.subr.bf16.mxu0 0
    %3227 = vmatpush1.bf16.msra.mxu0 0
    %3228 = vmatprep.subr.bf16.mxu0 0
    %3229 = vmatpush1.bf16.msra.mxu0 0
    %3230 = vmatprep.subr.bf16.mxu0 0
    %3231 = vmatpush1.bf16.msra.mxu0 0
    %3232 = vmatprep.subr.bf16.mxu0 0
    %3233 = vmatpush1.bf16.msra.mxu0 0
    %3234 = vmatprep.subr.bf16.mxu0 0
    %3235 = vmatpush1.bf16.msra.mxu0 0
    %3236 = vmatprep.subr.bf16.mxu0 0
    %3237 = vmatpush1.bf16.msra.mxu0 0
    %3238 = vmatprep.subr.bf16.mxu0 0
    %3239 = vmatpush1.bf16.msra.mxu0 0
    %3240 = vmatprep.subr.bf16.mxu0 0
    %3241 = vmatpush1.bf16.msra.mxu0 0
    %3242 = vmatprep.mubr.bf16.mxu0 0
    %3243 = vmatmul.mubr.bf16.gmra.mrb[0].mxu0 %v3187
    %v3244 = vpop.f32.mrb[0].mxu0
    %v3245 = vadd.f32 %v3118, %v3244
    %v3246 = vpop.f32.mrb[0].mxu0
    %v3247 = vpop.f32.mrb[0].mxu0
    %v3248 = vadd.f32 %v3121, %v3247
    %v3249 = vpop.f32.mrb[0].mxu0
    %3250 = vmatprep.mubr.bf16.mxu0 0
    %3251 = vmatmul.mubr.bf16.gmra.mrb[0].mxu0 %v3190
    %v3252 = vpop.f32.mrb[0].mxu0
    %v3253 = vadd.f32 %v3126, %v3252
    %v3254 = vpop.f32.mrb[0].mxu0
    %v3255 = vpop.f32.mrb[0].mxu0
    %v3256 = vadd.f32 %v3129, %v3255
    %v3257 = vpop.f32.mrb[0].mxu0
    %3258 = vmatprep.mubr.bf16.mxu0 0
    %3259 = vmatmul.mubr.bf16.gmra.mrb[0].mxu0 %v3193
    %v3260 = vpop.f32.mrb[0].mxu0
    %v3261 = vadd.f32 %v3134, %v3260
    %v3262 = vpop.f32.mrb[0].mxu0
    %v3263 = vpop.f32.mrb[0].mxu0
    %v3264 = vadd.f32 %v3137, %v3263
    %v3265 = vpop.f32.mrb[0].mxu0
    %3266 = vmatprep.mubr.bf16.mxu0 0
    %3267 = vmatmul.mubr.bf16.gmra.mrb[0].mxu0 %v3196
    %v3268 = vpop.f32.mrb[0].mxu0
    %v3269 = vadd.f32 %v3142, %v3268
    %v3270 = vpop.f32.mrb[0].mxu0
    %v3271 = vpop.f32.mrb[0].mxu0
    %v3272 = vadd.f32 %v3145, %v3271
    %v3273 = vpop.f32.mrb[0].mxu0
    %3274 = vmatprep.mubr.bf16.mxu0 0
    %3275 = vmatmul.mubr.bf16.gmra.mrb[0].mxu0 %v3199
    %v3276 = vpop.f32.mrb[0].mxu0
    %v3277 = vadd.f32 %v3150, %v3276
    %v3278 = vpop.f32.mrb[0].mxu0
    %v3279 = vpop.f32.mrb[0].mxu0
    %v3280 = vadd.f32 %v3153, %v3279
    %v3281 = vpop.f32.mrb[0].mxu0
    %3282 = vmatprep.mubr.bf16.mxu0 0
    %3283 = vmatmul.mubr.bf16.gmra.mrb[0].mxu0 %v3202
    %v3284 = vpop.f32.mrb[0].mxu0
    %v3285 = vadd.f32 %v3158, %v3284
    %v3286 = vpop.f32.mrb[0].mxu0
    %v3287 = vpop.f32.mrb[0].mxu0
    %v3288 = vadd.f32 %v3161, %v3287
    %v3289 = vpop.f32.mrb[0].mxu0
    %3290 = vmatprep.mubr.bf16.mxu0 0
    %3291 = vmatmul.mubr.bf16.gmra.mrb[0].mxu0 %v3205
    %v3292 = vpop.f32.mrb[0].mxu0
    %v3293 = vadd.f32 %v3166, %v3292
    %v3294 = vpop.f32.mrb[0].mxu0
    %v3295 = vpop.f32.mrb[0].mxu0
    %v3296 = vadd.f32 %v3169, %v3295
    %v3297 = vpop.f32.mrb[0].mxu0
    %3298 = vmatprep.mubr.bf16.mxu0 0
    %3299 = vmatmul.mubr.bf16.gmra.mrb[0].mxu0 %v3208
    %v3300 = vpop.f32.mrb[0].mxu0
    %v3301 = vadd.f32 %v3174, %v3300
    %v3302 = vpop.f32.mrb[0].mxu0
    %v3303 = vpop.f32.mrb[0].mxu0
    %v3304 = vadd.f32 %v3177, %v3303
    %v3305 = vpop.f32.mrb[0].mxu0
    %3306 = vdwg.mxu0
    %s3307 = scalar_lea.vmem %s3, 64
    %v3308 = vld [vmem:[%s3307] sm:$0xf]
    %v3309 = vld [vmem:[%s3307 + $0x4] sm:$0xf]
    %v3310 = vld [vmem:[%s3307 + $0x8] sm:$0xf]
    %v3311 = vld [vmem:[%s3307 + $0xc] sm:$0xf]
    %v3312 = vld [vmem:[%s3307 + $0x10] sm:$0xf]
    %v3313 = vld [vmem:[%s3307 + $0x14] sm:$0xf]
    %v3314 = vld [vmem:[%s3307 + $0x18] sm:$0xf]
    %v3315 = vld [vmem:[%s3307 + $0x1c] sm:$0xf]
    %s3316 = scalar_lea.vmem %s6, 2
    %v3317 = vld [vmem:[%s3316] sm:$0x1]
    %v3319 = vlaneseq
    %v3320 = vshrl.u32 %v3319, 7
    %v3321 = vsub.s32 0, %v3320
    %v3322 = vrot.slane %v3317, %v3321
    %v3332 = vunpack.c.l.b16 %v3308
    %v3333 = vunpack.c.l.b16 %v3309
    %v3334 = vunpack.c.l.b16 %v3310
    %v3335 = vunpack.c.l.b16 %v3311
    %v3336 = vunpack.c.l.b16 %v3312
    %v3337 = vunpack.c.l.b16 %v3313
    %v3338 = vunpack.c.l.b16 %v3314
    %v3339 = vunpack.c.l.b16 %v3315
    %v3340 = vpack.c.b16 %v3333, %v3332
    %v3341 = vpack.c.b16 %v3335, %v3334
    %v3342 = vpack.c.b16 %v3337, %v3336
    %v3343 = vpack.c.b16 %v3339, %v3338
    %3348 = vmatprep.subr.bf16.mxu0 0
    %3349 = vmatpush1.bf16.msra.mxu0 %v3340
    %3350 = vmatprep.subr.bf16.mxu0 0
    %3351 = vmatpush1.bf16.msra.mxu0 %v3341
    %3352 = vmatprep.subr.bf16.mxu0 0
    %3353 = vmatpush1.bf16.msra.mxu0 %v3342
    %3354 = vmatprep.subr.bf16.mxu0 0
    %3355 = vmatpush1.bf16.msra.mxu0 %v3343
    %3356 = vmatprep.subr.bf16.mxu0 0
    %3357 = vmatpush1.bf16.msra.mxu0 0
    %3358 = vmatprep.subr.bf16.mxu0 0
    %3359 = vmatpush1.bf16.msra.mxu0 0
    %3360 = vmatprep.subr.bf16.mxu0 0
    %3361 = vmatpush1.bf16.msra.mxu0 0
    %3362 = vmatprep.subr.bf16.mxu0 0
    %3363 = vmatpush1.bf16.msra.mxu0 0
    %3364 = vmatprep.subr.bf16.mxu0 0
    %3365 = vmatpush1.bf16.msra.mxu0 0
    %3366 = vmatprep.subr.bf16.mxu0 0
    %3367 = vmatpush1.bf16.msra.mxu0 0
    %3368 = vmatprep.subr.bf16.mxu0 0
    %3369 = vmatpush1.bf16.msra.mxu0 0
    %3370 = vmatprep.subr.bf16.mxu0 0
    %3371 = vmatpush1.bf16.msra.mxu0 0
    %3372 = vmatprep.subr.bf16.mxu0 0
    %3373 = vmatpush1.bf16.msra.mxu0 0
    %3374 = vmatprep.subr.bf16.mxu0 0
    %3375 = vmatpush1.bf16.msra.mxu0 0
    %3376 = vmatprep.subr.bf16.mxu0 0
    %3377 = vmatpush1.bf16.msra.mxu0 0
    %3378 = vmatprep.subr.bf16.mxu0 0
    %3379 = vmatpush1.bf16.msra.mxu0 0
    %3380 = vmatprep.mubr.bf16.mxu0 0
    %3381 = vmatmul.mubr.bf16.gmra.mrb[0].mxu0 %v353
    %v3382 = vpop.f32.mrb[0].mxu0
    %v3383 = vadd.f32 %v3322, %v3382
    %v3384 = vpop.f32.mrb[0].mxu0
    %v3385 = vpop.f32.mrb[0].mxu0
    %v3386 = vadd.f32 %v3322, %v3385
    %v3387 = vpop.f32.mrb[0].mxu0
    %3388 = vmatprep.mubr.bf16.mxu0 0
    %3389 = vmatmul.mubr.bf16.gmra.mrb[0].mxu0 %v356
    %v3390 = vpop.f32.mrb[0].mxu0
    %v3391 = vadd.f32 %v3322, %v3390
    %v3392 = vpop.f32.mrb[0].mxu0
    %v3393 = vpop.f32.mrb[0].mxu0
    %v3394 = vadd.f32 %v3322, %v3393
    %v3395 = vpop.f32.mrb[0].mxu0
    %3396 = vmatprep.mubr.bf16.mxu0 0
    %3397 = vmatmul.mubr.bf16.gmra.mrb[0].mxu0 %v359
    %v3398 = vpop.f32.mrb[0].mxu0
    %v3399 = vadd.f32 %v3322, %v3398
    %v3400 = vpop.f32.mrb[0].mxu0
    %v3401 = vpop.f32.mrb[0].mxu0
    %v3402 = vadd.f32 %v3322, %v3401
    %v3403 = vpop.f32.mrb[0].mxu0
    %3404 = vmatprep.mubr.bf16.mxu0 0
    %3405 = vmatmul.mubr.bf16.gmra.mrb[0].mxu0 %v362
    %v3406 = vpop.f32.mrb[0].mxu0
    %v3407 = vadd.f32 %v3322, %v3406
    %v3408 = vpop.f32.mrb[0].mxu0
    %v3409 = vpop.f32.mrb[0].mxu0
    %v3410 = vadd.f32 %v3322, %v3409
    %v3411 = vpop.f32.mrb[0].mxu0
    %3412 = vmatprep.mubr.bf16.mxu0 0
    %3413 = vmatmul.mubr.bf16.gmra.mrb[0].mxu0 %v365
    %v3414 = vpop.f32.mrb[0].mxu0
    %v3415 = vadd.f32 %v3322, %v3414
    %v3416 = vpop.f32.mrb[0].mxu0
    %v3417 = vpop.f32.mrb[0].mxu0
    %v3418 = vadd.f32 %v3322, %v3417
    %v3419 = vpop.f32.mrb[0].mxu0
    %3420 = vmatprep.mubr.bf16.mxu0 0
    %3421 = vmatmul.mubr.bf16.gmra.mrb[0].mxu0 %v368
    %v3422 = vpop.f32.mrb[0].mxu0
    %v3423 = vadd.f32 %v3322, %v3422
    %v3424 = vpop.f32.mrb[0].mxu0
    %v3425 = vpop.f32.mrb[0].mxu0
    %v3426 = vadd.f32 %v3322, %v3425
    %v3427 = vpop.f32.mrb[0].mxu0
    %3428 = vmatprep.mubr.bf16.mxu0 0
    %3429 = vmatmul.mubr.bf16.gmra.mrb[0].mxu0 %v371
    %v3430 = vpop.f32.mrb[0].mxu0
    %v3431 = vadd.f32 %v3322, %v3430
    %v3432 = vpop.f32.mrb[0].mxu0
    %v3433 = vpop.f32.mrb[0].mxu0
    %v3434 = vadd.f32 %v3322, %v3433
    %v3435 = vpop.f32.mrb[0].mxu0
    %3436 = vmatprep.mubr.bf16.mxu0 0
    %3437 = vmatmul.mubr.bf16.gmra.mrb[0].mxu0 %v374
    %v3438 = vpop.f32.mrb[0].mxu0
    %v3439 = vadd.f32 %v3322, %v3438
    %v3440 = vpop.f32.mrb[0].mxu0
    %v3441 = vpop.f32.mrb[0].mxu0
    %v3442 = vadd.f32 %v3322, %v3441
    %v3443 = vpop.f32.mrb[0].mxu0
    %3444 = vdwg.mxu0
    %s3445 = scalar_lea.vmem %s4, 64
    %v3446 = vld [vmem:[%s3445] sm:$0xf]
    %v3447 = vld [vmem:[%s3445 + $0x4] sm:$0xf]
    %v3448 = vld [vmem:[%s3445 + $0x8] sm:$0xf]
    %v3449 = vld [vmem:[%s3445 + $0xc] sm:$0xf]
    %v3450 = vld [vmem:[%s3445 + $0x10] sm:$0xf]
    %v3451 = vld [vmem:[%s3445 + $0x14] sm:$0xf]
    %v3452 = vld [vmem:[%s3445 + $0x18] sm:$0xf]
    %v3453 = vld [vmem:[%s3445 + $0x1c] sm:$0xf]
    %s3454 = scalar_lea.vmem %s7, 2
    %v3455 = vld [vmem:[%s3454] sm:$0x1]
    %v3457 = vlaneseq
    %v3458 = vshrl.u32 %v3457, 7
    %v3459 = vsub.s32 0, %v3458
    %v3460 = vrot.slane %v3455, %v3459
    %v3470 = vunpack.c.l.b16 %v3446
    %v3471 = vunpack.c.l.b16 %v3447
    %v3472 = vunpack.c.l.b16 %v3448
    %v3473 = vunpack.c.l.b16 %v3449
    %v3474 = vunpack.c.l.b16 %v3450
    %v3475 = vunpack.c.l.b16 %v3451
    %v3476 = vunpack.c.l.b16 %v3452
    %v3477 = vunpack.c.l.b16 %v3453
    %v3478 = vpack.c.b16 %v3471, %v3470
    %v3479 = vpack.c.b16 %v3473, %v3472
    %v3480 = vpack.c.b16 %v3475, %v3474
    %v3481 = vpack.c.b16 %v3477, %v3476
    %3486 = vmatprep.subr.bf16.mxu0 0
    %3487 = vmatpush1.bf16.msra.mxu0 %v3478
    %3488 = vmatprep.subr.bf16.mxu0 0
    %3489 = vmatpush1.bf16.msra.mxu0 %v3479
    %3490 = vmatprep.subr.bf16.mxu0 0
    %3491 = vmatpush1.bf16.msra.mxu0 %v3480
    %3492 = vmatprep.subr.bf16.mxu0 0
    %3493 = vmatpush1.bf16.msra.mxu0 %v3481
    %3494 = vmatprep.subr.bf16.mxu0 0
    %3495 = vmatpush1.bf16.msra.mxu0 0
    %3496 = vmatprep.subr.bf16.mxu0 0
    %3497 = vmatpush1.bf16.msra.mxu0 0
    %3498 = vmatprep.subr.bf16.mxu0 0
    %3499 = vmatpush1.bf16.msra.mxu0 0
    %3500 = vmatprep.subr.bf16.mxu0 0
    %3501 = vmatpush1.bf16.msra.mxu0 0
    %3502 = vmatprep.subr.bf16.mxu0 0
    %3503 = vmatpush1.bf16.msra.mxu0 0
    %3504 = vmatprep.subr.bf16.mxu0 0
    %3505 = vmatpush1.bf16.msra.mxu0 0
    %3506 = vmatprep.subr.bf16.mxu0 0
    %3507 = vmatpush1.bf16.msra.mxu0 0
    %3508 = vmatprep.subr.bf16.mxu0 0
    %3509 = vmatpush1.bf16.msra.mxu0 0
    %3510 = vmatprep.subr.bf16.mxu0 0
    %3511 = vmatpush1.bf16.msra.mxu0 0
    %3512 = vmatprep.subr.bf16.mxu0 0
    %3513 = vmatpush1.bf16.msra.mxu0 0
    %3514 = vmatprep.subr.bf16.mxu0 0
    %3515 = vmatpush1.bf16.msra.mxu0 0
    %3516 = vmatprep.subr.bf16.mxu0 0
    %3517 = vmatpush1.bf16.msra.mxu0 0
    %3518 = vmatprep.mubr.bf16.mxu0 0
    %3519 = vmatmul.mubr.bf16.gmra.mrb[0].mxu0 %v353
    %v3520 = vpop.f32.mrb[0].mxu0
    %v3521 = vadd.f32 %v3460, %v3520
    %v3522 = vpop.f32.mrb[0].mxu0
    %v3523 = vpop.f32.mrb[0].mxu0
    %v3524 = vadd.f32 %v3460, %v3523
    %v3525 = vpop.f32.mrb[0].mxu0
    %3526 = vmatprep.mubr.bf16.mxu0 0
    %3527 = vmatmul.mubr.bf16.gmra.mrb[0].mxu0 %v356
    %v3528 = vpop.f32.mrb[0].mxu0
    %v3529 = vadd.f32 %v3460, %v3528
    %v3530 = vpop.f32.mrb[0].mxu0
    %v3531 = vpop.f32.mrb[0].mxu0
    %v3532 = vadd.f32 %v3460, %v3531
    %v3533 = vpop.f32.mrb[0].mxu0
    %3534 = vmatprep.mubr.bf16.mxu0 0
    %3535 = vmatmul.mubr.bf16.gmra.mrb[0].mxu0 %v359
    %v3536 = vpop.f32.mrb[0].mxu0
    %v3537 = vadd.f32 %v3460, %v3536
    %v3538 = vpop.f32.mrb[0].mxu0
    %v3539 = vpop.f32.mrb[0].mxu0
    %v3540 = vadd.f32 %v3460, %v3539
    %v3541 = vpop.f32.mrb[0].mxu0
    %3542 = vmatprep.mubr.bf16.mxu0 0
    %3543 = vmatmul.mubr.bf16.gmra.mrb[0].mxu0 %v362
    %v3544 = vpop.f32.mrb[0].mxu0
    %v3545 = vadd.f32 %v3460, %v3544
    %v3546 = vpop.f32.mrb[0].mxu0
    %v3547 = vpop.f32.mrb[0].mxu0
    %v3548 = vadd.f32 %v3460, %v3547
    %v3549 = vpop.f32.mrb[0].mxu0
    %3550 = vmatprep.mubr.bf16.mxu0 0
    %3551 = vmatmul.mubr.bf16.gmra.mrb[0].mxu0 %v365
    %v3552 = vpop.f32.mrb[0].mxu0
    %v3553 = vadd.f32 %v3460, %v3552
    %v3554 = vpop.f32.mrb[0].mxu0
    %v3555 = vpop.f32.mrb[0].mxu0
    %v3556 = vadd.f32 %v3460, %v3555
    %v3557 = vpop.f32.mrb[0].mxu0
    %3558 = vmatprep.mubr.bf16.mxu0 0
    %3559 = vmatmul.mubr.bf16.gmra.mrb[0].mxu0 %v368
    %v3560 = vpop.f32.mrb[0].mxu0
    %v3561 = vadd.f32 %v3460, %v3560
    %v3562 = vpop.f32.mrb[0].mxu0
    %v3563 = vpop.f32.mrb[0].mxu0
    %v3564 = vadd.f32 %v3460, %v3563
    %v3565 = vpop.f32.mrb[0].mxu0
    %3566 = vmatprep.mubr.bf16.mxu0 0
    %3567 = vmatmul.mubr.bf16.gmra.mrb[0].mxu0 %v371
    %v3568 = vpop.f32.mrb[0].mxu0
    %v3569 = vadd.f32 %v3460, %v3568
    %v3570 = vpop.f32.mrb[0].mxu0
    %v3571 = vpop.f32.mrb[0].mxu0
    %v3572 = vadd.f32 %v3460, %v3571
    %v3573 = vpop.f32.mrb[0].mxu0
    %3574 = vmatprep.mubr.bf16.mxu0 0
    %3575 = vmatmul.mubr.bf16.gmra.mrb[0].mxu0 %v374
    %v3576 = vpop.f32.mrb[0].mxu0
    %v3577 = vadd.f32 %v3460, %v3576
    %v3578 = vpop.f32.mrb[0].mxu0
    %v3579 = vpop.f32.mrb[0].mxu0
    %v3580 = vadd.f32 %v3460, %v3579
    %v3581 = vpop.f32.mrb[0].mxu0
    %3582 = vdwg.mxu0
    %s3583 = scalar_lea.vmem %s5, 64
    %v3584 = vld [vmem:[%s3583] sm:$0xf]
    %v3585 = vld [vmem:[%s3583 + $0x4] sm:$0xf]
    %v3586 = vld [vmem:[%s3583 + $0x8] sm:$0xf]
    %v3587 = vld [vmem:[%s3583 + $0xc] sm:$0xf]
    %v3588 = vld [vmem:[%s3583 + $0x10] sm:$0xf]
    %v3589 = vld [vmem:[%s3583 + $0x14] sm:$0xf]
    %v3590 = vld [vmem:[%s3583 + $0x18] sm:$0xf]
    %v3591 = vld [vmem:[%s3583 + $0x1c] sm:$0xf]
    %s3592 = scalar_lea.vmem %s8, 2
    %v3593 = vld [vmem:[%s3592] sm:$0x1]
    %v3595 = vlaneseq
    %v3596 = vshrl.u32 %v3595, 7
    %v3597 = vsub.s32 0, %v3596
    %v3598 = vrot.slane %v3593, %v3597
    %v3608 = vunpack.c.l.b16 %v3584
    %v3609 = vunpack.c.l.b16 %v3585
    %v3610 = vunpack.c.l.b16 %v3586
    %v3611 = vunpack.c.l.b16 %v3587
    %v3612 = vunpack.c.l.b16 %v3588
    %v3613 = vunpack.c.l.b16 %v3589
    %v3614 = vunpack.c.l.b16 %v3590
    %v3615 = vunpack.c.l.b16 %v3591
    %v3616 = vpack.c.b16 %v3609, %v3608
    %v3617 = vpack.c.b16 %v3611, %v3610
    %v3618 = vpack.c.b16 %v3613, %v3612
    %v3619 = vpack.c.b16 %v3615, %v3614
    %3624 = vmatprep.subr.bf16.mxu0 0
    %3625 = vmatpush1.bf16.msra.mxu0 %v3616
    %3626 = vmatprep.subr.bf16.mxu0 0
    %3627 = vmatpush1.bf16.msra.mxu0 %v3617
    %3628 = vmatprep.subr.bf16.mxu0 0
    %3629 = vmatpush1.bf16.msra.mxu0 %v3618
    %3630 = vmatprep.subr.bf16.mxu0 0
    %3631 = vmatpush1.bf16.msra.mxu0 %v3619
    %3632 = vmatprep.subr.bf16.mxu0 0
    %3633 = vmatpush1.bf16.msra.mxu0 0
    %3634 = vmatprep.subr.bf16.mxu0 0
    %3635 = vmatpush1.bf16.msra.mxu0 0
    %3636 = vmatprep.subr.bf16.mxu0 0
    %3637 = vmatpush1.bf16.msra.mxu0 0
    %3638 = vmatprep.subr.bf16.mxu0 0
    %3639 = vmatpush1.bf16.msra.mxu0 0
    %3640 = vmatprep.subr.bf16.mxu0 0
    %3641 = vmatpush1.bf16.msra.mxu0 0
    %3642 = vmatprep.subr.bf16.mxu0 0
    %3643 = vmatpush1.bf16.msra.mxu0 0
    %3644 = vmatprep.subr.bf16.mxu0 0
    %3645 = vmatpush1.bf16.msra.mxu0 0
    %3646 = vmatprep.subr.bf16.mxu0 0
    %3647 = vmatpush1.bf16.msra.mxu0 0
    %3648 = vmatprep.subr.bf16.mxu0 0
    %3649 = vmatpush1.bf16.msra.mxu0 0
    %3650 = vmatprep.subr.bf16.mxu0 0
    %3651 = vmatpush1.bf16.msra.mxu0 0
    %3652 = vmatprep.subr.bf16.mxu0 0
    %3653 = vmatpush1.bf16.msra.mxu0 0
    %3654 = vmatprep.subr.bf16.mxu0 0
    %3655 = vmatpush1.bf16.msra.mxu0 0
    %3656 = vmatprep.mubr.bf16.mxu0 0
    %3657 = vmatmul.mubr.bf16.gmra.mrb[0].mxu0 %v353
    %v3658 = vpop.f32.mrb[0].mxu0
    %v3659 = vadd.f32 %v3598, %v3658
    %v3660 = vpop.f32.mrb[0].mxu0
    %v3661 = vpop.f32.mrb[0].mxu0
    %v3662 = vadd.f32 %v3598, %v3661
    %v3663 = vpop.f32.mrb[0].mxu0
    %3664 = vmatprep.mubr.bf16.mxu0 0
    %3665 = vmatmul.mubr.bf16.gmra.mrb[0].mxu0 %v356
    %v3666 = vpop.f32.mrb[0].mxu0
    %v3667 = vadd.f32 %v3598, %v3666
    %v3668 = vpop.f32.mrb[0].mxu0
    %v3669 = vpop.f32.mrb[0].mxu0
    %v3670 = vadd.f32 %v3598, %v3669
    %v3671 = vpop.f32.mrb[0].mxu0
    %3672 = vmatprep.mubr.bf16.mxu0 0
    %3673 = vmatmul.mubr.bf16.gmra.mrb[0].mxu0 %v359
    %v3674 = vpop.f32.mrb[0].mxu0
    %v3675 = vadd.f32 %v3598, %v3674
    %v3676 = vpop.f32.mrb[0].mxu0
    %v3677 = vpop.f32.mrb[0].mxu0
    %v3678 = vadd.f32 %v3598, %v3677
    %v3679 = vpop.f32.mrb[0].mxu0
    %3680 = vmatprep.mubr.bf16.mxu0 0
    %3681 = vmatmul.mubr.bf16.gmra.mrb[0].mxu0 %v362
    %v3682 = vpop.f32.mrb[0].mxu0
    %v3683 = vadd.f32 %v3598, %v3682
    %v3684 = vpop.f32.mrb[0].mxu0
    %v3685 = vpop.f32.mrb[0].mxu0
    %v3686 = vadd.f32 %v3598, %v3685
    %v3687 = vpop.f32.mrb[0].mxu0
    %3688 = vmatprep.mubr.bf16.mxu0 0
    %3689 = vmatmul.mubr.bf16.gmra.mrb[0].mxu0 %v365
    %v3690 = vpop.f32.mrb[0].mxu0
    %v3691 = vadd.f32 %v3598, %v3690
    %v3692 = vpop.f32.mrb[0].mxu0
    %v3693 = vpop.f32.mrb[0].mxu0
    %v3694 = vadd.f32 %v3598, %v3693
    %v3695 = vpop.f32.mrb[0].mxu0
    %3696 = vmatprep.mubr.bf16.mxu0 0
    %3697 = vmatmul.mubr.bf16.gmra.mrb[0].mxu0 %v368
    %v3698 = vpop.f32.mrb[0].mxu0
    %v3699 = vadd.f32 %v3598, %v3698
    %v3700 = vpop.f32.mrb[0].mxu0
    %v3701 = vpop.f32.mrb[0].mxu0
    %v3702 = vadd.f32 %v3598, %v3701
    %v3703 = vpop.f32.mrb[0].mxu0
    %3704 = vmatprep.mubr.bf16.mxu0 0
    %3705 = vmatmul.mubr.bf16.gmra.mrb[0].mxu0 %v371
    %v3706 = vpop.f32.mrb[0].mxu0
    %v3707 = vadd.f32 %v3598, %v3706
    %v3708 = vpop.f32.mrb[0].mxu0
    %v3709 = vpop.f32.mrb[0].mxu0
    %v3710 = vadd.f32 %v3598, %v3709
    %v3711 = vpop.f32.mrb[0].mxu0
    %3712 = vmatprep.mubr.bf16.mxu0 0
    %3713 = vmatmul.mubr.bf16.gmra.mrb[0].mxu0 %v374
    %v3714 = vpop.f32.mrb[0].mxu0
    %v3715 = vadd.f32 %v3598, %v3714
    %v3716 = vpop.f32.mrb[0].mxu0
    %v3717 = vpop.f32.mrb[0].mxu0
    %v3718 = vadd.f32 %v3598, %v3717
    %v3719 = vpop.f32.mrb[0].mxu0
    %3720 = vdwg.mxu0
    %v3721 = vpack.c.bf16 %v3386, %v3383
    %v3722 = vpack.c.bf16 %v3394, %v3391
    %v3723 = vpack.c.bf16 %v3402, %v3399
    %v3724 = vpack.c.bf16 %v3410, %v3407
    %v3725 = vpack.c.bf16 %v3418, %v3415
    %v3726 = vpack.c.bf16 %v3426, %v3423
    %v3727 = vpack.c.bf16 %v3434, %v3431
    %v3728 = vpack.c.bf16 %v3442, %v3439
    %v3729 = vpack.c.bf16 %v3524, %v3521
    %v3730 = vpack.c.bf16 %v3532, %v3529
    %v3731 = vpack.c.bf16 %v3540, %v3537
    %v3732 = vpack.c.bf16 %v3548, %v3545
    %v3733 = vpack.c.bf16 %v3556, %v3553
    %v3734 = vpack.c.bf16 %v3564, %v3561
    %v3735 = vpack.c.bf16 %v3572, %v3569
    %v3736 = vpack.c.bf16 %v3580, %v3577
    %v3738 = vsel %vm761, %v3721, 0
    %v3741 = vsel %vm761, %v3729, 0
    %3743 = vmatprep.subr.bf16.mxu0 0
    %3744 = vmatpush1.bf16.xpose.msra.mxu0 %v3741
    %3745 = vmatprep.subr.bf16.mxu0 0
    %3746 = vmatpush1.bf16.xpose.msra.mxu0 0
    %3747 = vmatprep.subr.bf16.mxu0 0
    %3748 = vmatpush1.bf16.xpose.msra.mxu0 0
    %3749 = vmatprep.subr.bf16.mxu0 0
    %3750 = vmatpush1.bf16.xpose.msra.mxu0 0
    %3751 = vmatprep.subr.bf16.mxu0 0
    %3752 = vmatpush1.bf16.xpose.msra.mxu0 0
    %3753 = vmatprep.subr.bf16.mxu0 0
    %3754 = vmatpush1.bf16.xpose.msra.mxu0 0
    %3755 = vmatprep.subr.bf16.mxu0 0
    %3756 = vmatpush1.bf16.xpose.msra.mxu0 0
    %3757 = vmatprep.subr.bf16.mxu0 0
    %3758 = vmatpush1.bf16.xpose.msra.mxu0 0
    %3759 = vmatprep.subr.bf16.mxu0 0
    %3760 = vmatpush1.bf16.xpose.msra.mxu0 0
    %3761 = vmatprep.subr.bf16.mxu0 0
    %3762 = vmatpush1.bf16.xpose.msra.mxu0 0
    %3763 = vmatprep.subr.bf16.mxu0 0
    %3764 = vmatpush1.bf16.xpose.msra.mxu0 0
    %3765 = vmatprep.subr.bf16.mxu0 0
    %3766 = vmatpush1.bf16.xpose.msra.mxu0 0
    %3767 = vmatprep.subr.bf16.mxu0 0
    %3768 = vmatpush1.bf16.xpose.msra.mxu0 0
    %3769 = vmatprep.subr.bf16.mxu0 0
    %3770 = vmatpush1.bf16.xpose.msra.mxu0 0
    %3771 = vmatprep.subr.bf16.mxu0 0
    %3772 = vmatpush1.bf16.xpose.msra.mxu0 0
    %3773 = vmatprep.subr.bf16.mxu0 0
    %3774 = vmatpush1.bf16.xpose.msra.mxu0 0
    %3775 = vmatprep.mubr.bf16.mxu0 0
    %3776 = vmatmul.mubr.bf16.gmra.mrb[0].mxu0 %v3738
    %v3777 = vpop.f32.mrb[0].mxu0
    %v3778 = vadd.f32 0.0, %v3777
    %v3779 = vpop.f32.mrb[0].mxu0
    %v3780 = vpop.f32.mrb[0].mxu0
    %v3781 = vadd.f32 0.0, %v3780
    %v3782 = vpop.f32.mrb[0].mxu0
    %3783 = vdwg.mxu0
    %v3785 = vsel %vm761, %v3722, 0
    %v3788 = vsel %vm761, %v3730, 0
    %3790 = vmatprep.subr.bf16.mxu0 0
    %3791 = vmatpush1.bf16.xpose.msra.mxu0 %v3788
    %3792 = vmatprep.subr.bf16.mxu0 0
    %3793 = vmatpush1.bf16.xpose.msra.mxu0 0
    %3794 = vmatprep.subr.bf16.mxu0 0
    %3795 = vmatpush1.bf16.xpose.msra.mxu0 0
    %3796 = vmatprep.subr.bf16.mxu0 0
    %3797 = vmatpush1.bf16.xpose.msra.mxu0 0
    %3798 = vmatprep.subr.bf16.mxu0 0
    %3799 = vmatpush1.bf16.xpose.msra.mxu0 0
    %3800 = vmatprep.subr.bf16.mxu0 0
    %3801 = vmatpush1.bf16.xpose.msra.mxu0 0
    %3802 = vmatprep.subr.bf16.mxu0 0
    %3803 = vmatpush1.bf16.xpose.msra.mxu0 0
    %3804 = vmatprep.subr.bf16.mxu0 0
    %3805 = vmatpush1.bf16.xpose.msra.mxu0 0
    %3806 = vmatprep.subr.bf16.mxu0 0
    %3807 = vmatpush1.bf16.xpose.msra.mxu0 0
    %3808 = vmatprep.subr.bf16.mxu0 0
    %3809 = vmatpush1.bf16.xpose.msra.mxu0 0
    %3810 = vmatprep.subr.bf16.mxu0 0
    %3811 = vmatpush1.bf16.xpose.msra.mxu0 0
    %3812 = vmatprep.subr.bf16.mxu0 0
    %3813 = vmatpush1.bf16.xpose.msra.mxu0 0
    %3814 = vmatprep.subr.bf16.mxu0 0
    %3815 = vmatpush1.bf16.xpose.msra.mxu0 0
    %3816 = vmatprep.subr.bf16.mxu0 0
    %3817 = vmatpush1.bf16.xpose.msra.mxu0 0
    %3818 = vmatprep.subr.bf16.mxu0 0
    %3819 = vmatpush1.bf16.xpose.msra.mxu0 0
    %3820 = vmatprep.subr.bf16.mxu0 0
    %3821 = vmatpush1.bf16.xpose.msra.mxu0 0
    %3822 = vmatprep.mubr.bf16.mxu0 0
    %3823 = vmatmul.mubr.bf16.gmra.mrb[0].mxu0 %v3785
    %v3824 = vpop.f32.mrb[0].mxu0
    %v3825 = vadd.f32 0.0, %v3824
    %v3826 = vpop.f32.mrb[0].mxu0
    %v3827 = vpop.f32.mrb[0].mxu0
    %v3828 = vadd.f32 0.0, %v3827
    %v3829 = vpop.f32.mrb[0].mxu0
    %3830 = vdwg.mxu0
    %v3832 = vsel %vm761, %v3723, 0
    %v3835 = vsel %vm761, %v3731, 0
    %3837 = vmatprep.subr.bf16.mxu0 0
    %3838 = vmatpush1.bf16.xpose.msra.mxu0 %v3835
    %3839 = vmatprep.subr.bf16.mxu0 0
    %3840 = vmatpush1.bf16.xpose.msra.mxu0 0
    %3841 = vmatprep.subr.bf16.mxu0 0
    %3842 = vmatpush1.bf16.xpose.msra.mxu0 0
    %3843 = vmatprep.subr.bf16.mxu0 0
    %3844 = vmatpush1.bf16.xpose.msra.mxu0 0
    %3845 = vmatprep.subr.bf16.mxu0 0
    %3846 = vmatpush1.bf16.xpose.msra.mxu0 0
    %3847 = vmatprep.subr.bf16.mxu0 0
    %3848 = vmatpush1.bf16.xpose.msra.mxu0 0
    %3849 = vmatprep.subr.bf16.mxu0 0
    %3850 = vmatpush1.bf16.xpose.msra.mxu0 0
    %3851 = vmatprep.subr.bf16.mxu0 0
    %3852 = vmatpush1.bf16.xpose.msra.mxu0 0
    %3853 = vmatprep.subr.bf16.mxu0 0
    %3854 = vmatpush1.bf16.xpose.msra.mxu0 0
    %3855 = vmatprep.subr.bf16.mxu0 0
    %3856 = vmatpush1.bf16.xpose.msra.mxu0 0
    %3857 = vmatprep.subr.bf16.mxu0 0
    %3858 = vmatpush1.bf16.xpose.msra.mxu0 0
    %3859 = vmatprep.subr.bf16.mxu0 0
    %3860 = vmatpush1.bf16.xpose.msra.mxu0 0
    %3861 = vmatprep.subr.bf16.mxu0 0
    %3862 = vmatpush1.bf16.xpose.msra.mxu0 0
    %3863 = vmatprep.subr.bf16.mxu0 0
    %3864 = vmatpush1.bf16.xpose.msra.mxu0 0
    %3865 = vmatprep.subr.bf16.mxu0 0
    %3866 = vmatpush1.bf16.xpose.msra.mxu0 0
    %3867 = vmatprep.subr.bf16.mxu0 0
    %3868 = vmatpush1.bf16.xpose.msra.mxu0 0
    %3869 = vmatprep.mubr.bf16.mxu0 0
    %3870 = vmatmul.mubr.bf16.gmra.mrb[0].mxu0 %v3832
    %v3871 = vpop.f32.mrb[0].mxu0
    %v3872 = vadd.f32 0.0, %v3871
    %v3873 = vpop.f32.mrb[0].mxu0
    %v3874 = vpop.f32.mrb[0].mxu0
    %v3875 = vadd.f32 0.0, %v3874
    %v3876 = vpop.f32.mrb[0].mxu0
    %3877 = vdwg.mxu0
    %v3879 = vsel %vm761, %v3724, 0
    %v3882 = vsel %vm761, %v3732, 0
    %3884 = vmatprep.subr.bf16.mxu0 0
    %3885 = vmatpush1.bf16.xpose.msra.mxu0 %v3882
    %3886 = vmatprep.subr.bf16.mxu0 0
    %3887 = vmatpush1.bf16.xpose.msra.mxu0 0
    %3888 = vmatprep.subr.bf16.mxu0 0
    %3889 = vmatpush1.bf16.xpose.msra.mxu0 0
    %3890 = vmatprep.subr.bf16.mxu0 0
    %3891 = vmatpush1.bf16.xpose.msra.mxu0 0
    %3892 = vmatprep.subr.bf16.mxu0 0
    %3893 = vmatpush1.bf16.xpose.msra.mxu0 0
    %3894 = vmatprep.subr.bf16.mxu0 0
    %3895 = vmatpush1.bf16.xpose.msra.mxu0 0
    %3896 = vmatprep.subr.bf16.mxu0 0
    %3897 = vmatpush1.bf16.xpose.msra.mxu0 0
    %3898 = vmatprep.subr.bf16.mxu0 0
    %3899 = vmatpush1.bf16.xpose.msra.mxu0 0
    %3900 = vmatprep.subr.bf16.mxu0 0
    %3901 = vmatpush1.bf16.xpose.msra.mxu0 0
    %3902 = vmatprep.subr.bf16.mxu0 0
    %3903 = vmatpush1.bf16.xpose.msra.mxu0 0
    %3904 = vmatprep.subr.bf16.mxu0 0
    %3905 = vmatpush1.bf16.xpose.msra.mxu0 0
    %3906 = vmatprep.subr.bf16.mxu0 0
    %3907 = vmatpush1.bf16.xpose.msra.mxu0 0
    %3908 = vmatprep.subr.bf16.mxu0 0
    %3909 = vmatpush1.bf16.xpose.msra.mxu0 0
    %3910 = vmatprep.subr.bf16.mxu0 0
    %3911 = vmatpush1.bf16.xpose.msra.mxu0 0
    %3912 = vmatprep.subr.bf16.mxu0 0
    %3913 = vmatpush1.bf16.xpose.msra.mxu0 0
    %3914 = vmatprep.subr.bf16.mxu0 0
    %3915 = vmatpush1.bf16.xpose.msra.mxu0 0
    %3916 = vmatprep.mubr.bf16.mxu0 0
    %3917 = vmatmul.mubr.bf16.gmra.mrb[0].mxu0 %v3879
    %v3918 = vpop.f32.mrb[0].mxu0
    %v3919 = vadd.f32 0.0, %v3918
    %v3920 = vpop.f32.mrb[0].mxu0
    %v3921 = vpop.f32.mrb[0].mxu0
    %v3922 = vadd.f32 0.0, %v3921
    %v3923 = vpop.f32.mrb[0].mxu0
    %3924 = vdwg.mxu0
    %v3926 = vsel %vm761, %v3725, 0
    %v3929 = vsel %vm761, %v3733, 0
    %3931 = vmatprep.subr.bf16.mxu0 0
    %3932 = vmatpush1.bf16.xpose.msra.mxu0 %v3929
    %3933 = vmatprep.subr.bf16.mxu0 0
    %3934 = vmatpush1.bf16.xpose.msra.mxu0 0
    %3935 = vmatprep.subr.bf16.mxu0 0
    %3936 = vmatpush1.bf16.xpose.msra.mxu0 0
    %3937 = vmatprep.subr.bf16.mxu0 0
    %3938 = vmatpush1.bf16.xpose.msra.mxu0 0
    %3939 = vmatprep.subr.bf16.mxu0 0
    %3940 = vmatpush1.bf16.xpose.msra.mxu0 0
    %3941 = vmatprep.subr.bf16.mxu0 0
    %3942 = vmatpush1.bf16.xpose.msra.mxu0 0
    %3943 = vmatprep.subr.bf16.mxu0 0
    %3944 = vmatpush1.bf16.xpose.msra.mxu0 0
    %3945 = vmatprep.subr.bf16.mxu0 0
    %3946 = vmatpush1.bf16.xpose.msra.mxu0 0
    %3947 = vmatprep.subr.bf16.mxu0 0
    %3948 = vmatpush1.bf16.xpose.msra.mxu0 0
    %3949 = vmatprep.subr.bf16.mxu0 0
    %3950 = vmatpush1.bf16.xpose.msra.mxu0 0
    %3951 = vmatprep.subr.bf16.mxu0 0
    %3952 = vmatpush1.bf16.xpose.msra.mxu0 0
    %3953 = vmatprep.subr.bf16.mxu0 0
    %3954 = vmatpush1.bf16.xpose.msra.mxu0 0
    %3955 = vmatprep.subr.bf16.mxu0 0
    %3956 = vmatpush1.bf16.xpose.msra.mxu0 0
    %3957 = vmatprep.subr.bf16.mxu0 0
    %3958 = vmatpush1.bf16.xpose.msra.mxu0 0
    %3959 = vmatprep.subr.bf16.mxu0 0
    %3960 = vmatpush1.bf16.xpose.msra.mxu0 0
    %3961 = vmatprep.subr.bf16.mxu0 0
    %3962 = vmatpush1.bf16.xpose.msra.mxu0 0
    %3963 = vmatprep.mubr.bf16.mxu0 0
    %3964 = vmatmul.mubr.bf16.gmra.mrb[0].mxu0 %v3926
    %v3965 = vpop.f32.mrb[0].mxu0
    %v3966 = vadd.f32 0.0, %v3965
    %v3967 = vpop.f32.mrb[0].mxu0
    %v3968 = vpop.f32.mrb[0].mxu0
    %v3969 = vadd.f32 0.0, %v3968
    %v3970 = vpop.f32.mrb[0].mxu0
    %3971 = vdwg.mxu0
    %v3973 = vsel %vm761, %v3726, 0
    %v3976 = vsel %vm761, %v3734, 0
    %3978 = vmatprep.subr.bf16.mxu0 0
    %3979 = vmatpush1.bf16.xpose.msra.mxu0 %v3976
    %3980 = vmatprep.subr.bf16.mxu0 0
    %3981 = vmatpush1.bf16.xpose.msra.mxu0 0
    %3982 = vmatprep.subr.bf16.mxu0 0
    %3983 = vmatpush1.bf16.xpose.msra.mxu0 0
    %3984 = vmatprep.subr.bf16.mxu0 0
    %3985 = vmatpush1.bf16.xpose.msra.mxu0 0
    %3986 = vmatprep.subr.bf16.mxu0 0
    %3987 = vmatpush1.bf16.xpose.msra.mxu0 0
    %3988 = vmatprep.subr.bf16.mxu0 0
    %3989 = vmatpush1.bf16.xpose.msra.mxu0 0
    %3990 = vmatprep.subr.bf16.mxu0 0
    %3991 = vmatpush1.bf16.xpose.msra.mxu0 0
    %3992 = vmatprep.subr.bf16.mxu0 0
    %3993 = vmatpush1.bf16.xpose.msra.mxu0 0
    %3994 = vmatprep.subr.bf16.mxu0 0
    %3995 = vmatpush1.bf16.xpose.msra.mxu0 0
    %3996 = vmatprep.subr.bf16.mxu0 0
    %3997 = vmatpush1.bf16.xpose.msra.mxu0 0
    %3998 = vmatprep.subr.bf16.mxu0 0
    %3999 = vmatpush1.bf16.xpose.msra.mxu0 0
    %4000 = vmatprep.subr.bf16.mxu0 0
    %4001 = vmatpush1.bf16.xpose.msra.mxu0 0
    %4002 = vmatprep.subr.bf16.mxu0 0
    %4003 = vmatpush1.bf16.xpose.msra.mxu0 0
    %4004 = vmatprep.subr.bf16.mxu0 0
    %4005 = vmatpush1.bf16.xpose.msra.mxu0 0
    %4006 = vmatprep.subr.bf16.mxu0 0
    %4007 = vmatpush1.bf16.xpose.msra.mxu0 0
    %4008 = vmatprep.subr.bf16.mxu0 0
    %4009 = vmatpush1.bf16.xpose.msra.mxu0 0
    %4010 = vmatprep.mubr.bf16.mxu0 0
    %4011 = vmatmul.mubr.bf16.gmra.mrb[0].mxu0 %v3973
    %v4012 = vpop.f32.mrb[0].mxu0
    %v4013 = vadd.f32 0.0, %v4012
    %v4014 = vpop.f32.mrb[0].mxu0
    %v4015 = vpop.f32.mrb[0].mxu0
    %v4016 = vadd.f32 0.0, %v4015
    %v4017 = vpop.f32.mrb[0].mxu0
    %4018 = vdwg.mxu0
    %v4020 = vsel %vm761, %v3727, 0
    %v4023 = vsel %vm761, %v3735, 0
    %4025 = vmatprep.subr.bf16.mxu0 0
    %4026 = vmatpush1.bf16.xpose.msra.mxu0 %v4023
    %4027 = vmatprep.subr.bf16.mxu0 0
    %4028 = vmatpush1.bf16.xpose.msra.mxu0 0
    %4029 = vmatprep.subr.bf16.mxu0 0
    %4030 = vmatpush1.bf16.xpose.msra.mxu0 0
    %4031 = vmatprep.subr.bf16.mxu0 0
    %4032 = vmatpush1.bf16.xpose.msra.mxu0 0
    %4033 = vmatprep.subr.bf16.mxu0 0
    %4034 = vmatpush1.bf16.xpose.msra.mxu0 0
    %4035 = vmatprep.subr.bf16.mxu0 0
    %4036 = vmatpush1.bf16.xpose.msra.mxu0 0
    %4037 = vmatprep.subr.bf16.mxu0 0
    %4038 = vmatpush1.bf16.xpose.msra.mxu0 0
    %4039 = vmatprep.subr.bf16.mxu0 0
    %4040 = vmatpush1.bf16.xpose.msra.mxu0 0
    %4041 = vmatprep.subr.bf16.mxu0 0
    %4042 = vmatpush1.bf16.xpose.msra.mxu0 0
    %4043 = vmatprep.subr.bf16.mxu0 0
    %4044 = vmatpush1.bf16.xpose.msra.mxu0 0
    %4045 = vmatprep.subr.bf16.mxu0 0
    %4046 = vmatpush1.bf16.xpose.msra.mxu0 0
    %4047 = vmatprep.subr.bf16.mxu0 0
    %4048 = vmatpush1.bf16.xpose.msra.mxu0 0
    %4049 = vmatprep.subr.bf16.mxu0 0
    %4050 = vmatpush1.bf16.xpose.msra.mxu0 0
    %4051 = vmatprep.subr.bf16.mxu0 0
    %4052 = vmatpush1.bf16.xpose.msra.mxu0 0
    %4053 = vmatprep.subr.bf16.mxu0 0
    %4054 = vmatpush1.bf16.xpose.msra.mxu0 0
    %4055 = vmatprep.subr.bf16.mxu0 0
    %4056 = vmatpush1.bf16.xpose.msra.mxu0 0
    %4057 = vmatprep.mubr.bf16.mxu0 0
    %4058 = vmatmul.mubr.bf16.gmra.mrb[0].mxu0 %v4020
    %v4059 = vpop.f32.mrb[0].mxu0
    %v4060 = vadd.f32 0.0, %v4059
    %v4061 = vpop.f32.mrb[0].mxu0
    %v4062 = vpop.f32.mrb[0].mxu0
    %v4063 = vadd.f32 0.0, %v4062
    %v4064 = vpop.f32.mrb[0].mxu0
    %4065 = vdwg.mxu0
    %v4067 = vsel %vm761, %v3728, 0
    %v4070 = vsel %vm761, %v3736, 0
    %4072 = vmatprep.subr.bf16.mxu0 0
    %4073 = vmatpush1.bf16.xpose.msra.mxu0 %v4070
    %4074 = vmatprep.subr.bf16.mxu0 0
    %4075 = vmatpush1.bf16.xpose.msra.mxu0 0
    %4076 = vmatprep.subr.bf16.mxu0 0
    %4077 = vmatpush1.bf16.xpose.msra.mxu0 0
    %4078 = vmatprep.subr.bf16.mxu0 0
    %4079 = vmatpush1.bf16.xpose.msra.mxu0 0
    %4080 = vmatprep.subr.bf16.mxu0 0
    %4081 = vmatpush1.bf16.xpose.msra.mxu0 0
    %4082 = vmatprep.subr.bf16.mxu0 0
    %4083 = vmatpush1.bf16.xpose.msra.mxu0 0
    %4084 = vmatprep.subr.bf16.mxu0 0
    %4085 = vmatpush1.bf16.xpose.msra.mxu0 0
    %4086 = vmatprep.subr.bf16.mxu0 0
    %4087 = vmatpush1.bf16.xpose.msra.mxu0 0
    %4088 = vmatprep.subr.bf16.mxu0 0
    %4089 = vmatpush1.bf16.xpose.msra.mxu0 0
    %4090 = vmatprep.subr.bf16.mxu0 0
    %4091 = vmatpush1.bf16.xpose.msra.mxu0 0
    %4092 = vmatprep.subr.bf16.mxu0 0
    %4093 = vmatpush1.bf16.xpose.msra.mxu0 0
    %4094 = vmatprep.subr.bf16.mxu0 0
    %4095 = vmatpush1.bf16.xpose.msra.mxu0 0
    %4096 = vmatprep.subr.bf16.mxu0 0
    %4097 = vmatpush1.bf16.xpose.msra.mxu0 0
    %4098 = vmatprep.subr.bf16.mxu0 0
    %4099 = vmatpush1.bf16.xpose.msra.mxu0 0
    %4100 = vmatprep.subr.bf16.mxu0 0
    %4101 = vmatpush1.bf16.xpose.msra.mxu0 0
    %4102 = vmatprep.subr.bf16.mxu0 0
    %4103 = vmatpush1.bf16.xpose.msra.mxu0 0
    %4104 = vmatprep.mubr.bf16.mxu0 0
    %4105 = vmatmul.mubr.bf16.gmra.mrb[0].mxu0 %v4067
    %v4106 = vpop.f32.mrb[0].mxu0
    %v4107 = vadd.f32 0.0, %v4106
    %v4108 = vpop.f32.mrb[0].mxu0
    %v4109 = vpop.f32.mrb[0].mxu0
    %v4110 = vadd.f32 0.0, %v4109
    %v4111 = vpop.f32.mrb[0].mxu0
    %4112 = vdwg.mxu0
    %v4113 = vsel %vm761, %v3778, -inf
    %4114 = vmax.xlane.f32.xlu0 %v4113
    %v4115 = vpop.xlane.xlu0 %4114
    %v4116 = vsel %vm761, %v3781, -inf
    %4117 = vmax.xlane.f32.xlu0 %v4116
    %v4118 = vpop.xlane.xlu0 %4117
    %v4119 = vsel %vm761, %v3825, -inf
    %4120 = vmax.xlane.f32.xlu0 %v4119
    %v4121 = vpop.xlane.xlu0 %4120
    %v4122 = vsel %vm761, %v3828, -inf
    %4123 = vmax.xlane.f32.xlu0 %v4122
    %v4124 = vpop.xlane.xlu0 %4123
    %v4125 = vsel %vm761, %v3872, -inf
    %4126 = vmax.xlane.f32.xlu0 %v4125
    %v4127 = vpop.xlane.xlu0 %4126
    %v4128 = vsel %vm761, %v3875, -inf
    %4129 = vmax.xlane.f32.xlu0 %v4128
    %v4130 = vpop.xlane.xlu0 %4129
    %v4131 = vsel %vm761, %v3919, -inf
    %4132 = vmax.xlane.f32.xlu0 %v4131
    %v4133 = vpop.xlane.xlu0 %4132
    %v4134 = vsel %vm761, %v3922, -inf
    %4135 = vmax.xlane.f32.xlu0 %v4134
    %v4136 = vpop.xlane.xlu0 %4135
    %v4137 = vsel %vm761, %v3966, -inf
    %4138 = vmax.xlane.f32.xlu0 %v4137
    %v4139 = vpop.xlane.xlu0 %4138
    %v4140 = vsel %vm761, %v3969, -inf
    %4141 = vmax.xlane.f32.xlu0 %v4140
    %v4142 = vpop.xlane.xlu0 %4141
    %v4143 = vsel %vm761, %v4013, -inf
    %4144 = vmax.xlane.f32.xlu0 %v4143
    %v4145 = vpop.xlane.xlu0 %4144
    %v4146 = vsel %vm761, %v4016, -inf
    %4147 = vmax.xlane.f32.xlu0 %v4146
    %v4148 = vpop.xlane.xlu0 %4147
    %v4149 = vsel %vm761, %v4060, -inf
    %4150 = vmax.xlane.f32.xlu0 %v4149
    %v4151 = vpop.xlane.xlu0 %4150
    %v4152 = vsel %vm761, %v4063, -inf
    %4153 = vmax.xlane.f32.xlu0 %v4152
    %v4154 = vpop.xlane.xlu0 %4153
    %v4155 = vsel %vm761, %v4107, -inf
    %4156 = vmax.xlane.f32.xlu0 %v4155
    %v4157 = vpop.xlane.xlu0 %4156
    %v4158 = vsel %vm761, %v4110, -inf
    %4159 = vmax.xlane.f32.xlu0 %v4158
    %v4160 = vpop.xlane.xlu0 %4159
    %v4161 = vsub.f32 %v3778, %v4115
    %v4162 = vsub.f32 %v3781, %v4118
    %v4163 = vsub.f32 %v3825, %v4121
    %v4164 = vsub.f32 %v3828, %v4124
    %v4165 = vsub.f32 %v3872, %v4127
    %v4166 = vsub.f32 %v3875, %v4130
    %v4167 = vsub.f32 %v3919, %v4133
    %v4168 = vsub.f32 %v3922, %v4136
    %v4169 = vsub.f32 %v3966, %v4139
    %v4170 = vsub.f32 %v3969, %v4142
    %v4171 = vsub.f32 %v4013, %v4145
    %v4172 = vsub.f32 %v4016, %v4148
    %v4173 = vsub.f32 %v4060, %v4151
    %v4174 = vsub.f32 %v4063, %v4154
    %v4175 = vsub.f32 %v4107, %v4157
    %v4176 = vsub.f32 %v4110, %v4160
    %v4177 = vmul.f32 %v4161, 1.442695
    %v4178 = vpow.pop %v4177
    %v4179 = vmul.f32 %v4162, 1.442695
    %v4180 = vpow.pop %v4179
    %v4181 = vmul.f32 %v4163, 1.442695
    %v4182 = vpow.pop %v4181
    %v4183 = vmul.f32 %v4164, 1.442695
    %v4184 = vpow.pop %v4183
    %v4185 = vmul.f32 %v4165, 1.442695
    %v4186 = vpow.pop %v4185
    %v4187 = vmul.f32 %v4166, 1.442695
    %v4188 = vpow.pop %v4187
    %v4189 = vmul.f32 %v4167, 1.442695
    %v4190 = vpow.pop %v4189
    %v4191 = vmul.f32 %v4168, 1.442695
    %v4192 = vpow.pop %v4191
    %v4193 = vmul.f32 %v4169, 1.442695
    %v4194 = vpow.pop %v4193
    %v4195 = vmul.f32 %v4170, 1.442695
    %v4196 = vpow.pop %v4195
    %v4197 = vmul.f32 %v4171, 1.442695
    %v4198 = vpow.pop %v4197
    %v4199 = vmul.f32 %v4172, 1.442695
    %v4200 = vpow.pop %v4199
    %v4201 = vmul.f32 %v4173, 1.442695
    %v4202 = vpow.pop %v4201
    %v4203 = vmul.f32 %v4174, 1.442695
    %v4204 = vpow.pop %v4203
    %v4205 = vmul.f32 %v4175, 1.442695
    %v4206 = vpow.pop %v4205
    %v4207 = vmul.f32 %v4176, 1.442695
    %v4208 = vpow.pop %v4207
    %v4209 = vsel %vm761, %v4178, 0.0
    %4210 = vadd.xlane.f32.xlu0 %v4209
    %v4211 = vpop.xlane.xlu0 %4210
    %v4212 = vsel %vm761, %v4180, 0.0
    %4213 = vadd.xlane.f32.xlu0 %v4212
    %v4214 = vpop.xlane.xlu0 %4213
    %v4215 = vsel %vm761, %v4182, 0.0
    %4216 = vadd.xlane.f32.xlu0 %v4215
    %v4217 = vpop.xlane.xlu0 %4216
    %v4218 = vsel %vm761, %v4184, 0.0
    %4219 = vadd.xlane.f32.xlu0 %v4218
    %v4220 = vpop.xlane.xlu0 %4219
    %v4221 = vsel %vm761, %v4186, 0.0
    %4222 = vadd.xlane.f32.xlu0 %v4221
    %v4223 = vpop.xlane.xlu0 %4222
    %v4224 = vsel %vm761, %v4188, 0.0
    %4225 = vadd.xlane.f32.xlu0 %v4224
    %v4226 = vpop.xlane.xlu0 %4225
    %v4227 = vsel %vm761, %v4190, 0.0
    %4228 = vadd.xlane.f32.xlu0 %v4227
    %v4229 = vpop.xlane.xlu0 %4228
    %v4230 = vsel %vm761, %v4192, 0.0
    %4231 = vadd.xlane.f32.xlu0 %v4230
    %v4232 = vpop.xlane.xlu0 %4231
    %v4233 = vsel %vm761, %v4194, 0.0
    %4234 = vadd.xlane.f32.xlu0 %v4233
    %v4235 = vpop.xlane.xlu0 %4234
    %v4236 = vsel %vm761, %v4196, 0.0
    %4237 = vadd.xlane.f32.xlu0 %v4236
    %v4238 = vpop.xlane.xlu0 %4237
    %v4239 = vsel %vm761, %v4198, 0.0
    %4240 = vadd.xlane.f32.xlu0 %v4239
    %v4241 = vpop.xlane.xlu0 %4240
    %v4242 = vsel %vm761, %v4200, 0.0
    %4243 = vadd.xlane.f32.xlu0 %v4242
    %v4244 = vpop.xlane.xlu0 %4243
    %v4245 = vsel %vm761, %v4202, 0.0
    %4246 = vadd.xlane.f32.xlu0 %v4245
    %v4247 = vpop.xlane.xlu0 %4246
    %v4248 = vsel %vm761, %v4204, 0.0
    %4249 = vadd.xlane.f32.xlu0 %v4248
    %v4250 = vpop.xlane.xlu0 %4249
    %v4251 = vsel %vm761, %v4206, 0.0
    %4252 = vadd.xlane.f32.xlu0 %v4251
    %v4253 = vpop.xlane.xlu0 %4252
    %v4254 = vsel %vm761, %v4208, 0.0
    %4255 = vadd.xlane.f32.xlu0 %v4254
    %v4256 = vpop.xlane.xlu0 %4255
    %v4257 = vrcp.pop %v4211
    %v4258 = vrcp.pop %v4214
    %v4259 = vrcp.pop %v4217
    %v4260 = vrcp.pop %v4220
    %v4261 = vrcp.pop %v4223
    %v4262 = vrcp.pop %v4226
    %v4263 = vrcp.pop %v4229
    %v4264 = vrcp.pop %v4232
    %v4265 = vrcp.pop %v4235
    %v4266 = vrcp.pop %v4238
    %v4267 = vrcp.pop %v4241
    %v4268 = vrcp.pop %v4244
    %v4269 = vrcp.pop %v4247
    %v4270 = vrcp.pop %v4250
    %v4271 = vrcp.pop %v4253
    %v4272 = vrcp.pop %v4256
    %v4273 = vmul.f32 %v4178, %v4257
    %v4274 = vmul.f32 %v4180, %v4258
    %v4275 = vmul.f32 %v4182, %v4259
    %v4276 = vmul.f32 %v4184, %v4260
    %v4277 = vmul.f32 %v4186, %v4261
    %v4278 = vmul.f32 %v4188, %v4262
    %v4279 = vmul.f32 %v4190, %v4263
    %v4280 = vmul.f32 %v4192, %v4264
    %v4281 = vmul.f32 %v4194, %v4265
    %v4282 = vmul.f32 %v4196, %v4266
    %v4283 = vmul.f32 %v4198, %v4267
    %v4284 = vmul.f32 %v4200, %v4268
    %v4285 = vmul.f32 %v4202, %v4269
    %v4286 = vmul.f32 %v4204, %v4270
    %v4287 = vmul.f32 %v4206, %v4271
    %v4288 = vmul.f32 %v4208, %v4272
    %v4289 = vpack.c.bf16 %v4274, %v4273
    %v4290 = vpack.c.bf16 %v4276, %v4275
    %v4291 = vpack.c.bf16 %v4278, %v4277
    %v4292 = vpack.c.bf16 %v4280, %v4279
    %v4293 = vpack.c.bf16 %v4282, %v4281
    %v4294 = vpack.c.bf16 %v4284, %v4283
    %v4295 = vpack.c.bf16 %v4286, %v4285
    %v4296 = vpack.c.bf16 %v4288, %v4287
    %v4297 = vpack.c.bf16 %v3662, %v3659
    %v4298 = vpack.c.bf16 %v3670, %v3667
    %v4299 = vpack.c.bf16 %v3678, %v3675
    %v4300 = vpack.c.bf16 %v3686, %v3683
    %v4301 = vpack.c.bf16 %v3694, %v3691
    %v4302 = vpack.c.bf16 %v3702, %v3699
    %v4303 = vpack.c.bf16 %v3710, %v3707
    %v4304 = vpack.c.bf16 %v3718, %v3715
    %v4306 = vsel %vm761, %v4289, 0
    %4308 = vmatprep.subr.bf16.mxu0 0
    %4309 = vmatpush1.bf16.msra.mxu0 %v4297
    %4310 = vmatprep.subr.bf16.mxu0 0
    %4311 = vmatpush1.bf16.msra.mxu0 0
    %4312 = vmatprep.subr.bf16.mxu0 0
    %4313 = vmatpush1.bf16.msra.mxu0 0
    %4314 = vmatprep.subr.bf16.mxu0 0
    %4315 = vmatpush1.bf16.msra.mxu0 0
    %4316 = vmatprep.subr.bf16.mxu0 0
    %4317 = vmatpush1.bf16.msra.mxu0 0
    %4318 = vmatprep.subr.bf16.mxu0 0
    %4319 = vmatpush1.bf16.msra.mxu0 0
    %4320 = vmatprep.subr.bf16.mxu0 0
    %4321 = vmatpush1.bf16.msra.mxu0 0
    %4322 = vmatprep.subr.bf16.mxu0 0
    %4323 = vmatpush1.bf16.msra.mxu0 0
    %4324 = vmatprep.subr.bf16.mxu0 0
    %4325 = vmatpush1.bf16.msra.mxu0 0
    %4326 = vmatprep.subr.bf16.mxu0 0
    %4327 = vmatpush1.bf16.msra.mxu0 0
    %4328 = vmatprep.subr.bf16.mxu0 0
    %4329 = vmatpush1.bf16.msra.mxu0 0
    %4330 = vmatprep.subr.bf16.mxu0 0
    %4331 = vmatpush1.bf16.msra.mxu0 0
    %4332 = vmatprep.subr.bf16.mxu0 0
    %4333 = vmatpush1.bf16.msra.mxu0 0
    %4334 = vmatprep.subr.bf16.mxu0 0
    %4335 = vmatpush1.bf16.msra.mxu0 0
    %4336 = vmatprep.subr.bf16.mxu0 0
    %4337 = vmatpush1.bf16.msra.mxu0 0
    %4338 = vmatprep.subr.bf16.mxu0 0
    %4339 = vmatpush1.bf16.msra.mxu0 0
    %4340 = vmatprep.mubr.bf16.mxu0 0
    %4341 = vmatmul.mubr.bf16.gmra.mrb[0].mxu0 %v4306
    %v4342 = vpop.f32.mrb[0].mxu0
    %v4343 = vadd.f32 0.0, %v4342
    %v4344 = vpop.f32.mrb[0].mxu0
    %v4345 = vpop.f32.mrb[0].mxu0
    %v4346 = vadd.f32 0.0, %v4345
    %v4347 = vpop.f32.mrb[0].mxu0
    %4348 = vdwg.mxu0
    %v4350 = vsel %vm761, %v4290, 0
    %4352 = vmatprep.subr.bf16.mxu0 0
    %4353 = vmatpush1.bf16.msra.mxu0 %v4298
    %4354 = vmatprep.subr.bf16.mxu0 0
    %4355 = vmatpush1.bf16.msra.mxu0 0
    %4356 = vmatprep.subr.bf16.mxu0 0
    %4357 = vmatpush1.bf16.msra.mxu0 0
    %4358 = vmatprep.subr.bf16.mxu0 0
    %4359 = vmatpush1.bf16.msra.mxu0 0
    %4360 = vmatprep.subr.bf16.mxu0 0
    %4361 = vmatpush1.bf16.msra.mxu0 0
    %4362 = vmatprep.subr.bf16.mxu0 0
    %4363 = vmatpush1.bf16.msra.mxu0 0
    %4364 = vmatprep.subr.bf16.mxu0 0
    %4365 = vmatpush1.bf16.msra.mxu0 0
    %4366 = vmatprep.subr.bf16.mxu0 0
    %4367 = vmatpush1.bf16.msra.mxu0 0
    %4368 = vmatprep.subr.bf16.mxu0 0
    %4369 = vmatpush1.bf16.msra.mxu0 0
    %4370 = vmatprep.subr.bf16.mxu0 0
    %4371 = vmatpush1.bf16.msra.mxu0 0
    %4372 = vmatprep.subr.bf16.mxu0 0
    %4373 = vmatpush1.bf16.msra.mxu0 0
    %4374 = vmatprep.subr.bf16.mxu0 0
    %4375 = vmatpush1.bf16.msra.mxu0 0
    %4376 = vmatprep.subr.bf16.mxu0 0
    %4377 = vmatpush1.bf16.msra.mxu0 0
    %4378 = vmatprep.subr.bf16.mxu0 0
    %4379 = vmatpush1.bf16.msra.mxu0 0
    %4380 = vmatprep.subr.bf16.mxu0 0
    %4381 = vmatpush1.bf16.msra.mxu0 0
    %4382 = vmatprep.subr.bf16.mxu0 0
    %4383 = vmatpush1.bf16.msra.mxu0 0
    %4384 = vmatprep.mubr.bf16.mxu0 0
    %4385 = vmatmul.mubr.bf16.gmra.mrb[0].mxu0 %v4350
    %v4386 = vpop.f32.mrb[0].mxu0
    %v4387 = vadd.f32 0.0, %v4386
    %v4388 = vpop.f32.mrb[0].mxu0
    %v4389 = vpop.f32.mrb[0].mxu0
    %v4390 = vadd.f32 0.0, %v4389
    %v4391 = vpop.f32.mrb[0].mxu0
    %4392 = vdwg.mxu0
    %v4394 = vsel %vm761, %v4291, 0
    %4396 = vmatprep.subr.bf16.mxu0 0
    %4397 = vmatpush1.bf16.msra.mxu0 %v4299
    %4398 = vmatprep.subr.bf16.mxu0 0
    %4399 = vmatpush1.bf16.msra.mxu0 0
    %4400 = vmatprep.subr.bf16.mxu0 0
    %4401 = vmatpush1.bf16.msra.mxu0 0
    %4402 = vmatprep.subr.bf16.mxu0 0
    %4403 = vmatpush1.bf16.msra.mxu0 0
    %4404 = vmatprep.subr.bf16.mxu0 0
    %4405 = vmatpush1.bf16.msra.mxu0 0
    %4406 = vmatprep.subr.bf16.mxu0 0
    %4407 = vmatpush1.bf16.msra.mxu0 0
    %4408 = vmatprep.subr.bf16.mxu0 0
    %4409 = vmatpush1.bf16.msra.mxu0 0
    %4410 = vmatprep.subr.bf16.mxu0 0
    %4411 = vmatpush1.bf16.msra.mxu0 0
    %4412 = vmatprep.subr.bf16.mxu0 0
    %4413 = vmatpush1.bf16.msra.mxu0 0
    %4414 = vmatprep.subr.bf16.mxu0 0
    %4415 = vmatpush1.bf16.msra.mxu0 0
    %4416 = vmatprep.subr.bf16.mxu0 0
    %4417 = vmatpush1.bf16.msra.mxu0 0
    %4418 = vmatprep.subr.bf16.mxu0 0
    %4419 = vmatpush1.bf16.msra.mxu0 0
    %4420 = vmatprep.subr.bf16.mxu0 0
    %4421 = vmatpush1.bf16.msra.mxu0 0
    %4422 = vmatprep.subr.bf16.mxu0 0
    %4423 = vmatpush1.bf16.msra.mxu0 0
    %4424 = vmatprep.subr.bf16.mxu0 0
    %4425 = vmatpush1.bf16.msra.mxu0 0
    %4426 = vmatprep.subr.bf16.mxu0 0
    %4427 = vmatpush1.bf16.msra.mxu0 0
    %4428 = vmatprep.mubr.bf16.mxu0 0
    %4429 = vmatmul.mubr.bf16.gmra.mrb[0].mxu0 %v4394
    %v4430 = vpop.f32.mrb[0].mxu0
    %v4431 = vadd.f32 0.0, %v4430
    %v4432 = vpop.f32.mrb[0].mxu0
    %v4433 = vpop.f32.mrb[0].mxu0
    %v4434 = vadd.f32 0.0, %v4433
    %v4435 = vpop.f32.mrb[0].mxu0
    %4436 = vdwg.mxu0
    %v4438 = vsel %vm761, %v4292, 0
    %4440 = vmatprep.subr.bf16.mxu0 0
    %4441 = vmatpush1.bf16.msra.mxu0 %v4300
    %4442 = vmatprep.subr.bf16.mxu0 0
    %4443 = vmatpush1.bf16.msra.mxu0 0
    %4444 = vmatprep.subr.bf16.mxu0 0
    %4445 = vmatpush1.bf16.msra.mxu0 0
    %4446 = vmatprep.subr.bf16.mxu0 0
    %4447 = vmatpush1.bf16.msra.mxu0 0
    %4448 = vmatprep.subr.bf16.mxu0 0
    %4449 = vmatpush1.bf16.msra.mxu0 0
    %4450 = vmatprep.subr.bf16.mxu0 0
    %4451 = vmatpush1.bf16.msra.mxu0 0
    %4452 = vmatprep.subr.bf16.mxu0 0
    %4453 = vmatpush1.bf16.msra.mxu0 0
    %4454 = vmatprep.subr.bf16.mxu0 0
    %4455 = vmatpush1.bf16.msra.mxu0 0
    %4456 = vmatprep.subr.bf16.mxu0 0
    %4457 = vmatpush1.bf16.msra.mxu0 0
    %4458 = vmatprep.subr.bf16.mxu0 0
    %4459 = vmatpush1.bf16.msra.mxu0 0
    %4460 = vmatprep.subr.bf16.mxu0 0
    %4461 = vmatpush1.bf16.msra.mxu0 0
    %4462 = vmatprep.subr.bf16.mxu0 0
    %4463 = vmatpush1.bf16.msra.mxu0 0
    %4464 = vmatprep.subr.bf16.mxu0 0
    %4465 = vmatpush1.bf16.msra.mxu0 0
    %4466 = vmatprep.subr.bf16.mxu0 0
    %4467 = vmatpush1.bf16.msra.mxu0 0
    %4468 = vmatprep.subr.bf16.mxu0 0
    %4469 = vmatpush1.bf16.msra.mxu0 0
    %4470 = vmatprep.subr.bf16.mxu0 0
    %4471 = vmatpush1.bf16.msra.mxu0 0
    %4472 = vmatprep.mubr.bf16.mxu0 0
    %4473 = vmatmul.mubr.bf16.gmra.mrb[0].mxu0 %v4438
    %v4474 = vpop.f32.mrb[0].mxu0
    %v4475 = vadd.f32 0.0, %v4474
    %v4476 = vpop.f32.mrb[0].mxu0
    %v4477 = vpop.f32.mrb[0].mxu0
    %v4478 = vadd.f32 0.0, %v4477
    %v4479 = vpop.f32.mrb[0].mxu0
    %4480 = vdwg.mxu0
    %v4482 = vsel %vm761, %v4293, 0
    %4484 = vmatprep.subr.bf16.mxu0 0
    %4485 = vmatpush1.bf16.msra.mxu0 %v4301
    %4486 = vmatprep.subr.bf16.mxu0 0
    %4487 = vmatpush1.bf16.msra.mxu0 0
    %4488 = vmatprep.subr.bf16.mxu0 0
    %4489 = vmatpush1.bf16.msra.mxu0 0
    %4490 = vmatprep.subr.bf16.mxu0 0
    %4491 = vmatpush1.bf16.msra.mxu0 0
    %4492 = vmatprep.subr.bf16.mxu0 0
    %4493 = vmatpush1.bf16.msra.mxu0 0
    %4494 = vmatprep.subr.bf16.mxu0 0
    %4495 = vmatpush1.bf16.msra.mxu0 0
    %4496 = vmatprep.subr.bf16.mxu0 0
    %4497 = vmatpush1.bf16.msra.mxu0 0
    %4498 = vmatprep.subr.bf16.mxu0 0
    %4499 = vmatpush1.bf16.msra.mxu0 0
    %4500 = vmatprep.subr.bf16.mxu0 0
    %4501 = vmatpush1.bf16.msra.mxu0 0
    %4502 = vmatprep.subr.bf16.mxu0 0
    %4503 = vmatpush1.bf16.msra.mxu0 0
    %4504 = vmatprep.subr.bf16.mxu0 0
    %4505 = vmatpush1.bf16.msra.mxu0 0
    %4506 = vmatprep.subr.bf16.mxu0 0
    %4507 = vmatpush1.bf16.msra.mxu0 0
    %4508 = vmatprep.subr.bf16.mxu0 0
    %4509 = vmatpush1.bf16.msra.mxu0 0
    %4510 = vmatprep.subr.bf16.mxu0 0
    %4511 = vmatpush1.bf16.msra.mxu0 0
    %4512 = vmatprep.subr.bf16.mxu0 0
    %4513 = vmatpush1.bf16.msra.mxu0 0
    %4514 = vmatprep.subr.bf16.mxu0 0
    %4515 = vmatpush1.bf16.msra.mxu0 0
    %4516 = vmatprep.mubr.bf16.mxu0 0
    %4517 = vmatmul.mubr.bf16.gmra.mrb[0].mxu0 %v4482
    %v4518 = vpop.f32.mrb[0].mxu0
    %v4519 = vadd.f32 0.0, %v4518
    %v4520 = vpop.f32.mrb[0].mxu0
    %v4521 = vpop.f32.mrb[0].mxu0
    %v4522 = vadd.f32 0.0, %v4521
    %v4523 = vpop.f32.mrb[0].mxu0
    %4524 = vdwg.mxu0
    %v4526 = vsel %vm761, %v4294, 0
    %4528 = vmatprep.subr.bf16.mxu0 0
    %4529 = vmatpush1.bf16.msra.mxu0 %v4302
    %4530 = vmatprep.subr.bf16.mxu0 0
    %4531 = vmatpush1.bf16.msra.mxu0 0
    %4532 = vmatprep.subr.bf16.mxu0 0
    %4533 = vmatpush1.bf16.msra.mxu0 0
    %4534 = vmatprep.subr.bf16.mxu0 0
    %4535 = vmatpush1.bf16.msra.mxu0 0
    %4536 = vmatprep.subr.bf16.mxu0 0
    %4537 = vmatpush1.bf16.msra.mxu0 0
    %4538 = vmatprep.subr.bf16.mxu0 0
    %4539 = vmatpush1.bf16.msra.mxu0 0
    %4540 = vmatprep.subr.bf16.mxu0 0
    %4541 = vmatpush1.bf16.msra.mxu0 0
    %4542 = vmatprep.subr.bf16.mxu0 0
    %4543 = vmatpush1.bf16.msra.mxu0 0
    %4544 = vmatprep.subr.bf16.mxu0 0
    %4545 = vmatpush1.bf16.msra.mxu0 0
    %4546 = vmatprep.subr.bf16.mxu0 0
    %4547 = vmatpush1.bf16.msra.mxu0 0
    %4548 = vmatprep.subr.bf16.mxu0 0
    %4549 = vmatpush1.bf16.msra.mxu0 0
    %4550 = vmatprep.subr.bf16.mxu0 0
    %4551 = vmatpush1.bf16.msra.mxu0 0
    %4552 = vmatprep.subr.bf16.mxu0 0
    %4553 = vmatpush1.bf16.msra.mxu0 0
    %4554 = vmatprep.subr.bf16.mxu0 0
    %4555 = vmatpush1.bf16.msra.mxu0 0
    %4556 = vmatprep.subr.bf16.mxu0 0
    %4557 = vmatpush1.bf16.msra.mxu0 0
    %4558 = vmatprep.subr.bf16.mxu0 0
    %4559 = vmatpush1.bf16.msra.mxu0 0
    %4560 = vmatprep.mubr.bf16.mxu0 0
    %4561 = vmatmul.mubr.bf16.gmra.mrb[0].mxu0 %v4526
    %v4562 = vpop.f32.mrb[0].mxu0
    %v4563 = vadd.f32 0.0, %v4562
    %v4564 = vpop.f32.mrb[0].mxu0
    %v4565 = vpop.f32.mrb[0].mxu0
    %v4566 = vadd.f32 0.0, %v4565
    %v4567 = vpop.f32.mrb[0].mxu0
    %4568 = vdwg.mxu0
    %v4570 = vsel %vm761, %v4295, 0
    %4572 = vmatprep.subr.bf16.mxu0 0
    %4573 = vmatpush1.bf16.msra.mxu0 %v4303
    %4574 = vmatprep.subr.bf16.mxu0 0
    %4575 = vmatpush1.bf16.msra.mxu0 0
    %4576 = vmatprep.subr.bf16.mxu0 0
    %4577 = vmatpush1.bf16.msra.mxu0 0
    %4578 = vmatprep.subr.bf16.mxu0 0
    %4579 = vmatpush1.bf16.msra.mxu0 0
    %4580 = vmatprep.subr.bf16.mxu0 0
    %4581 = vmatpush1.bf16.msra.mxu0 0
    %4582 = vmatprep.subr.bf16.mxu0 0
    %4583 = vmatpush1.bf16.msra.mxu0 0
    %4584 = vmatprep.subr.bf16.mxu0 0
    %4585 = vmatpush1.bf16.msra.mxu0 0
    %4586 = vmatprep.subr.bf16.mxu0 0
    %4587 = vmatpush1.bf16.msra.mxu0 0
    %4588 = vmatprep.subr.bf16.mxu0 0
    %4589 = vmatpush1.bf16.msra.mxu0 0
    %4590 = vmatprep.subr.bf16.mxu0 0
    %4591 = vmatpush1.bf16.msra.mxu0 0
    %4592 = vmatprep.subr.bf16.mxu0 0
    %4593 = vmatpush1.bf16.msra.mxu0 0
    %4594 = vmatprep.subr.bf16.mxu0 0
    %4595 = vmatpush1.bf16.msra.mxu0 0
    %4596 = vmatprep.subr.bf16.mxu0 0
    %4597 = vmatpush1.bf16.msra.mxu0 0
    %4598 = vmatprep.subr.bf16.mxu0 0
    %4599 = vmatpush1.bf16.msra.mxu0 0
    %4600 = vmatprep.subr.bf16.mxu0 0
    %4601 = vmatpush1.bf16.msra.mxu0 0
    %4602 = vmatprep.subr.bf16.mxu0 0
    %4603 = vmatpush1.bf16.msra.mxu0 0
    %4604 = vmatprep.mubr.bf16.mxu0 0
    %4605 = vmatmul.mubr.bf16.gmra.mrb[0].mxu0 %v4570
    %v4606 = vpop.f32.mrb[0].mxu0
    %v4607 = vadd.f32 0.0, %v4606
    %v4608 = vpop.f32.mrb[0].mxu0
    %v4609 = vpop.f32.mrb[0].mxu0
    %v4610 = vadd.f32 0.0, %v4609
    %v4611 = vpop.f32.mrb[0].mxu0
    %4612 = vdwg.mxu0
    %v4614 = vsel %vm761, %v4296, 0
    %4616 = vmatprep.subr.bf16.mxu0 0
    %4617 = vmatpush1.bf16.msra.mxu0 %v4304
    %4618 = vmatprep.subr.bf16.mxu0 0
    %4619 = vmatpush1.bf16.msra.mxu0 0
    %4620 = vmatprep.subr.bf16.mxu0 0
    %4621 = vmatpush1.bf16.msra.mxu0 0
    %4622 = vmatprep.subr.bf16.mxu0 0
    %4623 = vmatpush1.bf16.msra.mxu0 0
    %4624 = vmatprep.subr.bf16.mxu0 0
    %4625 = vmatpush1.bf16.msra.mxu0 0
    %4626 = vmatprep.subr.bf16.mxu0 0
    %4627 = vmatpush1.bf16.msra.mxu0 0
    %4628 = vmatprep.subr.bf16.mxu0 0
    %4629 = vmatpush1.bf16.msra.mxu0 0
    %4630 = vmatprep.subr.bf16.mxu0 0
    %4631 = vmatpush1.bf16.msra.mxu0 0
    %4632 = vmatprep.subr.bf16.mxu0 0
    %4633 = vmatpush1.bf16.msra.mxu0 0
    %4634 = vmatprep.subr.bf16.mxu0 0
    %4635 = vmatpush1.bf16.msra.mxu0 0
    %4636 = vmatprep.subr.bf16.mxu0 0
    %4637 = vmatpush1.bf16.msra.mxu0 0
    %4638 = vmatprep.subr.bf16.mxu0 0
    %4639 = vmatpush1.bf16.msra.mxu0 0
    %4640 = vmatprep.subr.bf16.mxu0 0
    %4641 = vmatpush1.bf16.msra.mxu0 0
    %4642 = vmatprep.subr.bf16.mxu0 0
    %4643 = vmatpush1.bf16.msra.mxu0 0
    %4644 = vmatprep.subr.bf16.mxu0 0
    %4645 = vmatpush1.bf16.msra.mxu0 0
    %4646 = vmatprep.subr.bf16.mxu0 0
    %4647 = vmatpush1.bf16.msra.mxu0 0
    %4648 = vmatprep.mubr.bf16.mxu0 0
    %4649 = vmatmul.mubr.bf16.gmra.mrb[0].mxu0 %v4614
    %v4650 = vpop.f32.mrb[0].mxu0
    %v4651 = vadd.f32 0.0, %v4650
    %v4652 = vpop.f32.mrb[0].mxu0
    %v4653 = vpop.f32.mrb[0].mxu0
    %v4654 = vadd.f32 0.0, %v4653
    %v4655 = vpop.f32.mrb[0].mxu0
    %4656 = vdwg.mxu0
    %v4657 = vpack.c.bf16 %v4346, %v4343
    %v4658 = vpack.c.bf16 %v4390, %v4387
    %v4659 = vpack.c.bf16 %v4434, %v4431
    %v4660 = vpack.c.bf16 %v4478, %v4475
    %v4661 = vpack.c.bf16 %v4522, %v4519
    %v4662 = vpack.c.bf16 %v4566, %v4563
    %v4663 = vpack.c.bf16 %v4610, %v4607
    %v4664 = vpack.c.bf16 %v4654, %v4651
    %s4665 = scalar_lea.vmem %s9, 16
    %v4666 = vld [vmem:[%s4665] sm:$0xf]
    %v4667 = vld [vmem:[%s4665 + $0x4] sm:$0xf]
    %v4670 = vunpack.c.l.b16 %v4666
    %v4671 = vunpack.c.l.b16 %v4667
    %v4672 = vpack.c.b16 %v4671, %v4670
    %v4675 = vsel %vm761, %v4657, 0
    %v4678 = vsel %vm761, %v4658, 0
    %v4681 = vsel %vm761, %v4659, 0
    %v4684 = vsel %vm761, %v4660, 0
    %v4687 = vsel %vm761, %v4661, 0
    %v4690 = vsel %vm761, %v4662, 0
    %v4693 = vsel %vm761, %v4663, 0
    %v4696 = vsel %vm761, %v4664, 0
    %4698 = vmatprep.subr.bf16.mxu0 0
    %4699 = vmatpush1.bf16.msra.mxu0 %v4672
    %4700 = vmatprep.subr.bf16.mxu0 0
    %4701 = vmatpush1.bf16.msra.mxu0 0
    %4702 = vmatprep.subr.bf16.mxu0 0
    %4703 = vmatpush1.bf16.msra.mxu0 0
    %4704 = vmatprep.subr.bf16.mxu0 0
    %4705 = vmatpush1.bf16.msra.mxu0 0
    %4706 = vmatprep.subr.bf16.mxu0 0
    %4707 = vmatpush1.bf16.msra.mxu0 0
    %4708 = vmatprep.subr.bf16.mxu0 0
    %4709 = vmatpush1.bf16.msra.mxu0 0
    %4710 = vmatprep.subr.bf16.mxu0 0
    %4711 = vmatpush1.bf16.msra.mxu0 0
    %4712 = vmatprep.subr.bf16.mxu0 0
    %4713 = vmatpush1.bf16.msra.mxu0 0
    %4714 = vmatprep.subr.bf16.mxu0 0
    %4715 = vmatpush1.bf16.msra.mxu0 0
    %4716 = vmatprep.subr.bf16.mxu0 0
    %4717 = vmatpush1.bf16.msra.mxu0 0
    %4718 = vmatprep.subr.bf16.mxu0 0
    %4719 = vmatpush1.bf16.msra.mxu0 0
    %4720 = vmatprep.subr.bf16.mxu0 0
    %4721 = vmatpush1.bf16.msra.mxu0 0
    %4722 = vmatprep.subr.bf16.mxu0 0
    %4723 = vmatpush1.bf16.msra.mxu0 0
    %4724 = vmatprep.subr.bf16.mxu0 0
    %4725 = vmatpush1.bf16.msra.mxu0 0
    %4726 = vmatprep.subr.bf16.mxu0 0
    %4727 = vmatpush1.bf16.msra.mxu0 0
    %4728 = vmatprep.subr.bf16.mxu0 0
    %4729 = vmatpush1.bf16.msra.mxu0 0
    %4730 = vmatprep.mubr.bf16.mxu0 0
    %4731 = vmatmul.mubr.bf16.gmra.mrb[0].mxu0 %v4675
    %v4732 = vpop.f32.mrb[0].mxu0
    %v4733 = vadd.f32 0.0, %v4732
    %v4734 = vpop.f32.mrb[0].mxu0
    %v4735 = vpop.f32.mrb[0].mxu0
    %v4736 = vadd.f32 0.0, %v4735
    %v4737 = vpop.f32.mrb[0].mxu0
    %4738 = vmatprep.mubr.bf16.mxu0 0
    %4739 = vmatmul.mubr.bf16.gmra.mrb[0].mxu0 %v4678
    %v4740 = vpop.f32.mrb[0].mxu0
    %v4741 = vadd.f32 0.0, %v4740
    %v4742 = vpop.f32.mrb[0].mxu0
    %v4743 = vpop.f32.mrb[0].mxu0
    %v4744 = vadd.f32 0.0, %v4743
    %v4745 = vpop.f32.mrb[0].mxu0
    %4746 = vmatprep.mubr.bf16.mxu0 0
    %4747 = vmatmul.mubr.bf16.gmra.mrb[0].mxu0 %v4681
    %v4748 = vpop.f32.mrb[0].mxu0
    %v4749 = vadd.f32 0.0, %v4748
    %v4750 = vpop.f32.mrb[0].mxu0
    %v4751 = vpop.f32.mrb[0].mxu0
    %v4752 = vadd.f32 0.0, %v4751
    %v4753 = vpop.f32.mrb[0].mxu0
    %4754 = vmatprep.mubr.bf16.mxu0 0
    %4755 = vmatmul.mubr.bf16.gmra.mrb[0].mxu0 %v4684
    %v4756 = vpop.f32.mrb[0].mxu0
    %v4757 = vadd.f32 0.0, %v4756
    %v4758 = vpop.f32.mrb[0].mxu0
    %v4759 = vpop.f32.mrb[0].mxu0
    %v4760 = vadd.f32 0.0, %v4759
    %v4761 = vpop.f32.mrb[0].mxu0
    %4762 = vmatprep.mubr.bf16.mxu0 0
    %4763 = vmatmul.mubr.bf16.gmra.mrb[0].mxu0 %v4687
    %v4764 = vpop.f32.mrb[0].mxu0
    %v4765 = vadd.f32 0.0, %v4764
    %v4766 = vpop.f32.mrb[0].mxu0
    %v4767 = vpop.f32.mrb[0].mxu0
    %v4768 = vadd.f32 0.0, %v4767
    %v4769 = vpop.f32.mrb[0].mxu0
    %4770 = vmatprep.mubr.bf16.mxu0 0
    %4771 = vmatmul.mubr.bf16.gmra.mrb[0].mxu0 %v4690
    %v4772 = vpop.f32.mrb[0].mxu0
    %v4773 = vadd.f32 0.0, %v4772
    %v4774 = vpop.f32.mrb[0].mxu0
    %v4775 = vpop.f32.mrb[0].mxu0
    %v4776 = vadd.f32 0.0, %v4775
    %v4777 = vpop.f32.mrb[0].mxu0
    %4778 = vmatprep.mubr.bf16.mxu0 0
    %4779 = vmatmul.mubr.bf16.gmra.mrb[0].mxu0 %v4693
    %v4780 = vpop.f32.mrb[0].mxu0
    %v4781 = vadd.f32 0.0, %v4780
    %v4782 = vpop.f32.mrb[0].mxu0
    %v4783 = vpop.f32.mrb[0].mxu0
    %v4784 = vadd.f32 0.0, %v4783
    %v4785 = vpop.f32.mrb[0].mxu0
    %4786 = vmatprep.mubr.bf16.mxu0 0
    %4787 = vmatmul.mubr.bf16.gmra.mrb[0].mxu0 %v4696
    %v4788 = vpop.f32.mrb[0].mxu0
    %v4789 = vadd.f32 0.0, %v4788
    %v4790 = vpop.f32.mrb[0].mxu0
    %v4791 = vpop.f32.mrb[0].mxu0
    %v4792 = vadd.f32 0.0, %v4791
    %v4793 = vpop.f32.mrb[0].mxu0
    %4794 = vdwg.mxu0
    %v4795 = vadd.f32 %v3245, %v4733
    %v4796 = vadd.f32 %v3248, %v4736
    %v4797 = vadd.f32 %v3253, %v4741
    %v4798 = vadd.f32 %v3256, %v4744
    %v4799 = vadd.f32 %v3261, %v4749
    %v4800 = vadd.f32 %v3264, %v4752
    %v4801 = vadd.f32 %v3269, %v4757
    %v4802 = vadd.f32 %v3272, %v4760
    %v4803 = vadd.f32 %v3277, %v4765
    %v4804 = vadd.f32 %v3280, %v4768
    %v4805 = vadd.f32 %v3285, %v4773
    %v4806 = vadd.f32 %v3288, %v4776
    %v4807 = vadd.f32 %v3293, %v4781
    %v4808 = vadd.f32 %v3296, %v4784
    %v4809 = vadd.f32 %v3301, %v4789
    %v4810 = vadd.f32 %v3304, %v4792
    %s4811 = scalar_lea.vmem %s3, 96
    %v4812 = vld [vmem:[%s4811] sm:$0xf]
    %v4813 = vld [vmem:[%s4811 + $0x4] sm:$0xf]
    %v4814 = vld [vmem:[%s4811 + $0x8] sm:$0xf]
    %v4815 = vld [vmem:[%s4811 + $0xc] sm:$0xf]
    %v4816 = vld [vmem:[%s4811 + $0x10] sm:$0xf]
    %v4817 = vld [vmem:[%s4811 + $0x14] sm:$0xf]
    %v4818 = vld [vmem:[%s4811 + $0x18] sm:$0xf]
    %v4819 = vld [vmem:[%s4811 + $0x1c] sm:$0xf]
    %s4820 = scalar_lea.vmem %s6, 3
    %v4821 = vld [vmem:[%s4820] sm:$0x1]
    %v4823 = vlaneseq
    %v4824 = vshrl.u32 %v4823, 7
    %v4825 = vsub.s32 0, %v4824
    %v4826 = vrot.slane %v4821, %v4825
    %v4836 = vunpack.c.l.b16 %v4812
    %v4837 = vunpack.c.l.b16 %v4813
    %v4838 = vunpack.c.l.b16 %v4814
    %v4839 = vunpack.c.l.b16 %v4815
    %v4840 = vunpack.c.l.b16 %v4816
    %v4841 = vunpack.c.l.b16 %v4817
    %v4842 = vunpack.c.l.b16 %v4818
    %v4843 = vunpack.c.l.b16 %v4819
    %v4844 = vpack.c.b16 %v4837, %v4836
    %v4845 = vpack.c.b16 %v4839, %v4838
    %v4846 = vpack.c.b16 %v4841, %v4840
    %v4847 = vpack.c.b16 %v4843, %v4842
    %4852 = vmatprep.subr.bf16.mxu0 0
    %4853 = vmatpush1.bf16.msra.mxu0 %v4844
    %4854 = vmatprep.subr.bf16.mxu0 0
    %4855 = vmatpush1.bf16.msra.mxu0 %v4845
    %4856 = vmatprep.subr.bf16.mxu0 0
    %4857 = vmatpush1.bf16.msra.mxu0 %v4846
    %4858 = vmatprep.subr.bf16.mxu0 0
    %4859 = vmatpush1.bf16.msra.mxu0 %v4847
    %4860 = vmatprep.subr.bf16.mxu0 0
    %4861 = vmatpush1.bf16.msra.mxu0 0
    %4862 = vmatprep.subr.bf16.mxu0 0
    %4863 = vmatpush1.bf16.msra.mxu0 0
    %4864 = vmatprep.subr.bf16.mxu0 0
    %4865 = vmatpush1.bf16.msra.mxu0 0
    %4866 = vmatprep.subr.bf16.mxu0 0
    %4867 = vmatpush1.bf16.msra.mxu0 0
    %4868 = vmatprep.subr.bf16.mxu0 0
    %4869 = vmatpush1.bf16.msra.mxu0 0
    %4870 = vmatprep.subr.bf16.mxu0 0
    %4871 = vmatpush1.bf16.msra.mxu0 0
    %4872 = vmatprep.subr.bf16.mxu0 0
    %4873 = vmatpush1.bf16.msra.mxu0 0
    %4874 = vmatprep.subr.bf16.mxu0 0
    %4875 = vmatpush1.bf16.msra.mxu0 0
    %4876 = vmatprep.subr.bf16.mxu0 0
    %4877 = vmatpush1.bf16.msra.mxu0 0
    %4878 = vmatprep.subr.bf16.mxu0 0
    %4879 = vmatpush1.bf16.msra.mxu0 0
    %4880 = vmatprep.subr.bf16.mxu0 0
    %4881 = vmatpush1.bf16.msra.mxu0 0
    %4882 = vmatprep.subr.bf16.mxu0 0
    %4883 = vmatpush1.bf16.msra.mxu0 0
    %4884 = vmatprep.mubr.bf16.mxu0 0
    %4885 = vmatmul.mubr.bf16.gmra.mrb[0].mxu0 %v353
    %v4886 = vpop.f32.mrb[0].mxu0
    %v4887 = vadd.f32 %v4826, %v4886
    %v4888 = vpop.f32.mrb[0].mxu0
    %v4889 = vpop.f32.mrb[0].mxu0
    %v4890 = vadd.f32 %v4826, %v4889
    %v4891 = vpop.f32.mrb[0].mxu0
    %4892 = vmatprep.mubr.bf16.mxu0 0
    %4893 = vmatmul.mubr.bf16.gmra.mrb[0].mxu0 %v356
    %v4894 = vpop.f32.mrb[0].mxu0
    %v4895 = vadd.f32 %v4826, %v4894
    %v4896 = vpop.f32.mrb[0].mxu0
    %v4897 = vpop.f32.mrb[0].mxu0
    %v4898 = vadd.f32 %v4826, %v4897
    %v4899 = vpop.f32.mrb[0].mxu0
    %4900 = vmatprep.mubr.bf16.mxu0 0
    %4901 = vmatmul.mubr.bf16.gmra.mrb[0].mxu0 %v359
    %v4902 = vpop.f32.mrb[0].mxu0
    %v4903 = vadd.f32 %v4826, %v4902
    %v4904 = vpop.f32.mrb[0].mxu0
    %v4905 = vpop.f32.mrb[0].mxu0
    %v4906 = vadd.f32 %v4826, %v4905
    %v4907 = vpop.f32.mrb[0].mxu0
    %4908 = vmatprep.mubr.bf16.mxu0 0
    %4909 = vmatmul.mubr.bf16.gmra.mrb[0].mxu0 %v362
    %v4910 = vpop.f32.mrb[0].mxu0
    %v4911 = vadd.f32 %v4826, %v4910
    %v4912 = vpop.f32.mrb[0].mxu0
    %v4913 = vpop.f32.mrb[0].mxu0
    %v4914 = vadd.f32 %v4826, %v4913
    %v4915 = vpop.f32.mrb[0].mxu0
    %4916 = vmatprep.mubr.bf16.mxu0 0
    %4917 = vmatmul.mubr.bf16.gmra.mrb[0].mxu0 %v365
    %v4918 = vpop.f32.mrb[0].mxu0
    %v4919 = vadd.f32 %v4826, %v4918
    %v4920 = vpop.f32.mrb[0].mxu0
    %v4921 = vpop.f32.mrb[0].mxu0
    %v4922 = vadd.f32 %v4826, %v4921
    %v4923 = vpop.f32.mrb[0].mxu0
    %4924 = vmatprep.mubr.bf16.mxu0 0
    %4925 = vmatmul.mubr.bf16.gmra.mrb[0].mxu0 %v368
    %v4926 = vpop.f32.mrb[0].mxu0
    %v4927 = vadd.f32 %v4826, %v4926
    %v4928 = vpop.f32.mrb[0].mxu0
    %v4929 = vpop.f32.mrb[0].mxu0
    %v4930 = vadd.f32 %v4826, %v4929
    %v4931 = vpop.f32.mrb[0].mxu0
    %4932 = vmatprep.mubr.bf16.mxu0 0
    %4933 = vmatmul.mubr.bf16.gmra.mrb[0].mxu0 %v371
    %v4934 = vpop.f32.mrb[0].mxu0
    %v4935 = vadd.f32 %v4826, %v4934
    %v4936 = vpop.f32.mrb[0].mxu0
    %v4937 = vpop.f32.mrb[0].mxu0
    %v4938 = vadd.f32 %v4826, %v4937
    %v4939 = vpop.f32.mrb[0].mxu0
    %4940 = vmatprep.mubr.bf16.mxu0 0
    %4941 = vmatmul.mubr.bf16.gmra.mrb[0].mxu0 %v374
    %v4942 = vpop.f32.mrb[0].mxu0
    %v4943 = vadd.f32 %v4826, %v4942
    %v4944 = vpop.f32.mrb[0].mxu0
    %v4945 = vpop.f32.mrb[0].mxu0
    %v4946 = vadd.f32 %v4826, %v4945
    %v4947 = vpop.f32.mrb[0].mxu0
    %4948 = vdwg.mxu0
    %s4949 = scalar_lea.vmem %s4, 96
    %v4950 = vld [vmem:[%s4949] sm:$0xf]
    %v4951 = vld [vmem:[%s4949 + $0x4] sm:$0xf]
    %v4952 = vld [vmem:[%s4949 + $0x8] sm:$0xf]
    %v4953 = vld [vmem:[%s4949 + $0xc] sm:$0xf]
    %v4954 = vld [vmem:[%s4949 + $0x10] sm:$0xf]
    %v4955 = vld [vmem:[%s4949 + $0x14] sm:$0xf]
    %v4956 = vld [vmem:[%s4949 + $0x18] sm:$0xf]
    %v4957 = vld [vmem:[%s4949 + $0x1c] sm:$0xf]
    %s4958 = scalar_lea.vmem %s7, 3
    %v4959 = vld [vmem:[%s4958] sm:$0x1]
    %v4961 = vlaneseq
    %v4962 = vshrl.u32 %v4961, 7
    %v4963 = vsub.s32 0, %v4962
    %v4964 = vrot.slane %v4959, %v4963
    %v4974 = vunpack.c.l.b16 %v4950
    %v4975 = vunpack.c.l.b16 %v4951
    %v4976 = vunpack.c.l.b16 %v4952
    %v4977 = vunpack.c.l.b16 %v4953
    %v4978 = vunpack.c.l.b16 %v4954
    %v4979 = vunpack.c.l.b16 %v4955
    %v4980 = vunpack.c.l.b16 %v4956
    %v4981 = vunpack.c.l.b16 %v4957
    %v4982 = vpack.c.b16 %v4975, %v4974
    %v4983 = vpack.c.b16 %v4977, %v4976
    %v4984 = vpack.c.b16 %v4979, %v4978
    %v4985 = vpack.c.b16 %v4981, %v4980
    %4990 = vmatprep.subr.bf16.mxu0 0
    %4991 = vmatpush1.bf16.msra.mxu0 %v4982
    %4992 = vmatprep.subr.bf16.mxu0 0
    %4993 = vmatpush1.bf16.msra.mxu0 %v4983
    %4994 = vmatprep.subr.bf16.mxu0 0
    %4995 = vmatpush1.bf16.msra.mxu0 %v4984
    %4996 = vmatprep.subr.bf16.mxu0 0
    %4997 = vmatpush1.bf16.msra.mxu0 %v4985
    %4998 = vmatprep.subr.bf16.mxu0 0
    %4999 = vmatpush1.bf16.msra.mxu0 0
    %5000 = vmatprep.subr.bf16.mxu0 0
    %5001 = vmatpush1.bf16.msra.mxu0 0
    %5002 = vmatprep.subr.bf16.mxu0 0
    %5003 = vmatpush1.bf16.msra.mxu0 0
    %5004 = vmatprep.subr.bf16.mxu0 0
    %5005 = vmatpush1.bf16.msra.mxu0 0
    %5006 = vmatprep.subr.bf16.mxu0 0
    %5007 = vmatpush1.bf16.msra.mxu0 0
    %5008 = vmatprep.subr.bf16.mxu0 0
    %5009 = vmatpush1.bf16.msra.mxu0 0
    %5010 = vmatprep.subr.bf16.mxu0 0
    %5011 = vmatpush1.bf16.msra.mxu0 0
    %5012 = vmatprep.subr.bf16.mxu0 0
    %5013 = vmatpush1.bf16.msra.mxu0 0
    %5014 = vmatprep.subr.bf16.mxu0 0
    %5015 = vmatpush1.bf16.msra.mxu0 0
    %5016 = vmatprep.subr.bf16.mxu0 0
    %5017 = vmatpush1.bf16.msra.mxu0 0
    %5018 = vmatprep.subr.bf16.mxu0 0
    %5019 = vmatpush1.bf16.msra.mxu0 0
    %5020 = vmatprep.subr.bf16.mxu0 0
    %5021 = vmatpush1.bf16.msra.mxu0 0
    %5022 = vmatprep.mubr.bf16.mxu0 0
    %5023 = vmatmul.mubr.bf16.gmra.mrb[0].mxu0 %v353
    %v5024 = vpop.f32.mrb[0].mxu0
    %v5025 = vadd.f32 %v4964, %v5024
    %v5026 = vpop.f32.mrb[0].mxu0
    %v5027 = vpop.f32.mrb[0].mxu0
    %v5028 = vadd.f32 %v4964, %v5027
    %v5029 = vpop.f32.mrb[0].mxu0
    %5030 = vmatprep.mubr.bf16.mxu0 0
    %5031 = vmatmul.mubr.bf16.gmra.mrb[0].mxu0 %v356
    %v5032 = vpop.f32.mrb[0].mxu0
    %v5033 = vadd.f32 %v4964, %v5032
    %v5034 = vpop.f32.mrb[0].mxu0
    %v5035 = vpop.f32.mrb[0].mxu0
    %v5036 = vadd.f32 %v4964, %v5035
    %v5037 = vpop.f32.mrb[0].mxu0
    %5038 = vmatprep.mubr.bf16.mxu0 0
    %5039 = vmatmul.mubr.bf16.gmra.mrb[0].mxu0 %v359
    %v5040 = vpop.f32.mrb[0].mxu0
    %v5041 = vadd.f32 %v4964, %v5040
    %v5042 = vpop.f32.mrb[0].mxu0
    %v5043 = vpop.f32.mrb[0].mxu0
    %v5044 = vadd.f32 %v4964, %v5043
    %v5045 = vpop.f32.mrb[0].mxu0
    %5046 = vmatprep.mubr.bf16.mxu0 0
    %5047 = vmatmul.mubr.bf16.gmra.mrb[0].mxu0 %v362
    %v5048 = vpop.f32.mrb[0].mxu0
    %v5049 = vadd.f32 %v4964, %v5048
    %v5050 = vpop.f32.mrb[0].mxu0
    %v5051 = vpop.f32.mrb[0].mxu0
    %v5052 = vadd.f32 %v4964, %v5051
    %v5053 = vpop.f32.mrb[0].mxu0
    %5054 = vmatprep.mubr.bf16.mxu0 0
    %5055 = vmatmul.mubr.bf16.gmra.mrb[0].mxu0 %v365
    %v5056 = vpop.f32.mrb[0].mxu0
    %v5057 = vadd.f32 %v4964, %v5056
    %v5058 = vpop.f32.mrb[0].mxu0
    %v5059 = vpop.f32.mrb[0].mxu0
    %v5060 = vadd.f32 %v4964, %v5059
    %v5061 = vpop.f32.mrb[0].mxu0
    %5062 = vmatprep.mubr.bf16.mxu0 0
    %5063 = vmatmul.mubr.bf16.gmra.mrb[0].mxu0 %v368
    %v5064 = vpop.f32.mrb[0].mxu0
    %v5065 = vadd.f32 %v4964, %v5064
    %v5066 = vpop.f32.mrb[0].mxu0
    %v5067 = vpop.f32.mrb[0].mxu0
    %v5068 = vadd.f32 %v4964, %v5067
    %v5069 = vpop.f32.mrb[0].mxu0
    %5070 = vmatprep.mubr.bf16.mxu0 0
    %5071 = vmatmul.mubr.bf16.gmra.mrb[0].mxu0 %v371
    %v5072 = vpop.f32.mrb[0].mxu0
    %v5073 = vadd.f32 %v4964, %v5072
    %v5074 = vpop.f32.mrb[0].mxu0
    %v5075 = vpop.f32.mrb[0].mxu0
    %v5076 = vadd.f32 %v4964, %v5075
    %v5077 = vpop.f32.mrb[0].mxu0
    %5078 = vmatprep.mubr.bf16.mxu0 0
    %5079 = vmatmul.mubr.bf16.gmra.mrb[0].mxu0 %v374
    %v5080 = vpop.f32.mrb[0].mxu0
    %v5081 = vadd.f32 %v4964, %v5080
    %v5082 = vpop.f32.mrb[0].mxu0
    %v5083 = vpop.f32.mrb[0].mxu0
    %v5084 = vadd.f32 %v4964, %v5083
    %v5085 = vpop.f32.mrb[0].mxu0
    %5086 = vdwg.mxu0
    %s5087 = scalar_lea.vmem %s5, 96
    %v5088 = vld [vmem:[%s5087] sm:$0xf]
    %v5089 = vld [vmem:[%s5087 + $0x4] sm:$0xf]
    %v5090 = vld [vmem:[%s5087 + $0x8] sm:$0xf]
    %v5091 = vld [vmem:[%s5087 + $0xc] sm:$0xf]
    %v5092 = vld [vmem:[%s5087 + $0x10] sm:$0xf]
    %v5093 = vld [vmem:[%s5087 + $0x14] sm:$0xf]
    %v5094 = vld [vmem:[%s5087 + $0x18] sm:$0xf]
    %v5095 = vld [vmem:[%s5087 + $0x1c] sm:$0xf]
    %s5096 = scalar_lea.vmem %s8, 3
    %v5097 = vld [vmem:[%s5096] sm:$0x1]
    %v5099 = vlaneseq
    %v5100 = vshrl.u32 %v5099, 7
    %v5101 = vsub.s32 0, %v5100
    %v5102 = vrot.slane %v5097, %v5101
    %v5112 = vunpack.c.l.b16 %v5088
    %v5113 = vunpack.c.l.b16 %v5089
    %v5114 = vunpack.c.l.b16 %v5090
    %v5115 = vunpack.c.l.b16 %v5091
    %v5116 = vunpack.c.l.b16 %v5092
    %v5117 = vunpack.c.l.b16 %v5093
    %v5118 = vunpack.c.l.b16 %v5094
    %v5119 = vunpack.c.l.b16 %v5095
    %v5120 = vpack.c.b16 %v5113, %v5112
    %v5121 = vpack.c.b16 %v5115, %v5114
    %v5122 = vpack.c.b16 %v5117, %v5116
    %v5123 = vpack.c.b16 %v5119, %v5118
    %5128 = vmatprep.subr.bf16.mxu0 0
    %5129 = vmatpush1.bf16.msra.mxu0 %v5120
    %5130 = vmatprep.subr.bf16.mxu0 0
    %5131 = vmatpush1.bf16.msra.mxu0 %v5121
    %5132 = vmatprep.subr.bf16.mxu0 0
    %5133 = vmatpush1.bf16.msra.mxu0 %v5122
    %5134 = vmatprep.subr.bf16.mxu0 0
    %5135 = vmatpush1.bf16.msra.mxu0 %v5123
    %5136 = vmatprep.subr.bf16.mxu0 0
    %5137 = vmatpush1.bf16.msra.mxu0 0
    %5138 = vmatprep.subr.bf16.mxu0 0
    %5139 = vmatpush1.bf16.msra.mxu0 0
    %5140 = vmatprep.subr.bf16.mxu0 0
    %5141 = vmatpush1.bf16.msra.mxu0 0
    %5142 = vmatprep.subr.bf16.mxu0 0
    %5143 = vmatpush1.bf16.msra.mxu0 0
    %5144 = vmatprep.subr.bf16.mxu0 0
    %5145 = vmatpush1.bf16.msra.mxu0 0
    %5146 = vmatprep.subr.bf16.mxu0 0
    %5147 = vmatpush1.bf16.msra.mxu0 0
    %5148 = vmatprep.subr.bf16.mxu0 0
    %5149 = vmatpush1.bf16.msra.mxu0 0
    %5150 = vmatprep.subr.bf16.mxu0 0
    %5151 = vmatpush1.bf16.msra.mxu0 0
    %5152 = vmatprep.subr.bf16.mxu0 0
    %5153 = vmatpush1.bf16.msra.mxu0 0
    %5154 = vmatprep.subr.bf16.mxu0 0
    %5155 = vmatpush1.bf16.msra.mxu0 0
    %5156 = vmatprep.subr.bf16.mxu0 0
    %5157 = vmatpush1.bf16.msra.mxu0 0
    %5158 = vmatprep.subr.bf16.mxu0 0
    %5159 = vmatpush1.bf16.msra.mxu0 0
    %5160 = vmatprep.mubr.bf16.mxu0 0
    %5161 = vmatmul.mubr.bf16.gmra.mrb[0].mxu0 %v353
    %v5162 = vpop.f32.mrb[0].mxu0
    %v5163 = vadd.f32 %v5102, %v5162
    %v5164 = vpop.f32.mrb[0].mxu0
    %v5165 = vpop.f32.mrb[0].mxu0
    %v5166 = vadd.f32 %v5102, %v5165
    %v5167 = vpop.f32.mrb[0].mxu0
    %5168 = vmatprep.mubr.bf16.mxu0 0
    %5169 = vmatmul.mubr.bf16.gmra.mrb[0].mxu0 %v356
    %v5170 = vpop.f32.mrb[0].mxu0
    %v5171 = vadd.f32 %v5102, %v5170
    %v5172 = vpop.f32.mrb[0].mxu0
    %v5173 = vpop.f32.mrb[0].mxu0
    %v5174 = vadd.f32 %v5102, %v5173
    %v5175 = vpop.f32.mrb[0].mxu0
    %5176 = vmatprep.mubr.bf16.mxu0 0
    %5177 = vmatmul.mubr.bf16.gmra.mrb[0].mxu0 %v359
    %v5178 = vpop.f32.mrb[0].mxu0
    %v5179 = vadd.f32 %v5102, %v5178
    %v5180 = vpop.f32.mrb[0].mxu0
    %v5181 = vpop.f32.mrb[0].mxu0
    %v5182 = vadd.f32 %v5102, %v5181
    %v5183 = vpop.f32.mrb[0].mxu0
    %5184 = vmatprep.mubr.bf16.mxu0 0
    %5185 = vmatmul.mubr.bf16.gmra.mrb[0].mxu0 %v362
    %v5186 = vpop.f32.mrb[0].mxu0
    %v5187 = vadd.f32 %v5102, %v5186
    %v5188 = vpop.f32.mrb[0].mxu0
    %v5189 = vpop.f32.mrb[0].mxu0
    %v5190 = vadd.f32 %v5102, %v5189
    %v5191 = vpop.f32.mrb[0].mxu0
    %5192 = vmatprep.mubr.bf16.mxu0 0
    %5193 = vmatmul.mubr.bf16.gmra.mrb[0].mxu0 %v365
    %v5194 = vpop.f32.mrb[0].mxu0
    %v5195 = vadd.f32 %v5102, %v5194
    %v5196 = vpop.f32.mrb[0].mxu0
    %v5197 = vpop.f32.mrb[0].mxu0
    %v5198 = vadd.f32 %v5102, %v5197
    %v5199 = vpop.f32.mrb[0].mxu0
    %5200 = vmatprep.mubr.bf16.mxu0 0
    %5201 = vmatmul.mubr.bf16.gmra.mrb[0].mxu0 %v368
    %v5202 = vpop.f32.mrb[0].mxu0
    %v5203 = vadd.f32 %v5102, %v5202
    %v5204 = vpop.f32.mrb[0].mxu0
    %v5205 = vpop.f32.mrb[0].mxu0
    %v5206 = vadd.f32 %v5102, %v5205
    %v5207 = vpop.f32.mrb[0].mxu0
    %5208 = vmatprep.mubr.bf16.mxu0 0
    %5209 = vmatmul.mubr.bf16.gmra.mrb[0].mxu0 %v371
    %v5210 = vpop.f32.mrb[0].mxu0
    %v5211 = vadd.f32 %v5102, %v5210
    %v5212 = vpop.f32.mrb[0].mxu0
    %v5213 = vpop.f32.mrb[0].mxu0
    %v5214 = vadd.f32 %v5102, %v5213
    %v5215 = vpop.f32.mrb[0].mxu0
    %5216 = vmatprep.mubr.bf16.mxu0 0
    %5217 = vmatmul.mubr.bf16.gmra.mrb[0].mxu0 %v374
    %v5218 = vpop.f32.mrb[0].mxu0
    %v5219 = vadd.f32 %v5102, %v5218
    %v5220 = vpop.f32.mrb[0].mxu0
    %v5221 = vpop.f32.mrb[0].mxu0
    %v5222 = vadd.f32 %v5102, %v5221
    %v5223 = vpop.f32.mrb[0].mxu0
    %5224 = vdwg.mxu0
    %v5225 = vpack.c.bf16 %v4890, %v4887
    %v5226 = vpack.c.bf16 %v4898, %v4895
    %v5227 = vpack.c.bf16 %v4906, %v4903
    %v5228 = vpack.c.bf16 %v4914, %v4911
    %v5229 = vpack.c.bf16 %v4922, %v4919
    %v5230 = vpack.c.bf16 %v4930, %v4927
    %v5231 = vpack.c.bf16 %v4938, %v4935
    %v5232 = vpack.c.bf16 %v4946, %v4943
    %v5233 = vpack.c.bf16 %v5028, %v5025
    %v5234 = vpack.c.bf16 %v5036, %v5033
    %v5235 = vpack.c.bf16 %v5044, %v5041
    %v5236 = vpack.c.bf16 %v5052, %v5049
    %v5237 = vpack.c.bf16 %v5060, %v5057
    %v5238 = vpack.c.bf16 %v5068, %v5065
    %v5239 = vpack.c.bf16 %v5076, %v5073
    %v5240 = vpack.c.bf16 %v5084, %v5081
    %v5242 = vsel %vm761, %v5225, 0
    %v5245 = vsel %vm761, %v5233, 0
    %5247 = vmatprep.subr.bf16.mxu0 0
    %5248 = vmatpush1.bf16.xpose.msra.mxu0 %v5245
    %5249 = vmatprep.subr.bf16.mxu0 0
    %5250 = vmatpush1.bf16.xpose.msra.mxu0 0
    %5251 = vmatprep.subr.bf16.mxu0 0
    %5252 = vmatpush1.bf16.xpose.msra.mxu0 0
    %5253 = vmatprep.subr.bf16.mxu0 0
    %5254 = vmatpush1.bf16.xpose.msra.mxu0 0
    %5255 = vmatprep.subr.bf16.mxu0 0
    %5256 = vmatpush1.bf16.xpose.msra.mxu0 0
    %5257 = vmatprep.subr.bf16.mxu0 0
    %5258 = vmatpush1.bf16.xpose.msra.mxu0 0
    %5259 = vmatprep.subr.bf16.mxu0 0
    %5260 = vmatpush1.bf16.xpose.msra.mxu0 0
    %5261 = vmatprep.subr.bf16.mxu0 0
    %5262 = vmatpush1.bf16.xpose.msra.mxu0 0
    %5263 = vmatprep.subr.bf16.mxu0 0
    %5264 = vmatpush1.bf16.xpose.msra.mxu0 0
    %5265 = vmatprep.subr.bf16.mxu0 0
    %5266 = vmatpush1.bf16.xpose.msra.mxu0 0
    %5267 = vmatprep.subr.bf16.mxu0 0
    %5268 = vmatpush1.bf16.xpose.msra.mxu0 0
    %5269 = vmatprep.subr.bf16.mxu0 0
    %5270 = vmatpush1.bf16.xpose.msra.mxu0 0
    %5271 = vmatprep.subr.bf16.mxu0 0
    %5272 = vmatpush1.bf16.xpose.msra.mxu0 0
    %5273 = vmatprep.subr.bf16.mxu0 0
    %5274 = vmatpush1.bf16.xpose.msra.mxu0 0
    %5275 = vmatprep.subr.bf16.mxu0 0
    %5276 = vmatpush1.bf16.xpose.msra.mxu0 0
    %5277 = vmatprep.subr.bf16.mxu0 0
    %5278 = vmatpush1.bf16.xpose.msra.mxu0 0
    %5279 = vmatprep.mubr.bf16.mxu0 0
    %5280 = vmatmul.mubr.bf16.gmra.mrb[0].mxu0 %v5242
    %v5281 = vpop.f32.mrb[0].mxu0
    %v5282 = vadd.f32 0.0, %v5281
    %v5283 = vpop.f32.mrb[0].mxu0
    %v5284 = vpop.f32.mrb[0].mxu0
    %v5285 = vadd.f32 0.0, %v5284
    %v5286 = vpop.f32.mrb[0].mxu0
    %5287 = vdwg.mxu0
    %v5289 = vsel %vm761, %v5226, 0
    %v5292 = vsel %vm761, %v5234, 0
    %5294 = vmatprep.subr.bf16.mxu0 0
    %5295 = vmatpush1.bf16.xpose.msra.mxu0 %v5292
    %5296 = vmatprep.subr.bf16.mxu0 0
    %5297 = vmatpush1.bf16.xpose.msra.mxu0 0
    %5298 = vmatprep.subr.bf16.mxu0 0
    %5299 = vmatpush1.bf16.xpose.msra.mxu0 0
    %5300 = vmatprep.subr.bf16.mxu0 0
    %5301 = vmatpush1.bf16.xpose.msra.mxu0 0
    %5302 = vmatprep.subr.bf16.mxu0 0
    %5303 = vmatpush1.bf16.xpose.msra.mxu0 0
    %5304 = vmatprep.subr.bf16.mxu0 0
    %5305 = vmatpush1.bf16.xpose.msra.mxu0 0
    %5306 = vmatprep.subr.bf16.mxu0 0
    %5307 = vmatpush1.bf16.xpose.msra.mxu0 0
    %5308 = vmatprep.subr.bf16.mxu0 0
    %5309 = vmatpush1.bf16.xpose.msra.mxu0 0
    %5310 = vmatprep.subr.bf16.mxu0 0
    %5311 = vmatpush1.bf16.xpose.msra.mxu0 0
    %5312 = vmatprep.subr.bf16.mxu0 0
    %5313 = vmatpush1.bf16.xpose.msra.mxu0 0
    %5314 = vmatprep.subr.bf16.mxu0 0
    %5315 = vmatpush1.bf16.xpose.msra.mxu0 0
    %5316 = vmatprep.subr.bf16.mxu0 0
    %5317 = vmatpush1.bf16.xpose.msra.mxu0 0
    %5318 = vmatprep.subr.bf16.mxu0 0
    %5319 = vmatpush1.bf16.xpose.msra.mxu0 0
    %5320 = vmatprep.subr.bf16.mxu0 0
    %5321 = vmatpush1.bf16.xpose.msra.mxu0 0
    %5322 = vmatprep.subr.bf16.mxu0 0
    %5323 = vmatpush1.bf16.xpose.msra.mxu0 0
    %5324 = vmatprep.subr.bf16.mxu0 0
    %5325 = vmatpush1.bf16.xpose.msra.mxu0 0
    %5326 = vmatprep.mubr.bf16.mxu0 0
    %5327 = vmatmul.mubr.bf16.gmra.mrb[0].mxu0 %v5289
    %v5328 = vpop.f32.mrb[0].mxu0
    %v5329 = vadd.f32 0.0, %v5328
    %v5330 = vpop.f32.mrb[0].mxu0
    %v5331 = vpop.f32.mrb[0].mxu0
    %v5332 = vadd.f32 0.0, %v5331
    %v5333 = vpop.f32.mrb[0].mxu0
    %5334 = vdwg.mxu0
    %v5336 = vsel %vm761, %v5227, 0
    %v5339 = vsel %vm761, %v5235, 0
    %5341 = vmatprep.subr.bf16.mxu0 0
    %5342 = vmatpush1.bf16.xpose.msra.mxu0 %v5339
    %5343 = vmatprep.subr.bf16.mxu0 0
    %5344 = vmatpush1.bf16.xpose.msra.mxu0 0
    %5345 = vmatprep.subr.bf16.mxu0 0
    %5346 = vmatpush1.bf16.xpose.msra.mxu0 0
    %5347 = vmatprep.subr.bf16.mxu0 0
    %5348 = vmatpush1.bf16.xpose.msra.mxu0 0
    %5349 = vmatprep.subr.bf16.mxu0 0
    %5350 = vmatpush1.bf16.xpose.msra.mxu0 0
    %5351 = vmatprep.subr.bf16.mxu0 0
    %5352 = vmatpush1.bf16.xpose.msra.mxu0 0
    %5353 = vmatprep.subr.bf16.mxu0 0
    %5354 = vmatpush1.bf16.xpose.msra.mxu0 0
    %5355 = vmatprep.subr.bf16.mxu0 0
    %5356 = vmatpush1.bf16.xpose.msra.mxu0 0
    %5357 = vmatprep.subr.bf16.mxu0 0
    %5358 = vmatpush1.bf16.xpose.msra.mxu0 0
    %5359 = vmatprep.subr.bf16.mxu0 0
    %5360 = vmatpush1.bf16.xpose.msra.mxu0 0
    %5361 = vmatprep.subr.bf16.mxu0 0
    %5362 = vmatpush1.bf16.xpose.msra.mxu0 0
    %5363 = vmatprep.subr.bf16.mxu0 0
    %5364 = vmatpush1.bf16.xpose.msra.mxu0 0
    %5365 = vmatprep.subr.bf16.mxu0 0
    %5366 = vmatpush1.bf16.xpose.msra.mxu0 0
    %5367 = vmatprep.subr.bf16.mxu0 0
    %5368 = vmatpush1.bf16.xpose.msra.mxu0 0
    %5369 = vmatprep.subr.bf16.mxu0 0
    %5370 = vmatpush1.bf16.xpose.msra.mxu0 0
    %5371 = vmatprep.subr.bf16.mxu0 0
    %5372 = vmatpush1.bf16.xpose.msra.mxu0 0
    %5373 = vmatprep.mubr.bf16.mxu0 0
    %5374 = vmatmul.mubr.bf16.gmra.mrb[0].mxu0 %v5336
    %v5375 = vpop.f32.mrb[0].mxu0
    %v5376 = vadd.f32 0.0, %v5375
    %v5377 = vpop.f32.mrb[0].mxu0
    %v5378 = vpop.f32.mrb[0].mxu0
    %v5379 = vadd.f32 0.0, %v5378
    %v5380 = vpop.f32.mrb[0].mxu0
    %5381 = vdwg.mxu0
    %v5383 = vsel %vm761, %v5228, 0
    %v5386 = vsel %vm761, %v5236, 0
    %5388 = vmatprep.subr.bf16.mxu0 0
    %5389 = vmatpush1.bf16.xpose.msra.mxu0 %v5386
    %5390 = vmatprep.subr.bf16.mxu0 0
    %5391 = vmatpush1.bf16.xpose.msra.mxu0 0
    %5392 = vmatprep.subr.bf16.mxu0 0
    %5393 = vmatpush1.bf16.xpose.msra.mxu0 0
    %5394 = vmatprep.subr.bf16.mxu0 0
    %5395 = vmatpush1.bf16.xpose.msra.mxu0 0
    %5396 = vmatprep.subr.bf16.mxu0 0
    %5397 = vmatpush1.bf16.xpose.msra.mxu0 0
    %5398 = vmatprep.subr.bf16.mxu0 0
    %5399 = vmatpush1.bf16.xpose.msra.mxu0 0
    %5400 = vmatprep.subr.bf16.mxu0 0
    %5401 = vmatpush1.bf16.xpose.msra.mxu0 0
    %5402 = vmatprep.subr.bf16.mxu0 0
    %5403 = vmatpush1.bf16.xpose.msra.mxu0 0
    %5404 = vmatprep.subr.bf16.mxu0 0
    %5405 = vmatpush1.bf16.xpose.msra.mxu0 0
    %5406 = vmatprep.subr.bf16.mxu0 0
    %5407 = vmatpush1.bf16.xpose.msra.mxu0 0
    %5408 = vmatprep.subr.bf16.mxu0 0
    %5409 = vmatpush1.bf16.xpose.msra.mxu0 0
    %5410 = vmatprep.subr.bf16.mxu0 0
    %5411 = vmatpush1.bf16.xpose.msra.mxu0 0
    %5412 = vmatprep.subr.bf16.mxu0 0
    %5413 = vmatpush1.bf16.xpose.msra.mxu0 0
    %5414 = vmatprep.subr.bf16.mxu0 0
    %5415 = vmatpush1.bf16.xpose.msra.mxu0 0
    %5416 = vmatprep.subr.bf16.mxu0 0
    %5417 = vmatpush1.bf16.xpose.msra.mxu0 0
    %5418 = vmatprep.subr.bf16.mxu0 0
    %5419 = vmatpush1.bf16.xpose.msra.mxu0 0
    %5420 = vmatprep.mubr.bf16.mxu0 0
    %5421 = vmatmul.mubr.bf16.gmra.mrb[0].mxu0 %v5383
    %v5422 = vpop.f32.mrb[0].mxu0
    %v5423 = vadd.f32 0.0, %v5422
    %v5424 = vpop.f32.mrb[0].mxu0
    %v5425 = vpop.f32.mrb[0].mxu0
    %v5426 = vadd.f32 0.0, %v5425
    %v5427 = vpop.f32.mrb[0].mxu0
    %5428 = vdwg.mxu0
    %v5430 = vsel %vm761, %v5229, 0
    %v5433 = vsel %vm761, %v5237, 0
    %5435 = vmatprep.subr.bf16.mxu0 0
    %5436 = vmatpush1.bf16.xpose.msra.mxu0 %v5433
    %5437 = vmatprep.subr.bf16.mxu0 0
    %5438 = vmatpush1.bf16.xpose.msra.mxu0 0
    %5439 = vmatprep.subr.bf16.mxu0 0
    %5440 = vmatpush1.bf16.xpose.msra.mxu0 0
    %5441 = vmatprep.subr.bf16.mxu0 0
    %5442 = vmatpush1.bf16.xpose.msra.mxu0 0
    %5443 = vmatprep.subr.bf16.mxu0 0
    %5444 = vmatpush1.bf16.xpose.msra.mxu0 0
    %5445 = vmatprep.subr.bf16.mxu0 0
    %5446 = vmatpush1.bf16.xpose.msra.mxu0 0
    %5447 = vmatprep.subr.bf16.mxu0 0
    %5448 = vmatpush1.bf16.xpose.msra.mxu0 0
    %5449 = vmatprep.subr.bf16.mxu0 0
    %5450 = vmatpush1.bf16.xpose.msra.mxu0 0
    %5451 = vmatprep.subr.bf16.mxu0 0
    %5452 = vmatpush1.bf16.xpose.msra.mxu0 0
    %5453 = vmatprep.subr.bf16.mxu0 0
    %5454 = vmatpush1.bf16.xpose.msra.mxu0 0
    %5455 = vmatprep.subr.bf16.mxu0 0
    %5456 = vmatpush1.bf16.xpose.msra.mxu0 0
    %5457 = vmatprep.subr.bf16.mxu0 0
    %5458 = vmatpush1.bf16.xpose.msra.mxu0 0
    %5459 = vmatprep.subr.bf16.mxu0 0
    %5460 = vmatpush1.bf16.xpose.msra.mxu0 0
    %5461 = vmatprep.subr.bf16.mxu0 0
    %5462 = vmatpush1.bf16.xpose.msra.mxu0 0
    %5463 = vmatprep.subr.bf16.mxu0 0
    %5464 = vmatpush1.bf16.xpose.msra.mxu0 0
    %5465 = vmatprep.subr.bf16.mxu0 0
    %5466 = vmatpush1.bf16.xpose.msra.mxu0 0
    %5467 = vmatprep.mubr.bf16.mxu0 0
    %5468 = vmatmul.mubr.bf16.gmra.mrb[0].mxu0 %v5430
    %v5469 = vpop.f32.mrb[0].mxu0
    %v5470 = vadd.f32 0.0, %v5469
    %v5471 = vpop.f32.mrb[0].mxu0
    %v5472 = vpop.f32.mrb[0].mxu0
    %v5473 = vadd.f32 0.0, %v5472
    %v5474 = vpop.f32.mrb[0].mxu0
    %5475 = vdwg.mxu0
    %v5477 = vsel %vm761, %v5230, 0
    %v5480 = vsel %vm761, %v5238, 0
    %5482 = vmatprep.subr.bf16.mxu0 0
    %5483 = vmatpush1.bf16.xpose.msra.mxu0 %v5480
    %5484 = vmatprep.subr.bf16.mxu0 0
    %5485 = vmatpush1.bf16.xpose.msra.mxu0 0
    %5486 = vmatprep.subr.bf16.mxu0 0
    %5487 = vmatpush1.bf16.xpose.msra.mxu0 0
    %5488 = vmatprep.subr.bf16.mxu0 0
    %5489 = vmatpush1.bf16.xpose.msra.mxu0 0
    %5490 = vmatprep.subr.bf16.mxu0 0
    %5491 = vmatpush1.bf16.xpose.msra.mxu0 0
    %5492 = vmatprep.subr.bf16.mxu0 0
    %5493 = vmatpush1.bf16.xpose.msra.mxu0 0
    %5494 = vmatprep.subr.bf16.mxu0 0
    %5495 = vmatpush1.bf16.xpose.msra.mxu0 0
    %5496 = vmatprep.subr.bf16.mxu0 0
    %5497 = vmatpush1.bf16.xpose.msra.mxu0 0
    %5498 = vmatprep.subr.bf16.mxu0 0
    %5499 = vmatpush1.bf16.xpose.msra.mxu0 0
    %5500 = vmatprep.subr.bf16.mxu0 0
    %5501 = vmatpush1.bf16.xpose.msra.mxu0 0
    %5502 = vmatprep.subr.bf16.mxu0 0
    %5503 = vmatpush1.bf16.xpose.msra.mxu0 0
    %5504 = vmatprep.subr.bf16.mxu0 0
    %5505 = vmatpush1.bf16.xpose.msra.mxu0 0
    %5506 = vmatprep.subr.bf16.mxu0 0
    %5507 = vmatpush1.bf16.xpose.msra.mxu0 0
    %5508 = vmatprep.subr.bf16.mxu0 0
    %5509 = vmatpush1.bf16.xpose.msra.mxu0 0
    %5510 = vmatprep.subr.bf16.mxu0 0
    %5511 = vmatpush1.bf16.xpose.msra.mxu0 0
    %5512 = vmatprep.subr.bf16.mxu0 0
    %5513 = vmatpush1.bf16.xpose.msra.mxu0 0
    %5514 = vmatprep.mubr.bf16.mxu0 0
    %5515 = vmatmul.mubr.bf16.gmra.mrb[0].mxu0 %v5477
    %v5516 = vpop.f32.mrb[0].mxu0
    %v5517 = vadd.f32 0.0, %v5516
    %v5518 = vpop.f32.mrb[0].mxu0
    %v5519 = vpop.f32.mrb[0].mxu0
    %v5520 = vadd.f32 0.0, %v5519
    %v5521 = vpop.f32.mrb[0].mxu0
    %5522 = vdwg.mxu0
    %v5524 = vsel %vm761, %v5231, 0
    %v5527 = vsel %vm761, %v5239, 0
    %5529 = vmatprep.subr.bf16.mxu0 0
    %5530 = vmatpush1.bf16.xpose.msra.mxu0 %v5527
    %5531 = vmatprep.subr.bf16.mxu0 0
    %5532 = vmatpush1.bf16.xpose.msra.mxu0 0
    %5533 = vmatprep.subr.bf16.mxu0 0
    %5534 = vmatpush1.bf16.xpose.msra.mxu0 0
    %5535 = vmatprep.subr.bf16.mxu0 0
    %5536 = vmatpush1.bf16.xpose.msra.mxu0 0
    %5537 = vmatprep.subr.bf16.mxu0 0
    %5538 = vmatpush1.bf16.xpose.msra.mxu0 0
    %5539 = vmatprep.subr.bf16.mxu0 0
    %5540 = vmatpush1.bf16.xpose.msra.mxu0 0
    %5541 = vmatprep.subr.bf16.mxu0 0
    %5542 = vmatpush1.bf16.xpose.msra.mxu0 0
    %5543 = vmatprep.subr.bf16.mxu0 0
    %5544 = vmatpush1.bf16.xpose.msra.mxu0 0
    %5545 = vmatprep.subr.bf16.mxu0 0
    %5546 = vmatpush1.bf16.xpose.msra.mxu0 0
    %5547 = vmatprep.subr.bf16.mxu0 0
    %5548 = vmatpush1.bf16.xpose.msra.mxu0 0
    %5549 = vmatprep.subr.bf16.mxu0 0
    %5550 = vmatpush1.bf16.xpose.msra.mxu0 0
    %5551 = vmatprep.subr.bf16.mxu0 0
    %5552 = vmatpush1.bf16.xpose.msra.mxu0 0
    %5553 = vmatprep.subr.bf16.mxu0 0
    %5554 = vmatpush1.bf16.xpose.msra.mxu0 0
    %5555 = vmatprep.subr.bf16.mxu0 0
    %5556 = vmatpush1.bf16.xpose.msra.mxu0 0
    %5557 = vmatprep.subr.bf16.mxu0 0
    %5558 = vmatpush1.bf16.xpose.msra.mxu0 0
    %5559 = vmatprep.subr.bf16.mxu0 0
    %5560 = vmatpush1.bf16.xpose.msra.mxu0 0
    %5561 = vmatprep.mubr.bf16.mxu0 0
    %5562 = vmatmul.mubr.bf16.gmra.mrb[0].mxu0 %v5524
    %v5563 = vpop.f32.mrb[0].mxu0
    %v5564 = vadd.f32 0.0, %v5563
    %v5565 = vpop.f32.mrb[0].mxu0
    %v5566 = vpop.f32.mrb[0].mxu0
    %v5567 = vadd.f32 0.0, %v5566
    %v5568 = vpop.f32.mrb[0].mxu0
    %5569 = vdwg.mxu0
    %v5571 = vsel %vm761, %v5232, 0
    %v5574 = vsel %vm761, %v5240, 0
    %5576 = vmatprep.subr.bf16.mxu0 0
    %5577 = vmatpush1.bf16.xpose.msra.mxu0 %v5574
    %5578 = vmatprep.subr.bf16.mxu0 0
    %5579 = vmatpush1.bf16.xpose.msra.mxu0 0
    %5580 = vmatprep.subr.bf16.mxu0 0
    %5581 = vmatpush1.bf16.xpose.msra.mxu0 0
    %5582 = vmatprep.subr.bf16.mxu0 0
    %5583 = vmatpush1.bf16.xpose.msra.mxu0 0
    %5584 = vmatprep.subr.bf16.mxu0 0
    %5585 = vmatpush1.bf16.xpose.msra.mxu0 0
    %5586 = vmatprep.subr.bf16.mxu0 0
    %5587 = vmatpush1.bf16.xpose.msra.mxu0 0
    %5588 = vmatprep.subr.bf16.mxu0 0
    %5589 = vmatpush1.bf16.xpose.msra.mxu0 0
    %5590 = vmatprep.subr.bf16.mxu0 0
    %5591 = vmatpush1.bf16.xpose.msra.mxu0 0
    %5592 = vmatprep.subr.bf16.mxu0 0
    %5593 = vmatpush1.bf16.xpose.msra.mxu0 0
    %5594 = vmatprep.subr.bf16.mxu0 0
    %5595 = vmatpush1.bf16.xpose.msra.mxu0 0
    %5596 = vmatprep.subr.bf16.mxu0 0
    %5597 = vmatpush1.bf16.xpose.msra.mxu0 0
    %5598 = vmatprep.subr.bf16.mxu0 0
    %5599 = vmatpush1.bf16.xpose.msra.mxu0 0
    %5600 = vmatprep.subr.bf16.mxu0 0
    %5601 = vmatpush1.bf16.xpose.msra.mxu0 0
    %5602 = vmatprep.subr.bf16.mxu0 0
    %5603 = vmatpush1.bf16.xpose.msra.mxu0 0
    %5604 = vmatprep.subr.bf16.mxu0 0
    %5605 = vmatpush1.bf16.xpose.msra.mxu0 0
    %5606 = vmatprep.subr.bf16.mxu0 0
    %5607 = vmatpush1.bf16.xpose.msra.mxu0 0
    %5608 = vmatprep.mubr.bf16.mxu0 0
    %5609 = vmatmul.mubr.bf16.gmra.mrb[0].mxu0 %v5571
    %v5610 = vpop.f32.mrb[0].mxu0
    %v5611 = vadd.f32 0.0, %v5610
    %v5612 = vpop.f32.mrb[0].mxu0
    %v5613 = vpop.f32.mrb[0].mxu0
    %v5614 = vadd.f32 0.0, %v5613
    %v5615 = vpop.f32.mrb[0].mxu0
    %5616 = vdwg.mxu0
    %v5617 = vsel %vm761, %v5282, -inf
    %5618 = vmax.xlane.f32.xlu0 %v5617
    %v5619 = vpop.xlane.xlu0 %5618
    %v5620 = vsel %vm761, %v5285, -inf
    %5621 = vmax.xlane.f32.xlu0 %v5620
    %v5622 = vpop.xlane.xlu0 %5621
    %v5623 = vsel %vm761, %v5329, -inf
    %5624 = vmax.xlane.f32.xlu0 %v5623
    %v5625 = vpop.xlane.xlu0 %5624
    %v5626 = vsel %vm761, %v5332, -inf
    %5627 = vmax.xlane.f32.xlu0 %v5626
    %v5628 = vpop.xlane.xlu0 %5627
    %v5629 = vsel %vm761, %v5376, -inf
    %5630 = vmax.xlane.f32.xlu0 %v5629
    %v5631 = vpop.xlane.xlu0 %5630
    %v5632 = vsel %vm761, %v5379, -inf
    %5633 = vmax.xlane.f32.xlu0 %v5632
    %v5634 = vpop.xlane.xlu0 %5633
    %v5635 = vsel %vm761, %v5423, -inf
    %5636 = vmax.xlane.f32.xlu0 %v5635
    %v5637 = vpop.xlane.xlu0 %5636
    %v5638 = vsel %vm761, %v5426, -inf
    %5639 = vmax.xlane.f32.xlu0 %v5638
    %v5640 = vpop.xlane.xlu0 %5639
    %v5641 = vsel %vm761, %v5470, -inf
    %5642 = vmax.xlane.f32.xlu0 %v5641
    %v5643 = vpop.xlane.xlu0 %5642
    %v5644 = vsel %vm761, %v5473, -inf
    %5645 = vmax.xlane.f32.xlu0 %v5644
    %v5646 = vpop.xlane.xlu0 %5645
    %v5647 = vsel %vm761, %v5517, -inf
    %5648 = vmax.xlane.f32.xlu0 %v5647
    %v5649 = vpop.xlane.xlu0 %5648
    %v5650 = vsel %vm761, %v5520, -inf
    %5651 = vmax.xlane.f32.xlu0 %v5650
    %v5652 = vpop.xlane.xlu0 %5651
    %v5653 = vsel %vm761, %v5564, -inf
    %5654 = vmax.xlane.f32.xlu0 %v5653
    %v5655 = vpop.xlane.xlu0 %5654
    %v5656 = vsel %vm761, %v5567, -inf
    %5657 = vmax.xlane.f32.xlu0 %v5656
    %v5658 = vpop.xlane.xlu0 %5657
    %v5659 = vsel %vm761, %v5611, -inf
    %5660 = vmax.xlane.f32.xlu0 %v5659
    %v5661 = vpop.xlane.xlu0 %5660
    %v5662 = vsel %vm761, %v5614, -inf
    %5663 = vmax.xlane.f32.xlu0 %v5662
    %v5664 = vpop.xlane.xlu0 %5663
    %v5665 = vsub.f32 %v5282, %v5619
    %v5666 = vsub.f32 %v5285, %v5622
    %v5667 = vsub.f32 %v5329, %v5625
    %v5668 = vsub.f32 %v5332, %v5628
    %v5669 = vsub.f32 %v5376, %v5631
    %v5670 = vsub.f32 %v5379, %v5634
    %v5671 = vsub.f32 %v5423, %v5637
    %v5672 = vsub.f32 %v5426, %v5640
    %v5673 = vsub.f32 %v5470, %v5643
    %v5674 = vsub.f32 %v5473, %v5646
    %v5675 = vsub.f32 %v5517, %v5649
    %v5676 = vsub.f32 %v5520, %v5652
    %v5677 = vsub.f32 %v5564, %v5655
    %v5678 = vsub.f32 %v5567, %v5658
    %v5679 = vsub.f32 %v5611, %v5661
    %v5680 = vsub.f32 %v5614, %v5664
    %v5681 = vmul.f32 %v5665, 1.442695
    %v5682 = vpow.pop %v5681
    %v5683 = vmul.f32 %v5666, 1.442695
    %v5684 = vpow.pop %v5683
    %v5685 = vmul.f32 %v5667, 1.442695
    %v5686 = vpow.pop %v5685
    %v5687 = vmul.f32 %v5668, 1.442695
    %v5688 = vpow.pop %v5687
    %v5689 = vmul.f32 %v5669, 1.442695
    %v5690 = vpow.pop %v5689
    %v5691 = vmul.f32 %v5670, 1.442695
    %v5692 = vpow.pop %v5691
    %v5693 = vmul.f32 %v5671, 1.442695
    %v5694 = vpow.pop %v5693
    %v5695 = vmul.f32 %v5672, 1.442695
    %v5696 = vpow.pop %v5695
    %v5697 = vmul.f32 %v5673, 1.442695
    %v5698 = vpow.pop %v5697
    %v5699 = vmul.f32 %v5674, 1.442695
    %v5700 = vpow.pop %v5699
    %v5701 = vmul.f32 %v5675, 1.442695
    %v5702 = vpow.pop %v5701
    %v5703 = vmul.f32 %v5676, 1.442695
    %v5704 = vpow.pop %v5703
    %v5705 = vmul.f32 %v5677, 1.442695
    %v5706 = vpow.pop %v5705
    %v5707 = vmul.f32 %v5678, 1.442695
    %v5708 = vpow.pop %v5707
    %v5709 = vmul.f32 %v5679, 1.442695
    %v5710 = vpow.pop %v5709
    %v5711 = vmul.f32 %v5680, 1.442695
    %v5712 = vpow.pop %v5711
    %v5713 = vsel %vm761, %v5682, 0.0
    %5714 = vadd.xlane.f32.xlu0 %v5713
    %v5715 = vpop.xlane.xlu0 %5714
    %v5716 = vsel %vm761, %v5684, 0.0
    %5717 = vadd.xlane.f32.xlu0 %v5716
    %v5718 = vpop.xlane.xlu0 %5717
    %v5719 = vsel %vm761, %v5686, 0.0
    %5720 = vadd.xlane.f32.xlu0 %v5719
    %v5721 = vpop.xlane.xlu0 %5720
    %v5722 = vsel %vm761, %v5688, 0.0
    %5723 = vadd.xlane.f32.xlu0 %v5722
    %v5724 = vpop.xlane.xlu0 %5723
    %v5725 = vsel %vm761, %v5690, 0.0
    %5726 = vadd.xlane.f32.xlu0 %v5725
    %v5727 = vpop.xlane.xlu0 %5726
    %v5728 = vsel %vm761, %v5692, 0.0
    %5729 = vadd.xlane.f32.xlu0 %v5728
    %v5730 = vpop.xlane.xlu0 %5729
    %v5731 = vsel %vm761, %v5694, 0.0
    %5732 = vadd.xlane.f32.xlu0 %v5731
    %v5733 = vpop.xlane.xlu0 %5732
    %v5734 = vsel %vm761, %v5696, 0.0
    %5735 = vadd.xlane.f32.xlu0 %v5734
    %v5736 = vpop.xlane.xlu0 %5735
    %v5737 = vsel %vm761, %v5698, 0.0
    %5738 = vadd.xlane.f32.xlu0 %v5737
    %v5739 = vpop.xlane.xlu0 %5738
    %v5740 = vsel %vm761, %v5700, 0.0
    %5741 = vadd.xlane.f32.xlu0 %v5740
    %v5742 = vpop.xlane.xlu0 %5741
    %v5743 = vsel %vm761, %v5702, 0.0
    %5744 = vadd.xlane.f32.xlu0 %v5743
    %v5745 = vpop.xlane.xlu0 %5744
    %v5746 = vsel %vm761, %v5704, 0.0
    %5747 = vadd.xlane.f32.xlu0 %v5746
    %v5748 = vpop.xlane.xlu0 %5747
    %v5749 = vsel %vm761, %v5706, 0.0
    %5750 = vadd.xlane.f32.xlu0 %v5749
    %v5751 = vpop.xlane.xlu0 %5750
    %v5752 = vsel %vm761, %v5708, 0.0
    %5753 = vadd.xlane.f32.xlu0 %v5752
    %v5754 = vpop.xlane.xlu0 %5753
    %v5755 = vsel %vm761, %v5710, 0.0
    %5756 = vadd.xlane.f32.xlu0 %v5755
    %v5757 = vpop.xlane.xlu0 %5756
    %v5758 = vsel %vm761, %v5712, 0.0
    %5759 = vadd.xlane.f32.xlu0 %v5758
    %v5760 = vpop.xlane.xlu0 %5759
    %v5761 = vrcp.pop %v5715
    %v5762 = vrcp.pop %v5718
    %v5763 = vrcp.pop %v5721
    %v5764 = vrcp.pop %v5724
    %v5765 = vrcp.pop %v5727
    %v5766 = vrcp.pop %v5730
    %v5767 = vrcp.pop %v5733
    %v5768 = vrcp.pop %v5736
    %v5769 = vrcp.pop %v5739
    %v5770 = vrcp.pop %v5742
    %v5771 = vrcp.pop %v5745
    %v5772 = vrcp.pop %v5748
    %v5773 = vrcp.pop %v5751
    %v5774 = vrcp.pop %v5754
    %v5775 = vrcp.pop %v5757
    %v5776 = vrcp.pop %v5760
    %v5777 = vmul.f32 %v5682, %v5761
    %v5778 = vmul.f32 %v5684, %v5762
    %v5779 = vmul.f32 %v5686, %v5763
    %v5780 = vmul.f32 %v5688, %v5764
    %v5781 = vmul.f32 %v5690, %v5765
    %v5782 = vmul.f32 %v5692, %v5766
    %v5783 = vmul.f32 %v5694, %v5767
    %v5784 = vmul.f32 %v5696, %v5768
    %v5785 = vmul.f32 %v5698, %v5769
    %v5786 = vmul.f32 %v5700, %v5770
    %v5787 = vmul.f32 %v5702, %v5771
    %v5788 = vmul.f32 %v5704, %v5772
    %v5789 = vmul.f32 %v5706, %v5773
    %v5790 = vmul.f32 %v5708, %v5774
    %v5791 = vmul.f32 %v5710, %v5775
    %v5792 = vmul.f32 %v5712, %v5776
    %v5793 = vpack.c.bf16 %v5778, %v5777
    %v5794 = vpack.c.bf16 %v5780, %v5779
    %v5795 = vpack.c.bf16 %v5782, %v5781
    %v5796 = vpack.c.bf16 %v5784, %v5783
    %v5797 = vpack.c.bf16 %v5786, %v5785
    %v5798 = vpack.c.bf16 %v5788, %v5787
    %v5799 = vpack.c.bf16 %v5790, %v5789
    %v5800 = vpack.c.bf16 %v5792, %v5791
    %v5801 = vpack.c.bf16 %v5166, %v5163
    %v5802 = vpack.c.bf16 %v5174, %v5171
    %v5803 = vpack.c.bf16 %v5182, %v5179
    %v5804 = vpack.c.bf16 %v5190, %v5187
    %v5805 = vpack.c.bf16 %v5198, %v5195
    %v5806 = vpack.c.bf16 %v5206, %v5203
    %v5807 = vpack.c.bf16 %v5214, %v5211
    %v5808 = vpack.c.bf16 %v5222, %v5219
    %v5810 = vsel %vm761, %v5793, 0
    %5812 = vmatprep.subr.bf16.mxu0 0
    %5813 = vmatpush1.bf16.msra.mxu0 %v5801
    %5814 = vmatprep.subr.bf16.mxu0 0
    %5815 = vmatpush1.bf16.msra.mxu0 0
    %5816 = vmatprep.subr.bf16.mxu0 0
    %5817 = vmatpush1.bf16.msra.mxu0 0
    %5818 = vmatprep.subr.bf16.mxu0 0
    %5819 = vmatpush1.bf16.msra.mxu0 0
    %5820 = vmatprep.subr.bf16.mxu0 0
    %5821 = vmatpush1.bf16.msra.mxu0 0
    %5822 = vmatprep.subr.bf16.mxu0 0
    %5823 = vmatpush1.bf16.msra.mxu0 0
    %5824 = vmatprep.subr.bf16.mxu0 0
    %5825 = vmatpush1.bf16.msra.mxu0 0
    %5826 = vmatprep.subr.bf16.mxu0 0
    %5827 = vmatpush1.bf16.msra.mxu0 0
    %5828 = vmatprep.subr.bf16.mxu0 0
    %5829 = vmatpush1.bf16.msra.mxu0 0
    %5830 = vmatprep.subr.bf16.mxu0 0
    %5831 = vmatpush1.bf16.msra.mxu0 0
    %5832 = vmatprep.subr.bf16.mxu0 0
    %5833 = vmatpush1.bf16.msra.mxu0 0
    %5834 = vmatprep.subr.bf16.mxu0 0
    %5835 = vmatpush1.bf16.msra.mxu0 0
    %5836 = vmatprep.subr.bf16.mxu0 0
    %5837 = vmatpush1.bf16.msra.mxu0 0
    %5838 = vmatprep.subr.bf16.mxu0 0
    %5839 = vmatpush1.bf16.msra.mxu0 0
    %5840 = vmatprep.subr.bf16.mxu0 0
    %5841 = vmatpush1.bf16.msra.mxu0 0
    %5842 = vmatprep.subr.bf16.mxu0 0
    %5843 = vmatpush1.bf16.msra.mxu0 0
    %5844 = vmatprep.mubr.bf16.mxu0 0
    %5845 = vmatmul.mubr.bf16.gmra.mrb[0].mxu0 %v5810
    %v5846 = vpop.f32.mrb[0].mxu0
    %v5847 = vadd.f32 0.0, %v5846
    %v5848 = vpop.f32.mrb[0].mxu0
    %v5849 = vpop.f32.mrb[0].mxu0
    %v5850 = vadd.f32 0.0, %v5849
    %v5851 = vpop.f32.mrb[0].mxu0
    %5852 = vdwg.mxu0
    %v5854 = vsel %vm761, %v5794, 0
    %5856 = vmatprep.subr.bf16.mxu0 0
    %5857 = vmatpush1.bf16.msra.mxu0 %v5802
    %5858 = vmatprep.subr.bf16.mxu0 0
    %5859 = vmatpush1.bf16.msra.mxu0 0
    %5860 = vmatprep.subr.bf16.mxu0 0
    %5861 = vmatpush1.bf16.msra.mxu0 0
    %5862 = vmatprep.subr.bf16.mxu0 0
    %5863 = vmatpush1.bf16.msra.mxu0 0
    %5864 = vmatprep.subr.bf16.mxu0 0
    %5865 = vmatpush1.bf16.msra.mxu0 0
    %5866 = vmatprep.subr.bf16.mxu0 0
    %5867 = vmatpush1.bf16.msra.mxu0 0
    %5868 = vmatprep.subr.bf16.mxu0 0
    %5869 = vmatpush1.bf16.msra.mxu0 0
    %5870 = vmatprep.subr.bf16.mxu0 0
    %5871 = vmatpush1.bf16.msra.mxu0 0
    %5872 = vmatprep.subr.bf16.mxu0 0
    %5873 = vmatpush1.bf16.msra.mxu0 0
    %5874 = vmatprep.subr.bf16.mxu0 0
    %5875 = vmatpush1.bf16.msra.mxu0 0
    %5876 = vmatprep.subr.bf16.mxu0 0
    %5877 = vmatpush1.bf16.msra.mxu0 0
    %5878 = vmatprep.subr.bf16.mxu0 0
    %5879 = vmatpush1.bf16.msra.mxu0 0
    %5880 = vmatprep.subr.bf16.mxu0 0
    %5881 = vmatpush1.bf16.msra.mxu0 0
    %5882 = vmatprep.subr.bf16.mxu0 0
    %5883 = vmatpush1.bf16.msra.mxu0 0
    %5884 = vmatprep.subr.bf16.mxu0 0
    %5885 = vmatpush1.bf16.msra.mxu0 0
    %5886 = vmatprep.subr.bf16.mxu0 0
    %5887 = vmatpush1.bf16.msra.mxu0 0
    %5888 = vmatprep.mubr.bf16.mxu0 0
    %5889 = vmatmul.mubr.bf16.gmra.mrb[0].mxu0 %v5854
    %v5890 = vpop.f32.mrb[0].mxu0
    %v5891 = vadd.f32 0.0, %v5890
    %v5892 = vpop.f32.mrb[0].mxu0
    %v5893 = vpop.f32.mrb[0].mxu0
    %v5894 = vadd.f32 0.0, %v5893
    %v5895 = vpop.f32.mrb[0].mxu0
    %5896 = vdwg.mxu0
    %v5898 = vsel %vm761, %v5795, 0
    %5900 = vmatprep.subr.bf16.mxu0 0
    %5901 = vmatpush1.bf16.msra.mxu0 %v5803
    %5902 = vmatprep.subr.bf16.mxu0 0
    %5903 = vmatpush1.bf16.msra.mxu0 0
    %5904 = vmatprep.subr.bf16.mxu0 0
    %5905 = vmatpush1.bf16.msra.mxu0 0
    %5906 = vmatprep.subr.bf16.mxu0 0
    %5907 = vmatpush1.bf16.msra.mxu0 0
    %5908 = vmatprep.subr.bf16.mxu0 0
    %5909 = vmatpush1.bf16.msra.mxu0 0
    %5910 = vmatprep.subr.bf16.mxu0 0
    %5911 = vmatpush1.bf16.msra.mxu0 0
    %5912 = vmatprep.subr.bf16.mxu0 0
    %5913 = vmatpush1.bf16.msra.mxu0 0
    %5914 = vmatprep.subr.bf16.mxu0 0
    %5915 = vmatpush1.bf16.msra.mxu0 0
    %5916 = vmatprep.subr.bf16.mxu0 0
    %5917 = vmatpush1.bf16.msra.mxu0 0
    %5918 = vmatprep.subr.bf16.mxu0 0
    %5919 = vmatpush1.bf16.msra.mxu0 0
    %5920 = vmatprep.subr.bf16.mxu0 0
    %5921 = vmatpush1.bf16.msra.mxu0 0
    %5922 = vmatprep.subr.bf16.mxu0 0
    %5923 = vmatpush1.bf16.msra.mxu0 0
    %5924 = vmatprep.subr.bf16.mxu0 0
    %5925 = vmatpush1.bf16.msra.mxu0 0
    %5926 = vmatprep.subr.bf16.mxu0 0
    %5927 = vmatpush1.bf16.msra.mxu0 0
    %5928 = vmatprep.subr.bf16.mxu0 0
    %5929 = vmatpush1.bf16.msra.mxu0 0
    %5930 = vmatprep.subr.bf16.mxu0 0
    %5931 = vmatpush1.bf16.msra.mxu0 0
    %5932 = vmatprep.mubr.bf16.mxu0 0
    %5933 = vmatmul.mubr.bf16.gmra.mrb[0].mxu0 %v5898
    %v5934 = vpop.f32.mrb[0].mxu0
    %v5935 = vadd.f32 0.0, %v5934
    %v5936 = vpop.f32.mrb[0].mxu0
    %v5937 = vpop.f32.mrb[0].mxu0
    %v5938 = vadd.f32 0.0, %v5937
    %v5939 = vpop.f32.mrb[0].mxu0
    %5940 = vdwg.mxu0
    %v5942 = vsel %vm761, %v5796, 0
    %5944 = vmatprep.subr.bf16.mxu0 0
    %5945 = vmatpush1.bf16.msra.mxu0 %v5804
    %5946 = vmatprep.subr.bf16.mxu0 0
    %5947 = vmatpush1.bf16.msra.mxu0 0
    %5948 = vmatprep.subr.bf16.mxu0 0
    %5949 = vmatpush1.bf16.msra.mxu0 0
    %5950 = vmatprep.subr.bf16.mxu0 0
    %5951 = vmatpush1.bf16.msra.mxu0 0
    %5952 = vmatprep.subr.bf16.mxu0 0
    %5953 = vmatpush1.bf16.msra.mxu0 0
    %5954 = vmatprep.subr.bf16.mxu0 0
    %5955 = vmatpush1.bf16.msra.mxu0 0
    %5956 = vmatprep.subr.bf16.mxu0 0
    %5957 = vmatpush1.bf16.msra.mxu0 0
    %5958 = vmatprep.subr.bf16.mxu0 0
    %5959 = vmatpush1.bf16.msra.mxu0 0
    %5960 = vmatprep.subr.bf16.mxu0 0
    %5961 = vmatpush1.bf16.msra.mxu0 0
    %5962 = vmatprep.subr.bf16.mxu0 0
    %5963 = vmatpush1.bf16.msra.mxu0 0
    %5964 = vmatprep.subr.bf16.mxu0 0
    %5965 = vmatpush1.bf16.msra.mxu0 0
    %5966 = vmatprep.subr.bf16.mxu0 0
    %5967 = vmatpush1.bf16.msra.mxu0 0
    %5968 = vmatprep.subr.bf16.mxu0 0
    %5969 = vmatpush1.bf16.msra.mxu0 0
    %5970 = vmatprep.subr.bf16.mxu0 0
    %5971 = vmatpush1.bf16.msra.mxu0 0
    %5972 = vmatprep.subr.bf16.mxu0 0
    %5973 = vmatpush1.bf16.msra.mxu0 0
    %5974 = vmatprep.subr.bf16.mxu0 0
    %5975 = vmatpush1.bf16.msra.mxu0 0
    %5976 = vmatprep.mubr.bf16.mxu0 0
    %5977 = vmatmul.mubr.bf16.gmra.mrb[0].mxu0 %v5942
    %v5978 = vpop.f32.mrb[0].mxu0
    %v5979 = vadd.f32 0.0, %v5978
    %v5980 = vpop.f32.mrb[0].mxu0
    %v5981 = vpop.f32.mrb[0].mxu0
    %v5982 = vadd.f32 0.0, %v5981
    %v5983 = vpop.f32.mrb[0].mxu0
    %5984 = vdwg.mxu0
    %v5986 = vsel %vm761, %v5797, 0
    %5988 = vmatprep.subr.bf16.mxu0 0
    %5989 = vmatpush1.bf16.msra.mxu0 %v5805
    %5990 = vmatprep.subr.bf16.mxu0 0
    %5991 = vmatpush1.bf16.msra.mxu0 0
    %5992 = vmatprep.subr.bf16.mxu0 0
    %5993 = vmatpush1.bf16.msra.mxu0 0
    %5994 = vmatprep.subr.bf16.mxu0 0
    %5995 = vmatpush1.bf16.msra.mxu0 0
    %5996 = vmatprep.subr.bf16.mxu0 0
    %5997 = vmatpush1.bf16.msra.mxu0 0
    %5998 = vmatprep.subr.bf16.mxu0 0
    %5999 = vmatpush1.bf16.msra.mxu0 0
    %6000 = vmatprep.subr.bf16.mxu0 0
    %6001 = vmatpush1.bf16.msra.mxu0 0
    %6002 = vmatprep.subr.bf16.mxu0 0
    %6003 = vmatpush1.bf16.msra.mxu0 0
    %6004 = vmatprep.subr.bf16.mxu0 0
    %6005 = vmatpush1.bf16.msra.mxu0 0
    %6006 = vmatprep.subr.bf16.mxu0 0
    %6007 = vmatpush1.bf16.msra.mxu0 0
    %6008 = vmatprep.subr.bf16.mxu0 0
    %6009 = vmatpush1.bf16.msra.mxu0 0
    %6010 = vmatprep.subr.bf16.mxu0 0
    %6011 = vmatpush1.bf16.msra.mxu0 0
    %6012 = vmatprep.subr.bf16.mxu0 0
    %6013 = vmatpush1.bf16.msra.mxu0 0
    %6014 = vmatprep.subr.bf16.mxu0 0
    %6015 = vmatpush1.bf16.msra.mxu0 0
    %6016 = vmatprep.subr.bf16.mxu0 0
    %6017 = vmatpush1.bf16.msra.mxu0 0
    %6018 = vmatprep.subr.bf16.mxu0 0
    %6019 = vmatpush1.bf16.msra.mxu0 0
    %6020 = vmatprep.mubr.bf16.mxu0 0
    %6021 = vmatmul.mubr.bf16.gmra.mrb[0].mxu0 %v5986
    %v6022 = vpop.f32.mrb[0].mxu0
    %v6023 = vadd.f32 0.0, %v6022
    %v6024 = vpop.f32.mrb[0].mxu0
    %v6025 = vpop.f32.mrb[0].mxu0
    %v6026 = vadd.f32 0.0, %v6025
    %v6027 = vpop.f32.mrb[0].mxu0
    %6028 = vdwg.mxu0
    %v6030 = vsel %vm761, %v5798, 0
    %6032 = vmatprep.subr.bf16.mxu0 0
    %6033 = vmatpush1.bf16.msra.mxu0 %v5806
    %6034 = vmatprep.subr.bf16.mxu0 0
    %6035 = vmatpush1.bf16.msra.mxu0 0
    %6036 = vmatprep.subr.bf16.mxu0 0
    %6037 = vmatpush1.bf16.msra.mxu0 0
    %6038 = vmatprep.subr.bf16.mxu0 0
    %6039 = vmatpush1.bf16.msra.mxu0 0
    %6040 = vmatprep.subr.bf16.mxu0 0
    %6041 = vmatpush1.bf16.msra.mxu0 0
    %6042 = vmatprep.subr.bf16.mxu0 0
    %6043 = vmatpush1.bf16.msra.mxu0 0
    %6044 = vmatprep.subr.bf16.mxu0 0
    %6045 = vmatpush1.bf16.msra.mxu0 0
    %6046 = vmatprep.subr.bf16.mxu0 0
    %6047 = vmatpush1.bf16.msra.mxu0 0
    %6048 = vmatprep.subr.bf16.mxu0 0
    %6049 = vmatpush1.bf16.msra.mxu0 0
    %6050 = vmatprep.subr.bf16.mxu0 0
    %6051 = vmatpush1.bf16.msra.mxu0 0
    %6052 = vmatprep.subr.bf16.mxu0 0
    %6053 = vmatpush1.bf16.msra.mxu0 0
    %6054 = vmatprep.subr.bf16.mxu0 0
    %6055 = vmatpush1.bf16.msra.mxu0 0
    %6056 = vmatprep.subr.bf16.mxu0 0
    %6057 = vmatpush1.bf16.msra.mxu0 0
    %6058 = vmatprep.subr.bf16.mxu0 0
    %6059 = vmatpush1.bf16.msra.mxu0 0
    %6060 = vmatprep.subr.bf16.mxu0 0
    %6061 = vmatpush1.bf16.msra.mxu0 0
    %6062 = vmatprep.subr.bf16.mxu0 0
    %6063 = vmatpush1.bf16.msra.mxu0 0
    %6064 = vmatprep.mubr.bf16.mxu0 0
    %6065 = vmatmul.mubr.bf16.gmra.mrb[0].mxu0 %v6030
    %v6066 = vpop.f32.mrb[0].mxu0
    %v6067 = vadd.f32 0.0, %v6066
    %v6068 = vpop.f32.mrb[0].mxu0
    %v6069 = vpop.f32.mrb[0].mxu0
    %v6070 = vadd.f32 0.0, %v6069
    %v6071 = vpop.f32.mrb[0].mxu0
    %6072 = vdwg.mxu0
    %v6074 = vsel %vm761, %v5799, 0
    %6076 = vmatprep.subr.bf16.mxu0 0
    %6077 = vmatpush1.bf16.msra.mxu0 %v5807
    %6078 = vmatprep.subr.bf16.mxu0 0
    %6079 = vmatpush1.bf16.msra.mxu0 0
    %6080 = vmatprep.subr.bf16.mxu0 0
    %6081 = vmatpush1.bf16.msra.mxu0 0
    %6082 = vmatprep.subr.bf16.mxu0 0
    %6083 = vmatpush1.bf16.msra.mxu0 0
    %6084 = vmatprep.subr.bf16.mxu0 0
    %6085 = vmatpush1.bf16.msra.mxu0 0
    %6086 = vmatprep.subr.bf16.mxu0 0
    %6087 = vmatpush1.bf16.msra.mxu0 0
    %6088 = vmatprep.subr.bf16.mxu0 0
    %6089 = vmatpush1.bf16.msra.mxu0 0
    %6090 = vmatprep.subr.bf16.mxu0 0
    %6091 = vmatpush1.bf16.msra.mxu0 0
    %6092 = vmatprep.subr.bf16.mxu0 0
    %6093 = vmatpush1.bf16.msra.mxu0 0
    %6094 = vmatprep.subr.bf16.mxu0 0
    %6095 = vmatpush1.bf16.msra.mxu0 0
    %6096 = vmatprep.subr.bf16.mxu0 0
    %6097 = vmatpush1.bf16.msra.mxu0 0
    %6098 = vmatprep.subr.bf16.mxu0 0
    %6099 = vmatpush1.bf16.msra.mxu0 0
    %6100 = vmatprep.subr.bf16.mxu0 0
    %6101 = vmatpush1.bf16.msra.mxu0 0
    %6102 = vmatprep.subr.bf16.mxu0 0
    %6103 = vmatpush1.bf16.msra.mxu0 0
    %6104 = vmatprep.subr.bf16.mxu0 0
    %6105 = vmatpush1.bf16.msra.mxu0 0
    %6106 = vmatprep.subr.bf16.mxu0 0
    %6107 = vmatpush1.bf16.msra.mxu0 0
    %6108 = vmatprep.mubr.bf16.mxu0 0
    %6109 = vmatmul.mubr.bf16.gmra.mrb[0].mxu0 %v6074
    %v6110 = vpop.f32.mrb[0].mxu0
    %v6111 = vadd.f32 0.0, %v6110
    %v6112 = vpop.f32.mrb[0].mxu0
    %v6113 = vpop.f32.mrb[0].mxu0
    %v6114 = vadd.f32 0.0, %v6113
    %v6115 = vpop.f32.mrb[0].mxu0
    %6116 = vdwg.mxu0
    %v6118 = vsel %vm761, %v5800, 0
    %6120 = vmatprep.subr.bf16.mxu0 0
    %6121 = vmatpush1.bf16.msra.mxu0 %v5808
    %6122 = vmatprep.subr.bf16.mxu0 0
    %6123 = vmatpush1.bf16.msra.mxu0 0
    %6124 = vmatprep.subr.bf16.mxu0 0
    %6125 = vmatpush1.bf16.msra.mxu0 0
    %6126 = vmatprep.subr.bf16.mxu0 0
    %6127 = vmatpush1.bf16.msra.mxu0 0
    %6128 = vmatprep.subr.bf16.mxu0 0
    %6129 = vmatpush1.bf16.msra.mxu0 0
    %6130 = vmatprep.subr.bf16.mxu0 0
    %6131 = vmatpush1.bf16.msra.mxu0 0
    %6132 = vmatprep.subr.bf16.mxu0 0
    %6133 = vmatpush1.bf16.msra.mxu0 0
    %6134 = vmatprep.subr.bf16.mxu0 0
    %6135 = vmatpush1.bf16.msra.mxu0 0
    %6136 = vmatprep.subr.bf16.mxu0 0
    %6137 = vmatpush1.bf16.msra.mxu0 0
    %6138 = vmatprep.subr.bf16.mxu0 0
    %6139 = vmatpush1.bf16.msra.mxu0 0
    %6140 = vmatprep.subr.bf16.mxu0 0
    %6141 = vmatpush1.bf16.msra.mxu0 0
    %6142 = vmatprep.subr.bf16.mxu0 0
    %6143 = vmatpush1.bf16.msra.mxu0 0
    %6144 = vmatprep.subr.bf16.mxu0 0
    %6145 = vmatpush1.bf16.msra.mxu0 0
    %6146 = vmatprep.subr.bf16.mxu0 0
    %6147 = vmatpush1.bf16.msra.mxu0 0
    %6148 = vmatprep.subr.bf16.mxu0 0
    %6149 = vmatpush1.bf16.msra.mxu0 0
    %6150 = vmatprep.subr.bf16.mxu0 0
    %6151 = vmatpush1.bf16.msra.mxu0 0
    %6152 = vmatprep.mubr.bf16.mxu0 0
    %6153 = vmatmul.mubr.bf16.gmra.mrb[0].mxu0 %v6118
    %v6154 = vpop.f32.mrb[0].mxu0
    %v6155 = vadd.f32 0.0, %v6154
    %v6156 = vpop.f32.mrb[0].mxu0
    %v6157 = vpop.f32.mrb[0].mxu0
    %v6158 = vadd.f32 0.0, %v6157
    %v6159 = vpop.f32.mrb[0].mxu0
    %6160 = vdwg.mxu0
    %v6161 = vpack.c.bf16 %v5850, %v5847
    %v6162 = vpack.c.bf16 %v5894, %v5891
    %v6163 = vpack.c.bf16 %v5938, %v5935
    %v6164 = vpack.c.bf16 %v5982, %v5979
    %v6165 = vpack.c.bf16 %v6026, %v6023
    %v6166 = vpack.c.bf16 %v6070, %v6067
    %v6167 = vpack.c.bf16 %v6114, %v6111
    %v6168 = vpack.c.bf16 %v6158, %v6155
    %s6169 = scalar_lea.vmem %s9, 24
    %v6170 = vld [vmem:[%s6169] sm:$0xf]
    %v6171 = vld [vmem:[%s6169 + $0x4] sm:$0xf]
    %v6174 = vunpack.c.l.b16 %v6170
    %v6175 = vunpack.c.l.b16 %v6171
    %v6176 = vpack.c.b16 %v6175, %v6174
    %v6179 = vsel %vm761, %v6161, 0
    %v6182 = vsel %vm761, %v6162, 0
    %v6185 = vsel %vm761, %v6163, 0
    %v6188 = vsel %vm761, %v6164, 0
    %v6191 = vsel %vm761, %v6165, 0
    %v6194 = vsel %vm761, %v6166, 0
    %v6197 = vsel %vm761, %v6167, 0
    %v6200 = vsel %vm761, %v6168, 0
    %6202 = vmatprep.subr.bf16.mxu0 0
    %6203 = vmatpush1.bf16.msra.mxu0 %v6176
    %6204 = vmatprep.subr.bf16.mxu0 0
    %6205 = vmatpush1.bf16.msra.mxu0 0
    %6206 = vmatprep.subr.bf16.mxu0 0
    %6207 = vmatpush1.bf16.msra.mxu0 0
    %6208 = vmatprep.subr.bf16.mxu0 0
    %6209 = vmatpush1.bf16.msra.mxu0 0
    %6210 = vmatprep.subr.bf16.mxu0 0
    %6211 = vmatpush1.bf16.msra.mxu0 0
    %6212 = vmatprep.subr.bf16.mxu0 0
    %6213 = vmatpush1.bf16.msra.mxu0 0
    %6214 = vmatprep.subr.bf16.mxu0 0
    %6215 = vmatpush1.bf16.msra.mxu0 0
    %6216 = vmatprep.subr.bf16.mxu0 0
    %6217 = vmatpush1.bf16.msra.mxu0 0
    %6218 = vmatprep.subr.bf16.mxu0 0
    %6219 = vmatpush1.bf16.msra.mxu0 0
    %6220 = vmatprep.subr.bf16.mxu0 0
    %6221 = vmatpush1.bf16.msra.mxu0 0
    %6222 = vmatprep.subr.bf16.mxu0 0
    %6223 = vmatpush1.bf16.msra.mxu0 0
    %6224 = vmatprep.subr.bf16.mxu0 0
    %6225 = vmatpush1.bf16.msra.mxu0 0
    %6226 = vmatprep.subr.bf16.mxu0 0
    %6227 = vmatpush1.bf16.msra.mxu0 0
    %6228 = vmatprep.subr.bf16.mxu0 0
    %6229 = vmatpush1.bf16.msra.mxu0 0
    %6230 = vmatprep.subr.bf16.mxu0 0
    %6231 = vmatpush1.bf16.msra.mxu0 0
    %6232 = vmatprep.subr.bf16.mxu0 0
    %6233 = vmatpush1.bf16.msra.mxu0 0
    %6234 = vmatprep.mubr.bf16.mxu0 0
    %6235 = vmatmul.mubr.bf16.gmra.mrb[0].mxu0 %v6179
    %v6236 = vpop.f32.mrb[0].mxu0
    %v6237 = vadd.f32 0.0, %v6236
    %v6238 = vpop.f32.mrb[0].mxu0
    %v6239 = vpop.f32.mrb[0].mxu0
    %v6240 = vadd.f32 0.0, %v6239
    %v6241 = vpop.f32.mrb[0].mxu0
    %6242 = vmatprep.mubr.bf16.mxu0 0
    %6243 = vmatmul.mubr.bf16.gmra.mrb[0].mxu0 %v6182
    %v6244 = vpop.f32.mrb[0].mxu0
    %v6245 = vadd.f32 0.0, %v6244
    %v6246 = vpop.f32.mrb[0].mxu0
    %v6247 = vpop.f32.mrb[0].mxu0
    %v6248 = vadd.f32 0.0, %v6247
    %v6249 = vpop.f32.mrb[0].mxu0
    %6250 = vmatprep.mubr.bf16.mxu0 0
    %6251 = vmatmul.mubr.bf16.gmra.mrb[0].mxu0 %v6185
    %v6252 = vpop.f32.mrb[0].mxu0
    %v6253 = vadd.f32 0.0, %v6252
    %v6254 = vpop.f32.mrb[0].mxu0
    %v6255 = vpop.f32.mrb[0].mxu0
    %v6256 = vadd.f32 0.0, %v6255
    %v6257 = vpop.f32.mrb[0].mxu0
    %6258 = vmatprep.mubr.bf16.mxu0 0
    %6259 = vmatmul.mubr.bf16.gmra.mrb[0].mxu0 %v6188
    %v6260 = vpop.f32.mrb[0].mxu0
    %v6261 = vadd.f32 0.0, %v6260
    %v6262 = vpop.f32.mrb[0].mxu0
    %v6263 = vpop.f32.mrb[0].mxu0
    %v6264 = vadd.f32 0.0, %v6263
    %v6265 = vpop.f32.mrb[0].mxu0
    %6266 = vmatprep.mubr.bf16.mxu0 0
    %6267 = vmatmul.mubr.bf16.gmra.mrb[0].mxu0 %v6191
    %v6268 = vpop.f32.mrb[0].mxu0
    %v6269 = vadd.f32 0.0, %v6268
    %v6270 = vpop.f32.mrb[0].mxu0
    %v6271 = vpop.f32.mrb[0].mxu0
    %v6272 = vadd.f32 0.0, %v6271
    %v6273 = vpop.f32.mrb[0].mxu0
    %6274 = vmatprep.mubr.bf16.mxu0 0
    %6275 = vmatmul.mubr.bf16.gmra.mrb[0].mxu0 %v6194
    %v6276 = vpop.f32.mrb[0].mxu0
    %v6277 = vadd.f32 0.0, %v6276
    %v6278 = vpop.f32.mrb[0].mxu0
    %v6279 = vpop.f32.mrb[0].mxu0
    %v6280 = vadd.f32 0.0, %v6279
    %v6281 = vpop.f32.mrb[0].mxu0
    %6282 = vmatprep.mubr.bf16.mxu0 0
    %6283 = vmatmul.mubr.bf16.gmra.mrb[0].mxu0 %v6197
    %v6284 = vpop.f32.mrb[0].mxu0
    %v6285 = vadd.f32 0.0, %v6284
    %v6286 = vpop.f32.mrb[0].mxu0
    %v6287 = vpop.f32.mrb[0].mxu0
    %v6288 = vadd.f32 0.0, %v6287
    %v6289 = vpop.f32.mrb[0].mxu0
    %6290 = vmatprep.mubr.bf16.mxu0 0
    %6291 = vmatmul.mubr.bf16.gmra.mrb[0].mxu0 %v6200
    %v6292 = vpop.f32.mrb[0].mxu0
    %v6293 = vadd.f32 0.0, %v6292
    %v6294 = vpop.f32.mrb[0].mxu0
    %v6295 = vpop.f32.mrb[0].mxu0
    %v6296 = vadd.f32 0.0, %v6295
    %v6297 = vpop.f32.mrb[0].mxu0
    %6298 = vdwg.mxu0
    %v6299 = vadd.f32 %v4795, %v6237
    %v6300 = vadd.f32 %v4796, %v6240
    %v6301 = vadd.f32 %v4797, %v6245
    %v6302 = vadd.f32 %v4798, %v6248
    %v6303 = vadd.f32 %v4799, %v6253
    %v6304 = vadd.f32 %v4800, %v6256
    %v6305 = vadd.f32 %v4801, %v6261
    %v6306 = vadd.f32 %v4802, %v6264
    %v6307 = vadd.f32 %v4803, %v6269
    %v6308 = vadd.f32 %v4804, %v6272
    %v6309 = vadd.f32 %v4805, %v6277
    %v6310 = vadd.f32 %v4806, %v6280
    %v6311 = vadd.f32 %v4807, %v6285
    %v6312 = vadd.f32 %v4808, %v6288
    %v6313 = vadd.f32 %v4809, %v6293
    %v6314 = vadd.f32 %v4810, %v6296
    %v6315 = vld [vmem:[%s10] sm:$0x1]
    %v6317 = vlaneseq
    %v6318 = vshrl.u32 %v6317, 7
    %v6319 = vsub.s32 0, %v6318
    %v6320 = vrot.slane %v6315, %v6319
    %v6322 = vadd.f32 %v6299, %v6320
    %v6323 = vadd.f32 %v6300, %v6320
    %v6324 = vadd.f32 %v6301, %v6320
    %v6325 = vadd.f32 %v6302, %v6320
    %v6326 = vadd.f32 %v6303, %v6320
    %v6327 = vadd.f32 %v6304, %v6320
    %v6328 = vadd.f32 %v6305, %v6320
    %v6329 = vadd.f32 %v6306, %v6320
    %v6330 = vadd.f32 %v6307, %v6320
    %v6331 = vadd.f32 %v6308, %v6320
    %v6332 = vadd.f32 %v6309, %v6320
    %v6333 = vadd.f32 %v6310, %v6320
    %v6334 = vadd.f32 %v6311, %v6320
    %v6335 = vadd.f32 %v6312, %v6320
    %v6336 = vadd.f32 %v6313, %v6320
    %v6337 = vadd.f32 %v6314, %v6320
    %v6338 = vadd.f32 %v288, %v6322
    %v6339 = vadd.f32 %v289, %v6323
    %v6340 = vadd.f32 %v290, %v6324
    %v6341 = vadd.f32 %v291, %v6325
    %v6342 = vadd.f32 %v292, %v6326
    %v6343 = vadd.f32 %v293, %v6327
    %v6344 = vadd.f32 %v294, %v6328
    %v6345 = vadd.f32 %v295, %v6329
    %v6346 = vadd.f32 %v296, %v6330
    %v6347 = vadd.f32 %v297, %v6331
    %v6348 = vadd.f32 %v298, %v6332
    %v6349 = vadd.f32 %v299, %v6333
    %v6350 = vadd.f32 %v300, %v6334
    %v6351 = vadd.f32 %v301, %v6335
    %v6352 = vadd.f32 %v302, %v6336
    %v6353 = vadd.f32 %v303, %v6337
    %v6354 = vsel %vm351, %v6338, 0.0
    %6355 = vadd.xlane.f32.xlu0 %v6354
    %v6356 = vpop.xlane.xlu0 %6355
    %v6357 = vsel %vm351, %v6339, 0.0
    %6358 = vadd.xlane.f32.xlu0 %v6357
    %v6359 = vpop.xlane.xlu0 %6358
    %v6360 = vsel %vm351, %v6340, 0.0
    %6361 = vadd.xlane.f32.xlu0 %v6360
    %v6362 = vpop.xlane.xlu0 %6361
    %v6363 = vsel %vm351, %v6341, 0.0
    %6364 = vadd.xlane.f32.xlu0 %v6363
    %v6365 = vpop.xlane.xlu0 %6364
    %v6366 = vsel %vm351, %v6342, 0.0
    %6367 = vadd.xlane.f32.xlu0 %v6366
    %v6368 = vpop.xlane.xlu0 %6367
    %v6369 = vsel %vm351, %v6343, 0.0
    %6370 = vadd.xlane.f32.xlu0 %v6369
    %v6371 = vpop.xlane.xlu0 %6370
    %v6372 = vsel %vm351, %v6344, 0.0
    %6373 = vadd.xlane.f32.xlu0 %v6372
    %v6374 = vpop.xlane.xlu0 %6373
    %v6375 = vsel %vm351, %v6345, 0.0
    %6376 = vadd.xlane.f32.xlu0 %v6375
    %v6377 = vpop.xlane.xlu0 %6376
    %v6378 = vsel %vm351, %v6346, 0.0
    %6379 = vadd.xlane.f32.xlu0 %v6378
    %v6380 = vpop.xlane.xlu0 %6379
    %v6381 = vsel %vm351, %v6347, 0.0
    %6382 = vadd.xlane.f32.xlu0 %v6381
    %v6383 = vpop.xlane.xlu0 %6382
    %v6384 = vsel %vm351, %v6348, 0.0
    %6385 = vadd.xlane.f32.xlu0 %v6384
    %v6386 = vpop.xlane.xlu0 %6385
    %v6387 = vsel %vm351, %v6349, 0.0
    %6388 = vadd.xlane.f32.xlu0 %v6387
    %v6389 = vpop.xlane.xlu0 %6388
    %v6390 = vsel %vm351, %v6350, 0.0
    %6391 = vadd.xlane.f32.xlu0 %v6390
    %v6392 = vpop.xlane.xlu0 %6391
    %v6393 = vsel %vm351, %v6351, 0.0
    %6394 = vadd.xlane.f32.xlu0 %v6393
    %v6395 = vpop.xlane.xlu0 %6394
    %v6396 = vsel %vm351, %v6352, 0.0
    %6397 = vadd.xlane.f32.xlu0 %v6396
    %v6398 = vpop.xlane.xlu0 %6397
    %v6399 = vsel %vm351, %v6353, 0.0
    %6400 = vadd.xlane.f32.xlu0 %v6399
    %v6401 = vpop.xlane.xlu0 %6400
    %v6402 = vrcp.pop 64.0
    %v6403 = vmul.f32 %v6356, %v6402
    %v6404 = vmul.f32 %v6359, %v6402
    %v6405 = vmul.f32 %v6362, %v6402
    %v6406 = vmul.f32 %v6365, %v6402
    %v6407 = vmul.f32 %v6368, %v6402
    %v6408 = vmul.f32 %v6371, %v6402
    %v6409 = vmul.f32 %v6374, %v6402
    %v6410 = vmul.f32 %v6377, %v6402
    %v6411 = vmul.f32 %v6380, %v6402
    %v6412 = vmul.f32 %v6383, %v6402
    %v6413 = vmul.f32 %v6386, %v6402
    %v6414 = vmul.f32 %v6389, %v6402
    %v6415 = vmul.f32 %v6392, %v6402
    %v6416 = vmul.f32 %v6395, %v6402
    %v6417 = vmul.f32 %v6398, %v6402
    %v6418 = vmul.f32 %v6401, %v6402
    %v6419 = vsub.f32 %v6338, %v6403
    %v6420 = vsub.f32 %v6339, %v6404
    %v6421 = vsub.f32 %v6340, %v6405
    %v6422 = vsub.f32 %v6341, %v6406
    %v6423 = vsub.f32 %v6342, %v6407
    %v6424 = vsub.f32 %v6343, %v6408
    %v6425 = vsub.f32 %v6344, %v6409
    %v6426 = vsub.f32 %v6345, %v6410
    %v6427 = vsub.f32 %v6346, %v6411
    %v6428 = vsub.f32 %v6347, %v6412
    %v6429 = vsub.f32 %v6348, %v6413
    %v6430 = vsub.f32 %v6349, %v6414
    %v6431 = vsub.f32 %v6350, %v6415
    %v6432 = vsub.f32 %v6351, %v6416
    %v6433 = vsub.f32 %v6352, %v6417
    %v6434 = vsub.f32 %v6353, %v6418
    %v6435 = vmul.f32 %v6419, %v6419
    %v6436 = vmul.f32 %v6420, %v6420
    %v6437 = vmul.f32 %v6421, %v6421
    %v6438 = vmul.f32 %v6422, %v6422
    %v6439 = vmul.f32 %v6423, %v6423
    %v6440 = vmul.f32 %v6424, %v6424
    %v6441 = vmul.f32 %v6425, %v6425
    %v6442 = vmul.f32 %v6426, %v6426
    %v6443 = vmul.f32 %v6427, %v6427
    %v6444 = vmul.f32 %v6428, %v6428
    %v6445 = vmul.f32 %v6429, %v6429
    %v6446 = vmul.f32 %v6430, %v6430
    %v6447 = vmul.f32 %v6431, %v6431
    %v6448 = vmul.f32 %v6432, %v6432
    %v6449 = vmul.f32 %v6433, %v6433
    %v6450 = vmul.f32 %v6434, %v6434
    %v6451 = vsel %vm351, %v6435, 0.0
    %6452 = vadd.xlane.f32.xlu0 %v6451
    %v6453 = vpop.xlane.xlu0 %6452
    %v6454 = vsel %vm351, %v6436, 0.0
    %6455 = vadd.xlane.f32.xlu0 %v6454
    %v6456 = vpop.xlane.xlu0 %6455
    %v6457 = vsel %vm351, %v6437, 0.0
    %6458 = vadd.xlane.f32.xlu0 %v6457
    %v6459 = vpop.xlane.xlu0 %6458
    %v6460 = vsel %vm351, %v6438, 0.0
    %6461 = vadd.xlane.f32.xlu0 %v6460
    %v6462 = vpop.xlane.xlu0 %6461
    %v6463 = vsel %vm351, %v6439, 0.0
    %6464 = vadd.xlane.f32.xlu0 %v6463
    %v6465 = vpop.xlane.xlu0 %6464
    %v6466 = vsel %vm351, %v6440, 0.0
    %6467 = vadd.xlane.f32.xlu0 %v6466
    %v6468 = vpop.xlane.xlu0 %6467
    %v6469 = vsel %vm351, %v6441, 0.0
    %6470 = vadd.xlane.f32.xlu0 %v6469
    %v6471 = vpop.xlane.xlu0 %6470
    %v6472 = vsel %vm351, %v6442, 0.0
    %6473 = vadd.xlane.f32.xlu0 %v6472
    %v6474 = vpop.xlane.xlu0 %6473
    %v6475 = vsel %vm351, %v6443, 0.0
    %6476 = vadd.xlane.f32.xlu0 %v6475
    %v6477 = vpop.xlane.xlu0 %6476
    %v6478 = vsel %vm351, %v6444, 0.0
    %6479 = vadd.xlane.f32.xlu0 %v6478
    %v6480 = vpop.xlane.xlu0 %6479
    %v6481 = vsel %vm351, %v6445, 0.0
    %6482 = vadd.xlane.f32.xlu0 %v6481
    %v6483 = vpop.xlane.xlu0 %6482
    %v6484 = vsel %vm351, %v6446, 0.0
    %6485 = vadd.xlane.f32.xlu0 %v6484
    %v6486 = vpop.xlane.xlu0 %6485
    %v6487 = vsel %vm351, %v6447, 0.0
    %6488 = vadd.xlane.f32.xlu0 %v6487
    %v6489 = vpop.xlane.xlu0 %6488
    %v6490 = vsel %vm351, %v6448, 0.0
    %6491 = vadd.xlane.f32.xlu0 %v6490
    %v6492 = vpop.xlane.xlu0 %6491
    %v6493 = vsel %vm351, %v6449, 0.0
    %6494 = vadd.xlane.f32.xlu0 %v6493
    %v6495 = vpop.xlane.xlu0 %6494
    %v6496 = vsel %vm351, %v6450, 0.0
    %6497 = vadd.xlane.f32.xlu0 %v6496
    %v6498 = vpop.xlane.xlu0 %6497
    %v6499 = vmul.f32 %v6453, %v6402
    %v6500 = vmul.f32 %v6456, %v6402
    %v6501 = vmul.f32 %v6459, %v6402
    %v6502 = vmul.f32 %v6462, %v6402
    %v6503 = vmul.f32 %v6465, %v6402
    %v6504 = vmul.f32 %v6468, %v6402
    %v6505 = vmul.f32 %v6471, %v6402
    %v6506 = vmul.f32 %v6474, %v6402
    %v6507 = vmul.f32 %v6477, %v6402
    %v6508 = vmul.f32 %v6480, %v6402
    %v6509 = vmul.f32 %v6483, %v6402
    %v6510 = vmul.f32 %v6486, %v6402
    %v6511 = vmul.f32 %v6489, %v6402
    %v6512 = vmul.f32 %v6492, %v6402
    %v6513 = vmul.f32 %v6495, %v6402
    %v6514 = vmul.f32 %v6498, %v6402
    %v6515 = vadd.f32 %v6499, 1e-05
    %v6516 = vadd.f32 %v6500, 1e-05
    %v6517 = vadd.f32 %v6501, 1e-05
    %v6518 = vadd.f32 %v6502, 1e-05
    %v6519 = vadd.f32 %v6503, 1e-05
    %v6520 = vadd.f32 %v6504, 1e-05
    %v6521 = vadd.f32 %v6505, 1e-05
    %v6522 = vadd.f32 %v6506, 1e-05
    %v6523 = vadd.f32 %v6507, 1e-05
    %v6524 = vadd.f32 %v6508, 1e-05
    %v6525 = vadd.f32 %v6509, 1e-05
    %v6526 = vadd.f32 %v6510, 1e-05
    %v6527 = vadd.f32 %v6511, 1e-05
    %v6528 = vadd.f32 %v6512, 1e-05
    %v6529 = vadd.f32 %v6513, 1e-05
    %v6530 = vadd.f32 %v6514, 1e-05
    %v6531 = vrsqrt.pop %v6515
    %v6532 = vrsqrt.pop %v6516
    %v6533 = vrsqrt.pop %v6517
    %v6534 = vrsqrt.pop %v6518
    %v6535 = vrsqrt.pop %v6519
    %v6536 = vrsqrt.pop %v6520
    %v6537 = vrsqrt.pop %v6521
    %v6538 = vrsqrt.pop %v6522
    %v6539 = vrsqrt.pop %v6523
    %v6540 = vrsqrt.pop %v6524
    %v6541 = vrsqrt.pop %v6525
    %v6542 = vrsqrt.pop %v6526
    %v6543 = vrsqrt.pop %v6527
    %v6544 = vrsqrt.pop %v6528
    %v6545 = vrsqrt.pop %v6529
    %v6546 = vrsqrt.pop %v6530
    %v6547 = vmul.f32 %v6419, %v6531
    %v6548 = vmul.f32 %v6420, %v6532
    %v6549 = vmul.f32 %v6421, %v6533
    %v6550 = vmul.f32 %v6422, %v6534
    %v6551 = vmul.f32 %v6423, %v6535
    %v6552 = vmul.f32 %v6424, %v6536
    %v6553 = vmul.f32 %v6425, %v6537
    %v6554 = vmul.f32 %v6426, %v6538
    %v6555 = vmul.f32 %v6427, %v6539
    %v6556 = vmul.f32 %v6428, %v6540
    %v6557 = vmul.f32 %v6429, %v6541
    %v6558 = vmul.f32 %v6430, %v6542
    %v6559 = vmul.f32 %v6431, %v6543
    %v6560 = vmul.f32 %v6432, %v6544
    %v6561 = vmul.f32 %v6433, %v6545
    %v6562 = vmul.f32 %v6434, %v6546
    %v6563 = vld [vmem:[%s11] sm:$0x1]
    %v6565 = vlaneseq
    %v6566 = vshrl.u32 %v6565, 7
    %v6567 = vsub.s32 0, %v6566
    %v6568 = vrot.slane %v6563, %v6567
    %v6570 = vmul.f32 %v6547, %v6568
    %v6571 = vmul.f32 %v6548, %v6568
    %v6572 = vmul.f32 %v6549, %v6568
    %v6573 = vmul.f32 %v6550, %v6568
    %v6574 = vmul.f32 %v6551, %v6568
    %v6575 = vmul.f32 %v6552, %v6568
    %v6576 = vmul.f32 %v6553, %v6568
    %v6577 = vmul.f32 %v6554, %v6568
    %v6578 = vmul.f32 %v6555, %v6568
    %v6579 = vmul.f32 %v6556, %v6568
    %v6580 = vmul.f32 %v6557, %v6568
    %v6581 = vmul.f32 %v6558, %v6568
    %v6582 = vmul.f32 %v6559, %v6568
    %v6583 = vmul.f32 %v6560, %v6568
    %v6584 = vmul.f32 %v6561, %v6568
    %v6585 = vmul.f32 %v6562, %v6568
    %v6586 = vld [vmem:[%s12] sm:$0x1]
    %v6588 = vlaneseq
    %v6589 = vshrl.u32 %v6588, 7
    %v6590 = vsub.s32 0, %v6589
    %v6591 = vrot.slane %v6586, %v6590
    %v6593 = vadd.f32 %v6570, %v6591
    %v6594 = vadd.f32 %v6571, %v6591
    %v6595 = vadd.f32 %v6572, %v6591
    %v6596 = vadd.f32 %v6573, %v6591
    %v6597 = vadd.f32 %v6574, %v6591
    %v6598 = vadd.f32 %v6575, %v6591
    %v6599 = vadd.f32 %v6576, %v6591
    %v6600 = vadd.f32 %v6577, %v6591
    %v6601 = vadd.f32 %v6578, %v6591
    %v6602 = vadd.f32 %v6579, %v6591
    %v6603 = vadd.f32 %v6580, %v6591
    %v6604 = vadd.f32 %v6581, %v6591
    %v6605 = vadd.f32 %v6582, %v6591
    %v6606 = vadd.f32 %v6583, %v6591
    %v6607 = vadd.f32 %v6584, %v6591
    %v6608 = vadd.f32 %v6585, %v6591
    %v6609 = vpack.c.bf16 %v6594, %v6593
    %v6610 = vpack.c.bf16 %v6596, %v6595
    %v6611 = vpack.c.bf16 %v6598, %v6597
    %v6612 = vpack.c.bf16 %v6600, %v6599
    %v6613 = vpack.c.bf16 %v6602, %v6601
    %v6614 = vpack.c.bf16 %v6604, %v6603
    %v6615 = vpack.c.bf16 %v6606, %v6605
    %v6616 = vpack.c.bf16 %v6608, %v6607
    %v6617 = vld [vmem:[%s13] sm:$0xff]
    %v6618 = vld [vmem:[%s13 + $0x8] sm:$0xff]
    %v6619 = vld [vmem:[%s13 + $0x10] sm:$0xff]
    %v6620 = vld [vmem:[%s13 + $0x18] sm:$0xff]
    %v6621 = vld [vmem:[%s13 + $0x20] sm:$0xff]
    %v6622 = vld [vmem:[%s13 + $0x28] sm:$0xff]
    %v6623 = vld [vmem:[%s13 + $0x30] sm:$0xff]
    %v6624 = vld [vmem:[%s13 + $0x38] sm:$0xff]
    %v6625 = vld [vmem:[%s13 + $0x40] sm:$0xff]
    %v6626 = vld [vmem:[%s13 + $0x48] sm:$0xff]
    %v6627 = vld [vmem:[%s13 + $0x50] sm:$0xff]
    %v6628 = vld [vmem:[%s13 + $0x58] sm:$0xff]
    %v6629 = vld [vmem:[%s13 + $0x60] sm:$0xff]
    %v6630 = vld [vmem:[%s13 + $0x68] sm:$0xff]
    %v6631 = vld [vmem:[%s13 + $0x70] sm:$0xff]
    %v6632 = vld [vmem:[%s13 + $0x78] sm:$0xff]
    %v6633 = vld [vmem:[%s13 + $0x80] sm:$0xff]
    %v6634 = vld [vmem:[%s13 + $0x88] sm:$0xff]
    %v6635 = vld [vmem:[%s13 + $0x90] sm:$0xff]
    %v6636 = vld [vmem:[%s13 + $0x98] sm:$0xff]
    %v6637 = vld [vmem:[%s13 + $0xa0] sm:$0xff]
    %v6638 = vld [vmem:[%s13 + $0xa8] sm:$0xff]
    %v6639 = vld [vmem:[%s13 + $0xb0] sm:$0xff]
    %v6640 = vld [vmem:[%s13 + $0xb8] sm:$0xff]
    %v6641 = vld [vmem:[%s13 + $0xc0] sm:$0xff]
    %v6642 = vld [vmem:[%s13 + $0xc8] sm:$0xff]
    %v6643 = vld [vmem:[%s13 + $0xd0] sm:$0xff]
    %v6644 = vld [vmem:[%s13 + $0xd8] sm:$0xff]
    %v6645 = vld [vmem:[%s13 + $0xe0] sm:$0xff]
    %v6646 = vld [vmem:[%s13 + $0xe8] sm:$0xff]
    %v6647 = vld [vmem:[%s13 + $0xf0] sm:$0xff]
    %v6648 = vld [vmem:[%s13 + $0xf8] sm:$0xff]
    %v6649 = vld [vmem:[%s13 + $0x100] sm:$0xff]
    %v6650 = vld [vmem:[%s13 + $0x108] sm:$0xff]
    %v6651 = vld [vmem:[%s13 + $0x110] sm:$0xff]
    %v6652 = vld [vmem:[%s13 + $0x118] sm:$0xff]
    %v6653 = vld [vmem:[%s13 + $0x120] sm:$0xff]
    %v6654 = vld [vmem:[%s13 + $0x128] sm:$0xff]
    %v6655 = vld [vmem:[%s13 + $0x130] sm:$0xff]
    %v6656 = vld [vmem:[%s13 + $0x138] sm:$0xff]
    %v6657 = vld [vmem:[%s13 + $0x140] sm:$0xff]
    %v6658 = vld [vmem:[%s13 + $0x148] sm:$0xff]
    %v6659 = vld [vmem:[%s13 + $0x150] sm:$0xff]
    %v6660 = vld [vmem:[%s13 + $0x158] sm:$0xff]
    %v6661 = vld [vmem:[%s13 + $0x160] sm:$0xff]
    %v6662 = vld [vmem:[%s13 + $0x168] sm:$0xff]
    %v6663 = vld [vmem:[%s13 + $0x170] sm:$0xff]
    %v6664 = vld [vmem:[%s13 + $0x178] sm:$0xff]
    %v6665 = vld [vmem:[%s13 + $0x180] sm:$0xff]
    %v6666 = vld [vmem:[%s13 + $0x188] sm:$0xff]
    %v6667 = vld [vmem:[%s13 + $0x190] sm:$0xff]
    %v6668 = vld [vmem:[%s13 + $0x198] sm:$0xff]
    %v6669 = vld [vmem:[%s13 + $0x1a0] sm:$0xff]
    %v6670 = vld [vmem:[%s13 + $0x1a8] sm:$0xff]
    %v6671 = vld [vmem:[%s13 + $0x1b0] sm:$0xff]
    %v6672 = vld [vmem:[%s13 + $0x1b8] sm:$0xff]
    %v6673 = vld [vmem:[%s13 + $0x1c0] sm:$0xff]
    %v6674 = vld [vmem:[%s13 + $0x1c8] sm:$0xff]
    %v6675 = vld [vmem:[%s13 + $0x1d0] sm:$0xff]
    %v6676 = vld [vmem:[%s13 + $0x1d8] sm:$0xff]
    %v6677 = vld [vmem:[%s13 + $0x1e0] sm:$0xff]
    %v6678 = vld [vmem:[%s13 + $0x1e8] sm:$0xff]
    %v6679 = vld [vmem:[%s13 + $0x1f0] sm:$0xff]
    %v6680 = vld [vmem:[%s13 + $0x1f8] sm:$0xff]
    %v6681 = vld [vmem:[%s14] sm:$0xff]
    %v6682 = vld [vmem:[%s14 + $0x8] sm:$0xff]
    %v6685 = vlaneseq
    %v6686 = vshrl.u32 %v6685, 7
    %v6687 = vsub.s32 0, %v6686
    %v6688 = vrot.slane %v6681, %v6687
    %v6689 = vlaneseq
    %v6690 = vshrl.u32 %v6689, 7
    %v6691 = vsub.s32 1, %v6690
    %v6692 = vrot.slane %v6681, %v6691
    %v6693 = vlaneseq
    %v6694 = vshrl.u32 %v6693, 7
    %v6695 = vsub.s32 2, %v6694
    %v6696 = vrot.slane %v6681, %v6695
    %v6697 = vlaneseq
    %v6698 = vshrl.u32 %v6697, 7
    %v6699 = vsub.s32 3, %v6698
    %v6700 = vrot.slane %v6681, %v6699
    %v6701 = vlaneseq
    %v6702 = vshrl.u32 %v6701, 7
    %v6703 = vsub.s32 4, %v6702
    %v6704 = vrot.slane %v6681, %v6703
    %v6705 = vlaneseq
    %v6706 = vshrl.u32 %v6705, 7
    %v6707 = vsub.s32 5, %v6706
    %v6708 = vrot.slane %v6681, %v6707
    %v6709 = vlaneseq
    %v6710 = vshrl.u32 %v6709, 7
    %v6711 = vsub.s32 6, %v6710
    %v6712 = vrot.slane %v6681, %v6711
    %v6713 = vlaneseq
    %v6714 = vshrl.u32 %v6713, 7
    %v6715 = vsub.s32 7, %v6714
    %v6716 = vrot.slane %v6681, %v6715
    %v6717 = vlaneseq
    %v6718 = vshrl.u32 %v6717, 7
    %v6719 = vsub.s32 0, %v6718
    %v6720 = vrot.slane %v6682, %v6719
    %v6721 = vlaneseq
    %v6722 = vshrl.u32 %v6721, 7
    %v6723 = vsub.s32 1, %v6722
    %v6724 = vrot.slane %v6682, %v6723
    %v6725 = vlaneseq
    %v6726 = vshrl.u32 %v6725, 7
    %v6727 = vsub.s32 2, %v6726
    %v6728 = vrot.slane %v6682, %v6727
    %v6729 = vlaneseq
    %v6730 = vshrl.u32 %v6729, 7
    %v6731 = vsub.s32 3, %v6730
    %v6732 = vrot.slane %v6682, %v6731
    %v6733 = vlaneseq
    %v6734 = vshrl.u32 %v6733, 7
    %v6735 = vsub.s32 4, %v6734
    %v6736 = vrot.slane %v6682, %v6735
    %v6737 = vlaneseq
    %v6738 = vshrl.u32 %v6737, 7
    %v6739 = vsub.s32 5, %v6738
    %v6740 = vrot.slane %v6682, %v6739
    %v6741 = vlaneseq
    %v6742 = vshrl.u32 %v6741, 7
    %v6743 = vsub.s32 6, %v6742
    %v6744 = vrot.slane %v6682, %v6743
    %v6745 = vlaneseq
    %v6746 = vshrl.u32 %v6745, 7
    %v6747 = vsub.s32 7, %v6746
    %v6748 = vrot.slane %v6682, %v6747
    %v6829 = vunpack.c.l.b16 %v6617
    %v6830 = vunpack.c.h.b16 %v6617
    %v6831 = vunpack.c.l.b16 %v6618
    %v6832 = vunpack.c.h.b16 %v6618
    %v6833 = vunpack.c.l.b16 %v6619
    %v6834 = vunpack.c.h.b16 %v6619
    %v6835 = vunpack.c.l.b16 %v6620
    %v6836 = vunpack.c.h.b16 %v6620
    %v6837 = vunpack.c.l.b16 %v6621
    %v6838 = vunpack.c.h.b16 %v6621
    %v6839 = vunpack.c.l.b16 %v6622
    %v6840 = vunpack.c.h.b16 %v6622
    %v6841 = vunpack.c.l.b16 %v6623
    %v6842 = vunpack.c.h.b16 %v6623
    %v6843 = vunpack.c.l.b16 %v6624
    %v6844 = vunpack.c.h.b16 %v6624
    %v6845 = vunpack.c.l.b16 %v6625
    %v6846 = vunpack.c.h.b16 %v6625
    %v6847 = vunpack.c.l.b16 %v6626
    %v6848 = vunpack.c.h.b16 %v6626
    %v6849 = vunpack.c.l.b16 %v6627
    %v6850 = vunpack.c.h.b16 %v6627
    %v6851 = vunpack.c.l.b16 %v6628
    %v6852 = vunpack.c.h.b16 %v6628
    %v6853 = vunpack.c.l.b16 %v6629
    %v6854 = vunpack.c.h.b16 %v6629
    %v6855 = vunpack.c.l.b16 %v6630
    %v6856 = vunpack.c.h.b16 %v6630
    %v6857 = vunpack.c.l.b16 %v6631
    %v6858 = vunpack.c.h.b16 %v6631
    %v6859 = vunpack.c.l.b16 %v6632
    %v6860 = vunpack.c.h.b16 %v6632
    %v6861 = vunpack.c.l.b16 %v6633
    %v6862 = vunpack.c.h.b16 %v6633
    %v6863 = vunpack.c.l.b16 %v6634
    %v6864 = vunpack.c.h.b16 %v6634
    %v6865 = vunpack.c.l.b16 %v6635
    %v6866 = vunpack.c.h.b16 %v6635
    %v6867 = vunpack.c.l.b16 %v6636
    %v6868 = vunpack.c.h.b16 %v6636
    %v6869 = vunpack.c.l.b16 %v6637
    %v6870 = vunpack.c.h.b16 %v6637
    %v6871 = vunpack.c.l.b16 %v6638
    %v6872 = vunpack.c.h.b16 %v6638
    %v6873 = vunpack.c.l.b16 %v6639
    %v6874 = vunpack.c.h.b16 %v6639
    %v6875 = vunpack.c.l.b16 %v6640
    %v6876 = vunpack.c.h.b16 %v6640
    %v6877 = vunpack.c.l.b16 %v6641
    %v6878 = vunpack.c.h.b16 %v6641
    %v6879 = vunpack.c.l.b16 %v6642
    %v6880 = vunpack.c.h.b16 %v6642
    %v6881 = vunpack.c.l.b16 %v6643
    %v6882 = vunpack.c.h.b16 %v6643
    %v6883 = vunpack.c.l.b16 %v6644
    %v6884 = vunpack.c.h.b16 %v6644
    %v6885 = vunpack.c.l.b16 %v6645
    %v6886 = vunpack.c.h.b16 %v6645
    %v6887 = vunpack.c.l.b16 %v6646
    %v6888 = vunpack.c.h.b16 %v6646
    %v6889 = vunpack.c.l.b16 %v6647
    %v6890 = vunpack.c.h.b16 %v6647
    %v6891 = vunpack.c.l.b16 %v6648
    %v6892 = vunpack.c.h.b16 %v6648
    %v6893 = vunpack.c.l.b16 %v6649
    %v6894 = vunpack.c.h.b16 %v6649
    %v6895 = vunpack.c.l.b16 %v6650
    %v6896 = vunpack.c.h.b16 %v6650
    %v6897 = vunpack.c.l.b16 %v6651
    %v6898 = vunpack.c.h.b16 %v6651
    %v6899 = vunpack.c.l.b16 %v6652
    %v6900 = vunpack.c.h.b16 %v6652
    %v6901 = vunpack.c.l.b16 %v6653
    %v6902 = vunpack.c.h.b16 %v6653
    %v6903 = vunpack.c.l.b16 %v6654
    %v6904 = vunpack.c.h.b16 %v6654
    %v6905 = vunpack.c.l.b16 %v6655
    %v6906 = vunpack.c.h.b16 %v6655
    %v6907 = vunpack.c.l.b16 %v6656
    %v6908 = vunpack.c.h.b16 %v6656
    %v6909 = vunpack.c.l.b16 %v6657
    %v6910 = vunpack.c.h.b16 %v6657
    %v6911 = vunpack.c.l.b16 %v6658
    %v6912 = vunpack.c.h.b16 %v6658
    %v6913 = vunpack.c.l.b16 %v6659
    %v6914 = vunpack.c.h.b16 %v6659
    %v6915 = vunpack.c.l.b16 %v6660
    %v6916 = vunpack.c.h.b16 %v6660
    %v6917 = vunpack.c.l.b16 %v6661
    %v6918 = vunpack.c.h.b16 %v6661
    %v6919 = vunpack.c.l.b16 %v6662
    %v6920 = vunpack.c.h.b16 %v6662
    %v6921 = vunpack.c.l.b16 %v6663
    %v6922 = vunpack.c.h.b16 %v6663
    %v6923 = vunpack.c.l.b16 %v6664
    %v6924 = vunpack.c.h.b16 %v6664
    %v6925 = vunpack.c.l.b16 %v6665
    %v6926 = vunpack.c.h.b16 %v6665
    %v6927 = vunpack.c.l.b16 %v6666
    %v6928 = vunpack.c.h.b16 %v6666
    %v6929 = vunpack.c.l.b16 %v6667
    %v6930 = vunpack.c.h.b16 %v6667
    %v6931 = vunpack.c.l.b16 %v6668
    %v6932 = vunpack.c.h.b16 %v6668
    %v6933 = vunpack.c.l.b16 %v6669
    %v6934 = vunpack.c.h.b16 %v6669
    %v6935 = vunpack.c.l.b16 %v6670
    %v6936 = vunpack.c.h.b16 %v6670
    %v6937 = vunpack.c.l.b16 %v6671
    %v6938 = vunpack.c.h.b16 %v6671
    %v6939 = vunpack.c.l.b16 %v6672
    %v6940 = vunpack.c.h.b16 %v6672
    %v6941 = vunpack.c.l.b16 %v6673
    %v6942 = vunpack.c.h.b16 %v6673
    %v6943 = vunpack.c.l.b16 %v6674
    %v6944 = vunpack.c.h.b16 %v6674
    %v6945 = vunpack.c.l.b16 %v6675
    %v6946 = vunpack.c.h.b16 %v6675
    %v6947 = vunpack.c.l.b16 %v6676
    %v6948 = vunpack.c.h.b16 %v6676
    %v6949 = vunpack.c.l.b16 %v6677
    %v6950 = vunpack.c.h.b16 %v6677
    %v6951 = vunpack.c.l.b16 %v6678
    %v6952 = vunpack.c.h.b16 %v6678
    %v6953 = vunpack.c.l.b16 %v6679
    %v6954 = vunpack.c.h.b16 %v6679
    %v6955 = vunpack.c.l.b16 %v6680
    %v6956 = vunpack.c.h.b16 %v6680
    %v6957 = vpack.c.b16 %v6845, %v6829
    %v6958 = vpack.c.b16 %v6846, %v6830
    %v6959 = vpack.c.b16 %v6847, %v6831
    %v6960 = vpack.c.b16 %v6848, %v6832
    %v6961 = vpack.c.b16 %v6849, %v6833
    %v6962 = vpack.c.b16 %v6850, %v6834
    %v6963 = vpack.c.b16 %v6851, %v6835
    %v6964 = vpack.c.b16 %v6852, %v6836
    %v6965 = vpack.c.b16 %v6853, %v6837
    %v6966 = vpack.c.b16 %v6854, %v6838
    %v6967 = vpack.c.b16 %v6855, %v6839
    %v6968 = vpack.c.b16 %v6856, %v6840
    %v6969 = vpack.c.b16 %v6857, %v6841
    %v6970 = vpack.c.b16 %v6858, %v6842
    %v6971 = vpack.c.b16 %v6859, %v6843
    %v6972 = vpack.c.b16 %v6860, %v6844
    %v6973 = vpack.c.b16 %v6877, %v6861
    %v6974 = vpack.c.b16 %v6878, %v6862
    %v6975 = vpack.c.b16 %v6879, %v6863
    %v6976 = vpack.c.b16 %v6880, %v6864
    %v6977 = vpack.c.b16 %v6881, %v6865
    %v6978 = vpack.c.b16 %v6882, %v6866
    %v6979 = vpack.c.b16 %v6883, %v6867
    %v6980 = vpack.c.b16 %v6884, %v6868
    %v6981 = vpack.c.b16 %v6885, %v6869
    %v6982 = vpack.c.b16 %v6886, %v6870
    %v6983 = vpack.c.b16 %v6887, %v6871
    %v6984 = vpack.c.b16 %v6888, %v6872
    %v6985 = vpack.c.b16 %v6889, %v6873
    %v6986 = vpack.c.b16 %v6890, %v6874
    %v6987 = vpack.c.b16 %v6891, %v6875
    %v6988 = vpack.c.b16 %v6892, %v6876
    %v6989 = vpack.c.b16 %v6909, %v6893
    %v6990 = vpack.c.b16 %v6910, %v6894
    %v6991 = vpack.c.b16 %v6911, %v6895
    %v6992 = vpack.c.b16 %v6912, %v6896
    %v6993 = vpack.c.b16 %v6913, %v6897
    %v6994 = vpack.c.b16 %v6914, %v6898
    %v6995 = vpack.c.b16 %v6915, %v6899
    %v6996 = vpack.c.b16 %v6916, %v6900
    %v6997 = vpack.c.b16 %v6917, %v6901
    %v6998 = vpack.c.b16 %v6918, %v6902
    %v6999 = vpack.c.b16 %v6919, %v6903
    %v7000 = vpack.c.b16 %v6920, %v6904
    %v7001 = vpack.c.b16 %v6921, %v6905
    %v7002 = vpack.c.b16 %v6922, %v6906
    %v7003 = vpack.c.b16 %v6923, %v6907
    %v7004 = vpack.c.b16 %v6924, %v6908
    %v7005 = vpack.c.b16 %v6941, %v6925
    %v7006 = vpack.c.b16 %v6942, %v6926
    %v7007 = vpack.c.b16 %v6943, %v6927
    %v7008 = vpack.c.b16 %v6944, %v6928
    %v7009 = vpack.c.b16 %v6945, %v6929
    %v7010 = vpack.c.b16 %v6946, %v6930
    %v7011 = vpack.c.b16 %v6947, %v6931
    %v7012 = vpack.c.b16 %v6948, %v6932
    %v7013 = vpack.c.b16 %v6949, %v6933
    %v7014 = vpack.c.b16 %v6950, %v6934
    %v7015 = vpack.c.b16 %v6951, %v6935
    %v7016 = vpack.c.b16 %v6952, %v6936
    %v7017 = vpack.c.b16 %v6953, %v6937
    %v7018 = vpack.c.b16 %v6954, %v6938
    %v7019 = vpack.c.b16 %v6955, %v6939
    %v7020 = vpack.c.b16 %v6956, %v6940
    %v7086 = vsel %vm351, %v6609, 0
    %v7089 = vsel %vm351, %v6610, 0
    %v7092 = vsel %vm351, %v6611, 0
    %v7095 = vsel %vm351, %v6612, 0
    %v7098 = vsel %vm351, %v6613, 0
    %v7101 = vsel %vm351, %v6614, 0
    %v7104 = vsel %vm351, %v6615, 0
    %v7107 = vsel %vm351, %v6616, 0
    %7109 = vmatprep.subr.bf16.mxu0 %v6958
    %7110 = vmatpush1.bf16.msra.mxu0 %v6957
    %7111 = vmatprep.subr.bf16.mxu0 %v6974
    %7112 = vmatpush1.bf16.msra.mxu0 %v6973
    %7113 = vmatprep.subr.bf16.mxu0 %v6990
    %7114 = vmatpush1.bf16.msra.mxu0 %v6989
    %7115 = vmatprep.subr.bf16.mxu0 %v7006
    %7116 = vmatpush1.bf16.msra.mxu0 %v7005
    %7117 = vmatprep.subr.bf16.mxu0 0
    %7118 = vmatpush1.bf16.msra.mxu0 0
    %7119 = vmatprep.subr.bf16.mxu0 0
    %7120 = vmatpush1.bf16.msra.mxu0 0
    %7121 = vmatprep.subr.bf16.mxu0 0
    %7122 = vmatpush1.bf16.msra.mxu0 0
    %7123 = vmatprep.subr.bf16.mxu0 0
    %7124 = vmatpush1.bf16.msra.mxu0 0
    %7125 = vmatprep.subr.bf16.mxu0 0
    %7126 = vmatpush1.bf16.msra.mxu0 0
    %7127 = vmatprep.subr.bf16.mxu0 0
    %7128 = vmatpush1.bf16.msra.mxu0 0
    %7129 = vmatprep.subr.bf16.mxu0 0
    %7130 = vmatpush1.bf16.msra.mxu0 0
    %7131 = vmatprep.subr.bf16.mxu0 0
    %7132 = vmatpush1.bf16.msra.mxu0 0
    %7133 = vmatprep.subr.bf16.mxu0 0
    %7134 = vmatpush1.bf16.msra.mxu0 0
    %7135 = vmatprep.subr.bf16.mxu0 0
    %7136 = vmatpush1.bf16.msra.mxu0 0
    %7137 = vmatprep.subr.bf16.mxu0 0
    %7138 = vmatpush1.bf16.msra.mxu0 0
    %7139 = vmatprep.subr.bf16.mxu0 0
    %7140 = vmatpush1.bf16.msra.mxu0 0
    %7141 = vmatprep.mubr.bf16.mxu0 0
    %7142 = vmatmul.mubr.bf16.gmra.mrb[0].mxu0 %v7086
    %v7143 = vpop.f32.mrb[0].mxu0
    %v7144 = vadd.f32 %v6688, %v7143
    %v7145 = vpop.f32.mrb[0].mxu0
    %v7146 = vadd.f32 %v6692, %v7145
    %v7147 = vpop.f32.mrb[0].mxu0
    %v7148 = vadd.f32 %v6688, %v7147
    %v7149 = vpop.f32.mrb[0].mxu0
    %v7150 = vadd.f32 %v6692, %v7149
    %7151 = vmatprep.mubr.bf16.mxu0 0
    %7152 = vmatmul.mubr.bf16.gmra.mrb[0].mxu0 %v7089
    %v7153 = vpop.f32.mrb[0].mxu0
    %v7154 = vadd.f32 %v6688, %v7153
    %v7155 = vpop.f32.mrb[0].mxu0
    %v7156 = vadd.f32 %v6692, %v7155
    %v7157 = vpop.f32.mrb[0].mxu0
    %v7158 = vadd.f32 %v6688, %v7157
    %v7159 = vpop.f32.mrb[0].mxu0
    %v7160 = vadd.f32 %v6692, %v7159
    %7161 = vmatprep.mubr.bf16.mxu0 0
    %7162 = vmatmul.mubr.bf16.gmra.mrb[0].mxu0 %v7092
    %v7163 = vpop.f32.mrb[0].mxu0
    %v7164 = vadd.f32 %v6688, %v7163
    %v7165 = vpop.f32.mrb[0].mxu0
    %v7166 = vadd.f32 %v6692, %v7165
    %v7167 = vpop.f32.mrb[0].mxu0
    %v7168 = vadd.f32 %v6688, %v7167
    %v7169 = vpop.f32.mrb[0].mxu0
    %v7170 = vadd.f32 %v6692, %v7169
    %7171 = vmatprep.mubr.bf16.mxu0 0
    %7172 = vmatmul.mubr.bf16.gmra.mrb[0].mxu0 %v7095
    %v7173 = vpop.f32.mrb[0].mxu0
    %v7174 = vadd.f32 %v6688, %v7173
    %v7175 = vpop.f32.mrb[0].mxu0
    %v7176 = vadd.f32 %v6692, %v7175
    %v7177 = vpop.f32.mrb[0].mxu0
    %v7178 = vadd.f32 %v6688, %v7177
    %v7179 = vpop.f32.mrb[0].mxu0
    %v7180 = vadd.f32 %v6692, %v7179
    %7181 = vmatprep.mubr.bf16.mxu0 0
    %7182 = vmatmul.mubr.bf16.gmra.mrb[0].mxu0 %v7098
    %v7183 = vpop.f32.mrb[0].mxu0
    %v7184 = vadd.f32 %v6688, %v7183
    %v7185 = vpop.f32.mrb[0].mxu0
    %v7186 = vadd.f32 %v6692, %v7185
    %v7187 = vpop.f32.mrb[0].mxu0
    %v7188 = vadd.f32 %v6688, %v7187
    %v7189 = vpop.f32.mrb[0].mxu0
    %v7190 = vadd.f32 %v6692, %v7189
    %7191 = vmatprep.mubr.bf16.mxu0 0
    %7192 = vmatmul.mubr.bf16.gmra.mrb[0].mxu0 %v7101
    %v7193 = vpop.f32.mrb[0].mxu0
    %v7194 = vadd.f32 %v6688, %v7193
    %v7195 = vpop.f32.mrb[0].mxu0
    %v7196 = vadd.f32 %v6692, %v7195
    %v7197 = vpop.f32.mrb[0].mxu0
    %v7198 = vadd.f32 %v6688, %v7197
    %v7199 = vpop.f32.mrb[0].mxu0
    %v7200 = vadd.f32 %v6692, %v7199
    %7201 = vmatprep.mubr.bf16.mxu0 0
    %7202 = vmatmul.mubr.bf16.gmra.mrb[0].mxu0 %v7104
    %v7203 = vpop.f32.mrb[0].mxu0
    %v7204 = vadd.f32 %v6688, %v7203
    %v7205 = vpop.f32.mrb[0].mxu0
    %v7206 = vadd.f32 %v6692, %v7205
    %v7207 = vpop.f32.mrb[0].mxu0
    %v7208 = vadd.f32 %v6688, %v7207
    %v7209 = vpop.f32.mrb[0].mxu0
    %v7210 = vadd.f32 %v6692, %v7209
    %7211 = vmatprep.mubr.bf16.mxu0 0
    %7212 = vmatmul.mubr.bf16.gmra.mrb[0].mxu0 %v7107
    %v7213 = vpop.f32.mrb[0].mxu0
    %v7214 = vadd.f32 %v6688, %v7213
    %v7215 = vpop.f32.mrb[0].mxu0
    %v7216 = vadd.f32 %v6692, %v7215
    %v7217 = vpop.f32.mrb[0].mxu0
    %v7218 = vadd.f32 %v6688, %v7217
    %v7219 = vpop.f32.mrb[0].mxu0
    %v7220 = vadd.f32 %v6692, %v7219
    %7221 = vdwg.mxu0
    %7222 = vmatprep.subr.bf16.mxu0 %v6960
    %7223 = vmatpush1.bf16.msra.mxu0 %v6959
    %7224 = vmatprep.subr.bf16.mxu0 %v6976
    %7225 = vmatpush1.bf16.msra.mxu0 %v6975
    %7226 = vmatprep.subr.bf16.mxu0 %v6992
    %7227 = vmatpush1.bf16.msra.mxu0 %v6991
    %7228 = vmatprep.subr.bf16.mxu0 %v7008
    %7229 = vmatpush1.bf16.msra.mxu0 %v7007
    %7230 = vmatprep.subr.bf16.mxu0 0
    %7231 = vmatpush1.bf16.msra.mxu0 0
    %7232 = vmatprep.subr.bf16.mxu0 0
    %7233 = vmatpush1.bf16.msra.mxu0 0
    %7234 = vmatprep.subr.bf16.mxu0 0
    %7235 = vmatpush1.bf16.msra.mxu0 0
    %7236 = vmatprep.subr.bf16.mxu0 0
    %7237 = vmatpush1.bf16.msra.mxu0 0
    %7238 = vmatprep.subr.bf16.mxu0 0
    %7239 = vmatpush1.bf16.msra.mxu0 0
    %7240 = vmatprep.subr.bf16.mxu0 0
    %7241 = vmatpush1.bf16.msra.mxu0 0
    %7242 = vmatprep.subr.bf16.mxu0 0
    %7243 = vmatpush1.bf16.msra.mxu0 0
    %7244 = vmatprep.subr.bf16.mxu0 0
    %7245 = vmatpush1.bf16.msra.mxu0 0
    %7246 = vmatprep.subr.bf16.mxu0 0
    %7247 = vmatpush1.bf16.msra.mxu0 0
    %7248 = vmatprep.subr.bf16.mxu0 0
    %7249 = vmatpush1.bf16.msra.mxu0 0
    %7250 = vmatprep.subr.bf16.mxu0 0
    %7251 = vmatpush1.bf16.msra.mxu0 0
    %7252 = vmatprep.subr.bf16.mxu0 0
    %7253 = vmatpush1.bf16.msra.mxu0 0
    %7254 = vmatprep.mubr.bf16.mxu0 0
    %7255 = vmatmul.mubr.bf16.gmra.mrb[0].mxu0 %v7086
    %v7256 = vpop.f32.mrb[0].mxu0
    %v7257 = vadd.f32 %v6696, %v7256
    %v7258 = vpop.f32.mrb[0].mxu0
    %v7259 = vadd.f32 %v6700, %v7258
    %v7260 = vpop.f32.mrb[0].mxu0
    %v7261 = vadd.f32 %v6696, %v7260
    %v7262 = vpop.f32.mrb[0].mxu0
    %v7263 = vadd.f32 %v6700, %v7262
    %7264 = vmatprep.mubr.bf16.mxu0 0
    %7265 = vmatmul.mubr.bf16.gmra.mrb[0].mxu0 %v7089
    %v7266 = vpop.f32.mrb[0].mxu0
    %v7267 = vadd.f32 %v6696, %v7266
    %v7268 = vpop.f32.mrb[0].mxu0
    %v7269 = vadd.f32 %v6700, %v7268
    %v7270 = vpop.f32.mrb[0].mxu0
    %v7271 = vadd.f32 %v6696, %v7270
    %v7272 = vpop.f32.mrb[0].mxu0
    %v7273 = vadd.f32 %v6700, %v7272
    %7274 = vmatprep.mubr.bf16.mxu0 0
    %7275 = vmatmul.mubr.bf16.gmra.mrb[0].mxu0 %v7092
    %v7276 = vpop.f32.mrb[0].mxu0
    %v7277 = vadd.f32 %v6696, %v7276
    %v7278 = vpop.f32.mrb[0].mxu0
    %v7279 = vadd.f32 %v6700, %v7278
    %v7280 = vpop.f32.mrb[0].mxu0
    %v7281 = vadd.f32 %v6696, %v7280
    %v7282 = vpop.f32.mrb[0].mxu0
    %v7283 = vadd.f32 %v6700, %v7282
    %7284 = vmatprep.mubr.bf16.mxu0 0
    %7285 = vmatmul.mubr.bf16.gmra.mrb[0].mxu0 %v7095
    %v7286 = vpop.f32.mrb[0].mxu0
    %v7287 = vadd.f32 %v6696, %v7286
    %v7288 = vpop.f32.mrb[0].mxu0
    %v7289 = vadd.f32 %v6700, %v7288
    %v7290 = vpop.f32.mrb[0].mxu0
    %v7291 = vadd.f32 %v6696, %v7290
    %v7292 = vpop.f32.mrb[0].mxu0
    %v7293 = vadd.f32 %v6700, %v7292
    %7294 = vmatprep.mubr.bf16.mxu0 0
    %7295 = vmatmul.mubr.bf16.gmra.mrb[0].mxu0 %v7098
    %v7296 = vpop.f32.mrb[0].mxu0
    %v7297 = vadd.f32 %v6696, %v7296
    %v7298 = vpop.f32.mrb[0].mxu0
    %v7299 = vadd.f32 %v6700, %v7298
    %v7300 = vpop.f32.mrb[0].mxu0
    %v7301 = vadd.f32 %v6696, %v7300
    %v7302 = vpop.f32.mrb[0].mxu0
    %v7303 = vadd.f32 %v6700, %v7302
    %7304 = vmatprep.mubr.bf16.mxu0 0
    %7305 = vmatmul.mubr.bf16.gmra.mrb[0].mxu0 %v7101
    %v7306 = vpop.f32.mrb[0].mxu0
    %v7307 = vadd.f32 %v6696, %v7306
    %v7308 = vpop.f32.mrb[0].mxu0
    %v7309 = vadd.f32 %v6700, %v7308
    %v7310 = vpop.f32.mrb[0].mxu0
    %v7311 = vadd.f32 %v6696, %v7310
    %v7312 = vpop.f32.mrb[0].mxu0
    %v7313 = vadd.f32 %v6700, %v7312
    %7314 = vmatprep.mubr.bf16.mxu0 0
    %7315 = vmatmul.mubr.bf16.gmra.mrb[0].mxu0 %v7104
    %v7316 = vpop.f32.mrb[0].mxu0
    %v7317 = vadd.f32 %v6696, %v7316
    %v7318 = vpop.f32.mrb[0].mxu0
    %v7319 = vadd.f32 %v6700, %v7318
    %v7320 = vpop.f32.mrb[0].mxu0
    %v7321 = vadd.f32 %v6696, %v7320
    %v7322 = vpop.f32.mrb[0].mxu0
    %v7323 = vadd.f32 %v6700, %v7322
    %7324 = vmatprep.mubr.bf16.mxu0 0
    %7325 = vmatmul.mubr.bf16.gmra.mrb[0].mxu0 %v7107
    %v7326 = vpop.f32.mrb[0].mxu0
    %v7327 = vadd.f32 %v6696, %v7326
    %v7328 = vpop.f32.mrb[0].mxu0
    %v7329 = vadd.f32 %v6700, %v7328
    %v7330 = vpop.f32.mrb[0].mxu0
    %v7331 = vadd.f32 %v6696, %v7330
    %v7332 = vpop.f32.mrb[0].mxu0
    %v7333 = vadd.f32 %v6700, %v7332
    %7334 = vdwg.mxu0
    %7335 = vmatprep.subr.bf16.mxu0 %v6962
    %7336 = vmatpush1.bf16.msra.mxu0 %v6961
    %7337 = vmatprep.subr.bf16.mxu0 %v6978
    %7338 = vmatpush1.bf16.msra.mxu0 %v6977
    %7339 = vmatprep.subr.bf16.mxu0 %v6994
    %7340 = vmatpush1.bf16.msra.mxu0 %v6993
    %7341 = vmatprep.subr.bf16.mxu0 %v7010
    %7342 = vmatpush1.bf16.msra.mxu0 %v7009
    %7343 = vmatprep.subr.bf16.mxu0 0
    %7344 = vmatpush1.bf16.msra.mxu0 0
    %7345 = vmatprep.subr.bf16.mxu0 0
    %7346 = vmatpush1.bf16.msra.mxu0 0
    %7347 = vmatprep.subr.bf16.mxu0 0
    %7348 = vmatpush1.bf16.msra.mxu0 0
    %7349 = vmatprep.subr.bf16.mxu0 0
    %7350 = vmatpush1.bf16.msra.mxu0 0
    %7351 = vmatprep.subr.bf16.mxu0 0
    %7352 = vmatpush1.bf16.msra.mxu0 0
    %7353 = vmatprep.subr.bf16.mxu0 0
    %7354 = vmatpush1.bf16.msra.mxu0 0
    %7355 = vmatprep.subr.bf16.mxu0 0
    %7356 = vmatpush1.bf16.msra.mxu0 0
    %7357 = vmatprep.subr.bf16.mxu0 0
    %7358 = vmatpush1.bf16.msra.mxu0 0
    %7359 = vmatprep.subr.bf16.mxu0 0
    %7360 = vmatpush1.bf16.msra.mxu0 0
    %7361 = vmatprep.subr.bf16.mxu0 0
    %7362 = vmatpush1.bf16.msra.mxu0 0
    %7363 = vmatprep.subr.bf16.mxu0 0
    %7364 = vmatpush1.bf16.msra.mxu0 0
    %7365 = vmatprep.subr.bf16.mxu0 0
    %7366 = vmatpush1.bf16.msra.mxu0 0
    %7367 = vmatprep.mubr.bf16.mxu0 0
    %7368 = vmatmul.mubr.bf16.gmra.mrb[0].mxu0 %v7086
    %v7369 = vpop.f32.mrb[0].mxu0
    %v7370 = vadd.f32 %v6704, %v7369
    %v7371 = vpop.f32.mrb[0].mxu0
    %v7372 = vadd.f32 %v6708, %v7371
    %v7373 = vpop.f32.mrb[0].mxu0
    %v7374 = vadd.f32 %v6704, %v7373
    %v7375 = vpop.f32.mrb[0].mxu0
    %v7376 = vadd.f32 %v6708, %v7375
    %7377 = vmatprep.mubr.bf16.mxu0 0
    %7378 = vmatmul.mubr.bf16.gmra.mrb[0].mxu0 %v7089
    %v7379 = vpop.f32.mrb[0].mxu0
    %v7380 = vadd.f32 %v6704, %v7379
    %v7381 = vpop.f32.mrb[0].mxu0
    %v7382 = vadd.f32 %v6708, %v7381
    %v7383 = vpop.f32.mrb[0].mxu0
    %v7384 = vadd.f32 %v6704, %v7383
    %v7385 = vpop.f32.mrb[0].mxu0
    %v7386 = vadd.f32 %v6708, %v7385
    %7387 = vmatprep.mubr.bf16.mxu0 0
    %7388 = vmatmul.mubr.bf16.gmra.mrb[0].mxu0 %v7092
    %v7389 = vpop.f32.mrb[0].mxu0
    %v7390 = vadd.f32 %v6704, %v7389
    %v7391 = vpop.f32.mrb[0].mxu0
    %v7392 = vadd.f32 %v6708, %v7391
    %v7393 = vpop.f32.mrb[0].mxu0
    %v7394 = vadd.f32 %v6704, %v7393
    %v7395 = vpop.f32.mrb[0].mxu0
    %v7396 = vadd.f32 %v6708, %v7395
    %7397 = vmatprep.mubr.bf16.mxu0 0
    %7398 = vmatmul.mubr.bf16.gmra.mrb[0].mxu0 %v7095
    %v7399 = vpop.f32.mrb[0].mxu0
    %v7400 = vadd.f32 %v6704, %v7399
    %v7401 = vpop.f32.mrb[0].mxu0
    %v7402 = vadd.f32 %v6708, %v7401
    %v7403 = vpop.f32.mrb[0].mxu0
    %v7404 = vadd.f32 %v6704, %v7403
    %v7405 = vpop.f32.mrb[0].mxu0
    %v7406 = vadd.f32 %v6708, %v7405
    %7407 = vmatprep.mubr.bf16.mxu0 0
    %7408 = vmatmul.mubr.bf16.gmra.mrb[0].mxu0 %v7098
    %v7409 = vpop.f32.mrb[0].mxu0
    %v7410 = vadd.f32 %v6704, %v7409
    %v7411 = vpop.f32.mrb[0].mxu0
    %v7412 = vadd.f32 %v6708, %v7411
    %v7413 = vpop.f32.mrb[0].mxu0
    %v7414 = vadd.f32 %v6704, %v7413
    %v7415 = vpop.f32.mrb[0].mxu0
    %v7416 = vadd.f32 %v6708, %v7415
    %7417 = vmatprep.mubr.bf16.mxu0 0
    %7418 = vmatmul.mubr.bf16.gmra.mrb[0].mxu0 %v7101
    %v7419 = vpop.f32.mrb[0].mxu0
    %v7420 = vadd.f32 %v6704, %v7419
    %v7421 = vpop.f32.mrb[0].mxu0
    %v7422 = vadd.f32 %v6708, %v7421
    %v7423 = vpop.f32.mrb[0].mxu0
    %v7424 = vadd.f32 %v6704, %v7423
    %v7425 = vpop.f32.mrb[0].mxu0
    %v7426 = vadd.f32 %v6708, %v7425
    %7427 = vmatprep.mubr.bf16.mxu0 0
    %7428 = vmatmul.mubr.bf16.gmra.mrb[0].mxu0 %v7104
    %v7429 = vpop.f32.mrb[0].mxu0
    %v7430 = vadd.f32 %v6704, %v7429
    %v7431 = vpop.f32.mrb[0].mxu0
    %v7432 = vadd.f32 %v6708, %v7431
    %v7433 = vpop.f32.mrb[0].mxu0
    %v7434 = vadd.f32 %v6704, %v7433
    %v7435 = vpop.f32.mrb[0].mxu0
    %v7436 = vadd.f32 %v6708, %v7435
    %7437 = vmatprep.mubr.bf16.mxu0 0
    %7438 = vmatmul.mubr.bf16.gmra.mrb[0].mxu0 %v7107
    %v7439 = vpop.f32.mrb[0].mxu0
    %v7440 = vadd.f32 %v6704, %v7439
    %v7441 = vpop.f32.mrb[0].mxu0
    %v7442 = vadd.f32 %v6708, %v7441
    %v7443 = vpop.f32.mrb[0].mxu0
    %v7444 = vadd.f32 %v6704, %v7443
    %v7445 = vpop.f32.mrb[0].mxu0
    %v7446 = vadd.f32 %v6708, %v7445
    %7447 = vdwg.mxu0
    %7448 = vmatprep.subr.bf16.mxu0 %v6964
    %7449 = vmatpush1.bf16.msra.mxu0 %v6963
    %7450 = vmatprep.subr.bf16.mxu0 %v6980
    %7451 = vmatpush1.bf16.msra.mxu0 %v6979
    %7452 = vmatprep.subr.bf16.mxu0 %v6996
    %7453 = vmatpush1.bf16.msra.mxu0 %v6995
    %7454 = vmatprep.subr.bf16.mxu0 %v7012
    %7455 = vmatpush1.bf16.msra.mxu0 %v7011
    %7456 = vmatprep.subr.bf16.mxu0 0
    %7457 = vmatpush1.bf16.msra.mxu0 0
    %7458 = vmatprep.subr.bf16.mxu0 0
    %7459 = vmatpush1.bf16.msra.mxu0 0
    %7460 = vmatprep.subr.bf16.mxu0 0
    %7461 = vmatpush1.bf16.msra.mxu0 0
    %7462 = vmatprep.subr.bf16.mxu0 0
    %7463 = vmatpush1.bf16.msra.mxu0 0
    %7464 = vmatprep.subr.bf16.mxu0 0
    %7465 = vmatpush1.bf16.msra.mxu0 0
    %7466 = vmatprep.subr.bf16.mxu0 0
    %7467 = vmatpush1.bf16.msra.mxu0 0
    %7468 = vmatprep.subr.bf16.mxu0 0
    %7469 = vmatpush1.bf16.msra.mxu0 0
    %7470 = vmatprep.subr.bf16.mxu0 0
    %7471 = vmatpush1.bf16.msra.mxu0 0
    %7472 = vmatprep.subr.bf16.mxu0 0
    %7473 = vmatpush1.bf16.msra.mxu0 0
    %7474 = vmatprep.subr.bf16.mxu0 0
    %7475 = vmatpush1.bf16.msra.mxu0 0
    %7476 = vmatprep.subr.bf16.mxu0 0
    %7477 = vmatpush1.bf16.msra.mxu0 0
    %7478 = vmatprep.subr.bf16.mxu0 0
    %7479 = vmatpush1.bf16.msra.mxu0 0
    %7480 = vmatprep.mubr.bf16.mxu0 0
    %7481 = vmatmul.mubr.bf16.gmra.mrb[0].mxu0 %v7086
    %v7482 = vpop.f32.mrb[0].mxu0
    %v7483 = vadd.f32 %v6712, %v7482
    %v7484 = vpop.f32.mrb[0].mxu0
    %v7485 = vadd.f32 %v6716, %v7484
    %v7486 = vpop.f32.mrb[0].mxu0
    %v7487 = vadd.f32 %v6712, %v7486
    %v7488 = vpop.f32.mrb[0].mxu0
    %v7489 = vadd.f32 %v6716, %v7488
    %7490 = vmatprep.mubr.bf16.mxu0 0
    %7491 = vmatmul.mubr.bf16.gmra.mrb[0].mxu0 %v7089
    %v7492 = vpop.f32.mrb[0].mxu0
    %v7493 = vadd.f32 %v6712, %v7492
    %v7494 = vpop.f32.mrb[0].mxu0
    %v7495 = vadd.f32 %v6716, %v7494
    %v7496 = vpop.f32.mrb[0].mxu0
    %v7497 = vadd.f32 %v6712, %v7496
    %v7498 = vpop.f32.mrb[0].mxu0
    %v7499 = vadd.f32 %v6716, %v7498
    %7500 = vmatprep.mubr.bf16.mxu0 0
    %7501 = vmatmul.mubr.bf16.gmra.mrb[0].mxu0 %v7092
    %v7502 = vpop.f32.mrb[0].mxu0
    %v7503 = vadd.f32 %v6712, %v7502
    %v7504 = vpop.f32.mrb[0].mxu0
    %v7505 = vadd.f32 %v6716, %v7504
    %v7506 = vpop.f32.mrb[0].mxu0
    %v7507 = vadd.f32 %v6712, %v7506
    %v7508 = vpop.f32.mrb[0].mxu0
    %v7509 = vadd.f32 %v6716, %v7508
    %7510 = vmatprep.mubr.bf16.mxu0 0
    %7511 = vmatmul.mubr.bf16.gmra.mrb[0].mxu0 %v7095
    %v7512 = vpop.f32.mrb[0].mxu0
    %v7513 = vadd.f32 %v6712, %v7512
    %v7514 = vpop.f32.mrb[0].mxu0
    %v7515 = vadd.f32 %v6716, %v7514
    %v7516 = vpop.f32.mrb[0].mxu0
    %v7517 = vadd.f32 %v6712, %v7516
    %v7518 = vpop.f32.mrb[0].mxu0
    %v7519 = vadd.f32 %v6716, %v7518
    %7520 = vmatprep.mubr.bf16.mxu0 0
    %7521 = vmatmul.mubr.bf16.gmra.mrb[0].mxu0 %v7098
    %v7522 = vpop.f32.mrb[0].mxu0
    %v7523 = vadd.f32 %v6712, %v7522
    %v7524 = vpop.f32.mrb[0].mxu0
    %v7525 = vadd.f32 %v6716, %v7524
    %v7526 = vpop.f32.mrb[0].mxu0
    %v7527 = vadd.f32 %v6712, %v7526
    %v7528 = vpop.f32.mrb[0].mxu0
    %v7529 = vadd.f32 %v6716, %v7528
    %7530 = vmatprep.mubr.bf16.mxu0 0
    %7531 = vmatmul.mubr.bf16.gmra.mrb[0].mxu0 %v7101
    %v7532 = vpop.f32.mrb[0].mxu0
    %v7533 = vadd.f32 %v6712, %v7532
    %v7534 = vpop.f32.mrb[0].mxu0
    %v7535 = vadd.f32 %v6716, %v7534
    %v7536 = vpop.f32.mrb[0].mxu0
    %v7537 = vadd.f32 %v6712, %v7536
    %v7538 = vpop.f32.mrb[0].mxu0
    %v7539 = vadd.f32 %v6716, %v7538
    %7540 = vmatprep.mubr.bf16.mxu0 0
    %7541 = vmatmul.mubr.bf16.gmra.mrb[0].mxu0 %v7104
    %v7542 = vpop.f32.mrb[0].mxu0
    %v7543 = vadd.f32 %v6712, %v7542
    %v7544 = vpop.f32.mrb[0].mxu0
    %v7545 = vadd.f32 %v6716, %v7544
    %v7546 = vpop.f32.mrb[0].mxu0
    %v7547 = vadd.f32 %v6712, %v7546
    %v7548 = vpop.f32.mrb[0].mxu0
    %v7549 = vadd.f32 %v6716, %v7548
    %7550 = vmatprep.mubr.bf16.mxu0 0
    %7551 = vmatmul.mubr.bf16.gmra.mrb[0].mxu0 %v7107
    %v7552 = vpop.f32.mrb[0].mxu0
    %v7553 = vadd.f32 %v6712, %v7552
    %v7554 = vpop.f32.mrb[0].mxu0
    %v7555 = vadd.f32 %v6716, %v7554
    %v7556 = vpop.f32.mrb[0].mxu0
    %v7557 = vadd.f32 %v6712, %v7556
    %v7558 = vpop.f32.mrb[0].mxu0
    %v7559 = vadd.f32 %v6716, %v7558
    %7560 = vdwg.mxu0
    %7561 = vmatprep.subr.bf16.mxu0 %v6966
    %7562 = vmatpush1.bf16.msra.mxu0 %v6965
    %7563 = vmatprep.subr.bf16.mxu0 %v6982
    %7564 = vmatpush1.bf16.msra.mxu0 %v6981
    %7565 = vmatprep.subr.bf16.mxu0 %v6998
    %7566 = vmatpush1.bf16.msra.mxu0 %v6997
    %7567 = vmatprep.subr.bf16.mxu0 %v7014
    %7568 = vmatpush1.bf16.msra.mxu0 %v7013
    %7569 = vmatprep.subr.bf16.mxu0 0
    %7570 = vmatpush1.bf16.msra.mxu0 0
    %7571 = vmatprep.subr.bf16.mxu0 0
    %7572 = vmatpush1.bf16.msra.mxu0 0
    %7573 = vmatprep.subr.bf16.mxu0 0
    %7574 = vmatpush1.bf16.msra.mxu0 0
    %7575 = vmatprep.subr.bf16.mxu0 0
    %7576 = vmatpush1.bf16.msra.mxu0 0
    %7577 = vmatprep.subr.bf16.mxu0 0
    %7578 = vmatpush1.bf16.msra.mxu0 0
    %7579 = vmatprep.subr.bf16.mxu0 0
    %7580 = vmatpush1.bf16.msra.mxu0 0
    %7581 = vmatprep.subr.bf16.mxu0 0
    %7582 = vmatpush1.bf16.msra.mxu0 0
    %7583 = vmatprep.subr.bf16.mxu0 0
    %7584 = vmatpush1.bf16.msra.mxu0 0
    %7585 = vmatprep.subr.bf16.mxu0 0
    %7586 = vmatpush1.bf16.msra.mxu0 0
    %7587 = vmatprep.subr.bf16.mxu0 0
    %7588 = vmatpush1.bf16.msra.mxu0 0
    %7589 = vmatprep.subr.bf16.mxu0 0
    %7590 = vmatpush1.bf16.msra.mxu0 0
    %7591 = vmatprep.subr.bf16.mxu0 0
    %7592 = vmatpush1.bf16.msra.mxu0 0
    %7593 = vmatprep.mubr.bf16.mxu0 0
    %7594 = vmatmul.mubr.bf16.gmra.mrb[0].mxu0 %v7086
    %v7595 = vpop.f32.mrb[0].mxu0
    %v7596 = vadd.f32 %v6720, %v7595
    %v7597 = vpop.f32.mrb[0].mxu0
    %v7598 = vadd.f32 %v6724, %v7597
    %v7599 = vpop.f32.mrb[0].mxu0
    %v7600 = vadd.f32 %v6720, %v7599
    %v7601 = vpop.f32.mrb[0].mxu0
    %v7602 = vadd.f32 %v6724, %v7601
    %7603 = vmatprep.mubr.bf16.mxu0 0
    %7604 = vmatmul.mubr.bf16.gmra.mrb[0].mxu0 %v7089
    %v7605 = vpop.f32.mrb[0].mxu0
    %v7606 = vadd.f32 %v6720, %v7605
    %v7607 = vpop.f32.mrb[0].mxu0
    %v7608 = vadd.f32 %v6724, %v7607
    %v7609 = vpop.f32.mrb[0].mxu0
    %v7610 = vadd.f32 %v6720, %v7609
    %v7611 = vpop.f32.mrb[0].mxu0
    %v7612 = vadd.f32 %v6724, %v7611
    %7613 = vmatprep.mubr.bf16.mxu0 0
    %7614 = vmatmul.mubr.bf16.gmra.mrb[0].mxu0 %v7092
    %v7615 = vpop.f32.mrb[0].mxu0
    %v7616 = vadd.f32 %v6720, %v7615
    %v7617 = vpop.f32.mrb[0].mxu0
    %v7618 = vadd.f32 %v6724, %v7617
    %v7619 = vpop.f32.mrb[0].mxu0
    %v7620 = vadd.f32 %v6720, %v7619
    %v7621 = vpop.f32.mrb[0].mxu0
    %v7622 = vadd.f32 %v6724, %v7621
    %7623 = vmatprep.mubr.bf16.mxu0 0
    %7624 = vmatmul.mubr.bf16.gmra.mrb[0].mxu0 %v7095
    %v7625 = vpop.f32.mrb[0].mxu0
    %v7626 = vadd.f32 %v6720, %v7625
    %v7627 = vpop.f32.mrb[0].mxu0
    %v7628 = vadd.f32 %v6724, %v7627
    %v7629 = vpop.f32.mrb[0].mxu0
    %v7630 = vadd.f32 %v6720, %v7629
    %v7631 = vpop.f32.mrb[0].mxu0
    %v7632 = vadd.f32 %v6724, %v7631
    %7633 = vmatprep.mubr.bf16.mxu0 0
    %7634 = vmatmul.mubr.bf16.gmra.mrb[0].mxu0 %v7098
    %v7635 = vpop.f32.mrb[0].mxu0
    %v7636 = vadd.f32 %v6720, %v7635
    %v7637 = vpop.f32.mrb[0].mxu0
    %v7638 = vadd.f32 %v6724, %v7637
    %v7639 = vpop.f32.mrb[0].mxu0
    %v7640 = vadd.f32 %v6720, %v7639
    %v7641 = vpop.f32.mrb[0].mxu0
    %v7642 = vadd.f32 %v6724, %v7641
    %7643 = vmatprep.mubr.bf16.mxu0 0
    %7644 = vmatmul.mubr.bf16.gmra.mrb[0].mxu0 %v7101
    %v7645 = vpop.f32.mrb[0].mxu0
    %v7646 = vadd.f32 %v6720, %v7645
    %v7647 = vpop.f32.mrb[0].mxu0
    %v7648 = vadd.f32 %v6724, %v7647
    %v7649 = vpop.f32.mrb[0].mxu0
    %v7650 = vadd.f32 %v6720, %v7649
    %v7651 = vpop.f32.mrb[0].mxu0
    %v7652 = vadd.f32 %v6724, %v7651
    %7653 = vmatprep.mubr.bf16.mxu0 0
    %7654 = vmatmul.mubr.bf16.gmra.mrb[0].mxu0 %v7104
    %v7655 = vpop.f32.mrb[0].mxu0
    %v7656 = vadd.f32 %v6720, %v7655
    %v7657 = vpop.f32.mrb[0].mxu0
    %v7658 = vadd.f32 %v6724, %v7657
    %v7659 = vpop.f32.mrb[0].mxu0
    %v7660 = vadd.f32 %v6720, %v7659
    %v7661 = vpop.f32.mrb[0].mxu0
    %v7662 = vadd.f32 %v6724, %v7661
    %7663 = vmatprep.mubr.bf16.mxu0 0
    %7664 = vmatmul.mubr.bf16.gmra.mrb[0].mxu0 %v7107
    %v7665 = vpop.f32.mrb[0].mxu0
    %v7666 = vadd.f32 %v6720, %v7665
    %v7667 = vpop.f32.mrb[0].mxu0
    %v7668 = vadd.f32 %v6724, %v7667
    %v7669 = vpop.f32.mrb[0].mxu0
    %v7670 = vadd.f32 %v6720, %v7669
    %v7671 = vpop.f32.mrb[0].mxu0
    %v7672 = vadd.f32 %v6724, %v7671
    %7673 = vdwg.mxu0
    %7674 = vmatprep.subr.bf16.mxu0 %v6968
    %7675 = vmatpush1.bf16.msra.mxu0 %v6967
    %7676 = vmatprep.subr.bf16.mxu0 %v6984
    %7677 = vmatpush1.bf16.msra.mxu0 %v6983
    %7678 = vmatprep.subr.bf16.mxu0 %v7000
    %7679 = vmatpush1.bf16.msra.mxu0 %v6999
    %7680 = vmatprep.subr.bf16.mxu0 %v7016
    %7681 = vmatpush1.bf16.msra.mxu0 %v7015
    %7682 = vmatprep.subr.bf16.mxu0 0
    %7683 = vmatpush1.bf16.msra.mxu0 0
    %7684 = vmatprep.subr.bf16.mxu0 0
    %7685 = vmatpush1.bf16.msra.mxu0 0
    %7686 = vmatprep.subr.bf16.mxu0 0
    %7687 = vmatpush1.bf16.msra.mxu0 0
    %7688 = vmatprep.subr.bf16.mxu0 0
    %7689 = vmatpush1.bf16.msra.mxu0 0
    %7690 = vmatprep.subr.bf16.mxu0 0
    %7691 = vmatpush1.bf16.msra.mxu0 0
    %7692 = vmatprep.subr.bf16.mxu0 0
    %7693 = vmatpush1.bf16.msra.mxu0 0
    %7694 = vmatprep.subr.bf16.mxu0 0
    %7695 = vmatpush1.bf16.msra.mxu0 0
    %7696 = vmatprep.subr.bf16.mxu0 0
    %7697 = vmatpush1.bf16.msra.mxu0 0
    %7698 = vmatprep.subr.bf16.mxu0 0
    %7699 = vmatpush1.bf16.msra.mxu0 0
    %7700 = vmatprep.subr.bf16.mxu0 0
    %7701 = vmatpush1.bf16.msra.mxu0 0
    %7702 = vmatprep.subr.bf16.mxu0 0
    %7703 = vmatpush1.bf16.msra.mxu0 0
    %7704 = vmatprep.subr.bf16.mxu0 0
    %7705 = vmatpush1.bf16.msra.mxu0 0
    %7706 = vmatprep.mubr.bf16.mxu0 0
    %7707 = vmatmul.mubr.bf16.gmra.mrb[0].mxu0 %v7086
    %v7708 = vpop.f32.mrb[0].mxu0
    %v7709 = vadd.f32 %v6728, %v7708
    %v7710 = vpop.f32.mrb[0].mxu0
    %v7711 = vadd.f32 %v6732, %v7710
    %v7712 = vpop.f32.mrb[0].mxu0
    %v7713 = vadd.f32 %v6728, %v7712
    %v7714 = vpop.f32.mrb[0].mxu0
    %v7715 = vadd.f32 %v6732, %v7714
    %7716 = vmatprep.mubr.bf16.mxu0 0
    %7717 = vmatmul.mubr.bf16.gmra.mrb[0].mxu0 %v7089
    %v7718 = vpop.f32.mrb[0].mxu0
    %v7719 = vadd.f32 %v6728, %v7718
    %v7720 = vpop.f32.mrb[0].mxu0
    %v7721 = vadd.f32 %v6732, %v7720
    %v7722 = vpop.f32.mrb[0].mxu0
    %v7723 = vadd.f32 %v6728, %v7722
    %v7724 = vpop.f32.mrb[0].mxu0
    %v7725 = vadd.f32 %v6732, %v7724
    %7726 = vmatprep.mubr.bf16.mxu0 0
    %7727 = vmatmul.mubr.bf16.gmra.mrb[0].mxu0 %v7092
    %v7728 = vpop.f32.mrb[0].mxu0
    %v7729 = vadd.f32 %v6728, %v7728
    %v7730 = vpop.f32.mrb[0].mxu0
    %v7731 = vadd.f32 %v6732, %v7730
    %v7732 = vpop.f32.mrb[0].mxu0
    %v7733 = vadd.f32 %v6728, %v7732
    %v7734 = vpop.f32.mrb[0].mxu0
    %v7735 = vadd.f32 %v6732, %v7734
    %7736 = vmatprep.mubr.bf16.mxu0 0
    %7737 = vmatmul.mubr.bf16.gmra.mrb[0].mxu0 %v7095
    %v7738 = vpop.f32.mrb[0].mxu0
    %v7739 = vadd.f32 %v6728, %v7738
    %v7740 = vpop.f32.mrb[0].mxu0
    %v7741 = vadd.f32 %v6732, %v7740
    %v7742 = vpop.f32.mrb[0].mxu0
    %v7743 = vadd.f32 %v6728, %v7742
    %v7744 = vpop.f32.mrb[0].mxu0
    %v7745 = vadd.f32 %v6732, %v7744
    %7746 = vmatprep.mubr.bf16.mxu0 0
    %7747 = vmatmul.mubr.bf16.gmra.mrb[0].mxu0 %v7098
    %v7748 = vpop.f32.mrb[0].mxu0
    %v7749 = vadd.f32 %v6728, %v7748
    %v7750 = vpop.f32.mrb[0].mxu0
    %v7751 = vadd.f32 %v6732, %v7750
    %v7752 = vpop.f32.mrb[0].mxu0
    %v7753 = vadd.f32 %v6728, %v7752
    %v7754 = vpop.f32.mrb[0].mxu0
    %v7755 = vadd.f32 %v6732, %v7754
    %7756 = vmatprep.mubr.bf16.mxu0 0
    %7757 = vmatmul.mubr.bf16.gmra.mrb[0].mxu0 %v7101
    %v7758 = vpop.f32.mrb[0].mxu0
    %v7759 = vadd.f32 %v6728, %v7758
    %v7760 = vpop.f32.mrb[0].mxu0
    %v7761 = vadd.f32 %v6732, %v7760
    %v7762 = vpop.f32.mrb[0].mxu0
    %v7763 = vadd.f32 %v6728, %v7762
    %v7764 = vpop.f32.mrb[0].mxu0
    %v7765 = vadd.f32 %v6732, %v7764
    %7766 = vmatprep.mubr.bf16.mxu0 0
    %7767 = vmatmul.mubr.bf16.gmra.mrb[0].mxu0 %v7104
    %v7768 = vpop.f32.mrb[0].mxu0
    %v7769 = vadd.f32 %v6728, %v7768
    %v7770 = vpop.f32.mrb[0].mxu0
    %v7771 = vadd.f32 %v6732, %v7770
    %v7772 = vpop.f32.mrb[0].mxu0
    %v7773 = vadd.f32 %v6728, %v7772
    %v7774 = vpop.f32.mrb[0].mxu0
    %v7775 = vadd.f32 %v6732, %v7774
    %7776 = vmatprep.mubr.bf16.mxu0 0
    %7777 = vmatmul.mubr.bf16.gmra.mrb[0].mxu0 %v7107
    %v7778 = vpop.f32.mrb[0].mxu0
    %v7779 = vadd.f32 %v6728, %v7778
    %v7780 = vpop.f32.mrb[0].mxu0
    %v7781 = vadd.f32 %v6732, %v7780
    %v7782 = vpop.f32.mrb[0].mxu0
    %v7783 = vadd.f32 %v6728, %v7782
    %v7784 = vpop.f32.mrb[0].mxu0
    %v7785 = vadd.f32 %v6732, %v7784
    %7786 = vdwg.mxu0
    %7787 = vmatprep.subr.bf16.mxu0 %v6970
    %7788 = vmatpush1.bf16.msra.mxu0 %v6969
    %7789 = vmatprep.subr.bf16.mxu0 %v6986
    %7790 = vmatpush1.bf16.msra.mxu0 %v6985
    %7791 = vmatprep.subr.bf16.mxu0 %v7002
    %7792 = vmatpush1.bf16.msra.mxu0 %v7001
    %7793 = vmatprep.subr.bf16.mxu0 %v7018
    %7794 = vmatpush1.bf16.msra.mxu0 %v7017
    %7795 = vmatprep.subr.bf16.mxu0 0
    %7796 = vmatpush1.bf16.msra.mxu0 0
    %7797 = vmatprep.subr.bf16.mxu0 0
    %7798 = vmatpush1.bf16.msra.mxu0 0
    %7799 = vmatprep.subr.bf16.mxu0 0
    %7800 = vmatpush1.bf16.msra.mxu0 0
    %7801 = vmatprep.subr.bf16.mxu0 0
    %7802 = vmatpush1.bf16.msra.mxu0 0
    %7803 = vmatprep.subr.bf16.mxu0 0
    %7804 = vmatpush1.bf16.msra.mxu0 0
    %7805 = vmatprep.subr.bf16.mxu0 0
    %7806 = vmatpush1.bf16.msra.mxu0 0
    %7807 = vmatprep.subr.bf16.mxu0 0
    %7808 = vmatpush1.bf16.msra.mxu0 0
    %7809 = vmatprep.subr.bf16.mxu0 0
    %7810 = vmatpush1.bf16.msra.mxu0 0
    %7811 = vmatprep.subr.bf16.mxu0 0
    %7812 = vmatpush1.bf16.msra.mxu0 0
    %7813 = vmatprep.subr.bf16.mxu0 0
    %7814 = vmatpush1.bf16.msra.mxu0 0
    %7815 = vmatprep.subr.bf16.mxu0 0
    %7816 = vmatpush1.bf16.msra.mxu0 0
    %7817 = vmatprep.subr.bf16.mxu0 0
    %7818 = vmatpush1.bf16.msra.mxu0 0
    %7819 = vmatprep.mubr.bf16.mxu0 0
    %7820 = vmatmul.mubr.bf16.gmra.mrb[0].mxu0 %v7086
    %v7821 = vpop.f32.mrb[0].mxu0
    %v7822 = vadd.f32 %v6736, %v7821
    %v7823 = vpop.f32.mrb[0].mxu0
    %v7824 = vadd.f32 %v6740, %v7823
    %v7825 = vpop.f32.mrb[0].mxu0
    %v7826 = vadd.f32 %v6736, %v7825
    %v7827 = vpop.f32.mrb[0].mxu0
    %v7828 = vadd.f32 %v6740, %v7827
    %7829 = vmatprep.mubr.bf16.mxu0 0
    %7830 = vmatmul.mubr.bf16.gmra.mrb[0].mxu0 %v7089
    %v7831 = vpop.f32.mrb[0].mxu0
    %v7832 = vadd.f32 %v6736, %v7831
    %v7833 = vpop.f32.mrb[0].mxu0
    %v7834 = vadd.f32 %v6740, %v7833
    %v7835 = vpop.f32.mrb[0].mxu0
    %v7836 = vadd.f32 %v6736, %v7835
    %v7837 = vpop.f32.mrb[0].mxu0
    %v7838 = vadd.f32 %v6740, %v7837
    %7839 = vmatprep.mubr.bf16.mxu0 0
    %7840 = vmatmul.mubr.bf16.gmra.mrb[0].mxu0 %v7092
    %v7841 = vpop.f32.mrb[0].mxu0
    %v7842 = vadd.f32 %v6736, %v7841
    %v7843 = vpop.f32.mrb[0].mxu0
    %v7844 = vadd.f32 %v6740, %v7843
    %v7845 = vpop.f32.mrb[0].mxu0
    %v7846 = vadd.f32 %v6736, %v7845
    %v7847 = vpop.f32.mrb[0].mxu0
    %v7848 = vadd.f32 %v6740, %v7847
    %7849 = vmatprep.mubr.bf16.mxu0 0
    %7850 = vmatmul.mubr.bf16.gmra.mrb[0].mxu0 %v7095
    %v7851 = vpop.f32.mrb[0].mxu0
    %v7852 = vadd.f32 %v6736, %v7851
    %v7853 = vpop.f32.mrb[0].mxu0
    %v7854 = vadd.f32 %v6740, %v7853
    %v7855 = vpop.f32.mrb[0].mxu0
    %v7856 = vadd.f32 %v6736, %v7855
    %v7857 = vpop.f32.mrb[0].mxu0
    %v7858 = vadd.f32 %v6740, %v7857
    %7859 = vmatprep.mubr.bf16.mxu0 0
    %7860 = vmatmul.mubr.bf16.gmra.mrb[0].mxu0 %v7098
    %v7861 = vpop.f32.mrb[0].mxu0
    %v7862 = vadd.f32 %v6736, %v7861
    %v7863 = vpop.f32.mrb[0].mxu0
    %v7864 = vadd.f32 %v6740, %v7863
    %v7865 = vpop.f32.mrb[0].mxu0
    %v7866 = vadd.f32 %v6736, %v7865
    %v7867 = vpop.f32.mrb[0].mxu0
    %v7868 = vadd.f32 %v6740, %v7867
    %7869 = vmatprep.mubr.bf16.mxu0 0
    %7870 = vmatmul.mubr.bf16.gmra.mrb[0].mxu0 %v7101
    %v7871 = vpop.f32.mrb[0].mxu0
    %v7872 = vadd.f32 %v6736, %v7871
    %v7873 = vpop.f32.mrb[0].mxu0
    %v7874 = vadd.f32 %v6740, %v7873
    %v7875 = vpop.f32.mrb[0].mxu0
    %v7876 = vadd.f32 %v6736, %v7875
    %v7877 = vpop.f32.mrb[0].mxu0
    %v7878 = vadd.f32 %v6740, %v7877
    %7879 = vmatprep.mubr.bf16.mxu0 0
    %7880 = vmatmul.mubr.bf16.gmra.mrb[0].mxu0 %v7104
    %v7881 = vpop.f32.mrb[0].mxu0
    %v7882 = vadd.f32 %v6736, %v7881
    %v7883 = vpop.f32.mrb[0].mxu0
    %v7884 = vadd.f32 %v6740, %v7883
    %v7885 = vpop.f32.mrb[0].mxu0
    %v7886 = vadd.f32 %v6736, %v7885
    %v7887 = vpop.f32.mrb[0].mxu0
    %v7888 = vadd.f32 %v6740, %v7887
    %7889 = vmatprep.mubr.bf16.mxu0 0
    %7890 = vmatmul.mubr.bf16.gmra.mrb[0].mxu0 %v7107
    %v7891 = vpop.f32.mrb[0].mxu0
    %v7892 = vadd.f32 %v6736, %v7891
    %v7893 = vpop.f32.mrb[0].mxu0
    %v7894 = vadd.f32 %v6740, %v7893
    %v7895 = vpop.f32.mrb[0].mxu0
    %v7896 = vadd.f32 %v6736, %v7895
    %v7897 = vpop.f32.mrb[0].mxu0
    %v7898 = vadd.f32 %v6740, %v7897
    %7899 = vdwg.mxu0
    %7900 = vmatprep.subr.bf16.mxu0 %v6972
    %7901 = vmatpush1.bf16.msra.mxu0 %v6971
    %7902 = vmatprep.subr.bf16.mxu0 %v6988
    %7903 = vmatpush1.bf16.msra.mxu0 %v6987
    %7904 = vmatprep.subr.bf16.mxu0 %v7004
    %7905 = vmatpush1.bf16.msra.mxu0 %v7003
    %7906 = vmatprep.subr.bf16.mxu0 %v7020
    %7907 = vmatpush1.bf16.msra.mxu0 %v7019
    %7908 = vmatprep.subr.bf16.mxu0 0
    %7909 = vmatpush1.bf16.msra.mxu0 0
    %7910 = vmatprep.subr.bf16.mxu0 0
    %7911 = vmatpush1.bf16.msra.mxu0 0
    %7912 = vmatprep.subr.bf16.mxu0 0
    %7913 = vmatpush1.bf16.msra.mxu0 0
    %7914 = vmatprep.subr.bf16.mxu0 0
    %7915 = vmatpush1.bf16.msra.mxu0 0
    %7916 = vmatprep.subr.bf16.mxu0 0
    %7917 = vmatpush1.bf16.msra.mxu0 0
    %7918 = vmatprep.subr.bf16.mxu0 0
    %7919 = vmatpush1.bf16.msra.mxu0 0
    %7920 = vmatprep.subr.bf16.mxu0 0
    %7921 = vmatpush1.bf16.msra.mxu0 0
    %7922 = vmatprep.subr.bf16.mxu0 0
    %7923 = vmatpush1.bf16.msra.mxu0 0
    %7924 = vmatprep.subr.bf16.mxu0 0
    %7925 = vmatpush1.bf16.msra.mxu0 0
    %7926 = vmatprep.subr.bf16.mxu0 0
    %7927 = vmatpush1.bf16.msra.mxu0 0
    %7928 = vmatprep.subr.bf16.mxu0 0
    %7929 = vmatpush1.bf16.msra.mxu0 0
    %7930 = vmatprep.subr.bf16.mxu0 0
    %7931 = vmatpush1.bf16.msra.mxu0 0
    %7932 = vmatprep.mubr.bf16.mxu0 0
    %7933 = vmatmul.mubr.bf16.gmra.mrb[0].mxu0 %v7086
    %v7934 = vpop.f32.mrb[0].mxu0
    %v7935 = vadd.f32 %v6744, %v7934
    %v7936 = vpop.f32.mrb[0].mxu0
    %v7937 = vadd.f32 %v6748, %v7936
    %v7938 = vpop.f32.mrb[0].mxu0
    %v7939 = vadd.f32 %v6744, %v7938
    %v7940 = vpop.f32.mrb[0].mxu0
    %v7941 = vadd.f32 %v6748, %v7940
    %7942 = vmatprep.mubr.bf16.mxu0 0
    %7943 = vmatmul.mubr.bf16.gmra.mrb[0].mxu0 %v7089
    %v7944 = vpop.f32.mrb[0].mxu0
    %v7945 = vadd.f32 %v6744, %v7944
    %v7946 = vpop.f32.mrb[0].mxu0
    %v7947 = vadd.f32 %v6748, %v7946
    %v7948 = vpop.f32.mrb[0].mxu0
    %v7949 = vadd.f32 %v6744, %v7948
    %v7950 = vpop.f32.mrb[0].mxu0
    %v7951 = vadd.f32 %v6748, %v7950
    %7952 = vmatprep.mubr.bf16.mxu0 0
    %7953 = vmatmul.mubr.bf16.gmra.mrb[0].mxu0 %v7092
    %v7954 = vpop.f32.mrb[0].mxu0
    %v7955 = vadd.f32 %v6744, %v7954
    %v7956 = vpop.f32.mrb[0].mxu0
    %v7957 = vadd.f32 %v6748, %v7956
    %v7958 = vpop.f32.mrb[0].mxu0
    %v7959 = vadd.f32 %v6744, %v7958
    %v7960 = vpop.f32.mrb[0].mxu0
    %v7961 = vadd.f32 %v6748, %v7960
    %7962 = vmatprep.mubr.bf16.mxu0 0
    %7963 = vmatmul.mubr.bf16.gmra.mrb[0].mxu0 %v7095
    %v7964 = vpop.f32.mrb[0].mxu0
    %v7965 = vadd.f32 %v6744, %v7964
    %v7966 = vpop.f32.mrb[0].mxu0
    %v7967 = vadd.f32 %v6748, %v7966
    %v7968 = vpop.f32.mrb[0].mxu0
    %v7969 = vadd.f32 %v6744, %v7968
    %v7970 = vpop.f32.mrb[0].mxu0
    %v7971 = vadd.f32 %v6748, %v7970
    %7972 = vmatprep.mubr.bf16.mxu0 0
    %7973 = vmatmul.mubr.bf16.gmra.mrb[0].mxu0 %v7098
    %v7974 = vpop.f32.mrb[0].mxu0
    %v7975 = vadd.f32 %v6744, %v7974
    %v7976 = vpop.f32.mrb[0].mxu0
    %v7977 = vadd.f32 %v6748, %v7976
    %v7978 = vpop.f32.mrb[0].mxu0
    %v7979 = vadd.f32 %v6744, %v7978
    %v7980 = vpop.f32.mrb[0].mxu0
    %v7981 = vadd.f32 %v6748, %v7980
    %7982 = vmatprep.mubr.bf16.mxu0 0
    %7983 = vmatmul.mubr.bf16.gmra.mrb[0].mxu0 %v7101
    %v7984 = vpop.f32.mrb[0].mxu0
    %v7985 = vadd.f32 %v6744, %v7984
    %v7986 = vpop.f32.mrb[0].mxu0
    %v7987 = vadd.f32 %v6748, %v7986
    %v7988 = vpop.f32.mrb[0].mxu0
    %v7989 = vadd.f32 %v6744, %v7988
    %v7990 = vpop.f32.mrb[0].mxu0
    %v7991 = vadd.f32 %v6748, %v7990
    %7992 = vmatprep.mubr.bf16.mxu0 0
    %7993 = vmatmul.mubr.bf16.gmra.mrb[0].mxu0 %v7104
    %v7994 = vpop.f32.mrb[0].mxu0
    %v7995 = vadd.f32 %v6744, %v7994
    %v7996 = vpop.f32.mrb[0].mxu0
    %v7997 = vadd.f32 %v6748, %v7996
    %v7998 = vpop.f32.mrb[0].mxu0
    %v7999 = vadd.f32 %v6744, %v7998
    %v8000 = vpop.f32.mrb[0].mxu0
    %v8001 = vadd.f32 %v6748, %v8000
    %8002 = vmatprep.mubr.bf16.mxu0 0
    %8003 = vmatmul.mubr.bf16.gmra.mrb[0].mxu0 %v7107
    %v8004 = vpop.f32.mrb[0].mxu0
    %v8005 = vadd.f32 %v6744, %v8004
    %v8006 = vpop.f32.mrb[0].mxu0
    %v8007 = vadd.f32 %v6748, %v8006
    %v8008 = vpop.f32.mrb[0].mxu0
    %v8009 = vadd.f32 %v6744, %v8008
    %v8010 = vpop.f32.mrb[0].mxu0
    %v8011 = vadd.f32 %v6748, %v8010
    %8012 = vdwg.mxu0
    %v8013 = vmax.f32 %v7144, 0.0
    %v8014 = vmax.f32 %v7146, 0.0
    %v8015 = vmax.f32 %v7257, 0.0
    %v8016 = vmax.f32 %v7259, 0.0
    %v8017 = vmax.f32 %v7370, 0.0
    %v8018 = vmax.f32 %v7372, 0.0
    %v8019 = vmax.f32 %v7483, 0.0
    %v8020 = vmax.f32 %v7485, 0.0
    %v8021 = vmax.f32 %v7596, 0.0
    %v8022 = vmax.f32 %v7598, 0.0
    %v8023 = vmax.f32 %v7709, 0.0
    %v8024 = vmax.f32 %v7711, 0.0
    %v8025 = vmax.f32 %v7822, 0.0
    %v8026 = vmax.f32 %v7824, 0.0
    %v8027 = vmax.f32 %v7935, 0.0
    %v8028 = vmax.f32 %v7937, 0.0
    %v8029 = vmax.f32 %v7148, 0.0
    %v8030 = vmax.f32 %v7150, 0.0
    %v8031 = vmax.f32 %v7261, 0.0
    %v8032 = vmax.f32 %v7263, 0.0
    %v8033 = vmax.f32 %v7374, 0.0
    %v8034 = vmax.f32 %v7376, 0.0
    %v8035 = vmax.f32 %v7487, 0.0
    %v8036 = vmax.f32 %v7489, 0.0
    %v8037 = vmax.f32 %v7600, 0.0
    %v8038 = vmax.f32 %v7602, 0.0
    %v8039 = vmax.f32 %v7713, 0.0
    %v8040 = vmax.f32 %v7715, 0.0
    %v8041 = vmax.f32 %v7826, 0.0
    %v8042 = vmax.f32 %v7828, 0.0
    %v8043 = vmax.f32 %v7939, 0.0
    %v8044 = vmax.f32 %v7941, 0.0
    %v8045 = vmax.f32 %v7154, 0.0
    %v8046 = vmax.f32 %v7156, 0.0
    %v8047 = vmax.f32 %v7267, 0.0
    %v8048 = vmax.f32 %v7269, 0.0
    %v8049 = vmax.f32 %v7380, 0.0
    %v8050 = vmax.f32 %v7382, 0.0
    %v8051 = vmax.f32 %v7493, 0.0
    %v8052 = vmax.f32 %v7495, 0.0
    %v8053 = vmax.f32 %v7606, 0.0
    %v8054 = vmax.f32 %v7608, 0.0
    %v8055 = vmax.f32 %v7719, 0.0
    %v8056 = vmax.f32 %v7721, 0.0
    %v8057 = vmax.f32 %v7832, 0.0
    %v8058 = vmax.f32 %v7834, 0.0
    %v8059 = vmax.f32 %v7945, 0.0
    %v8060 = vmax.f32 %v7947, 0.0
    %v8061 = vmax.f32 %v7158, 0.0
    %v8062 = vmax.f32 %v7160, 0.0
    %v8063 = vmax.f32 %v7271, 0.0
    %v8064 = vmax.f32 %v7273, 0.0
    %v8065 = vmax.f32 %v7384, 0.0
    %v8066 = vmax.f32 %v7386, 0.0
    %v8067 = vmax.f32 %v7497, 0.0
    %v8068 = vmax.f32 %v7499, 0.0
    %v8069 = vmax.f32 %v7610, 0.0
    %v8070 = vmax.f32 %v7612, 0.0
    %v8071 = vmax.f32 %v7723, 0.0
    %v8072 = vmax.f32 %v7725, 0.0
    %v8073 = vmax.f32 %v7836, 0.0
    %v8074 = vmax.f32 %v7838, 0.0
    %v8075 = vmax.f32 %v7949, 0.0
    %v8076 = vmax.f32 %v7951, 0.0
    %v8077 = vmax.f32 %v7164, 0.0
    %v8078 = vmax.f32 %v7166, 0.0
    %v8079 = vmax.f32 %v7277, 0.0
    %v8080 = vmax.f32 %v7279, 0.0
    %v8081 = vmax.f32 %v7390, 0.0
    %v8082 = vmax.f32 %v7392, 0.0
    %v8083 = vmax.f32 %v7503, 0.0
    %v8084 = vmax.f32 %v7505, 0.0
    %v8085 = vmax.f32 %v7616, 0.0
    %v8086 = vmax.f32 %v7618, 0.0
    %v8087 = vmax.f32 %v7729, 0.0
    %v8088 = vmax.f32 %v7731, 0.0
    %v8089 = vmax.f32 %v7842, 0.0
    %v8090 = vmax.f32 %v7844, 0.0
    %v8091 = vmax.f32 %v7955, 0.0
    %v8092 = vmax.f32 %v7957, 0.0
    %v8093 = vmax.f32 %v7168, 0.0
    %v8094 = vmax.f32 %v7170, 0.0
    %v8095 = vmax.f32 %v7281, 0.0
    %v8096 = vmax.f32 %v7283, 0.0
    %v8097 = vmax.f32 %v7394, 0.0
    %v8098 = vmax.f32 %v7396, 0.0
    %v8099 = vmax.f32 %v7507, 0.0
    %v8100 = vmax.f32 %v7509, 0.0
    %v8101 = vmax.f32 %v7620, 0.0
    %v8102 = vmax.f32 %v7622, 0.0
    %v8103 = vmax.f32 %v7733, 0.0
    %v8104 = vmax.f32 %v7735, 0.0
    %v8105 = vmax.f32 %v7846, 0.0
    %v8106 = vmax.f32 %v7848, 0.0
    %v8107 = vmax.f32 %v7959, 0.0
    %v8108 = vmax.f32 %v7961, 0.0
    %v8109 = vmax.f32 %v7174, 0.0
    %v8110 = vmax.f32 %v7176, 0.0
    %v8111 = vmax.f32 %v7287, 0.0
    %v8112 = vmax.f32 %v7289, 0.0
    %v8113 = vmax.f32 %v7400, 0.0
    %v8114 = vmax.f32 %v7402, 0.0
    %v8115 = vmax.f32 %v7513, 0.0
    %v8116 = vmax.f32 %v7515, 0.0
    %v8117 = vmax.f32 %v7626, 0.0
    %v8118 = vmax.f32 %v7628, 0.0
    %v8119 = vmax.f32 %v7739, 0.0
    %v8120 = vmax.f32 %v7741, 0.0
    %v8121 = vmax.f32 %v7852, 0.0
    %v8122 = vmax.f32 %v7854, 0.0
    %v8123 = vmax.f32 %v7965, 0.0
    %v8124 = vmax.f32 %v7967, 0.0
    %v8125 = vmax.f32 %v7178, 0.0
    %v8126 = vmax.f32 %v7180, 0.0
    %v8127 = vmax.f32 %v7291, 0.0
    %v8128 = vmax.f32 %v7293, 0.0
    %v8129 = vmax.f32 %v7404, 0.0
    %v8130 = vmax.f32 %v7406, 0.0
    %v8131 = vmax.f32 %v7517, 0.0
    %v8132 = vmax.f32 %v7519, 0.0
    %v8133 = vmax.f32 %v7630, 0.0
    %v8134 = vmax.f32 %v7632, 0.0
    %v8135 = vmax.f32 %v7743, 0.0
    %v8136 = vmax.f32 %v7745, 0.0
    %v8137 = vmax.f32 %v7856, 0.0
    %v8138 = vmax.f32 %v7858, 0.0
    %v8139 = vmax.f32 %v7969, 0.0
    %v8140 = vmax.f32 %v7971, 0.0
    %v8141 = vmax.f32 %v7184, 0.0
    %v8142 = vmax.f32 %v7186, 0.0
    %v8143 = vmax.f32 %v7297, 0.0
    %v8144 = vmax.f32 %v7299, 0.0
    %v8145 = vmax.f32 %v7410, 0.0
    %v8146 = vmax.f32 %v7412, 0.0
    %v8147 = vmax.f32 %v7523, 0.0
    %v8148 = vmax.f32 %v7525, 0.0
    %v8149 = vmax.f32 %v7636, 0.0
    %v8150 = vmax.f32 %v7638, 0.0
    %v8151 = vmax.f32 %v7749, 0.0
    %v8152 = vmax.f32 %v7751, 0.0
    %v8153 = vmax.f32 %v7862, 0.0
    %v8154 = vmax.f32 %v7864, 0.0
    %v8155 = vmax.f32 %v7975, 0.0
    %v8156 = vmax.f32 %v7977, 0.0
    %v8157 = vmax.f32 %v7188, 0.0
    %v8158 = vmax.f32 %v7190, 0.0
    %v8159 = vmax.f32 %v7301, 0.0
    %v8160 = vmax.f32 %v7303, 0.0
    %v8161 = vmax.f32 %v7414, 0.0
    %v8162 = vmax.f32 %v7416, 0.0
    %v8163 = vmax.f32 %v7527, 0.0
    %v8164 = vmax.f32 %v7529, 0.0
    %v8165 = vmax.f32 %v7640, 0.0
    %v8166 = vmax.f32 %v7642, 0.0
    %v8167 = vmax.f32 %v7753, 0.0
    %v8168 = vmax.f32 %v7755, 0.0
    %v8169 = vmax.f32 %v7866, 0.0
    %v8170 = vmax.f32 %v7868, 0.0
    %v8171 = vmax.f32 %v7979, 0.0
    %v8172 = vmax.f32 %v7981, 0.0
    %v8173 = vmax.f32 %v7194, 0.0
    %v8174 = vmax.f32 %v7196, 0.0
    %v8175 = vmax.f32 %v7307, 0.0
    %v8176 = vmax.f32 %v7309, 0.0
    %v8177 = vmax.f32 %v7420, 0.0
    %v8178 = vmax.f32 %v7422, 0.0
    %v8179 = vmax.f32 %v7533, 0.0
    %v8180 = vmax.f32 %v7535, 0.0
    %v8181 = vmax.f32 %v7646, 0.0
    %v8182 = vmax.f32 %v7648, 0.0
    %v8183 = vmax.f32 %v7759, 0.0
    %v8184 = vmax.f32 %v7761, 0.0
    %v8185 = vmax.f32 %v7872, 0.0
    %v8186 = vmax.f32 %v7874, 0.0
    %v8187 = vmax.f32 %v7985, 0.0
    %v8188 = vmax.f32 %v7987, 0.0
    %v8189 = vmax.f32 %v7198, 0.0
    %v8190 = vmax.f32 %v7200, 0.0
    %v8191 = vmax.f32 %v7311, 0.0
    %v8192 = vmax.f32 %v7313, 0.0
    %v8193 = vmax.f32 %v7424, 0.0
    %v8194 = vmax.f32 %v7426, 0.0
    %v8195 = vmax.f32 %v7537, 0.0
    %v8196 = vmax.f32 %v7539, 0.0
    %v8197 = vmax.f32 %v7650, 0.0
    %v8198 = vmax.f32 %v7652, 0.0
    %v8199 = vmax.f32 %v7763, 0.0
    %v8200 = vmax.f32 %v7765, 0.0
    %v8201 = vmax.f32 %v7876, 0.0
    %v8202 = vmax.f32 %v7878, 0.0
    %v8203 = vmax.f32 %v7989, 0.0
    %v8204 = vmax.f32 %v7991, 0.0
    %v8205 = vmax.f32 %v7204, 0.0
    %v8206 = vmax.f32 %v7206, 0.0
    %v8207 = vmax.f32 %v7317, 0.0
    %v8208 = vmax.f32 %v7319, 0.0
    %v8209 = vmax.f32 %v7430, 0.0
    %v8210 = vmax.f32 %v7432, 0.0
    %v8211 = vmax.f32 %v7543, 0.0
    %v8212 = vmax.f32 %v7545, 0.0
    %v8213 = vmax.f32 %v7656, 0.0
    %v8214 = vmax.f32 %v7658, 0.0
    %v8215 = vmax.f32 %v7769, 0.0
    %v8216 = vmax.f32 %v7771, 0.0
    %v8217 = vmax.f32 %v7882, 0.0
    %v8218 = vmax.f32 %v7884, 0.0
    %v8219 = vmax.f32 %v7995, 0.0
    %v8220 = vmax.f32 %v7997, 0.0
    %v8221 = vmax.f32 %v7208, 0.0
    %v8222 = vmax.f32 %v7210, 0.0
    %v8223 = vmax.f32 %v7321, 0.0
    %v8224 = vmax.f32 %v7323, 0.0
    %v8225 = vmax.f32 %v7434, 0.0
    %v8226 = vmax.f32 %v7436, 0.0
    %v8227 = vmax.f32 %v7547, 0.0
    %v8228 = vmax.f32 %v7549, 0.0
    %v8229 = vmax.f32 %v7660, 0.0
    %v8230 = vmax.f32 %v7662, 0.0
    %v8231 = vmax.f32 %v7773, 0.0
    %v8232 = vmax.f32 %v7775, 0.0
    %v8233 = vmax.f32 %v7886, 0.0
    %v8234 = vmax.f32 %v7888, 0.0
    %v8235 = vmax.f32 %v7999, 0.0
    %v8236 = vmax.f32 %v8001, 0.0
    %v8237 = vmax.f32 %v7214, 0.0
    %v8238 = vmax.f32 %v7216, 0.0
    %v8239 = vmax.f32 %v7327, 0.0
    %v8240 = vmax.f32 %v7329, 0.0
    %v8241 = vmax.f32 %v7440, 0.0
    %v8242 = vmax.f32 %v7442, 0.0
    %v8243 = vmax.f32 %v7553, 0.0
    %v8244 = vmax.f32 %v7555, 0.0
    %v8245 = vmax.f32 %v7666, 0.0
    %v8246 = vmax.f32 %v7668, 0.0
    %v8247 = vmax.f32 %v7779, 0.0
    %v8248 = vmax.f32 %v7781, 0.0
    %v8249 = vmax.f32 %v7892, 0.0
    %v8250 = vmax.f32 %v7894, 0.0
    %v8251 = vmax.f32 %v8005, 0.0
    %v8252 = vmax.f32 %v8007, 0.0
    %v8253 = vmax.f32 %v7218, 0.0
    %v8254 = vmax.f32 %v7220, 0.0
    %v8255 = vmax.f32 %v7331, 0.0
    %v8256 = vmax.f32 %v7333, 0.0
    %v8257 = vmax.f32 %v7444, 0.0
    %v8258 = vmax.f32 %v7446, 0.0
    %v8259 = vmax.f32 %v7557, 0.0
    %v8260 = vmax.f32 %v7559, 0.0
    %v8261 = vmax.f32 %v7670, 0.0
    %v8262 = vmax.f32 %v7672, 0.0
    %v8263 = vmax.f32 %v7783, 0.0
    %v8264 = vmax.f32 %v7785, 0.0
    %v8265 = vmax.f32 %v7896, 0.0
    %v8266 = vmax.f32 %v7898, 0.0
    %v8267 = vmax.f32 %v8009, 0.0
    %v8268 = vmax.f32 %v8011, 0.0
    %v8269 = vpack.c.bf16 %v8029, %v8013
    %v8270 = vpack.c.bf16 %v8030, %v8014
    %v8271 = vpack.c.bf16 %v8031, %v8015
    %v8272 = vpack.c.bf16 %v8032, %v8016
    %v8273 = vpack.c.bf16 %v8033, %v8017
    %v8274 = vpack.c.bf16 %v8034, %v8018
    %v8275 = vpack.c.bf16 %v8035, %v8019
    %v8276 = vpack.c.bf16 %v8036, %v8020
    %v8277 = vpack.c.bf16 %v8037, %v8021
    %v8278 = vpack.c.bf16 %v8038, %v8022
    %v8279 = vpack.c.bf16 %v8039, %v8023
    %v8280 = vpack.c.bf16 %v8040, %v8024
    %v8281 = vpack.c.bf16 %v8041, %v8025
    %v8282 = vpack.c.bf16 %v8042, %v8026
    %v8283 = vpack.c.bf16 %v8043, %v8027
    %v8284 = vpack.c.bf16 %v8044, %v8028
    %v8285 = vpack.c.bf16 %v8061, %v8045
    %v8286 = vpack.c.bf16 %v8062, %v8046
    %v8287 = vpack.c.bf16 %v8063, %v8047
    %v8288 = vpack.c.bf16 %v8064, %v8048
    %v8289 = vpack.c.bf16 %v8065, %v8049
    %v8290 = vpack.c.bf16 %v8066, %v8050
    %v8291 = vpack.c.bf16 %v8067, %v8051
    %v8292 = vpack.c.bf16 %v8068, %v8052
    %v8293 = vpack.c.bf16 %v8069, %v8053
    %v8294 = vpack.c.bf16 %v8070, %v8054
    %v8295 = vpack.c.bf16 %v8071, %v8055
    %v8296 = vpack.c.bf16 %v8072, %v8056
    %v8297 = vpack.c.bf16 %v8073, %v8057
    %v8298 = vpack.c.bf16 %v8074, %v8058
    %v8299 = vpack.c.bf16 %v8075, %v8059
    %v8300 = vpack.c.bf16 %v8076, %v8060
    %v8301 = vpack.c.bf16 %v8093, %v8077
    %v8302 = vpack.c.bf16 %v8094, %v8078
    %v8303 = vpack.c.bf16 %v8095, %v8079
    %v8304 = vpack.c.bf16 %v8096, %v8080
    %v8305 = vpack.c.bf16 %v8097, %v8081
    %v8306 = vpack.c.bf16 %v8098, %v8082
    %v8307 = vpack.c.bf16 %v8099, %v8083
    %v8308 = vpack.c.bf16 %v8100, %v8084
    %v8309 = vpack.c.bf16 %v8101, %v8085
    %v8310 = vpack.c.bf16 %v8102, %v8086
    %v8311 = vpack.c.bf16 %v8103, %v8087
    %v8312 = vpack.c.bf16 %v8104, %v8088
    %v8313 = vpack.c.bf16 %v8105, %v8089
    %v8314 = vpack.c.bf16 %v8106, %v8090
    %v8315 = vpack.c.bf16 %v8107, %v8091
    %v8316 = vpack.c.bf16 %v8108, %v8092
    %v8317 = vpack.c.bf16 %v8125, %v8109
    %v8318 = vpack.c.bf16 %v8126, %v8110
    %v8319 = vpack.c.bf16 %v8127, %v8111
    %v8320 = vpack.c.bf16 %v8128, %v8112
    %v8321 = vpack.c.bf16 %v8129, %v8113
    %v8322 = vpack.c.bf16 %v8130, %v8114
    %v8323 = vpack.c.bf16 %v8131, %v8115
    %v8324 = vpack.c.bf16 %v8132, %v8116
    %v8325 = vpack.c.bf16 %v8133, %v8117
    %v8326 = vpack.c.bf16 %v8134, %v8118
    %v8327 = vpack.c.bf16 %v8135, %v8119
    %v8328 = vpack.c.bf16 %v8136, %v8120
    %v8329 = vpack.c.bf16 %v8137, %v8121
    %v8330 = vpack.c.bf16 %v8138, %v8122
    %v8331 = vpack.c.bf16 %v8139, %v8123
    %v8332 = vpack.c.bf16 %v8140, %v8124
    %v8333 = vpack.c.bf16 %v8157, %v8141
    %v8334 = vpack.c.bf16 %v8158, %v8142
    %v8335 = vpack.c.bf16 %v8159, %v8143
    %v8336 = vpack.c.bf16 %v8160, %v8144
    %v8337 = vpack.c.bf16 %v8161, %v8145
    %v8338 = vpack.c.bf16 %v8162, %v8146
    %v8339 = vpack.c.bf16 %v8163, %v8147
    %v8340 = vpack.c.bf16 %v8164, %v8148
    %v8341 = vpack.c.bf16 %v8165, %v8149
    %v8342 = vpack.c.bf16 %v8166, %v8150
    %v8343 = vpack.c.bf16 %v8167, %v8151
    %v8344 = vpack.c.bf16 %v8168, %v8152
    %v8345 = vpack.c.bf16 %v8169, %v8153
    %v8346 = vpack.c.bf16 %v8170, %v8154
    %v8347 = vpack.c.bf16 %v8171, %v8155
    %v8348 = vpack.c.bf16 %v8172, %v8156
    %v8349 = vpack.c.bf16 %v8189, %v8173
    %v8350 = vpack.c.bf16 %v8190, %v8174
    %v8351 = vpack.c.bf16 %v8191, %v8175
    %v8352 = vpack.c.bf16 %v8192, %v8176
    %v8353 = vpack.c.bf16 %v8193, %v8177
    %v8354 = vpack.c.bf16 %v8194, %v8178
    %v8355 = vpack.c.bf16 %v8195, %v8179
    %v8356 = vpack.c.bf16 %v8196, %v8180
    %v8357 = vpack.c.bf16 %v8197, %v8181
    %v8358 = vpack.c.bf16 %v8198, %v8182
    %v8359 = vpack.c.bf16 %v8199, %v8183
    %v8360 = vpack.c.bf16 %v8200, %v8184
    %v8361 = vpack.c.bf16 %v8201, %v8185
    %v8362 = vpack.c.bf16 %v8202, %v8186
    %v8363 = vpack.c.bf16 %v8203, %v8187
    %v8364 = vpack.c.bf16 %v8204, %v8188
    %v8365 = vpack.c.bf16 %v8221, %v8205
    %v8366 = vpack.c.bf16 %v8222, %v8206
    %v8367 = vpack.c.bf16 %v8223, %v8207
    %v8368 = vpack.c.bf16 %v8224, %v8208
    %v8369 = vpack.c.bf16 %v8225, %v8209
    %v8370 = vpack.c.bf16 %v8226, %v8210
    %v8371 = vpack.c.bf16 %v8227, %v8211
    %v8372 = vpack.c.bf16 %v8228, %v8212
    %v8373 = vpack.c.bf16 %v8229, %v8213
    %v8374 = vpack.c.bf16 %v8230, %v8214
    %v8375 = vpack.c.bf16 %v8231, %v8215
    %v8376 = vpack.c.bf16 %v8232, %v8216
    %v8377 = vpack.c.bf16 %v8233, %v8217
    %v8378 = vpack.c.bf16 %v8234, %v8218
    %v8379 = vpack.c.bf16 %v8235, %v8219
    %v8380 = vpack.c.bf16 %v8236, %v8220
    %v8381 = vpack.c.bf16 %v8253, %v8237
    %v8382 = vpack.c.bf16 %v8254, %v8238
    %v8383 = vpack.c.bf16 %v8255, %v8239
    %v8384 = vpack.c.bf16 %v8256, %v8240
    %v8385 = vpack.c.bf16 %v8257, %v8241
    %v8386 = vpack.c.bf16 %v8258, %v8242
    %v8387 = vpack.c.bf16 %v8259, %v8243
    %v8388 = vpack.c.bf16 %v8260, %v8244
    %v8389 = vpack.c.bf16 %v8261, %v8245
    %v8390 = vpack.c.bf16 %v8262, %v8246
    %v8391 = vpack.c.bf16 %v8263, %v8247
    %v8392 = vpack.c.bf16 %v8264, %v8248
    %v8393 = vpack.c.bf16 %v8265, %v8249
    %v8394 = vpack.c.bf16 %v8266, %v8250
    %v8395 = vpack.c.bf16 %v8267, %v8251
    %v8396 = vpack.c.bf16 %v8268, %v8252
    %v8397 = vld [vmem:[%s15] sm:$0xf]
    %v8398 = vld [vmem:[%s15 + $0x4] sm:$0xf]
    %v8399 = vld [vmem:[%s15 + $0x8] sm:$0xf]
    %v8400 = vld [vmem:[%s15 + $0xc] sm:$0xf]
    %v8401 = vld [vmem:[%s15 + $0x10] sm:$0xf]
    %v8402 = vld [vmem:[%s15 + $0x14] sm:$0xf]
    %v8403 = vld [vmem:[%s15 + $0x18] sm:$0xf]
    %v8404 = vld [vmem:[%s15 + $0x1c] sm:$0xf]
    %v8405 = vld [vmem:[%s15 + $0x20] sm:$0xf]
    %v8406 = vld [vmem:[%s15 + $0x24] sm:$0xf]
    %v8407 = vld [vmem:[%s15 + $0x28] sm:$0xf]
    %v8408 = vld [vmem:[%s15 + $0x2c] sm:$0xf]
    %v8409 = vld [vmem:[%s15 + $0x30] sm:$0xf]
    %v8410 = vld [vmem:[%s15 + $0x34] sm:$0xf]
    %v8411 = vld [vmem:[%s15 + $0x38] sm:$0xf]
    %v8412 = vld [vmem:[%s15 + $0x3c] sm:$0xf]
    %v8413 = vld [vmem:[%s15 + $0x40] sm:$0xf]
    %v8414 = vld [vmem:[%s15 + $0x44] sm:$0xf]
    %v8415 = vld [vmem:[%s15 + $0x48] sm:$0xf]
    %v8416 = vld [vmem:[%s15 + $0x4c] sm:$0xf]
    %v8417 = vld [vmem:[%s15 + $0x50] sm:$0xf]
    %v8418 = vld [vmem:[%s15 + $0x54] sm:$0xf]
    %v8419 = vld [vmem:[%s15 + $0x58] sm:$0xf]
    %v8420 = vld [vmem:[%s15 + $0x5c] sm:$0xf]
    %v8421 = vld [vmem:[%s15 + $0x60] sm:$0xf]
    %v8422 = vld [vmem:[%s15 + $0x64] sm:$0xf]
    %v8423 = vld [vmem:[%s15 + $0x68] sm:$0xf]
    %v8424 = vld [vmem:[%s15 + $0x6c] sm:$0xf]
    %v8425 = vld [vmem:[%s15 + $0x70] sm:$0xf]
    %v8426 = vld [vmem:[%s15 + $0x74] sm:$0xf]
    %v8427 = vld [vmem:[%s15 + $0x78] sm:$0xf]
    %v8428 = vld [vmem:[%s15 + $0x7c] sm:$0xf]
    %v8429 = vld [vmem:[%s15 + $0x80] sm:$0xf]
    %v8430 = vld [vmem:[%s15 + $0x84] sm:$0xf]
    %v8431 = vld [vmem:[%s15 + $0x88] sm:$0xf]
    %v8432 = vld [vmem:[%s15 + $0x8c] sm:$0xf]
    %v8433 = vld [vmem:[%s15 + $0x90] sm:$0xf]
    %v8434 = vld [vmem:[%s15 + $0x94] sm:$0xf]
    %v8435 = vld [vmem:[%s15 + $0x98] sm:$0xf]
    %v8436 = vld [vmem:[%s15 + $0x9c] sm:$0xf]
    %v8437 = vld [vmem:[%s15 + $0xa0] sm:$0xf]
    %v8438 = vld [vmem:[%s15 + $0xa4] sm:$0xf]
    %v8439 = vld [vmem:[%s15 + $0xa8] sm:$0xf]
    %v8440 = vld [vmem:[%s15 + $0xac] sm:$0xf]
    %v8441 = vld [vmem:[%s15 + $0xb0] sm:$0xf]
    %v8442 = vld [vmem:[%s15 + $0xb4] sm:$0xf]
    %v8443 = vld [vmem:[%s15 + $0xb8] sm:$0xf]
    %v8444 = vld [vmem:[%s15 + $0xbc] sm:$0xf]
    %v8445 = vld [vmem:[%s15 + $0xc0] sm:$0xf]
    %v8446 = vld [vmem:[%s15 + $0xc4] sm:$0xf]
    %v8447 = vld [vmem:[%s15 + $0xc8] sm:$0xf]
    %v8448 = vld [vmem:[%s15 + $0xcc] sm:$0xf]
    %v8449 = vld [vmem:[%s15 + $0xd0] sm:$0xf]
    %v8450 = vld [vmem:[%s15 + $0xd4] sm:$0xf]
    %v8451 = vld [vmem:[%s15 + $0xd8] sm:$0xf]
    %v8452 = vld [vmem:[%s15 + $0xdc] sm:$0xf]
    %v8453 = vld [vmem:[%s15 + $0xe0] sm:$0xf]
    %v8454 = vld [vmem:[%s15 + $0xe4] sm:$0xf]
    %v8455 = vld [vmem:[%s15 + $0xe8] sm:$0xf]
    %v8456 = vld [vmem:[%s15 + $0xec] sm:$0xf]
    %v8457 = vld [vmem:[%s15 + $0xf0] sm:$0xf]
    %v8458 = vld [vmem:[%s15 + $0xf4] sm:$0xf]
    %v8459 = vld [vmem:[%s15 + $0xf8] sm:$0xf]
    %v8460 = vld [vmem:[%s15 + $0xfc] sm:$0xf]
    %v8461 = vld [vmem:[%s15 + $0x100] sm:$0xf]
    %v8462 = vld [vmem:[%s15 + $0x104] sm:$0xf]
    %v8463 = vld [vmem:[%s15 + $0x108] sm:$0xf]
    %v8464 = vld [vmem:[%s15 + $0x10c] sm:$0xf]
    %v8465 = vld [vmem:[%s15 + $0x110] sm:$0xf]
    %v8466 = vld [vmem:[%s15 + $0x114] sm:$0xf]
    %v8467 = vld [vmem:[%s15 + $0x118] sm:$0xf]
    %v8468 = vld [vmem:[%s15 + $0x11c] sm:$0xf]
    %v8469 = vld [vmem:[%s15 + $0x120] sm:$0xf]
    %v8470 = vld [vmem:[%s15 + $0x124] sm:$0xf]
    %v8471 = vld [vmem:[%s15 + $0x128] sm:$0xf]
    %v8472 = vld [vmem:[%s15 + $0x12c] sm:$0xf]
    %v8473 = vld [vmem:[%s15 + $0x130] sm:$0xf]
    %v8474 = vld [vmem:[%s15 + $0x134] sm:$0xf]
    %v8475 = vld [vmem:[%s15 + $0x138] sm:$0xf]
    %v8476 = vld [vmem:[%s15 + $0x13c] sm:$0xf]
    %v8477 = vld [vmem:[%s15 + $0x140] sm:$0xf]
    %v8478 = vld [vmem:[%s15 + $0x144] sm:$0xf]
    %v8479 = vld [vmem:[%s15 + $0x148] sm:$0xf]
    %v8480 = vld [vmem:[%s15 + $0x14c] sm:$0xf]
    %v8481 = vld [vmem:[%s15 + $0x150] sm:$0xf]
    %v8482 = vld [vmem:[%s15 + $0x154] sm:$0xf]
    %v8483 = vld [vmem:[%s15 + $0x158] sm:$0xf]
    %v8484 = vld [vmem:[%s15 + $0x15c] sm:$0xf]
    %v8485 = vld [vmem:[%s15 + $0x160] sm:$0xf]
    %v8486 = vld [vmem:[%s15 + $0x164] sm:$0xf]
    %v8487 = vld [vmem:[%s15 + $0x168] sm:$0xf]
    %v8488 = vld [vmem:[%s15 + $0x16c] sm:$0xf]
    %v8489 = vld [vmem:[%s15 + $0x170] sm:$0xf]
    %v8490 = vld [vmem:[%s15 + $0x174] sm:$0xf]
    %v8491 = vld [vmem:[%s15 + $0x178] sm:$0xf]
    %v8492 = vld [vmem:[%s15 + $0x17c] sm:$0xf]
    %v8493 = vld [vmem:[%s15 + $0x180] sm:$0xf]
    %v8494 = vld [vmem:[%s15 + $0x184] sm:$0xf]
    %v8495 = vld [vmem:[%s15 + $0x188] sm:$0xf]
    %v8496 = vld [vmem:[%s15 + $0x18c] sm:$0xf]
    %v8497 = vld [vmem:[%s15 + $0x190] sm:$0xf]
    %v8498 = vld [vmem:[%s15 + $0x194] sm:$0xf]
    %v8499 = vld [vmem:[%s15 + $0x198] sm:$0xf]
    %v8500 = vld [vmem:[%s15 + $0x19c] sm:$0xf]
    %v8501 = vld [vmem:[%s15 + $0x1a0] sm:$0xf]
    %v8502 = vld [vmem:[%s15 + $0x1a4] sm:$0xf]
    %v8503 = vld [vmem:[%s15 + $0x1a8] sm:$0xf]
    %v8504 = vld [vmem:[%s15 + $0x1ac] sm:$0xf]
    %v8505 = vld [vmem:[%s15 + $0x1b0] sm:$0xf]
    %v8506 = vld [vmem:[%s15 + $0x1b4] sm:$0xf]
    %v8507 = vld [vmem:[%s15 + $0x1b8] sm:$0xf]
    %v8508 = vld [vmem:[%s15 + $0x1bc] sm:$0xf]
    %v8509 = vld [vmem:[%s15 + $0x1c0] sm:$0xf]
    %v8510 = vld [vmem:[%s15 + $0x1c4] sm:$0xf]
    %v8511 = vld [vmem:[%s15 + $0x1c8] sm:$0xf]
    %v8512 = vld [vmem:[%s15 + $0x1cc] sm:$0xf]
    %v8513 = vld [vmem:[%s15 + $0x1d0] sm:$0xf]
    %v8514 = vld [vmem:[%s15 + $0x1d4] sm:$0xf]
    %v8515 = vld [vmem:[%s15 + $0x1d8] sm:$0xf]
    %v8516 = vld [vmem:[%s15 + $0x1dc] sm:$0xf]
    %v8517 = vld [vmem:[%s15 + $0x1e0] sm:$0xf]
    %v8518 = vld [vmem:[%s15 + $0x1e4] sm:$0xf]
    %v8519 = vld [vmem:[%s15 + $0x1e8] sm:$0xf]
    %v8520 = vld [vmem:[%s15 + $0x1ec] sm:$0xf]
    %v8521 = vld [vmem:[%s15 + $0x1f0] sm:$0xf]
    %v8522 = vld [vmem:[%s15 + $0x1f4] sm:$0xf]
    %v8523 = vld [vmem:[%s15 + $0x1f8] sm:$0xf]
    %v8524 = vld [vmem:[%s15 + $0x1fc] sm:$0xf]
    %v8525 = vld [vmem:[%s15 + $0x200] sm:$0xf]
    %v8526 = vld [vmem:[%s15 + $0x204] sm:$0xf]
    %v8527 = vld [vmem:[%s15 + $0x208] sm:$0xf]
    %v8528 = vld [vmem:[%s15 + $0x20c] sm:$0xf]
    %v8529 = vld [vmem:[%s15 + $0x210] sm:$0xf]
    %v8530 = vld [vmem:[%s15 + $0x214] sm:$0xf]
    %v8531 = vld [vmem:[%s15 + $0x218] sm:$0xf]
    %v8532 = vld [vmem:[%s15 + $0x21c] sm:$0xf]
    %v8533 = vld [vmem:[%s15 + $0x220] sm:$0xf]
    %v8534 = vld [vmem:[%s15 + $0x224] sm:$0xf]
    %v8535 = vld [vmem:[%s15 + $0x228] sm:$0xf]
    %v8536 = vld [vmem:[%s15 + $0x22c] sm:$0xf]
    %v8537 = vld [vmem:[%s15 + $0x230] sm:$0xf]
    %v8538 = vld [vmem:[%s15 + $0x234] sm:$0xf]
    %v8539 = vld [vmem:[%s15 + $0x238] sm:$0xf]
    %v8540 = vld [vmem:[%s15 + $0x23c] sm:$0xf]
    %v8541 = vld [vmem:[%s15 + $0x240] sm:$0xf]
    %v8542 = vld [vmem:[%s15 + $0x244] sm:$0xf]
    %v8543 = vld [vmem:[%s15 + $0x248] sm:$0xf]
    %v8544 = vld [vmem:[%s15 + $0x24c] sm:$0xf]
    %v8545 = vld [vmem:[%s15 + $0x250] sm:$0xf]
    %v8546 = vld [vmem:[%s15 + $0x254] sm:$0xf]
    %v8547 = vld [vmem:[%s15 + $0x258] sm:$0xf]
    %v8548 = vld [vmem:[%s15 + $0x25c] sm:$0xf]
    %v8549 = vld [vmem:[%s15 + $0x260] sm:$0xf]
    %v8550 = vld [vmem:[%s15 + $0x264] sm:$0xf]
    %v8551 = vld [vmem:[%s15 + $0x268] sm:$0xf]
    %v8552 = vld [vmem:[%s15 + $0x26c] sm:$0xf]
    %v8553 = vld [vmem:[%s15 + $0x270] sm:$0xf]
    %v8554 = vld [vmem:[%s15 + $0x274] sm:$0xf]
    %v8555 = vld [vmem:[%s15 + $0x278] sm:$0xf]
    %v8556 = vld [vmem:[%s15 + $0x27c] sm:$0xf]
    %v8557 = vld [vmem:[%s15 + $0x280] sm:$0xf]
    %v8558 = vld [vmem:[%s15 + $0x284] sm:$0xf]
    %v8559 = vld [vmem:[%s15 + $0x288] sm:$0xf]
    %v8560 = vld [vmem:[%s15 + $0x28c] sm:$0xf]
    %v8561 = vld [vmem:[%s15 + $0x290] sm:$0xf]
    %v8562 = vld [vmem:[%s15 + $0x294] sm:$0xf]
    %v8563 = vld [vmem:[%s15 + $0x298] sm:$0xf]
    %v8564 = vld [vmem:[%s15 + $0x29c] sm:$0xf]
    %v8565 = vld [vmem:[%s15 + $0x2a0] sm:$0xf]
    %v8566 = vld [vmem:[%s15 + $0x2a4] sm:$0xf]
    %v8567 = vld [vmem:[%s15 + $0x2a8] sm:$0xf]
    %v8568 = vld [vmem:[%s15 + $0x2ac] sm:$0xf]
    %v8569 = vld [vmem:[%s15 + $0x2b0] sm:$0xf]
    %v8570 = vld [vmem:[%s15 + $0x2b4] sm:$0xf]
    %v8571 = vld [vmem:[%s15 + $0x2b8] sm:$0xf]
    %v8572 = vld [vmem:[%s15 + $0x2bc] sm:$0xf]
    %v8573 = vld [vmem:[%s15 + $0x2c0] sm:$0xf]
    %v8574 = vld [vmem:[%s15 + $0x2c4] sm:$0xf]
    %v8575 = vld [vmem:[%s15 + $0x2c8] sm:$0xf]
    %v8576 = vld [vmem:[%s15 + $0x2cc] sm:$0xf]
    %v8577 = vld [vmem:[%s15 + $0x2d0] sm:$0xf]
    %v8578 = vld [vmem:[%s15 + $0x2d4] sm:$0xf]
    %v8579 = vld [vmem:[%s15 + $0x2d8] sm:$0xf]
    %v8580 = vld [vmem:[%s15 + $0x2dc] sm:$0xf]
    %v8581 = vld [vmem:[%s15 + $0x2e0] sm:$0xf]
    %v8582 = vld [vmem:[%s15 + $0x2e4] sm:$0xf]
    %v8583 = vld [vmem:[%s15 + $0x2e8] sm:$0xf]
    %v8584 = vld [vmem:[%s15 + $0x2ec] sm:$0xf]
    %v8585 = vld [vmem:[%s15 + $0x2f0] sm:$0xf]
    %v8586 = vld [vmem:[%s15 + $0x2f4] sm:$0xf]
    %v8587 = vld [vmem:[%s15 + $0x2f8] sm:$0xf]
    %v8588 = vld [vmem:[%s15 + $0x2fc] sm:$0xf]
    %v8589 = vld [vmem:[%s15 + $0x300] sm:$0xf]
    %v8590 = vld [vmem:[%s15 + $0x304] sm:$0xf]
    %v8591 = vld [vmem:[%s15 + $0x308] sm:$0xf]
    %v8592 = vld [vmem:[%s15 + $0x30c] sm:$0xf]
    %v8593 = vld [vmem:[%s15 + $0x310] sm:$0xf]
    %v8594 = vld [vmem:[%s15 + $0x314] sm:$0xf]
    %v8595 = vld [vmem:[%s15 + $0x318] sm:$0xf]
    %v8596 = vld [vmem:[%s15 + $0x31c] sm:$0xf]
    %v8597 = vld [vmem:[%s15 + $0x320] sm:$0xf]
    %v8598 = vld [vmem:[%s15 + $0x324] sm:$0xf]
    %v8599 = vld [vmem:[%s15 + $0x328] sm:$0xf]
    %v8600 = vld [vmem:[%s15 + $0x32c] sm:$0xf]
    %v8601 = vld [vmem:[%s15 + $0x330] sm:$0xf]
    %v8602 = vld [vmem:[%s15 + $0x334] sm:$0xf]
    %v8603 = vld [vmem:[%s15 + $0x338] sm:$0xf]
    %v8604 = vld [vmem:[%s15 + $0x33c] sm:$0xf]
    %v8605 = vld [vmem:[%s15 + $0x340] sm:$0xf]
    %v8606 = vld [vmem:[%s15 + $0x344] sm:$0xf]
    %v8607 = vld [vmem:[%s15 + $0x348] sm:$0xf]
    %v8608 = vld [vmem:[%s15 + $0x34c] sm:$0xf]
    %v8609 = vld [vmem:[%s15 + $0x350] sm:$0xf]
    %v8610 = vld [vmem:[%s15 + $0x354] sm:$0xf]
    %v8611 = vld [vmem:[%s15 + $0x358] sm:$0xf]
    %v8612 = vld [vmem:[%s15 + $0x35c] sm:$0xf]
    %v8613 = vld [vmem:[%s15 + $0x360] sm:$0xf]
    %v8614 = vld [vmem:[%s15 + $0x364] sm:$0xf]
    %v8615 = vld [vmem:[%s15 + $0x368] sm:$0xf]
    %v8616 = vld [vmem:[%s15 + $0x36c] sm:$0xf]
    %v8617 = vld [vmem:[%s15 + $0x370] sm:$0xf]
    %v8618 = vld [vmem:[%s15 + $0x374] sm:$0xf]
    %v8619 = vld [vmem:[%s15 + $0x378] sm:$0xf]
    %v8620 = vld [vmem:[%s15 + $0x37c] sm:$0xf]
    %v8621 = vld [vmem:[%s15 + $0x380] sm:$0xf]
    %v8622 = vld [vmem:[%s15 + $0x384] sm:$0xf]
    %v8623 = vld [vmem:[%s15 + $0x388] sm:$0xf]
    %v8624 = vld [vmem:[%s15 + $0x38c] sm:$0xf]
    %v8625 = vld [vmem:[%s15 + $0x390] sm:$0xf]
    %v8626 = vld [vmem:[%s15 + $0x394] sm:$0xf]
    %v8627 = vld [vmem:[%s15 + $0x398] sm:$0xf]
    %v8628 = vld [vmem:[%s15 + $0x39c] sm:$0xf]
    %v8629 = vld [vmem:[%s15 + $0x3a0] sm:$0xf]
    %v8630 = vld [vmem:[%s15 + $0x3a4] sm:$0xf]
    %v8631 = vld [vmem:[%s15 + $0x3a8] sm:$0xf]
    %v8632 = vld [vmem:[%s15 + $0x3ac] sm:$0xf]
    %v8633 = vld [vmem:[%s15 + $0x3b0] sm:$0xf]
    %v8634 = vld [vmem:[%s15 + $0x3b4] sm:$0xf]
    %v8635 = vld [vmem:[%s15 + $0x3b8] sm:$0xf]
    %v8636 = vld [vmem:[%s15 + $0x3bc] sm:$0xf]
    %v8637 = vld [vmem:[%s15 + $0x3c0] sm:$0xf]
    %v8638 = vld [vmem:[%s15 + $0x3c4] sm:$0xf]
    %v8639 = vld [vmem:[%s15 + $0x3c8] sm:$0xf]
    %v8640 = vld [vmem:[%s15 + $0x3cc] sm:$0xf]
    %v8641 = vld [vmem:[%s15 + $0x3d0] sm:$0xf]
    %v8642 = vld [vmem:[%s15 + $0x3d4] sm:$0xf]
    %v8643 = vld [vmem:[%s15 + $0x3d8] sm:$0xf]
    %v8644 = vld [vmem:[%s15 + $0x3dc] sm:$0xf]
    %v8645 = vld [vmem:[%s15 + $0x3e0] sm:$0xf]
    %v8646 = vld [vmem:[%s15 + $0x3e4] sm:$0xf]
    %v8647 = vld [vmem:[%s15 + $0x3e8] sm:$0xf]
    %v8648 = vld [vmem:[%s15 + $0x3ec] sm:$0xf]
    %v8649 = vld [vmem:[%s15 + $0x3f0] sm:$0xf]
    %v8650 = vld [vmem:[%s15 + $0x3f4] sm:$0xf]
    %v8651 = vld [vmem:[%s15 + $0x3f8] sm:$0xf]
    %v8652 = vld [vmem:[%s15 + $0x3fc] sm:$0xf]
    %v8653 = vld [vmem:[%s16] sm:$0x1]
    %v8655 = vlaneseq
    %v8656 = vshrl.u32 %v8655, 7
    %v8657 = vsub.s32 0, %v8656
    %v8658 = vrot.slane %v8653, %v8657
    %v8916 = vunpack.c.l.b16 %v8397
    %v8917 = vunpack.c.l.b16 %v8398
    %v8918 = vunpack.c.l.b16 %v8399
    %v8919 = vunpack.c.l.b16 %v8400
    %v8920 = vunpack.c.l.b16 %v8401
    %v8921 = vunpack.c.l.b16 %v8402
    %v8922 = vunpack.c.l.b16 %v8403
    %v8923 = vunpack.c.l.b16 %v8404
    %v8924 = vunpack.c.l.b16 %v8405
    %v8925 = vunpack.c.l.b16 %v8406
    %v8926 = vunpack.c.l.b16 %v8407
    %v8927 = vunpack.c.l.b16 %v8408
    %v8928 = vunpack.c.l.b16 %v8409
    %v8929 = vunpack.c.l.b16 %v8410
    %v8930 = vunpack.c.l.b16 %v8411
    %v8931 = vunpack.c.l.b16 %v8412
    %v8932 = vunpack.c.l.b16 %v8413
    %v8933 = vunpack.c.l.b16 %v8414
    %v8934 = vunpack.c.l.b16 %v8415
    %v8935 = vunpack.c.l.b16 %v8416
    %v8936 = vunpack.c.l.b16 %v8417
    %v8937 = vunpack.c.l.b16 %v8418
    %v8938 = vunpack.c.l.b16 %v8419
    %v8939 = vunpack.c.l.b16 %v8420
    %v8940 = vunpack.c.l.b16 %v8421
    %v8941 = vunpack.c.l.b16 %v8422
    %v8942 = vunpack.c.l.b16 %v8423
    %v8943 = vunpack.c.l.b16 %v8424
    %v8944 = vunpack.c.l.b16 %v8425
    %v8945 = vunpack.c.l.b16 %v8426
    %v8946 = vunpack.c.l.b16 %v8427
    %v8947 = vunpack.c.l.b16 %v8428
    %v8948 = vunpack.c.l.b16 %v8429
    %v8949 = vunpack.c.l.b16 %v8430
    %v8950 = vunpack.c.l.b16 %v8431
    %v8951 = vunpack.c.l.b16 %v8432
    %v8952 = vunpack.c.l.b16 %v8433
    %v8953 = vunpack.c.l.b16 %v8434
    %v8954 = vunpack.c.l.b16 %v8435
    %v8955 = vunpack.c.l.b16 %v8436
    %v8956 = vunpack.c.l.b16 %v8437
    %v8957 = vunpack.c.l.b16 %v8438
    %v8958 = vunpack.c.l.b16 %v8439
    %v8959 = vunpack.c.l.b16 %v8440
    %v8960 = vunpack.c.l.b16 %v8441
    %v8961 = vunpack.c.l.b16 %v8442
    %v8962 = vunpack.c.l.b16 %v8443
    %v8963 = vunpack.c.l.b16 %v8444
    %v8964 = vunpack.c.l.b16 %v8445
    %v8965 = vunpack.c.l.b16 %v8446
    %v8966 = vunpack.c.l.b16 %v8447
    %v8967 = vunpack.c.l.b16 %v8448
    %v8968 = vunpack.c.l.b16 %v8449
    %v8969 = vunpack.c.l.b16 %v8450
    %v8970 = vunpack.c.l.b16 %v8451
    %v8971 = vunpack.c.l.b16 %v8452
    %v8972 = vunpack.c.l.b16 %v8453
    %v8973 = vunpack.c.l.b16 %v8454
    %v8974 = vunpack.c.l.b16 %v8455
    %v8975 = vunpack.c.l.b16 %v8456
    %v8976 = vunpack.c.l.b16 %v8457
    %v8977 = vunpack.c.l.b16 %v8458
    %v8978 = vunpack.c.l.b16 %v8459
    %v8979 = vunpack.c.l.b16 %v8460
    %v8980 = vunpack.c.l.b16 %v8461
    %v8981 = vunpack.c.l.b16 %v8462
    %v8982 = vunpack.c.l.b16 %v8463
    %v8983 = vunpack.c.l.b16 %v8464
    %v8984 = vunpack.c.l.b16 %v8465
    %v8985 = vunpack.c.l.b16 %v8466
    %v8986 = vunpack.c.l.b16 %v8467
    %v8987 = vunpack.c.l.b16 %v8468
    %v8988 = vunpack.c.l.b16 %v8469
    %v8989 = vunpack.c.l.b16 %v8470
    %v8990 = vunpack.c.l.b16 %v8471
    %v8991 = vunpack.c.l.b16 %v8472
    %v8992 = vunpack.c.l.b16 %v8473
    %v8993 = vunpack.c.l.b16 %v8474
    %v8994 = vunpack.c.l.b16 %v8475
    %v8995 = vunpack.c.l.b16 %v8476
    %v8996 = vunpack.c.l.b16 %v8477
    %v8997 = vunpack.c.l.b16 %v8478
    %v8998 = vunpack.c.l.b16 %v8479
    %v8999 = vunpack.c.l.b16 %v8480
    %v9000 = vunpack.c.l.b16 %v8481
    %v9001 = vunpack.c.l.b16 %v8482
    %v9002 = vunpack.c.l.b16 %v8483
    %v9003 = vunpack.c.l.b16 %v8484
    %v9004 = vunpack.c.l.b16 %v8485
    %v9005 = vunpack.c.l.b16 %v8486
    %v9006 = vunpack.c.l.b16 %v8487
    %v9007 = vunpack.c.l.b16 %v8488
    %v9008 = vunpack.c.l.b16 %v8489
    %v9009 = vunpack.c.l.b16 %v8490
    %v9010 = vunpack.c.l.b16 %v8491
    %v9011 = vunpack.c.l.b16 %v8492
    %v9012 = vunpack.c.l.b16 %v8493
    %v9013 = vunpack.c.l.b16 %v8494
    %v9014 = vunpack.c.l.b16 %v8495
    %v9015 = vunpack.c.l.b16 %v8496
    %v9016 = vunpack.c.l.b16 %v8497
    %v9017 = vunpack.c.l.b16 %v8498
    %v9018 = vunpack.c.l.b16 %v8499
    %v9019 = vunpack.c.l.b16 %v8500
    %v9020 = vunpack.c.l.b16 %v8501
    %v9021 = vunpack.c.l.b16 %v8502
    %v9022 = vunpack.c.l.b16 %v8503
    %v9023 = vunpack.c.l.b16 %v8504
    %v9024 = vunpack.c.l.b16 %v8505
    %v9025 = vunpack.c.l.b16 %v8506
    %v9026 = vunpack.c.l.b16 %v8507
    %v9027 = vunpack.c.l.b16 %v8508
    %v9028 = vunpack.c.l.b16 %v8509
    %v9029 = vunpack.c.l.b16 %v8510
    %v9030 = vunpack.c.l.b16 %v8511
    %v9031 = vunpack.c.l.b16 %v8512
    %v9032 = vunpack.c.l.b16 %v8513
    %v9033 = vunpack.c.l.b16 %v8514
    %v9034 = vunpack.c.l.b16 %v8515
    %v9035 = vunpack.c.l.b16 %v8516
    %v9036 = vunpack.c.l.b16 %v8517
    %v9037 = vunpack.c.l.b16 %v8518
    %v9038 = vunpack.c.l.b16 %v8519
    %v9039 = vunpack.c.l.b16 %v8520
    %v9040 = vunpack.c.l.b16 %v8521
    %v9041 = vunpack.c.l.b16 %v8522
    %v9042 = vunpack.c.l.b16 %v8523
    %v9043 = vunpack.c.l.b16 %v8524
    %v9044 = vunpack.c.l.b16 %v8525
    %v9045 = vunpack.c.l.b16 %v8526
    %v9046 = vunpack.c.l.b16 %v8527
    %v9047 = vunpack.c.l.b16 %v8528
    %v9048 = vunpack.c.l.b16 %v8529
    %v9049 = vunpack.c.l.b16 %v8530
    %v9050 = vunpack.c.l.b16 %v8531
    %v9051 = vunpack.c.l.b16 %v8532
    %v9052 = vunpack.c.l.b16 %v8533
    %v9053 = vunpack.c.l.b16 %v8534
    %v9054 = vunpack.c.l.b16 %v8535
    %v9055 = vunpack.c.l.b16 %v8536
    %v9056 = vunpack.c.l.b16 %v8537
    %v9057 = vunpack.c.l.b16 %v8538
    %v9058 = vunpack.c.l.b16 %v8539
    %v9059 = vunpack.c.l.b16 %v8540
    %v9060 = vunpack.c.l.b16 %v8541
    %v9061 = vunpack.c.l.b16 %v8542
    %v9062 = vunpack.c.l.b16 %v8543
    %v9063 = vunpack.c.l.b16 %v8544
    %v9064 = vunpack.c.l.b16 %v8545
    %v9065 = vunpack.c.l.b16 %v8546
    %v9066 = vunpack.c.l.b16 %v8547
    %v9067 = vunpack.c.l.b16 %v8548
    %v9068 = vunpack.c.l.b16 %v8549
    %v9069 = vunpack.c.l.b16 %v8550
    %v9070 = vunpack.c.l.b16 %v8551
    %v9071 = vunpack.c.l.b16 %v8552
    %v9072 = vunpack.c.l.b16 %v8553
    %v9073 = vunpack.c.l.b16 %v8554
    %v9074 = vunpack.c.l.b16 %v8555
    %v9075 = vunpack.c.l.b16 %v8556
    %v9076 = vunpack.c.l.b16 %v8557
    %v9077 = vunpack.c.l.b16 %v8558
    %v9078 = vunpack.c.l.b16 %v8559
    %v9079 = vunpack.c.l.b16 %v8560
    %v9080 = vunpack.c.l.b16 %v8561
    %v9081 = vunpack.c.l.b16 %v8562
    %v9082 = vunpack.c.l.b16 %v8563
    %v9083 = vunpack.c.l.b16 %v8564
    %v9084 = vunpack.c.l.b16 %v8565
    %v9085 = vunpack.c.l.b16 %v8566
    %v9086 = vunpack.c.l.b16 %v8567
    %v9087 = vunpack.c.l.b16 %v8568
    %v9088 = vunpack.c.l.b16 %v8569
    %v9089 = vunpack.c.l.b16 %v8570
    %v9090 = vunpack.c.l.b16 %v8571
    %v9091 = vunpack.c.l.b16 %v8572
    %v9092 = vunpack.c.l.b16 %v8573
    %v9093 = vunpack.c.l.b16 %v8574
    %v9094 = vunpack.c.l.b16 %v8575
    %v9095 = vunpack.c.l.b16 %v8576
    %v9096 = vunpack.c.l.b16 %v8577
    %v9097 = vunpack.c.l.b16 %v8578
    %v9098 = vunpack.c.l.b16 %v8579
    %v9099 = vunpack.c.l.b16 %v8580
    %v9100 = vunpack.c.l.b16 %v8581
    %v9101 = vunpack.c.l.b16 %v8582
    %v9102 = vunpack.c.l.b16 %v8583
    %v9103 = vunpack.c.l.b16 %v8584
    %v9104 = vunpack.c.l.b16 %v8585
    %v9105 = vunpack.c.l.b16 %v8586
    %v9106 = vunpack.c.l.b16 %v8587
    %v9107 = vunpack.c.l.b16 %v8588
    %v9108 = vunpack.c.l.b16 %v8589
    %v9109 = vunpack.c.l.b16 %v8590
    %v9110 = vunpack.c.l.b16 %v8591
    %v9111 = vunpack.c.l.b16 %v8592
    %v9112 = vunpack.c.l.b16 %v8593
    %v9113 = vunpack.c.l.b16 %v8594
    %v9114 = vunpack.c.l.b16 %v8595
    %v9115 = vunpack.c.l.b16 %v8596
    %v9116 = vunpack.c.l.b16 %v8597
    %v9117 = vunpack.c.l.b16 %v8598
    %v9118 = vunpack.c.l.b16 %v8599
    %v9119 = vunpack.c.l.b16 %v8600
    %v9120 = vunpack.c.l.b16 %v8601
    %v9121 = vunpack.c.l.b16 %v8602
    %v9122 = vunpack.c.l.b16 %v8603
    %v9123 = vunpack.c.l.b16 %v8604
    %v9124 = vunpack.c.l.b16 %v8605
    %v9125 = vunpack.c.l.b16 %v8606
    %v9126 = vunpack.c.l.b16 %v8607
    %v9127 = vunpack.c.l.b16 %v8608
    %v9128 = vunpack.c.l.b16 %v8609
    %v9129 = vunpack.c.l.b16 %v8610
    %v9130 = vunpack.c.l.b16 %v8611
    %v9131 = vunpack.c.l.b16 %v8612
    %v9132 = vunpack.c.l.b16 %v8613
    %v9133 = vunpack.c.l.b16 %v8614
    %v9134 = vunpack.c.l.b16 %v8615
    %v9135 = vunpack.c.l.b16 %v8616
    %v9136 = vunpack.c.l.b16 %v8617
    %v9137 = vunpack.c.l.b16 %v8618
    %v9138 = vunpack.c.l.b16 %v8619
    %v9139 = vunpack.c.l.b16 %v8620
    %v9140 = vunpack.c.l.b16 %v8621
    %v9141 = vunpack.c.l.b16 %v8622
    %v9142 = vunpack.c.l.b16 %v8623
    %v9143 = vunpack.c.l.b16 %v8624
    %v9144 = vunpack.c.l.b16 %v8625
    %v9145 = vunpack.c.l.b16 %v8626
    %v9146 = vunpack.c.l.b16 %v8627
    %v9147 = vunpack.c.l.b16 %v8628
    %v9148 = vunpack.c.l.b16 %v8629
    %v9149 = vunpack.c.l.b16 %v8630
    %v9150 = vunpack.c.l.b16 %v8631
    %v9151 = vunpack.c.l.b16 %v8632
    %v9152 = vunpack.c.l.b16 %v8633
    %v9153 = vunpack.c.l.b16 %v8634
    %v9154 = vunpack.c.l.b16 %v8635
    %v9155 = vunpack.c.l.b16 %v8636
    %v9156 = vunpack.c.l.b16 %v8637
    %v9157 = vunpack.c.l.b16 %v8638
    %v9158 = vunpack.c.l.b16 %v8639
    %v9159 = vunpack.c.l.b16 %v8640
    %v9160 = vunpack.c.l.b16 %v8641
    %v9161 = vunpack.c.l.b16 %v8642
    %v9162 = vunpack.c.l.b16 %v8643
    %v9163 = vunpack.c.l.b16 %v8644
    %v9164 = vunpack.c.l.b16 %v8645
    %v9165 = vunpack.c.l.b16 %v8646
    %v9166 = vunpack.c.l.b16 %v8647
    %v9167 = vunpack.c.l.b16 %v8648
    %v9168 = vunpack.c.l.b16 %v8649
    %v9169 = vunpack.c.l.b16 %v8650
    %v9170 = vunpack.c.l.b16 %v8651
    %v9171 = vunpack.c.l.b16 %v8652
    %v9172 = vpack.c.b16 %v8917, %v8916
    %v9173 = vpack.c.b16 %v8919, %v8918
    %v9174 = vpack.c.b16 %v8921, %v8920
    %v9175 = vpack.c.b16 %v8923, %v8922
    %v9176 = vpack.c.b16 %v8925, %v8924
    %v9177 = vpack.c.b16 %v8927, %v8926
    %v9178 = vpack.c.b16 %v8929, %v8928
    %v9179 = vpack.c.b16 %v8931, %v8930
    %v9180 = vpack.c.b16 %v8933, %v8932
    %v9181 = vpack.c.b16 %v8935, %v8934
    %v9182 = vpack.c.b16 %v8937, %v8936
    %v9183 = vpack.c.b16 %v8939, %v8938
    %v9184 = vpack.c.b16 %v8941, %v8940
    %v9185 = vpack.c.b16 %v8943, %v8942
    %v9186 = vpack.c.b16 %v8945, %v8944
    %v9187 = vpack.c.b16 %v8947, %v8946
    %v9188 = vpack.c.b16 %v8949, %v8948
    %v9189 = vpack.c.b16 %v8951, %v8950
    %v9190 = vpack.c.b16 %v8953, %v8952
    %v9191 = vpack.c.b16 %v8955, %v8954
    %v9192 = vpack.c.b16 %v8957, %v8956
    %v9193 = vpack.c.b16 %v8959, %v8958
    %v9194 = vpack.c.b16 %v8961, %v8960
    %v9195 = vpack.c.b16 %v8963, %v8962
    %v9196 = vpack.c.b16 %v8965, %v8964
    %v9197 = vpack.c.b16 %v8967, %v8966
    %v9198 = vpack.c.b16 %v8969, %v8968
    %v9199 = vpack.c.b16 %v8971, %v8970
    %v9200 = vpack.c.b16 %v8973, %v8972
    %v9201 = vpack.c.b16 %v8975, %v8974
    %v9202 = vpack.c.b16 %v8977, %v8976
    %v9203 = vpack.c.b16 %v8979, %v8978
    %v9204 = vpack.c.b16 %v8981, %v8980
    %v9205 = vpack.c.b16 %v8983, %v8982
    %v9206 = vpack.c.b16 %v8985, %v8984
    %v9207 = vpack.c.b16 %v8987, %v8986
    %v9208 = vpack.c.b16 %v8989, %v8988
    %v9209 = vpack.c.b16 %v8991, %v8990
    %v9210 = vpack.c.b16 %v8993, %v8992
    %v9211 = vpack.c.b16 %v8995, %v8994
    %v9212 = vpack.c.b16 %v8997, %v8996
    %v9213 = vpack.c.b16 %v8999, %v8998
    %v9214 = vpack.c.b16 %v9001, %v9000
    %v9215 = vpack.c.b16 %v9003, %v9002
    %v9216 = vpack.c.b16 %v9005, %v9004
    %v9217 = vpack.c.b16 %v9007, %v9006
    %v9218 = vpack.c.b16 %v9009, %v9008
    %v9219 = vpack.c.b16 %v9011, %v9010
    %v9220 = vpack.c.b16 %v9013, %v9012
    %v9221 = vpack.c.b16 %v9015, %v9014
    %v9222 = vpack.c.b16 %v9017, %v9016
    %v9223 = vpack.c.b16 %v9019, %v9018
    %v9224 = vpack.c.b16 %v9021, %v9020
    %v9225 = vpack.c.b16 %v9023, %v9022
    %v9226 = vpack.c.b16 %v9025, %v9024
    %v9227 = vpack.c.b16 %v9027, %v9026
    %v9228 = vpack.c.b16 %v9029, %v9028
    %v9229 = vpack.c.b16 %v9031, %v9030
    %v9230 = vpack.c.b16 %v9033, %v9032
    %v9231 = vpack.c.b16 %v9035, %v9034
    %v9232 = vpack.c.b16 %v9037, %v9036
    %v9233 = vpack.c.b16 %v9039, %v9038
    %v9234 = vpack.c.b16 %v9041, %v9040
    %v9235 = vpack.c.b16 %v9043, %v9042
    %v9236 = vpack.c.b16 %v9045, %v9044
    %v9237 = vpack.c.b16 %v9047, %v9046
    %v9238 = vpack.c.b16 %v9049, %v9048
    %v9239 = vpack.c.b16 %v9051, %v9050
    %v9240 = vpack.c.b16 %v9053, %v9052
    %v9241 = vpack.c.b16 %v9055, %v9054
    %v9242 = vpack.c.b16 %v9057, %v9056
    %v9243 = vpack.c.b16 %v9059, %v9058
    %v9244 = vpack.c.b16 %v9061, %v9060
    %v9245 = vpack.c.b16 %v9063, %v9062
    %v9246 = vpack.c.b16 %v9065, %v9064
    %v9247 = vpack.c.b16 %v9067, %v9066
    %v9248 = vpack.c.b16 %v9069, %v9068
    %v9249 = vpack.c.b16 %v9071, %v9070
    %v9250 = vpack.c.b16 %v9073, %v9072
    %v9251 = vpack.c.b16 %v9075, %v9074
    %v9252 = vpack.c.b16 %v9077, %v9076
    %v9253 = vpack.c.b16 %v9079, %v9078
    %v9254 = vpack.c.b16 %v9081, %v9080
    %v9255 = vpack.c.b16 %v9083, %v9082
    %v9256 = vpack.c.b16 %v9085, %v9084
    %v9257 = vpack.c.b16 %v9087, %v9086
    %v9258 = vpack.c.b16 %v9089, %v9088
    %v9259 = vpack.c.b16 %v9091, %v9090
    %v9260 = vpack.c.b16 %v9093, %v9092
    %v9261 = vpack.c.b16 %v9095, %v9094
    %v9262 = vpack.c.b16 %v9097, %v9096
    %v9263 = vpack.c.b16 %v9099, %v9098
    %v9264 = vpack.c.b16 %v9101, %v9100
    %v9265 = vpack.c.b16 %v9103, %v9102
    %v9266 = vpack.c.b16 %v9105, %v9104
    %v9267 = vpack.c.b16 %v9107, %v9106
    %v9268 = vpack.c.b16 %v9109, %v9108
    %v9269 = vpack.c.b16 %v9111, %v9110
    %v9270 = vpack.c.b16 %v9113, %v9112
    %v9271 = vpack.c.b16 %v9115, %v9114
    %v9272 = vpack.c.b16 %v9117, %v9116
    %v9273 = vpack.c.b16 %v9119, %v9118
    %v9274 = vpack.c.b16 %v9121, %v9120
    %v9275 = vpack.c.b16 %v9123, %v9122
    %v9276 = vpack.c.b16 %v9125, %v9124
    %v9277 = vpack.c.b16 %v9127, %v9126
    %v9278 = vpack.c.b16 %v9129, %v9128
    %v9279 = vpack.c.b16 %v9131, %v9130
    %v9280 = vpack.c.b16 %v9133, %v9132
    %v9281 = vpack.c.b16 %v9135, %v9134
    %v9282 = vpack.c.b16 %v9137, %v9136
    %v9283 = vpack.c.b16 %v9139, %v9138
    %v9284 = vpack.c.b16 %v9141, %v9140
    %v9285 = vpack.c.b16 %v9143, %v9142
    %v9286 = vpack.c.b16 %v9145, %v9144
    %v9287 = vpack.c.b16 %v9147, %v9146
    %v9288 = vpack.c.b16 %v9149, %v9148
    %v9289 = vpack.c.b16 %v9151, %v9150
    %v9290 = vpack.c.b16 %v9153, %v9152
    %v9291 = vpack.c.b16 %v9155, %v9154
    %v9292 = vpack.c.b16 %v9157, %v9156
    %v9293 = vpack.c.b16 %v9159, %v9158
    %v9294 = vpack.c.b16 %v9161, %v9160
    %v9295 = vpack.c.b16 %v9163, %v9162
    %v9296 = vpack.c.b16 %v9165, %v9164
    %v9297 = vpack.c.b16 %v9167, %v9166
    %v9298 = vpack.c.b16 %v9169, %v9168
    %v9299 = vpack.c.b16 %v9171, %v9170
    %9428 = vmatprep.subr.bf16.mxu0 0
    %9429 = vmatpush1.bf16.msra.mxu0 %v9172
    %9430 = vmatprep.subr.bf16.mxu0 0
    %9431 = vmatpush1.bf16.msra.mxu0 %v9173
    %9432 = vmatprep.subr.bf16.mxu0 0
    %9433 = vmatpush1.bf16.msra.mxu0 %v9174
    %9434 = vmatprep.subr.bf16.mxu0 0
    %9435 = vmatpush1.bf16.msra.mxu0 %v9175
    %9436 = vmatprep.subr.bf16.mxu0 0
    %9437 = vmatpush1.bf16.msra.mxu0 %v9176
    %9438 = vmatprep.subr.bf16.mxu0 0
    %9439 = vmatpush1.bf16.msra.mxu0 %v9177
    %9440 = vmatprep.subr.bf16.mxu0 0
    %9441 = vmatpush1.bf16.msra.mxu0 %v9178
    %9442 = vmatprep.subr.bf16.mxu0 0
    %9443 = vmatpush1.bf16.msra.mxu0 %v9179
    %9444 = vmatprep.subr.bf16.mxu0 0
    %9445 = vmatpush1.bf16.msra.mxu0 %v9180
    %9446 = vmatprep.subr.bf16.mxu0 0
    %9447 = vmatpush1.bf16.msra.mxu0 %v9181
    %9448 = vmatprep.subr.bf16.mxu0 0
    %9449 = vmatpush1.bf16.msra.mxu0 %v9182
    %9450 = vmatprep.subr.bf16.mxu0 0
    %9451 = vmatpush1.bf16.msra.mxu0 %v9183
    %9452 = vmatprep.subr.bf16.mxu0 0
    %9453 = vmatpush1.bf16.msra.mxu0 %v9184
    %9454 = vmatprep.subr.bf16.mxu0 0
    %9455 = vmatpush1.bf16.msra.mxu0 %v9185
    %9456 = vmatprep.subr.bf16.mxu0 0
    %9457 = vmatpush1.bf16.msra.mxu0 %v9186
    %9458 = vmatprep.subr.bf16.mxu0 0
    %9459 = vmatpush1.bf16.msra.mxu0 %v9187
    %9460 = vmatprep.mubr.bf16.mxu0 %v8270
    %9461 = vmatmul.mubr.bf16.gmra.mrb[0].mxu0 %v8269
    %v9462 = vpop.f32.mrb[0].mxu0
    %v9463 = vadd.f32 %v8658, %v9462
    %v9464 = vpop.f32.mrb[0].mxu0
    %v9465 = vpop.f32.mrb[0].mxu0
    %v9466 = vadd.f32 %v8658, %v9465
    %v9467 = vpop.f32.mrb[0].mxu0
    %9468 = vmatprep.mubr.bf16.mxu0 %v8286
    %9469 = vmatmul.mubr.bf16.gmra.mrb[0].mxu0 %v8285
    %v9470 = vpop.f32.mrb[0].mxu0
    %v9471 = vadd.f32 %v8658, %v9470
    %v9472 = vpop.f32.mrb[0].mxu0
    %v9473 = vpop.f32.mrb[0].mxu0
    %v9474 = vadd.f32 %v8658, %v9473
    %v9475 = vpop.f32.mrb[0].mxu0
    %9476 = vmatprep.mubr.bf16.mxu0 %v8302
    %9477 = vmatmul.mubr.bf16.gmra.mrb[0].mxu0 %v8301
    %v9478 = vpop.f32.mrb[0].mxu0
    %v9479 = vadd.f32 %v8658, %v9478
    %v9480 = vpop.f32.mrb[0].mxu0
    %v9481 = vpop.f32.mrb[0].mxu0
    %v9482 = vadd.f32 %v8658, %v9481
    %v9483 = vpop.f32.mrb[0].mxu0
    %9484 = vmatprep.mubr.bf16.mxu0 %v8318
    %9485 = vmatmul.mubr.bf16.gmra.mrb[0].mxu0 %v8317
    %v9486 = vpop.f32.mrb[0].mxu0
    %v9487 = vadd.f32 %v8658, %v9486
    %v9488 = vpop.f32.mrb[0].mxu0
    %v9489 = vpop.f32.mrb[0].mxu0
    %v9490 = vadd.f32 %v8658, %v9489
    %v9491 = vpop.f32.mrb[0].mxu0
    %9492 = vmatprep.mubr.bf16.mxu0 %v8334
    %9493 = vmatmul.mubr.bf16.gmra.mrb[0].mxu0 %v8333
    %v9494 = vpop.f32.mrb[0].mxu0
    %v9495 = vadd.f32 %v8658, %v9494
    %v9496 = vpop.f32.mrb[0].mxu0
    %v9497 = vpop.f32.mrb[0].mxu0
    %v9498 = vadd.f32 %v8658, %v9497
    %v9499 = vpop.f32.mrb[0].mxu0
    %9500 = vmatprep.mubr.bf16.mxu0 %v8350
    %9501 = vmatmul.mubr.bf16.gmra.mrb[0].mxu0 %v8349
    %v9502 = vpop.f32.mrb[0].mxu0
    %v9503 = vadd.f32 %v8658, %v9502
    %v9504 = vpop.f32.mrb[0].mxu0
    %v9505 = vpop.f32.mrb[0].mxu0
    %v9506 = vadd.f32 %v8658, %v9505
    %v9507 = vpop.f32.mrb[0].mxu0
    %9508 = vmatprep.mubr.bf16.mxu0 %v8366
    %9509 = vmatmul.mubr.bf16.gmra.mrb[0].mxu0 %v8365
    %v9510 = vpop.f32.mrb[0].mxu0
    %v9511 = vadd.f32 %v8658, %v9510
    %v9512 = vpop.f32.mrb[0].mxu0
    %v9513 = vpop.f32.mrb[0].mxu0
    %v9514 = vadd.f32 %v8658, %v9513
    %v9515 = vpop.f32.mrb[0].mxu0
    %9516 = vmatprep.mubr.bf16.mxu0 %v8382
    %9517 = vmatmul.mubr.bf16.gmra.mrb[0].mxu0 %v8381
    %v9518 = vpop.f32.mrb[0].mxu0
    %v9519 = vadd.f32 %v8658, %v9518
    %v9520 = vpop.f32.mrb[0].mxu0
    %v9521 = vpop.f32.mrb[0].mxu0
    %v9522 = vadd.f32 %v8658, %v9521
    %v9523 = vpop.f32.mrb[0].mxu0
    %9524 = vdwg.mxu0
    %9525 = vmatprep.subr.bf16.mxu0 0
    %9526 = vmatpush1.bf16.msra.mxu0 %v9188
    %9527 = vmatprep.subr.bf16.mxu0 0
    %9528 = vmatpush1.bf16.msra.mxu0 %v9189
    %9529 = vmatprep.subr.bf16.mxu0 0
    %9530 = vmatpush1.bf16.msra.mxu0 %v9190
    %9531 = vmatprep.subr.bf16.mxu0 0
    %9532 = vmatpush1.bf16.msra.mxu0 %v9191
    %9533 = vmatprep.subr.bf16.mxu0 0
    %9534 = vmatpush1.bf16.msra.mxu0 %v9192
    %9535 = vmatprep.subr.bf16.mxu0 0
    %9536 = vmatpush1.bf16.msra.mxu0 %v9193
    %9537 = vmatprep.subr.bf16.mxu0 0
    %9538 = vmatpush1.bf16.msra.mxu0 %v9194
    %9539 = vmatprep.subr.bf16.mxu0 0
    %9540 = vmatpush1.bf16.msra.mxu0 %v9195
    %9541 = vmatprep.subr.bf16.mxu0 0
    %9542 = vmatpush1.bf16.msra.mxu0 %v9196
    %9543 = vmatprep.subr.bf16.mxu0 0
    %9544 = vmatpush1.bf16.msra.mxu0 %v9197
    %9545 = vmatprep.subr.bf16.mxu0 0
    %9546 = vmatpush1.bf16.msra.mxu0 %v9198
    %9547 = vmatprep.subr.bf16.mxu0 0
    %9548 = vmatpush1.bf16.msra.mxu0 %v9199
    %9549 = vmatprep.subr.bf16.mxu0 0
    %9550 = vmatpush1.bf16.msra.mxu0 %v9200
    %9551 = vmatprep.subr.bf16.mxu0 0
    %9552 = vmatpush1.bf16.msra.mxu0 %v9201
    %9553 = vmatprep.subr.bf16.mxu0 0
    %9554 = vmatpush1.bf16.msra.mxu0 %v9202
    %9555 = vmatprep.subr.bf16.mxu0 0
    %9556 = vmatpush1.bf16.msra.mxu0 %v9203
    %9557 = vmatprep.mubr.bf16.mxu0 %v8272
    %9558 = vmatmul.mubr.bf16.gmra.mrb[0].mxu0 %v8271
    %v9559 = vpop.f32.mrb[0].mxu0
    %v9560 = vadd.f32 %v9463, %v9559
    %v9561 = vpop.f32.mrb[0].mxu0
    %v9562 = vpop.f32.mrb[0].mxu0
    %v9563 = vadd.f32 %v9466, %v9562
    %v9564 = vpop.f32.mrb[0].mxu0
    %9565 = vmatprep.mubr.bf16.mxu0 %v8288
    %9566 = vmatmul.mubr.bf16.gmra.mrb[0].mxu0 %v8287
    %v9567 = vpop.f32.mrb[0].mxu0
    %v9568 = vadd.f32 %v9471, %v9567
    %v9569 = vpop.f32.mrb[0].mxu0
    %v9570 = vpop.f32.mrb[0].mxu0
    %v9571 = vadd.f32 %v9474, %v9570
    %v9572 = vpop.f32.mrb[0].mxu0
    %9573 = vmatprep.mubr.bf16.mxu0 %v8304
    %9574 = vmatmul.mubr.bf16.gmra.mrb[0].mxu0 %v8303
    %v9575 = vpop.f32.mrb[0].mxu0
    %v9576 = vadd.f32 %v9479, %v9575
    %v9577 = vpop.f32.mrb[0].mxu0
    %v9578 = vpop.f32.mrb[0].mxu0
    %v9579 = vadd.f32 %v9482, %v9578
    %v9580 = vpop.f32.mrb[0].mxu0
    %9581 = vmatprep.mubr.bf16.mxu0 %v8320
    %9582 = vmatmul.mubr.bf16.gmra.mrb[0].mxu0 %v8319
    %v9583 = vpop.f32.mrb[0].mxu0
    %v9584 = vadd.f32 %v9487, %v9583
    %v9585 = vpop.f32.mrb[0].mxu0
    %v9586 = vpop.f32.mrb[0].mxu0
    %v9587 = vadd.f32 %v9490, %v9586
    %v9588 = vpop.f32.mrb[0].mxu0
    %9589 = vmatprep.mubr.bf16.mxu0 %v8336
    %9590 = vmatmul.mubr.bf16.gmra.mrb[0].mxu0 %v8335
    %v9591 = vpop.f32.mrb[0].mxu0
    %v9592 = vadd.f32 %v9495, %v9591
    %v9593 = vpop.f32.mrb[0].mxu0
    %v9594 = vpop.f32.mrb[0].mxu0
    %v9595 = vadd.f32 %v9498, %v9594
    %v9596 = vpop.f32.mrb[0].mxu0
    %9597 = vmatprep.mubr.bf16.mxu0 %v8352
    %9598 = vmatmul.mubr.bf16.gmra.mrb[0].mxu0 %v8351
    %v9599 = vpop.f32.mrb[0].mxu0
    %v9600 = vadd.f32 %v9503, %v9599
    %v9601 = vpop.f32.mrb[0].mxu0
    %v9602 = vpop.f32.mrb[0].mxu0
    %v9603 = vadd.f32 %v9506, %v9602
    %v9604 = vpop.f32.mrb[0].mxu0
    %9605 = vmatprep.mubr.bf16.mxu0 %v8368
    %9606 = vmatmul.mubr.bf16.gmra.mrb[0].mxu0 %v8367
    %v9607 = vpop.f32.mrb[0].mxu0
    %v9608 = vadd.f32 %v9511, %v9607
    %v9609 = vpop.f32.mrb[0].mxu0
    %v9610 = vpop.f32.mrb[0].mxu0
    %v9611 = vadd.f32 %v9514, %v9610
    %v9612 = vpop.f32.mrb[0].mxu0
    %9613 = vmatprep.mubr.bf16.mxu0 %v8384
    %9614 = vmatmul.mubr.bf16.gmra.mrb[0].mxu0 %v8383
    %v9615 = vpop.f32.mrb[0].mxu0
    %v9616 = vadd.f32 %v9519, %v9615
    %v9617 = vpop.f32.mrb[0].mxu0
    %v9618 = vpop.f32.mrb[0].mxu0
    %v9619 = vadd.f32 %v9522, %v9618
    %v9620 = vpop.f32.mrb[0].mxu0
    %9621 = vdwg.mxu0
    %9622 = vmatprep.subr.bf16.mxu0 0
    %9623 = vmatpush1.bf16.msra.mxu0 %v9204
    %9624 = vmatprep.subr.bf16.mxu0 0
    %9625 = vmatpush1.bf16.msra.mxu0 %v9205
    %9626 = vmatprep.subr.bf16.mxu0 0
    %9627 = vmatpush1.bf16.msra.mxu0 %v9206
    %9628 = vmatprep.subr.bf16.mxu0 0
    %9629 = vmatpush1.bf16.msra.mxu0 %v9207
    %9630 = vmatprep.subr.bf16.mxu0 0
    %9631 = vmatpush1.bf16.msra.mxu0 %v9208
    %9632 = vmatprep.subr.bf16.mxu0 0
    %9633 = vmatpush1.bf16.msra.mxu0 %v9209
    %9634 = vmatprep.subr.bf16.mxu0 0
    %9635 = vmatpush1.bf16.msra.mxu0 %v9210
    %9636 = vmatprep.subr.bf16.mxu0 0
    %9637 = vmatpush1.bf16.msra.mxu0 %v9211
    %9638 = vmatprep.subr.bf16.mxu0 0
    %9639 = vmatpush1.bf16.msra.mxu0 %v9212
    %9640 = vmatprep.subr.bf16.mxu0 0
    %9641 = vmatpush1.bf16.msra.mxu0 %v9213
    %9642 = vmatprep.subr.bf16.mxu0 0
    %9643 = vmatpush1.bf16.msra.mxu0 %v9214
    %9644 = vmatprep.subr.bf16.mxu0 0
    %9645 = vmatpush1.bf16.msra.mxu0 %v9215
    %9646 = vmatprep.subr.bf16.mxu0 0
    %9647 = vmatpush1.bf16.msra.mxu0 %v9216
    %9648 = vmatprep.subr.bf16.mxu0 0
    %9649 = vmatpush1.bf16.msra.mxu0 %v9217
    %9650 = vmatprep.subr.bf16.mxu0 0
    %9651 = vmatpush1.bf16.msra.mxu0 %v9218
    %9652 = vmatprep.subr.bf16.mxu0 0
    %9653 = vmatpush1.bf16.msra.mxu0 %v9219
    %9654 = vmatprep.mubr.bf16.mxu0 %v8274
    %9655 = vmatmul.mubr.bf16.gmra.mrb[0].mxu0 %v8273
    %v9656 = vpop.f32.mrb[0].mxu0
    %v9657 = vadd.f32 %v9560, %v9656
    %v9658 = vpop.f32.mrb[0].mxu0
    %v9659 = vpop.f32.mrb[0].mxu0
    %v9660 = vadd.f32 %v9563, %v9659
    %v9661 = vpop.f32.mrb[0].mxu0
    %9662 = vmatprep.mubr.bf16.mxu0 %v8290
    %9663 = vmatmul.mubr.bf16.gmra.mrb[0].mxu0 %v8289
    %v9664 = vpop.f32.mrb[0].mxu0
    %v9665 = vadd.f32 %v9568, %v9664
    %v9666 = vpop.f32.mrb[0].mxu0
    %v9667 = vpop.f32.mrb[0].mxu0
    %v9668 = vadd.f32 %v9571, %v9667
    %v9669 = vpop.f32.mrb[0].mxu0
    %9670 = vmatprep.mubr.bf16.mxu0 %v8306
    %9671 = vmatmul.mubr.bf16.gmra.mrb[0].mxu0 %v8305
    %v9672 = vpop.f32.mrb[0].mxu0
    %v9673 = vadd.f32 %v9576, %v9672
    %v9674 = vpop.f32.mrb[0].mxu0
    %v9675 = vpop.f32.mrb[0].mxu0
    %v9676 = vadd.f32 %v9579, %v9675
    %v9677 = vpop.f32.mrb[0].mxu0
    %9678 = vmatprep.mubr.bf16.mxu0 %v8322
    %9679 = vmatmul.mubr.bf16.gmra.mrb[0].mxu0 %v8321
    %v9680 = vpop.f32.mrb[0].mxu0
    %v9681 = vadd.f32 %v9584, %v9680
    %v9682 = vpop.f32.mrb[0].mxu0
    %v9683 = vpop.f32.mrb[0].mxu0
    %v9684 = vadd.f32 %v9587, %v9683
    %v9685 = vpop.f32.mrb[0].mxu0
    %9686 = vmatprep.mubr.bf16.mxu0 %v8338
    %9687 = vmatmul.mubr.bf16.gmra.mrb[0].mxu0 %v8337
    %v9688 = vpop.f32.mrb[0].mxu0
    %v9689 = vadd.f32 %v9592, %v9688
    %v9690 = vpop.f32.mrb[0].mxu0
    %v9691 = vpop.f32.mrb[0].mxu0
    %v9692 = vadd.f32 %v9595, %v9691
    %v9693 = vpop.f32.mrb[0].mxu0
    %9694 = vmatprep.mubr.bf16.mxu0 %v8354
    %9695 = vmatmul.mubr.bf16.gmra.mrb[0].mxu0 %v8353
    %v9696 = vpop.f32.mrb[0].mxu0
    %v9697 = vadd.f32 %v9600, %v9696
    %v9698 = vpop.f32.mrb[0].mxu0
    %v9699 = vpop.f32.mrb[0].mxu0
    %v9700 = vadd.f32 %v9603, %v9699
    %v9701 = vpop.f32.mrb[0].mxu0
    %9702 = vmatprep.mubr.bf16.mxu0 %v8370
    %9703 = vmatmul.mubr.bf16.gmra.mrb[0].mxu0 %v8369
    %v9704 = vpop.f32.mrb[0].mxu0
    %v9705 = vadd.f32 %v9608, %v9704
    %v9706 = vpop.f32.mrb[0].mxu0
    %v9707 = vpop.f32.mrb[0].mxu0
    %v9708 = vadd.f32 %v9611, %v9707
    %v9709 = vpop.f32.mrb[0].mxu0
    %9710 = vmatprep.mubr.bf16.mxu0 %v8386
    %9711 = vmatmul.mubr.bf16.gmra.mrb[0].mxu0 %v8385
    %v9712 = vpop.f32.mrb[0].mxu0
    %v9713 = vadd.f32 %v9616, %v9712
    %v9714 = vpop.f32.mrb[0].mxu0
    %v9715 = vpop.f32.mrb[0].mxu0
    %v9716 = vadd.f32 %v9619, %v9715
    %v9717 = vpop.f32.mrb[0].mxu0
    %9718 = vdwg.mxu0
    %9719 = vmatprep.subr.bf16.mxu0 0
    %9720 = vmatpush1.bf16.msra.mxu0 %v9220
    %9721 = vmatprep.subr.bf16.mxu0 0
    %9722 = vmatpush1.bf16.msra.mxu0 %v9221
    %9723 = vmatprep.subr.bf16.mxu0 0
    %9724 = vmatpush1.bf16.msra.mxu0 %v9222
    %9725 = vmatprep.subr.bf16.mxu0 0
    %9726 = vmatpush1.bf16.msra.mxu0 %v9223
    %9727 = vmatprep.subr.bf16.mxu0 0
    %9728 = vmatpush1.bf16.msra.mxu0 %v9224
    %9729 = vmatprep.subr.bf16.mxu0 0
    %9730 = vmatpush1.bf16.msra.mxu0 %v9225
    %9731 = vmatprep.subr.bf16.mxu0 0
    %9732 = vmatpush1.bf16.msra.mxu0 %v9226
    %9733 = vmatprep.subr.bf16.mxu0 0
    %9734 = vmatpush1.bf16.msra.mxu0 %v9227
    %9735 = vmatprep.subr.bf16.mxu0 0
    %9736 = vmatpush1.bf16.msra.mxu0 %v9228
    %9737 = vmatprep.subr.bf16.mxu0 0
    %9738 = vmatpush1.bf16.msra.mxu0 %v9229
    %9739 = vmatprep.subr.bf16.mxu0 0
    %9740 = vmatpush1.bf16.msra.mxu0 %v9230
    %9741 = vmatprep.subr.bf16.mxu0 0
    %9742 = vmatpush1.bf16.msra.mxu0 %v9231
    %9743 = vmatprep.subr.bf16.mxu0 0
    %9744 = vmatpush1.bf16.msra.mxu0 %v9232
    %9745 = vmatprep.subr.bf16.mxu0 0
    %9746 = vmatpush1.bf16.msra.mxu0 %v9233
    %9747 = vmatprep.subr.bf16.mxu0 0
    %9748 = vmatpush1.bf16.msra.mxu0 %v9234
    %9749 = vmatprep.subr.bf16.mxu0 0
    %9750 = vmatpush1.bf16.msra.mxu0 %v9235
    %9751 = vmatprep.mubr.bf16.mxu0 %v8276
    %9752 = vmatmul.mubr.bf16.gmra.mrb[0].mxu0 %v8275
    %v9753 = vpop.f32.mrb[0].mxu0
    %v9754 = vadd.f32 %v9657, %v9753
    %v9755 = vpop.f32.mrb[0].mxu0
    %v9756 = vpop.f32.mrb[0].mxu0
    %v9757 = vadd.f32 %v9660, %v9756
    %v9758 = vpop.f32.mrb[0].mxu0
    %9759 = vmatprep.mubr.bf16.mxu0 %v8292
    %9760 = vmatmul.mubr.bf16.gmra.mrb[0].mxu0 %v8291
    %v9761 = vpop.f32.mrb[0].mxu0
    %v9762 = vadd.f32 %v9665, %v9761
    %v9763 = vpop.f32.mrb[0].mxu0
    %v9764 = vpop.f32.mrb[0].mxu0
    %v9765 = vadd.f32 %v9668, %v9764
    %v9766 = vpop.f32.mrb[0].mxu0
    %9767 = vmatprep.mubr.bf16.mxu0 %v8308
    %9768 = vmatmul.mubr.bf16.gmra.mrb[0].mxu0 %v8307
    %v9769 = vpop.f32.mrb[0].mxu0
    %v9770 = vadd.f32 %v9673, %v9769
    %v9771 = vpop.f32.mrb[0].mxu0
    %v9772 = vpop.f32.mrb[0].mxu0
    %v9773 = vadd.f32 %v9676, %v9772
    %v9774 = vpop.f32.mrb[0].mxu0
    %9775 = vmatprep.mubr.bf16.mxu0 %v8324
    %9776 = vmatmul.mubr.bf16.gmra.mrb[0].mxu0 %v8323
    %v9777 = vpop.f32.mrb[0].mxu0
    %v9778 = vadd.f32 %v9681, %v9777
    %v9779 = vpop.f32.mrb[0].mxu0
    %v9780 = vpop.f32.mrb[0].mxu0
    %v9781 = vadd.f32 %v9684, %v9780
    %v9782 = vpop.f32.mrb[0].mxu0
    %9783 = vmatprep.mubr.bf16.mxu0 %v8340
    %9784 = vmatmul.mubr.bf16.gmra.mrb[0].mxu0 %v8339
    %v9785 = vpop.f32.mrb[0].mxu0
    %v9786 = vadd.f32 %v9689, %v9785
    %v9787 = vpop.f32.mrb[0].mxu0
    %v9788 = vpop.f32.mrb[0].mxu0
    %v9789 = vadd.f32 %v9692, %v9788
    %v9790 = vpop.f32.mrb[0].mxu0
    %9791 = vmatprep.mubr.bf16.mxu0 %v8356
    %9792 = vmatmul.mubr.bf16.gmra.mrb[0].mxu0 %v8355
    %v9793 = vpop.f32.mrb[0].mxu0
    %v9794 = vadd.f32 %v9697, %v9793
    %v9795 = vpop.f32.mrb[0].mxu0
    %v9796 = vpop.f32.mrb[0].mxu0
    %v9797 = vadd.f32 %v9700, %v9796
    %v9798 = vpop.f32.mrb[0].mxu0
    %9799 = vmatprep.mubr.bf16.mxu0 %v8372
    %9800 = vmatmul.mubr.bf16.gmra.mrb[0].mxu0 %v8371
    %v9801 = vpop.f32.mrb[0].mxu0
    %v9802 = vadd.f32 %v9705, %v9801
    %v9803 = vpop.f32.mrb[0].mxu0
    %v9804 = vpop.f32.mrb[0].mxu0
    %v9805 = vadd.f32 %v9708, %v9804
    %v9806 = vpop.f32.mrb[0].mxu0
    %9807 = vmatprep.mubr.bf16.mxu0 %v8388
    %9808 = vmatmul.mubr.bf16.gmra.mrb[0].mxu0 %v8387
    %v9809 = vpop.f32.mrb[0].mxu0
    %v9810 = vadd.f32 %v9713, %v9809
    %v9811 = vpop.f32.mrb[0].mxu0
    %v9812 = vpop.f32.mrb[0].mxu0
    %v9813 = vadd.f32 %v9716, %v9812
    %v9814 = vpop.f32.mrb[0].mxu0
    %9815 = vdwg.mxu0
    %9816 = vmatprep.subr.bf16.mxu0 0
    %9817 = vmatpush1.bf16.msra.mxu0 %v9236
    %9818 = vmatprep.subr.bf16.mxu0 0
    %9819 = vmatpush1.bf16.msra.mxu0 %v9237
    %9820 = vmatprep.subr.bf16.mxu0 0
    %9821 = vmatpush1.bf16.msra.mxu0 %v9238
    %9822 = vmatprep.subr.bf16.mxu0 0
    %9823 = vmatpush1.bf16.msra.mxu0 %v9239
    %9824 = vmatprep.subr.bf16.mxu0 0
    %9825 = vmatpush1.bf16.msra.mxu0 %v9240
    %9826 = vmatprep.subr.bf16.mxu0 0
    %9827 = vmatpush1.bf16.msra.mxu0 %v9241
    %9828 = vmatprep.subr.bf16.mxu0 0
    %9829 = vmatpush1.bf16.msra.mxu0 %v9242
    %9830 = vmatprep.subr.bf16.mxu0 0
    %9831 = vmatpush1.bf16.msra.mxu0 %v9243
    %9832 = vmatprep.subr.bf16.mxu0 0
    %9833 = vmatpush1.bf16.msra.mxu0 %v9244
    %9834 = vmatprep.subr.bf16.mxu0 0
    %9835 = vmatpush1.bf16.msra.mxu0 %v9245
    %9836 = vmatprep.subr.bf16.mxu0 0
    %9837 = vmatpush1.bf16.msra.mxu0 %v9246
    %9838 = vmatprep.subr.bf16.mxu0 0
    %9839 = vmatpush1.bf16.msra.mxu0 %v9247
    %9840 = vmatprep.subr.bf16.mxu0 0
    %9841 = vmatpush1.bf16.msra.mxu0 %v9248
    %9842 = vmatprep.subr.bf16.mxu0 0
    %9843 = vmatpush1.bf16.msra.mxu0 %v9249
    %9844 = vmatprep.subr.bf16.mxu0 0
    %9845 = vmatpush1.bf16.msra.mxu0 %v9250
    %9846 = vmatprep.subr.bf16.mxu0 0
    %9847 = vmatpush1.bf16.msra.mxu0 %v9251
    %9848 = vmatprep.mubr.bf16.mxu0 %v8278
    %9849 = vmatmul.mubr.bf16.gmra.mrb[0].mxu0 %v8277
    %v9850 = vpop.f32.mrb[0].mxu0
    %v9851 = vadd.f32 %v9754, %v9850
    %v9852 = vpop.f32.mrb[0].mxu0
    %v9853 = vpop.f32.mrb[0].mxu0
    %v9854 = vadd.f32 %v9757, %v9853
    %v9855 = vpop.f32.mrb[0].mxu0
    %9856 = vmatprep.mubr.bf16.mxu0 %v8294
    %9857 = vmatmul.mubr.bf16.gmra.mrb[0].mxu0 %v8293
    %v9858 = vpop.f32.mrb[0].mxu0
    %v9859 = vadd.f32 %v9762, %v9858
    %v9860 = vpop.f32.mrb[0].mxu0
    %v9861 = vpop.f32.mrb[0].mxu0
    %v9862 = vadd.f32 %v9765, %v9861
    %v9863 = vpop.f32.mrb[0].mxu0
    %9864 = vmatprep.mubr.bf16.mxu0 %v8310
    %9865 = vmatmul.mubr.bf16.gmra.mrb[0].mxu0 %v8309
    %v9866 = vpop.f32.mrb[0].mxu0
    %v9867 = vadd.f32 %v9770, %v9866
    %v9868 = vpop.f32.mrb[0].mxu0
    %v9869 = vpop.f32.mrb[0].mxu0
    %v9870 = vadd.f32 %v9773, %v9869
    %v9871 = vpop.f32.mrb[0].mxu0
    %9872 = vmatprep.mubr.bf16.mxu0 %v8326
    %9873 = vmatmul.mubr.bf16.gmra.mrb[0].mxu0 %v8325
    %v9874 = vpop.f32.mrb[0].mxu0
    %v9875 = vadd.f32 %v9778, %v9874
    %v9876 = vpop.f32.mrb[0].mxu0
    %v9877 = vpop.f32.mrb[0].mxu0
    %v9878 = vadd.f32 %v9781, %v9877
    %v9879 = vpop.f32.mrb[0].mxu0
    %9880 = vmatprep.mubr.bf16.mxu0 %v8342
    %9881 = vmatmul.mubr.bf16.gmra.mrb[0].mxu0 %v8341
    %v9882 = vpop.f32.mrb[0].mxu0
    %v9883 = vadd.f32 %v9786, %v9882
    %v9884 = vpop.f32.mrb[0].mxu0
    %v9885 = vpop.f32.mrb[0].mxu0
    %v9886 = vadd.f32 %v9789, %v9885
    %v9887 = vpop.f32.mrb[0].mxu0
    %9888 = vmatprep.mubr.bf16.mxu0 %v8358
    %9889 = vmatmul.mubr.bf16.gmra.mrb[0].mxu0 %v8357
    %v9890 = vpop.f32.mrb[0].mxu0
    %v9891 = vadd.f32 %v9794, %v9890
    %v9892 = vpop.f32.mrb[0].mxu0
    %v9893 = vpop.f32.mrb[0].mxu0
    %v9894 = vadd.f32 %v9797, %v9893
    %v9895 = vpop.f32.mrb[0].mxu0
    %9896 = vmatprep.mubr.bf16.mxu0 %v8374
    %9897 = vmatmul.mubr.bf16.gmra.mrb[0].mxu0 %v8373
    %v9898 = vpop.f32.mrb[0].mxu0
    %v9899 = vadd.f32 %v9802, %v9898
    %v9900 = vpop.f32.mrb[0].mxu0
    %v9901 = vpop.f32.mrb[0].mxu0
    %v9902 = vadd.f32 %v9805, %v9901
    %v9903 = vpop.f32.mrb[0].mxu0
    %9904 = vmatprep.mubr.bf16.mxu0 %v8390
    %9905 = vmatmul.mubr.bf16.gmra.mrb[0].mxu0 %v8389
    %v9906 = vpop.f32.mrb[0].mxu0
    %v9907 = vadd.f32 %v9810, %v9906
    %v9908 = vpop.f32.mrb[0].mxu0
    %v9909 = vpop.f32.mrb[0].mxu0
    %v9910 = vadd.f32 %v9813, %v9909
    %v9911 = vpop.f32.mrb[0].mxu0
    %9912 = vdwg.mxu0
    %9913 = vmatprep.subr.bf16.mxu0 0
    %9914 = vmatpush1.bf16.msra.mxu0 %v9252
    %9915 = vmatprep.subr.bf16.mxu0 0
    %9916 = vmatpush1.bf16.msra.mxu0 %v9253
    %9917 = vmatprep.subr.bf16.mxu0 0
    %9918 = vmatpush1.bf16.msra.mxu0 %v9254
    %9919 = vmatprep.subr.bf16.mxu0 0
    %9920 = vmatpush1.bf16.msra.mxu0 %v9255
    %9921 = vmatprep.subr.bf16.mxu0 0
    %9922 = vmatpush1.bf16.msra.mxu0 %v9256
    %9923 = vmatprep.subr.bf16.mxu0 0
    %9924 = vmatpush1.bf16.msra.mxu0 %v9257
    %9925 = vmatprep.subr.bf16.mxu0 0
    %9926 = vmatpush1.bf16.msra.mxu0 %v9258
    %9927 = vmatprep.subr.bf16.mxu0 0
    %9928 = vmatpush1.bf16.msra.mxu0 %v9259
    %9929 = vmatprep.subr.bf16.mxu0 0
    %9930 = vmatpush1.bf16.msra.mxu0 %v9260
    %9931 = vmatprep.subr.bf16.mxu0 0
    %9932 = vmatpush1.bf16.msra.mxu0 %v9261
    %9933 = vmatprep.subr.bf16.mxu0 0
    %9934 = vmatpush1.bf16.msra.mxu0 %v9262
    %9935 = vmatprep.subr.bf16.mxu0 0
    %9936 = vmatpush1.bf16.msra.mxu0 %v9263
    %9937 = vmatprep.subr.bf16.mxu0 0
    %9938 = vmatpush1.bf16.msra.mxu0 %v9264
    %9939 = vmatprep.subr.bf16.mxu0 0
    %9940 = vmatpush1.bf16.msra.mxu0 %v9265
    %9941 = vmatprep.subr.bf16.mxu0 0
    %9942 = vmatpush1.bf16.msra.mxu0 %v9266
    %9943 = vmatprep.subr.bf16.mxu0 0
    %9944 = vmatpush1.bf16.msra.mxu0 %v9267
    %9945 = vmatprep.mubr.bf16.mxu0 %v8280
    %9946 = vmatmul.mubr.bf16.gmra.mrb[0].mxu0 %v8279
    %v9947 = vpop.f32.mrb[0].mxu0
    %v9948 = vadd.f32 %v9851, %v9947
    %v9949 = vpop.f32.mrb[0].mxu0
    %v9950 = vpop.f32.mrb[0].mxu0
    %v9951 = vadd.f32 %v9854, %v9950
    %v9952 = vpop.f32.mrb[0].mxu0
    %9953 = vmatprep.mubr.bf16.mxu0 %v8296
    %9954 = vmatmul.mubr.bf16.gmra.mrb[0].mxu0 %v8295
    %v9955 = vpop.f32.mrb[0].mxu0
    %v9956 = vadd.f32 %v9859, %v9955
    %v9957 = vpop.f32.mrb[0].mxu0
    %v9958 = vpop.f32.mrb[0].mxu0
    %v9959 = vadd.f32 %v9862, %v9958
    %v9960 = vpop.f32.mrb[0].mxu0
    %9961 = vmatprep.mubr.bf16.mxu0 %v8312
    %9962 = vmatmul.mubr.bf16.gmra.mrb[0].mxu0 %v8311
    %v9963 = vpop.f32.mrb[0].mxu0
    %v9964 = vadd.f32 %v9867, %v9963
    %v9965 = vpop.f32.mrb[0].mxu0
    %v9966 = vpop.f32.mrb[0].mxu0
    %v9967 = vadd.f32 %v9870, %v9966
    %v9968 = vpop.f32.mrb[0].mxu0
    %9969 = vmatprep.mubr.bf16.mxu0 %v8328
    %9970 = vmatmul.mubr.bf16.gmra.mrb[0].mxu0 %v8327
    %v9971 = vpop.f32.mrb[0].mxu0
    %v9972 = vadd.f32 %v9875, %v9971
    %v9973 = vpop.f32.mrb[0].mxu0
    %v9974 = vpop.f32.mrb[0].mxu0
    %v9975 = vadd.f32 %v9878, %v9974
    %v9976 = vpop.f32.mrb[0].mxu0
    %9977 = vmatprep.mubr.bf16.mxu0 %v8344
    %9978 = vmatmul.mubr.bf16.gmra.mrb[0].mxu0 %v8343
    %v9979 = vpop.f32.mrb[0].mxu0
    %v9980 = vadd.f32 %v9883, %v9979
    %v9981 = vpop.f32.mrb[0].mxu0
    %v9982 = vpop.f32.mrb[0].mxu0
    %v9983 = vadd.f32 %v9886, %v9982
    %v9984 = vpop.f32.mrb[0].mxu0
    %9985 = vmatprep.mubr.bf16.mxu0 %v8360
    %9986 = vmatmul.mubr.bf16.gmra.mrb[0].mxu0 %v8359
    %v9987 = vpop.f32.mrb[0].mxu0
    %v9988 = vadd.f32 %v9891, %v9987
    %v9989 = vpop.f32.mrb[0].mxu0
    %v9990 = vpop.f32.mrb[0].mxu0
    %v9991 = vadd.f32 %v9894, %v9990
    %v9992 = vpop.f32.mrb[0].mxu0
    %9993 = vmatprep.mubr.bf16.mxu0 %v8376
    %9994 = vmatmul.mubr.bf16.gmra.mrb[0].mxu0 %v8375
    %v9995 = vpop.f32.mrb[0].mxu0
    %v9996 = vadd.f32 %v9899, %v9995
    %v9997 = vpop.f32.mrb[0].mxu0
    %v9998 = vpop.f32.mrb[0].mxu0
    %v9999 = vadd.f32 %v9902, %v9998
    %v10000 = vpop.f32.mrb[0].mxu0
    %10001 = vmatprep.mubr.bf16.mxu0 %v8392
    %10002 = vmatmul.mubr.bf16.gmra.mrb[0].mxu0 %v8391
    %v10003 = vpop.f32.mrb[0].mxu0
    %v10004 = vadd.f32 %v9907, %v10003
    %v10005 = vpop.f32.mrb[0].mxu0
    %v10006 = vpop.f32.mrb[0].mxu0
    %v10007 = vadd.f32 %v9910, %v10006
    %v10008 = vpop.f32.mrb[0].mxu0
    %10009 = vdwg.mxu0
    %10010 = vmatprep.subr.bf16.mxu0 0
    %10011 = vmatpush1.bf16.msra.mxu0 %v9268
    %10012 = vmatprep.subr.bf16.mxu0 0
    %10013 = vmatpush1.bf16.msra.mxu0 %v9269
    %10014 = vmatprep.subr.bf16.mxu0 0
    %10015 = vmatpush1.bf16.msra.mxu0 %v9270
    %10016 = vmatprep.subr.bf16.mxu0 0
    %10017 = vmatpush1.bf16.msra.mxu0 %v9271
    %10018 = vmatprep.subr.bf16.mxu0 0
    %10019 = vmatpush1.bf16.msra.mxu0 %v9272
    %10020 = vmatprep.subr.bf16.mxu0 0
    %10021 = vmatpush1.bf16.msra.mxu0 %v9273
    %10022 = vmatprep.subr.bf16.mxu0 0
    %10023 = vmatpush1.bf16.msra.mxu0 %v9274
    %10024 = vmatprep.subr.bf16.mxu0 0
    %10025 = vmatpush1.bf16.msra.mxu0 %v9275
    %10026 = vmatprep.subr.bf16.mxu0 0
    %10027 = vmatpush1.bf16.msra.mxu0 %v9276
    %10028 = vmatprep.subr.bf16.mxu0 0
    %10029 = vmatpush1.bf16.msra.mxu0 %v9277
    %10030 = vmatprep.subr.bf16.mxu0 0
    %10031 = vmatpush1.bf16.msra.mxu0 %v9278
    %10032 = vmatprep.subr.bf16.mxu0 0
    %10033 = vmatpush1.bf16.msra.mxu0 %v9279
    %10034 = vmatprep.subr.bf16.mxu0 0
    %10035 = vmatpush1.bf16.msra.mxu0 %v9280
    %10036 = vmatprep.subr.bf16.mxu0 0
    %10037 = vmatpush1.bf16.msra.mxu0 %v9281
    %10038 = vmatprep.subr.bf16.mxu0 0
    %10039 = vmatpush1.bf16.msra.mxu0 %v9282
    %10040 = vmatprep.subr.bf16.mxu0 0
    %10041 = vmatpush1.bf16.msra.mxu0 %v9283
    %10042 = vmatprep.mubr.bf16.mxu0 %v8282
    %10043 = vmatmul.mubr.bf16.gmra.mrb[0].mxu0 %v8281
    %v10044 = vpop.f32.mrb[0].mxu0
    %v10045 = vadd.f32 %v9948, %v10044
    %v10046 = vpop.f32.mrb[0].mxu0
    %v10047 = vpop.f32.mrb[0].mxu0
    %v10048 = vadd.f32 %v9951, %v10047
    %v10049 = vpop.f32.mrb[0].mxu0
    %10050 = vmatprep.mubr.bf16.mxu0 %v8298
    %10051 = vmatmul.mubr.bf16.gmra.mrb[0].mxu0 %v8297
    %v10052 = vpop.f32.mrb[0].mxu0
    %v10053 = vadd.f32 %v9956, %v10052
    %v10054 = vpop.f32.mrb[0].mxu0
    %v10055 = vpop.f32.mrb[0].mxu0
    %v10056 = vadd.f32 %v9959, %v10055
    %v10057 = vpop.f32.mrb[0].mxu0
    %10058 = vmatprep.mubr.bf16.mxu0 %v8314
    %10059 = vmatmul.mubr.bf16.gmra.mrb[0].mxu0 %v8313
    %v10060 = vpop.f32.mrb[0].mxu0
    %v10061 = vadd.f32 %v9964, %v10060
    %v10062 = vpop.f32.mrb[0].mxu0
    %v10063 = vpop.f32.mrb[0].mxu0
    %v10064 = vadd.f32 %v9967, %v10063
    %v10065 = vpop.f32.mrb[0].mxu0
    %10066 = vmatprep.mubr.bf16.mxu0 %v8330
    %10067 = vmatmul.mubr.bf16.gmra.mrb[0].mxu0 %v8329
    %v10068 = vpop.f32.mrb[0].mxu0
    %v10069 = vadd.f32 %v9972, %v10068
    %v10070 = vpop.f32.mrb[0].mxu0
    %v10071 = vpop.f32.mrb[0].mxu0
    %v10072 = vadd.f32 %v9975, %v10071
    %v10073 = vpop.f32.mrb[0].mxu0
    %10074 = vmatprep.mubr.bf16.mxu0 %v8346
    %10075 = vmatmul.mubr.bf16.gmra.mrb[0].mxu0 %v8345
    %v10076 = vpop.f32.mrb[0].mxu0
    %v10077 = vadd.f32 %v9980, %v10076
    %v10078 = vpop.f32.mrb[0].mxu0
    %v10079 = vpop.f32.mrb[0].mxu0
    %v10080 = vadd.f32 %v9983, %v10079
    %v10081 = vpop.f32.mrb[0].mxu0
    %10082 = vmatprep.mubr.bf16.mxu0 %v8362
    %10083 = vmatmul.mubr.bf16.gmra.mrb[0].mxu0 %v8361
    %v10084 = vpop.f32.mrb[0].mxu0
    %v10085 = vadd.f32 %v9988, %v10084
    %v10086 = vpop.f32.mrb[0].mxu0
    %v10087 = vpop.f32.mrb[0].mxu0
    %v10088 = vadd.f32 %v9991, %v10087
    %v10089 = vpop.f32.mrb[0].mxu0
    %10090 = vmatprep.mubr.bf16.mxu0 %v8378
    %10091 = vmatmul.mubr.bf16.gmra.mrb[0].mxu0 %v8377
    %v10092 = vpop.f32.mrb[0].mxu0
    %v10093 = vadd.f32 %v9996, %v10092
    %v10094 = vpop.f32.mrb[0].mxu0
    %v10095 = vpop.f32.mrb[0].mxu0
    %v10096 = vadd.f32 %v9999, %v10095
    %v10097 = vpop.f32.mrb[0].mxu0
    %10098 = vmatprep.mubr.bf16.mxu0 %v8394
    %10099 = vmatmul.mubr.bf16.gmra.mrb[0].mxu0 %v8393
    %v10100 = vpop.f32.mrb[0].mxu0
    %v10101 = vadd.f32 %v10004, %v10100
    %v10102 = vpop.f32.mrb[0].mxu0
    %v10103 = vpop.f32.mrb[0].mxu0
    %v10104 = vadd.f32 %v10007, %v10103
    %v10105 = vpop.f32.mrb[0].mxu0
    %10106 = vdwg.mxu0
    %10107 = vmatprep.subr.bf16.mxu0 0
    %10108 = vmatpush1.bf16.msra.mxu0 %v9284
    %10109 = vmatprep.subr.bf16.mxu0 0
    %10110 = vmatpush1.bf16.msra.mxu0 %v9285
    %10111 = vmatprep.subr.bf16.mxu0 0
    %10112 = vmatpush1.bf16.msra.mxu0 %v9286
    %10113 = vmatprep.subr.bf16.mxu0 0
    %10114 = vmatpush1.bf16.msra.mxu0 %v9287
    %10115 = vmatprep.subr.bf16.mxu0 0
    %10116 = vmatpush1.bf16.msra.mxu0 %v9288
    %10117 = vmatprep.subr.bf16.mxu0 0
    %10118 = vmatpush1.bf16.msra.mxu0 %v9289
    %10119 = vmatprep.subr.bf16.mxu0 0
    %10120 = vmatpush1.bf16.msra.mxu0 %v9290
    %10121 = vmatprep.subr.bf16.mxu0 0
    %10122 = vmatpush1.bf16.msra.mxu0 %v9291
    %10123 = vmatprep.subr.bf16.mxu0 0
    %10124 = vmatpush1.bf16.msra.mxu0 %v9292
    %10125 = vmatprep.subr.bf16.mxu0 0
    %10126 = vmatpush1.bf16.msra.mxu0 %v9293
    %10127 = vmatprep.subr.bf16.mxu0 0
    %10128 = vmatpush1.bf16.msra.mxu0 %v9294
    %10129 = vmatprep.subr.bf16.mxu0 0
    %10130 = vmatpush1.bf16.msra.mxu0 %v9295
    %10131 = vmatprep.subr.bf16.mxu0 0
    %10132 = vmatpush1.bf16.msra.mxu0 %v9296
    %10133 = vmatprep.subr.bf16.mxu0 0
    %10134 = vmatpush1.bf16.msra.mxu0 %v9297
    %10135 = vmatprep.subr.bf16.mxu0 0
    %10136 = vmatpush1.bf16.msra.mxu0 %v9298
    %10137 = vmatprep.subr.bf16.mxu0 0
    %10138 = vmatpush1.bf16.msra.mxu0 %v9299
    %10139 = vmatprep.mubr.bf16.mxu0 %v8284
    %10140 = vmatmul.mubr.bf16.gmra.mrb[0].mxu0 %v8283
    %v10141 = vpop.f32.mrb[0].mxu0
    %v10142 = vadd.f32 %v10045, %v10141
    %v10143 = vpop.f32.mrb[0].mxu0
    %v10144 = vpop.f32.mrb[0].mxu0
    %v10145 = vadd.f32 %v10048, %v10144
    %v10146 = vpop.f32.mrb[0].mxu0
    %10147 = vmatprep.mubr.bf16.mxu0 %v8300
    %10148 = vmatmul.mubr.bf16.gmra.mrb[0].mxu0 %v8299
    %v10149 = vpop.f32.mrb[0].mxu0
    %v10150 = vadd.f32 %v10053, %v10149
    %v10151 = vpop.f32.mrb[0].mxu0
    %v10152 = vpop.f32.mrb[0].mxu0
    %v10153 = vadd.f32 %v10056, %v10152
    %v10154 = vpop.f32.mrb[0].mxu0
    %10155 = vmatprep.mubr.bf16.mxu0 %v8316
    %10156 = vmatmul.mubr.bf16.gmra.mrb[0].mxu0 %v8315
    %v10157 = vpop.f32.mrb[0].mxu0
    %v10158 = vadd.f32 %v10061, %v10157
    %v10159 = vpop.f32.mrb[0].mxu0
    %v10160 = vpop.f32.mrb[0].mxu0
    %v10161 = vadd.f32 %v10064, %v10160
    %v10162 = vpop.f32.mrb[0].mxu0
    %10163 = vmatprep.mubr.bf16.mxu0 %v8332
    %10164 = vmatmul.mubr.bf16.gmra.mrb[0].mxu0 %v8331
    %v10165 = vpop.f32.mrb[0].mxu0
    %v10166 = vadd.f32 %v10069, %v10165
    %v10167 = vpop.f32.mrb[0].mxu0
    %v10168 = vpop.f32.mrb[0].mxu0
    %v10169 = vadd.f32 %v10072, %v10168
    %v10170 = vpop.f32.mrb[0].mxu0
    %10171 = vmatprep.mubr.bf16.mxu0 %v8348
    %10172 = vmatmul.mubr.bf16.gmra.mrb[0].mxu0 %v8347
    %v10173 = vpop.f32.mrb[0].mxu0
    %v10174 = vadd.f32 %v10077, %v10173
    %v10175 = vpop.f32.mrb[0].mxu0
    %v10176 = vpop.f32.mrb[0].mxu0
    %v10177 = vadd.f32 %v10080, %v10176
    %v10178 = vpop.f32.mrb[0].mxu0
    %10179 = vmatprep.mubr.bf16.mxu0 %v8364
    %10180 = vmatmul.mubr.bf16.gmra.mrb[0].mxu0 %v8363
    %v10181 = vpop.f32.mrb[0].mxu0
    %v10182 = vadd.f32 %v10085, %v10181
    %v10183 = vpop.f32.mrb[0].mxu0
    %v10184 = vpop.f32.mrb[0].mxu0
    %v10185 = vadd.f32 %v10088, %v10184
    %v10186 = vpop.f32.mrb[0].mxu0
    %10187 = vmatprep.mubr.bf16.mxu0 %v8380
    %10188 = vmatmul.mubr.bf16.gmra.mrb[0].mxu0 %v8379
    %v10189 = vpop.f32.mrb[0].mxu0
    %v10190 = vadd.f32 %v10093, %v10189
    %v10191 = vpop.f32.mrb[0].mxu0
    %v10192 = vpop.f32.mrb[0].mxu0
    %v10193 = vadd.f32 %v10096, %v10192
    %v10194 = vpop.f32.mrb[0].mxu0
    %10195 = vmatprep.mubr.bf16.mxu0 %v8396
    %10196 = vmatmul.mubr.bf16.gmra.mrb[0].mxu0 %v8395
    %v10197 = vpop.f32.mrb[0].mxu0
    %v10198 = vadd.f32 %v10101, %v10197
    %v10199 = vpop.f32.mrb[0].mxu0
    %v10200 = vpop.f32.mrb[0].mxu0
    %v10201 = vadd.f32 %v10104, %v10200
    %v10202 = vpop.f32.mrb[0].mxu0
    %10203 = vdwg.mxu0
    %v10204 = vadd.f32 %v6593, %v10142
    %v10205 = vadd.f32 %v6594, %v10145
    %v10206 = vadd.f32 %v6595, %v10150
    %v10207 = vadd.f32 %v6596, %v10153
    %v10208 = vadd.f32 %v6597, %v10158
    %v10209 = vadd.f32 %v6598, %v10161
    %v10210 = vadd.f32 %v6599, %v10166
    %v10211 = vadd.f32 %v6600, %v10169
    %v10212 = vadd.f32 %v6601, %v10174
    %v10213 = vadd.f32 %v6602, %v10177
    %v10214 = vadd.f32 %v6603, %v10182
    %v10215 = vadd.f32 %v6604, %v10185
    %v10216 = vadd.f32 %v6605, %v10190
    %v10217 = vadd.f32 %v6606, %v10193
    %v10218 = vadd.f32 %v6607, %v10198
    %v10219 = vadd.f32 %v6608, %v10201
    %v10220 = vsel %vm351, %v10204, 0.0
    %10221 = vadd.xlane.f32.xlu0 %v10220
    %v10222 = vpop.xlane.xlu0 %10221
    %v10223 = vsel %vm351, %v10205, 0.0
    %10224 = vadd.xlane.f32.xlu0 %v10223
    %v10225 = vpop.xlane.xlu0 %10224
    %v10226 = vsel %vm351, %v10206, 0.0
    %10227 = vadd.xlane.f32.xlu0 %v10226
    %v10228 = vpop.xlane.xlu0 %10227
    %v10229 = vsel %vm351, %v10207, 0.0
    %10230 = vadd.xlane.f32.xlu0 %v10229
    %v10231 = vpop.xlane.xlu0 %10230
    %v10232 = vsel %vm351, %v10208, 0.0
    %10233 = vadd.xlane.f32.xlu0 %v10232
    %v10234 = vpop.xlane.xlu0 %10233
    %v10235 = vsel %vm351, %v10209, 0.0
    %10236 = vadd.xlane.f32.xlu0 %v10235
    %v10237 = vpop.xlane.xlu0 %10236
    %v10238 = vsel %vm351, %v10210, 0.0
    %10239 = vadd.xlane.f32.xlu0 %v10238
    %v10240 = vpop.xlane.xlu0 %10239
    %v10241 = vsel %vm351, %v10211, 0.0
    %10242 = vadd.xlane.f32.xlu0 %v10241
    %v10243 = vpop.xlane.xlu0 %10242
    %v10244 = vsel %vm351, %v10212, 0.0
    %10245 = vadd.xlane.f32.xlu0 %v10244
    %v10246 = vpop.xlane.xlu0 %10245
    %v10247 = vsel %vm351, %v10213, 0.0
    %10248 = vadd.xlane.f32.xlu0 %v10247
    %v10249 = vpop.xlane.xlu0 %10248
    %v10250 = vsel %vm351, %v10214, 0.0
    %10251 = vadd.xlane.f32.xlu0 %v10250
    %v10252 = vpop.xlane.xlu0 %10251
    %v10253 = vsel %vm351, %v10215, 0.0
    %10254 = vadd.xlane.f32.xlu0 %v10253
    %v10255 = vpop.xlane.xlu0 %10254
    %v10256 = vsel %vm351, %v10216, 0.0
    %10257 = vadd.xlane.f32.xlu0 %v10256
    %v10258 = vpop.xlane.xlu0 %10257
    %v10259 = vsel %vm351, %v10217, 0.0
    %10260 = vadd.xlane.f32.xlu0 %v10259
    %v10261 = vpop.xlane.xlu0 %10260
    %v10262 = vsel %vm351, %v10218, 0.0
    %10263 = vadd.xlane.f32.xlu0 %v10262
    %v10264 = vpop.xlane.xlu0 %10263
    %v10265 = vsel %vm351, %v10219, 0.0
    %10266 = vadd.xlane.f32.xlu0 %v10265
    %v10267 = vpop.xlane.xlu0 %10266
    %v10268 = vmul.f32 %v10222, %v6402
    %v10269 = vmul.f32 %v10225, %v6402
    %v10270 = vmul.f32 %v10228, %v6402
    %v10271 = vmul.f32 %v10231, %v6402
    %v10272 = vmul.f32 %v10234, %v6402
    %v10273 = vmul.f32 %v10237, %v6402
    %v10274 = vmul.f32 %v10240, %v6402
    %v10275 = vmul.f32 %v10243, %v6402
    %v10276 = vmul.f32 %v10246, %v6402
    %v10277 = vmul.f32 %v10249, %v6402
    %v10278 = vmul.f32 %v10252, %v6402
    %v10279 = vmul.f32 %v10255, %v6402
    %v10280 = vmul.f32 %v10258, %v6402
    %v10281 = vmul.f32 %v10261, %v6402
    %v10282 = vmul.f32 %v10264, %v6402
    %v10283 = vmul.f32 %v10267, %v6402
    %v10284 = vsub.f32 %v10204, %v10268
    %v10285 = vsub.f32 %v10205, %v10269
    %v10286 = vsub.f32 %v10206, %v10270
    %v10287 = vsub.f32 %v10207, %v10271
    %v10288 = vsub.f32 %v10208, %v10272
    %v10289 = vsub.f32 %v10209, %v10273
    %v10290 = vsub.f32 %v10210, %v10274
    %v10291 = vsub.f32 %v10211, %v10275
    %v10292 = vsub.f32 %v10212, %v10276
    %v10293 = vsub.f32 %v10213, %v10277
    %v10294 = vsub.f32 %v10214, %v10278
    %v10295 = vsub.f32 %v10215, %v10279
    %v10296 = vsub.f32 %v10216, %v10280
    %v10297 = vsub.f32 %v10217, %v10281
    %v10298 = vsub.f32 %v10218, %v10282
    %v10299 = vsub.f32 %v10219, %v10283
    %v10300 = vmul.f32 %v10284, %v10284
    %v10301 = vmul.f32 %v10285, %v10285
    %v10302 = vmul.f32 %v10286, %v10286
    %v10303 = vmul.f32 %v10287, %v10287
    %v10304 = vmul.f32 %v10288, %v10288
    %v10305 = vmul.f32 %v10289, %v10289
    %v10306 = vmul.f32 %v10290, %v10290
    %v10307 = vmul.f32 %v10291, %v10291
    %v10308 = vmul.f32 %v10292, %v10292
    %v10309 = vmul.f32 %v10293, %v10293
    %v10310 = vmul.f32 %v10294, %v10294
    %v10311 = vmul.f32 %v10295, %v10295
    %v10312 = vmul.f32 %v10296, %v10296
    %v10313 = vmul.f32 %v10297, %v10297
    %v10314 = vmul.f32 %v10298, %v10298
    %v10315 = vmul.f32 %v10299, %v10299
    %v10316 = vsel %vm351, %v10300, 0.0
    %10317 = vadd.xlane.f32.xlu0 %v10316
    %v10318 = vpop.xlane.xlu0 %10317
    %v10319 = vsel %vm351, %v10301, 0.0
    %10320 = vadd.xlane.f32.xlu0 %v10319
    %v10321 = vpop.xlane.xlu0 %10320
    %v10322 = vsel %vm351, %v10302, 0.0
    %10323 = vadd.xlane.f32.xlu0 %v10322
    %v10324 = vpop.xlane.xlu0 %10323
    %v10325 = vsel %vm351, %v10303, 0.0
    %10326 = vadd.xlane.f32.xlu0 %v10325
    %v10327 = vpop.xlane.xlu0 %10326
    %v10328 = vsel %vm351, %v10304, 0.0
    %10329 = vadd.xlane.f32.xlu0 %v10328
    %v10330 = vpop.xlane.xlu0 %10329
    %v10331 = vsel %vm351, %v10305, 0.0
    %10332 = vadd.xlane.f32.xlu0 %v10331
    %v10333 = vpop.xlane.xlu0 %10332
    %v10334 = vsel %vm351, %v10306, 0.0
    %10335 = vadd.xlane.f32.xlu0 %v10334
    %v10336 = vpop.xlane.xlu0 %10335
    %v10337 = vsel %vm351, %v10307, 0.0
    %10338 = vadd.xlane.f32.xlu0 %v10337
    %v10339 = vpop.xlane.xlu0 %10338
    %v10340 = vsel %vm351, %v10308, 0.0
    %10341 = vadd.xlane.f32.xlu0 %v10340
    %v10342 = vpop.xlane.xlu0 %10341
    %v10343 = vsel %vm351, %v10309, 0.0
    %10344 = vadd.xlane.f32.xlu0 %v10343
    %v10345 = vpop.xlane.xlu0 %10344
    %v10346 = vsel %vm351, %v10310, 0.0
    %10347 = vadd.xlane.f32.xlu0 %v10346
    %v10348 = vpop.xlane.xlu0 %10347
    %v10349 = vsel %vm351, %v10311, 0.0
    %10350 = vadd.xlane.f32.xlu0 %v10349
    %v10351 = vpop.xlane.xlu0 %10350
    %v10352 = vsel %vm351, %v10312, 0.0
    %10353 = vadd.xlane.f32.xlu0 %v10352
    %v10354 = vpop.xlane.xlu0 %10353
    %v10355 = vsel %vm351, %v10313, 0.0
    %10356 = vadd.xlane.f32.xlu0 %v10355
    %v10357 = vpop.xlane.xlu0 %10356
    %v10358 = vsel %vm351, %v10314, 0.0
    %10359 = vadd.xlane.f32.xlu0 %v10358
    %v10360 = vpop.xlane.xlu0 %10359
    %v10361 = vsel %vm351, %v10315, 0.0
    %10362 = vadd.xlane.f32.xlu0 %v10361
    %v10363 = vpop.xlane.xlu0 %10362
    %v10364 = vmul.f32 %v10318, %v6402
    %v10365 = vmul.f32 %v10321, %v6402
    %v10366 = vmul.f32 %v10324, %v6402
    %v10367 = vmul.f32 %v10327, %v6402
    %v10368 = vmul.f32 %v10330, %v6402
    %v10369 = vmul.f32 %v10333, %v6402
    %v10370 = vmul.f32 %v10336, %v6402
    %v10371 = vmul.f32 %v10339, %v6402
    %v10372 = vmul.f32 %v10342, %v6402
    %v10373 = vmul.f32 %v10345, %v6402
    %v10374 = vmul.f32 %v10348, %v6402
    %v10375 = vmul.f32 %v10351, %v6402
    %v10376 = vmul.f32 %v10354, %v6402
    %v10377 = vmul.f32 %v10357, %v6402
    %v10378 = vmul.f32 %v10360, %v6402
    %v10379 = vmul.f32 %v10363, %v6402
    %v10380 = vadd.f32 %v10364, 1e-05
    %v10381 = vadd.f32 %v10365, 1e-05
    %v10382 = vadd.f32 %v10366, 1e-05
    %v10383 = vadd.f32 %v10367, 1e-05
    %v10384 = vadd.f32 %v10368, 1e-05
    %v10385 = vadd.f32 %v10369, 1e-05
    %v10386 = vadd.f32 %v10370, 1e-05
    %v10387 = vadd.f32 %v10371, 1e-05
    %v10388 = vadd.f32 %v10372, 1e-05
    %v10389 = vadd.f32 %v10373, 1e-05
    %v10390 = vadd.f32 %v10374, 1e-05
    %v10391 = vadd.f32 %v10375, 1e-05
    %v10392 = vadd.f32 %v10376, 1e-05
    %v10393 = vadd.f32 %v10377, 1e-05
    %v10394 = vadd.f32 %v10378, 1e-05
    %v10395 = vadd.f32 %v10379, 1e-05
    %v10396 = vrsqrt.pop %v10380
    %v10397 = vrsqrt.pop %v10381
    %v10398 = vrsqrt.pop %v10382
    %v10399 = vrsqrt.pop %v10383
    %v10400 = vrsqrt.pop %v10384
    %v10401 = vrsqrt.pop %v10385
    %v10402 = vrsqrt.pop %v10386
    %v10403 = vrsqrt.pop %v10387
    %v10404 = vrsqrt.pop %v10388
    %v10405 = vrsqrt.pop %v10389
    %v10406 = vrsqrt.pop %v10390
    %v10407 = vrsqrt.pop %v10391
    %v10408 = vrsqrt.pop %v10392
    %v10409 = vrsqrt.pop %v10393
    %v10410 = vrsqrt.pop %v10394
    %v10411 = vrsqrt.pop %v10395
    %v10412 = vmul.f32 %v10284, %v10396
    %v10413 = vmul.f32 %v10285, %v10397
    %v10414 = vmul.f32 %v10286, %v10398
    %v10415 = vmul.f32 %v10287, %v10399
    %v10416 = vmul.f32 %v10288, %v10400
    %v10417 = vmul.f32 %v10289, %v10401
    %v10418 = vmul.f32 %v10290, %v10402
    %v10419 = vmul.f32 %v10291, %v10403
    %v10420 = vmul.f32 %v10292, %v10404
    %v10421 = vmul.f32 %v10293, %v10405
    %v10422 = vmul.f32 %v10294, %v10406
    %v10423 = vmul.f32 %v10295, %v10407
    %v10424 = vmul.f32 %v10296, %v10408
    %v10425 = vmul.f32 %v10297, %v10409
    %v10426 = vmul.f32 %v10298, %v10410
    %v10427 = vmul.f32 %v10299, %v10411
    %v10428 = vld [vmem:[%s17] sm:$0x1]
    %v10430 = vlaneseq
    %v10431 = vshrl.u32 %v10430, 7
    %v10432 = vsub.s32 0, %v10431
    %v10433 = vrot.slane %v10428, %v10432
    %v10435 = vmul.f32 %v10412, %v10433
    %v10436 = vmul.f32 %v10413, %v10433
    %v10437 = vmul.f32 %v10414, %v10433
    %v10438 = vmul.f32 %v10415, %v10433
    %v10439 = vmul.f32 %v10416, %v10433
    %v10440 = vmul.f32 %v10417, %v10433
    %v10441 = vmul.f32 %v10418, %v10433
    %v10442 = vmul.f32 %v10419, %v10433
    %v10443 = vmul.f32 %v10420, %v10433
    %v10444 = vmul.f32 %v10421, %v10433
    %v10445 = vmul.f32 %v10422, %v10433
    %v10446 = vmul.f32 %v10423, %v10433
    %v10447 = vmul.f32 %v10424, %v10433
    %v10448 = vmul.f32 %v10425, %v10433
    %v10449 = vmul.f32 %v10426, %v10433
    %v10450 = vmul.f32 %v10427, %v10433
    %v10451 = vld [vmem:[%s18] sm:$0x1]
    %v10453 = vlaneseq
    %v10454 = vshrl.u32 %v10453, 7
    %v10455 = vsub.s32 0, %v10454
    %v10456 = vrot.slane %v10451, %v10455
    %v10458 = vadd.f32 %v10435, %v10456
    %v10459 = vadd.f32 %v10436, %v10456
    %v10460 = vadd.f32 %v10437, %v10456
    %v10461 = vadd.f32 %v10438, %v10456
    %v10462 = vadd.f32 %v10439, %v10456
    %v10463 = vadd.f32 %v10440, %v10456
    %v10464 = vadd.f32 %v10441, %v10456
    %v10465 = vadd.f32 %v10442, %v10456
    %v10466 = vadd.f32 %v10443, %v10456
    %v10467 = vadd.f32 %v10444, %v10456
    %v10468 = vadd.f32 %v10445, %v10456
    %v10469 = vadd.f32 %v10446, %v10456
    %v10470 = vadd.f32 %v10447, %v10456
    %v10471 = vadd.f32 %v10448, %v10456
    %v10472 = vadd.f32 %v10449, %v10456
    %v10473 = vadd.f32 %v10450, %v10456
    %v10474 = vsel %vm351, %v10458, 0.0
    %v10475 = vsel %vm351, %v10459, 0.0
    %v10476 = vadd.f32 %v10474, %v10475
    %v10477 = vrot.slane %v10476, 4
    %v10478 = vadd.f32 %v10476, %v10477
    %v10479 = vrot.slane %v10478, 2
    %v10480 = vadd.f32 %v10478, %v10479
    %v10481 = vrot.slane %v10480, 1
    %v10482 = vadd.f32 %v10480, %v10481
    %v10483 = vsel %vm351, %v10460, 0.0
    %v10484 = vsel %vm351, %v10461, 0.0
    %v10485 = vadd.f32 %v10483, %v10484
    %v10486 = vrot.slane %v10485, 4
    %v10487 = vadd.f32 %v10485, %v10486
    %v10488 = vrot.slane %v10487, 2
    %v10489 = vadd.f32 %v10487, %v10488
    %v10490 = vrot.slane %v10489, 1
    %v10491 = vadd.f32 %v10489, %v10490
    %v10492 = vsel %vm351, %v10462, 0.0
    %v10493 = vsel %vm351, %v10463, 0.0
    %v10494 = vadd.f32 %v10492, %v10493
    %v10495 = vrot.slane %v10494, 4
    %v10496 = vadd.f32 %v10494, %v10495
    %v10497 = vrot.slane %v10496, 2
    %v10498 = vadd.f32 %v10496, %v10497
    %v10499 = vrot.slane %v10498, 1
    %v10500 = vadd.f32 %v10498, %v10499
    %v10501 = vsel %vm351, %v10464, 0.0
    %v10502 = vsel %vm351, %v10465, 0.0
    %v10503 = vadd.f32 %v10501, %v10502
    %v10504 = vrot.slane %v10503, 4
    %v10505 = vadd.f32 %v10503, %v10504
    %v10506 = vrot.slane %v10505, 2
    %v10507 = vadd.f32 %v10505, %v10506
    %v10508 = vrot.slane %v10507, 1
    %v10509 = vadd.f32 %v10507, %v10508
    %v10510 = vsel %vm351, %v10466, 0.0
    %v10511 = vsel %vm351, %v10467, 0.0
    %v10512 = vadd.f32 %v10510, %v10511
    %v10513 = vrot.slane %v10512, 4
    %v10514 = vadd.f32 %v10512, %v10513
    %v10515 = vrot.slane %v10514, 2
    %v10516 = vadd.f32 %v10514, %v10515
    %v10517 = vrot.slane %v10516, 1
    %v10518 = vadd.f32 %v10516, %v10517
    %v10519 = vsel %vm351, %v10468, 0.0
    %v10520 = vsel %vm351, %v10469, 0.0
    %v10521 = vadd.f32 %v10519, %v10520
    %v10522 = vrot.slane %v10521, 4
    %v10523 = vadd.f32 %v10521, %v10522
    %v10524 = vrot.slane %v10523, 2
    %v10525 = vadd.f32 %v10523, %v10524
    %v10526 = vrot.slane %v10525, 1
    %v10527 = vadd.f32 %v10525, %v10526
    %v10528 = vsel %vm351, %v10470, 0.0
    %v10529 = vsel %vm351, %v10471, 0.0
    %v10530 = vadd.f32 %v10528, %v10529
    %v10531 = vrot.slane %v10530, 4
    %v10532 = vadd.f32 %v10530, %v10531
    %v10533 = vrot.slane %v10532, 2
    %v10534 = vadd.f32 %v10532, %v10533
    %v10535 = vrot.slane %v10534, 1
    %v10536 = vadd.f32 %v10534, %v10535
    %v10537 = vsel %vm351, %v10472, 0.0
    %v10538 = vsel %vm351, %v10473, 0.0
    %v10539 = vadd.f32 %v10537, %v10538
    %v10540 = vrot.slane %v10539, 4
    %v10541 = vadd.f32 %v10539, %v10540
    %v10542 = vrot.slane %v10541, 2
    %v10543 = vadd.f32 %v10541, %v10542
    %v10544 = vrot.slane %v10543, 1
    %v10545 = vadd.f32 %v10543, %v10544
    %v10546 = vrcp.pop 16.0
    %v10547 = vmul.f32 %v10482, %v10546
    %v10548 = vmul.f32 %v10491, %v10546
    %v10549 = vmul.f32 %v10500, %v10546
    %v10550 = vmul.f32 %v10509, %v10546
    %v10551 = vmul.f32 %v10518, %v10546
    %v10552 = vmul.f32 %v10527, %v10546
    %v10553 = vmul.f32 %v10536, %v10546
    %v10554 = vmul.f32 %v10545, %v10546
    %v10555 = vld [vmem:[%s19] sm:$0xff]
    %v10556 = vld [vmem:[%s19 + $0x8] sm:$0xff]
    %v10557 = vld [vmem:[%s19 + $0x10] sm:$0xff]
    %v10558 = vld [vmem:[%s19 + $0x18] sm:$0xff]
    %v10559 = vld [vmem:[%s19 + $0x20] sm:$0xff]
    %v10560 = vld [vmem:[%s19 + $0x28] sm:$0xff]
    %v10561 = vld [vmem:[%s19 + $0x30] sm:$0xff]
    %v10562 = vld [vmem:[%s19 + $0x38] sm:$0xff]
    %v10563 = vld [vmem:[%s20] sm:$0x1]
    %v10565 = vlaneseq
    %v10566 = vshrl.u32 %v10565, 7
    %v10567 = vsub.s32 0, %v10566
    %v10568 = vrot.slane %v10563, %v10567
    %vm10578 = vcmask 1041409
    %v10579 = vsel %vm10578, %v10548, %v10547
    %vm10580 = vcmask 1042434
    %v10581 = vsel %vm10580, %v10549, %v10579
    %vm10582 = vcmask 1043459
    %v10583 = vsel %vm10582, %v10550, %v10581
    %vm10584 = vcmask 1044484
    %v10585 = vsel %vm10584, %v10551, %v10583
    %vm10586 = vcmask 1045509
    %v10587 = vsel %vm10586, %v10552, %v10585
    %vm10588 = vcmask 1046534
    %v10589 = vsel %vm10588, %v10553, %v10587
    %vm10590 = vcmask 1047559
    %v10591 = vsel %vm10590, %v10554, %v10589
    %v10592 = vsel %vm351, %v10591, 0
    %10594 = vmatprep.subr.mxu0 0.0
    %10595 = vmatpush1.msra.mxu0 %v10555
    %10596 = vmatprep.subr.mxu0 0.0
    %10597 = vmatpush1.msra.mxu0 %v10556
    %10598 = vmatprep.subr.mxu0 0.0
    %10599 = vmatpush1.msra.mxu0 %v10557
    %10600 = vmatprep.subr.mxu0 0.0
    %10601 = vmatpush1.msra.mxu0 %v10558
    %10602 = vmatprep.subr.mxu0 0.0
    %10603 = vmatpush1.msra.mxu0 %v10559
    %10604 = vmatprep.subr.mxu0 0.0
    %10605 = vmatpush1.msra.mxu0 %v10560
    %10606 = vmatprep.subr.mxu0 0.0
    %10607 = vmatpush1.msra.mxu0 %v10561
    %10608 = vmatprep.subr.mxu0 0.0
    %10609 = vmatpush1.msra.mxu0 %v10562
    %10610 = vmatprep.subr.mxu0 0.0
    %10611 = vmatpush1.msra.mxu0 0.0
    %10612 = vmatprep.subr.mxu0 0.0
    %10613 = vmatpush1.msra.mxu0 0.0
    %10614 = vmatprep.subr.mxu0 0.0
    %10615 = vmatpush1.msra.mxu0 0.0
    %10616 = vmatprep.subr.mxu0 0.0
    %10617 = vmatpush1.msra.mxu0 0.0
    %10618 = vmatprep.subr.mxu0 0.0
    %10619 = vmatpush1.msra.mxu0 0.0
    %10620 = vmatprep.subr.mxu0 0.0
    %10621 = vmatpush1.msra.mxu0 0.0
    %10622 = vmatprep.subr.mxu0 0.0
    %10623 = vmatpush1.msra.mxu0 0.0
    %10624 = vmatprep.subr.mxu0 0.0
    %10625 = vmatpush1.msra.mxu0 0.0
    %10626 = vmatprep.subr.mxu0 0.0
    %10627 = vmatpush1.msra.mxu0 0.0
    %10628 = vmatprep.subr.mxu0 0.0
    %10629 = vmatpush1.msra.mxu0 0.0
    %10630 = vmatprep.subr.mxu0 0.0
    %10631 = vmatpush1.msra.mxu0 0.0
    %10632 = vmatprep.subr.mxu0 0.0
    %10633 = vmatpush1.msra.mxu0 0.0
    %10634 = vmatprep.subr.mxu0 0.0
    %10635 = vmatpush1.msra.mxu0 0.0
    %10636 = vmatprep.subr.mxu0 0.0
    %10637 = vmatpush1.msra.mxu0 0.0
    %10638 = vmatprep.subr.mxu0 0.0
    %10639 = vmatpush1.msra.mxu0 0.0
    %10640 = vmatprep.subr.mxu0 0.0
    %10641 = vmatpush1.msra.mxu0 0.0
    %10642 = vmatprep.subr.mxu0 0.0
    %10643 = vmatpush1.msra.mxu0 0.0
    %10644 = vmatprep.subr.mxu0 0.0
    %10645 = vmatpush1.msra.mxu0 0.0
    %10646 = vmatprep.subr.mxu0 0.0
    %10647 = vmatpush1.msra.mxu0 0.0
    %10648 = vmatprep.subr.mxu0 0.0
    %10649 = vmatpush1.msra.mxu0 0.0
    %10650 = vmatprep.subr.mxu0 0.0
    %10651 = vmatpush1.msra.mxu0 0.0
    %10652 = vmatprep.subr.mxu0 0.0
    %10653 = vmatpush1.msra.mxu0 0.0
    %10654 = vmatprep.subr.mxu0 0.0
    %10655 = vmatpush1.msra.mxu0 0.0
    %10656 = vmatprep.subr.mxu0 0.0
    %10657 = vmatpush1.msra.mxu0 0.0
    %10658 = vmatprep.mubr.f32.mxu0 0.0
    %10659 = vmatmul.mubr.f32.gmra.mrb[0].mxu0 %v10592
    %v10660 = vpop.f32.mrb[0].mxu0
    %v10661 = vadd.f32 %v10568, %v10660
    %v10662 = vpop.f32.mrb[0].mxu0
    %10663 = vdwg.mxu0
    %10664 = vst [vmem:[#allocation2] sm:$0xff] %v10661
    // Predicated region
    $region86: #{tpu_custom_call.1} parent=1 // pred_check
      _
    $region87: #{tpu_custom_call.1} parent=1 // pred_check_branch
      %10666 = sbr.rel (0) target = $region89
    $region88: #{tpu_custom_call.1} parent=1 // pred_region
      %s10668 = ssub.s32 128, 128
      %10669 = vsyncadd [#allocation3], %s10668
      %s10671 = sshll.u32 [#allocation2], 4
      %s10672 = int_to_ptr.vmem [resolvable:$true] %s10671
      %10674 = dma.vmem_to_hbm [thread:$0]  %s10672, 128, %s21, [#allocation3]
    $region89: #{tpu_custom_call.1} parent=1 // pred_fallthru
      _
    // Predicated region
    $region90: #{tpu_custom_call.1} parent=1 // pred_check
      _
    $region91: #{tpu_custom_call.1} parent=1 // pred_check_branch
      %10676 = sbr.rel (0) target = $region93
    $region92: #{tpu_custom_call.1} parent=1 // pred_region
      %10677 = dma.done [#allocation3], 128
    $region93: #{tpu_custom_call.1} parent=1 // pred_fallthru
      _
    %10678 = vsyncpa [#allocation3], 1

</llo_original>
